<compile_context>
chip_gen: v7x
topology: tpu7x:2x2x1
jax: 0.10.0
libtpu: 0.0.40
codegen_flags: <defaults>
</compile_context>

<pallas_src>
import numpy as np
import jax
import jax.numpy as jnp
from jax import lax
from jax.experimental import pallas as pl
from jax.experimental.pallas import tpu as pltpu

EPSILON = float(np.finfo(np.float32).eps)

# ---------------- small-model configuration (consistent with Model semantics) ----------------
N_FFT = 64
HOP = 16
WIN = 64
FDRC = 0.5
NUM_FREQS = N_FFT // 2 + 1              # 33
FREQ_CUTOFFS = [8, 16]
SB_CENTER = [1, 2, 4]
SB_NEIGH = [3, 3, 3]
FB_CENTER = [1, 2, 4]
FB_NEIGH = [3, 3, 3]
FB_HIDDEN = 32
SB_HIDDEN = 32
NUM_LAYERS = 2

TP = 4          # timesteps packed per lane-dense output store (4*H = 128 lanes)

# =============================== Pallas kernel ===============================
# Fused 2-layer LSTM recurrence for GPS independent weight groups per grid step.
#   gx1  : [G, Tt, Bp, 4H] bf16   precomputed x @ W_ih1 + b1 (input projection hoisted out)
#   whh1 : [G, H, 4H]  bf16       layer-1 recurrent weights
#   w2   : [G, 2H, 4H] bf16       stacked [W_ih2 ; W_hh2] -> one fused layer-2 matmul
#   b2   : [G, 1, 4H]  f32
#   out  : [G, Tt/4, Bp, 4H] f32  layer-2 hidden history, 4 timesteps packed along lanes
# Grid = (G // GPS, num_time_chunks); h/c state lives in VMEM scratch across time chunks.


def _fused_lstm2_kernel(gx1_ref, whh1_ref, w2_ref, b2_ref, out_ref, state_ref):
    GPS, TC, Bp, G4 = gx1_ref.shape
    H = G4 // 4
    nb = TC // TP

    # init per-group state (h1|c1|h2|c2 packed along lanes) at the first time chunk
    @pl.when(pl.program_id(1) == 0)
    def _():
        state_ref[...] = jnp.zeros_like(state_ref)

    # Single-transcendental gate activation (PyTorch gate order i, f, g, o):
    #   tanh lanes [2H,3H): act = tanh(g)
    #   sigmoid lanes:      act = 0.5*tanh(g/2) + 0.5
    lane = lax.broadcasted_iota(jnp.int32, (Bp, G4), 1)
    tanh_mask = (lane >= 2 * H) & (lane < 3 * H)
    sc = jnp.where(tanh_mask, 1.0, 0.5).astype(jnp.float32)    # hoisted out of the time loop
    off = jnp.where(tanh_mask, 0.0, 0.5).astype(jnp.float32)

    def cell(gates, c_prev):
        th = jnp.tanh(gates * sc)            # one tanh over the whole [Bp, 4H] vreg
        act = th * sc + off
        i = act[:, 0:H]
        f = act[:, H:2 * H]
        g = act[:, 2 * H:3 * H]
        o = act[:, 3 * H:4 * H]
        c = f * c_prev + i * g
        h = o * jnp.tanh(c)
        return h, c

    # per-group weights loaded once (loop-invariant vregs)
    whh1 = [whh1_ref[g] for g in range(GPS)]
    w2 = [w2_ref[g] for g in range(GPS)]
    b2 = [jnp.broadcast_to(b2_ref[g], (Bp, G4)) for g in range(GPS)]

    init = []
    for g in range(GPS):
        st = state_ref[g]
        init.append((st[:, 0:H], st[:, H:2 * H], st[:, 2 * H:3 * H], st[:, 3 * H:4 * H]))

    def block_step(tb, carry):
        new_carry = []
        for g in range(GPS):                 # static loop: GPS independent chains interleave
            h1, c1, h2, c2 = carry[g]
            packed = []
            for s in range(TP):              # static inner unroll of 4 timesteps
                t = tb * TP + s
                g1 = gx1_ref[g, t].astype(jnp.float32) + jnp.dot(
                    h1.astype(whh1[g].dtype), whh1[g],
                    preferred_element_type=jnp.float32)
                h1, c1 = cell(g1, c1)
                # fused layer-2 matmul: [h1 | h2] @ [W_ih2 ; W_hh2]
                h12 = jnp.concatenate([h1, h2], axis=-1).astype(w2[g].dtype)
                g2 = jnp.dot(h12, w2[g], preferred_element_type=jnp.float32) + b2[g]
                h2, c2 = cell(g2, c2)
                packed.append(h2)
            # lane-dense store: 4 timesteps -> one [Bp, 128] unmasked store
            out_ref[g, tb] = jnp.concatenate(packed, axis=-1)
            new_carry.append((h1, c1, h2, c2))
        return tuple(new_carry)

    unroll = True if nb <= 8 else 2          # partial unroll; full unroll only for short chunks
    final = lax.fori_loop(0, nb, block_step, tuple(init), unroll=unroll)

    # write state back for the next time chunk
    for g in range(GPS):
        h1, c1, h2, c2 = final[g]
        state_ref[g] = jnp.concatenate([h1, c1, h2, c2], axis=-1)


def _choose_time_tiling(T):
    """Pad T to a multiple of TP and pick a time-chunk size that bounds VMEM for long T."""
    t4 = -(-T // TP) * TP
    if t4 <= 128:
        return t4, t4
    t_chunk = 128
    t_total = -(-t4 // t_chunk) * t_chunk
    return t_total, t_chunk


def fused_lstm2(gx1, whh1, w2, b2, *, groups_per_block, t_chunk):
    """gx1: [G, Tt, Bp, 4H] (bf16) -> layer-2 hidden history [G, Tt, Bp, H] (f32)."""
    G, T_total, Bp, G4 = gx1.shape
    H = G4 // 4
    GPS = groups_per_block
    assert G % GPS == 0 and T_total % t_chunk == 0 and t_chunk % TP == 0
    nb_total = T_total // TP
    num_chunks = T_total // t_chunk

    out = pl.pallas_call(
        _fused_lstm2_kernel,
        out_shape=jax.ShapeDtypeStruct((G, nb_total, Bp, G4), jnp.float32),
        grid=(G // GPS, num_chunks),
        in_specs=[
            pl.BlockSpec((GPS, t_chunk, Bp, G4), lambda g, c: (g, c, 0, 0)),
            pl.BlockSpec((GPS, H, G4), lambda g, c: (g, 0, 0)),
            pl.BlockSpec((GPS, 2 * H, G4), lambda g, c: (g, 0, 0)),
            pl.BlockSpec((GPS, 1, G4), lambda g, c: (g, 0, 0)),
        ],
        out_specs=pl.BlockSpec((GPS, t_chunk // TP, Bp, G4), lambda g, c: (g, c, 0, 0)),
        scratch_shapes=[pltpu.VMEM((GPS, Bp, G4), jnp.float32)],   # h1|c1|h2|c2 per group
        compiler_params=pltpu.CompilerParams(
            dimension_semantics=("parallel", "arbitrary"),
            vmem_limit_bytes=32 * 1024 * 1024,
        ),
    )(gx1, whh1, w2, b2)

    # undo the 4-timestep lane packing: [G, nb, Bp, 4H] -> [G, Tt, Bp, H]
    h2 = out.reshape(G, nb_total, Bp, TP, H)
    h2 = jnp.transpose(h2, (0, 1, 3, 2, 4)).reshape(G, T_total, Bp, H)
    return h2


def _stack_recurrent_weights(lstm_param_groups):
    """Each group: [(w_ih1, w_hh1, b1), (w_ih2, w_hh2, b2)] -> stacked kernel weights."""
    whh1 = jnp.stack([g[0][1] for g in lstm_param_groups]).astype(jnp.bfloat16)
    w2 = jnp.stack([jnp.concatenate([g[1][0], g[1][1]], axis=0)
                    for g in lstm_param_groups]).astype(jnp.bfloat16)    # [2H, 4H]
    b2 = jnp.stack([g[1][2] for g in lstm_param_groups])
    return whh1, w2, b2

# =============================== sequence models ===============================


def fullband_forward(fb_in, lstm_params, fc_w, fc_b):
    """fb_in: [B, F, T] -> [B, out, T]  (2-layer LSTM + Linear, no output activation)."""
    B, F, T = fb_in.shape
    T_total, t_chunk = _choose_time_tiling(T)
    Bp = max(8, -(-B // 8) * 8)
    x = jnp.transpose(fb_in, (2, 0, 1))                        # [T, B, F]
    w_ih1, _, b1 = lstm_params[0]
    gx1 = jnp.einsum('tbf,fg->tbg', x, w_ih1) + b1             # hoisted input projection
    gx1 = jnp.pad(gx1, ((0, T_total - T), (0, Bp - B), (0, 0))).astype(jnp.bfloat16)
    whh1, w2, b2 = _stack_recurrent_weights([lstm_params])
    h2 = fused_lstm2(gx1[None], whh1, w2, b2, groups_per_block=1, t_chunk=t_chunk)[0]
    h2 = h2[:T, :B]                                            # [T, B, H]
    o = jnp.einsum('tbh,ho->tbo', h2, fc_w) + fc_b             # FC fused by XLA
    return jnp.transpose(o, (1, 2, 0))                         # [B, out, T]


def _section_bounds(idx, num_freqs):
    n = len(SB_CENTER)
    if idx == 0:
        return 0, FREQ_CUTOFFS[0]
    if idx == n - 1:
        return FREQ_CUTOFFS[-1], num_freqs
    return FREQ_CUTOFFS[idx - 1], FREQ_CUTOFFS[idx]


def freq_unfold(x, lower, upper, num_center, num_neighbor):
    """x: [B, 1, F, T] -> [B, num_units, 1, width, T] (static unfold along freq)."""
    B, C, F, T = x.shape
    if lower == 0:
        valid = x[:, :, 0:upper + num_neighbor, :]
        valid = jnp.pad(valid, ((0, 0), (0, 0), (num_neighbor, 0), (0, 0)), mode='reflect')
    elif upper == F:
        valid = x[:, :, lower - num_neighbor:F, :]
        valid = jnp.pad(valid, ((0, 0), (0, 0), (0, num_neighbor), (0, 0)), mode='reflect')
    else:
        valid = x[:, :, lower - num_neighbor:upper + num_neighbor, :]
    width = num_center + 2 * num_neighbor
    num_units = (upper - lower) // num_center
    units = [valid[:, :, u * num_center:u * num_center + width, :] for u in range(num_units)]
    return jnp.stack(units, axis=1)                            # [B, U, 1, width, T]


def subband_forward(noisy_input, fb_output, sb_params):
    """noisy_input / fb_output: [B, 1, F, T] -> cRM [B, 2, F, T].

    All subband sections run in ONE pallas_call. The finest section (most units) is split
    into two groups so every group carries the same number of independent streams (no
    zero-padding waste), and groups are interleaved inside the kernel.
    """
    B, _, F, T = noisy_input.shape
    n_sections = len(SB_CENTER)

    # unfold + reference offline Laplace norm (mean over all non-batch dims, per section)
    section_inputs = []
    for idx in range(n_sections):
        lower, upper = _section_bounds(idx, F)
        noisy_sb = freq_unfold(noisy_input, lower, upper, SB_CENTER[idx], SB_NEIGH[idx])
        fb_sb = freq_unfold(fb_output, lower, upper, FB_CENTER[idx], FB_NEIGH[idx])
        sb_in = jnp.concatenate([noisy_sb, fb_sb], axis=-2)    # [B, U, 1, W, T]
        mu = jnp.mean(sb_in, axis=(1, 2, 3, 4), keepdims=True)
        sb_in = sb_in / (mu + EPSILON)
        section_inputs.append(sb_in[:, :, 0])                  # [B, U, W, T]

    # build groups; split section 0 (largest U) along its unit axis if possible
    groups = []   # (section_idx, u_start, x_group [B, Ug, W, T])
    u0 = section_inputs[0].shape[1]
    if u0 >= 2 and u0 % 2 == 0:
        groups.append((0, 0, section_inputs[0][:, :u0 // 2]))
        groups.append((0, u0 // 2, section_inputs[0][:, u0 // 2:]))
    else:
        groups.append((0, 0, section_inputs[0]))
    for idx in range(1, n_sections):
        groups.append((idx, 0, section_inputs[idx]))

    G = len(groups)
    gps = 2 if G % 2 == 0 else G          # 2 -> balanced v7x megacore; interleave on 1-TC chips
    n_streams = [B * g[2].shape[1] for g in groups]
    Bp = max(8, -(-max(n_streams) // 8) * 8)
    T_total, t_chunk = _choose_time_tiling(T)

    gx_list = []
    for (sec, _, x_g) in groups:
        Bn, U, W, _ = x_g.shape
        x = jnp.transpose(x_g.reshape(Bn * U, W, T), (2, 0, 1))     # [T, n, W]
        w_ih1, _, b1 = sb_params[sec][0][0]
        gx1 = jnp.einsum('tnw,wg->tng', x, w_ih1) + b1              # hoisted projection
        gx1 = jnp.pad(gx1, ((0, T_total - T), (0, Bp - gx1.shape[1]), (0, 0)))
        gx_list.append(gx1.astype(jnp.bfloat16))                    # bf16 DMA stream
    gx_all = jnp.stack(gx_list)                                     # [G, Tt, Bp, 4H]

    lstm_groups = [sb_params[sec][0] for (sec, _, _) in groups]
    whh1, w2, b2 = _stack_recurrent_weights(lstm_groups)
    h2_all = fused_lstm2(gx_all, whh1, w2, b2,
                         groups_per_block=gps, t_chunk=t_chunk)     # [G, Tt, Bp, H]

    # FC + reassemble per section (split halves re-joined along the unit axis)
    per_section = [[] for _ in range(n_sections)]
    for gi, (sec, u_start, _) in enumerate(groups):
        n = n_streams[gi]
        _, fc_w, fc_b = sb_params[sec]
        h2 = h2_all[gi, :T, :n, :]                                  # [T, n, H]
        o = jnp.einsum('tnh,ho->tno', h2, fc_w) + fc_b              # [T, n, 2*center]
        o = jnp.transpose(o, (1, 2, 0))                             # [n, 2*center, T]
        U = n // B
        o = o.reshape(B, U, 2, SB_CENTER[sec], T)
        per_section[sec].append((u_start, o))

    outputs = []
    for sec in range(n_sections):
        parts = [o for _, o in sorted(per_section[sec], key=lambda p: p[0])]
        o = jnp.concatenate(parts, axis=1) if len(parts) > 1 else parts[0]
        Utot = o.shape[1]
        o = jnp.transpose(o, (0, 2, 1, 3, 4)).reshape(B, 2, Utot * SB_CENTER[sec], T)
        outputs.append(o)
    return jnp.concatenate(outputs, axis=2)                         # [B, 2, F, T]

# =============================== STFT / iSTFT (vectorized JAX) ===============================


def hann_window(n):
    # torch.hann_window default: periodic=True
    return 0.5 * (1.0 - jnp.cos(2.0 * jnp.pi * jnp.arange(n, dtype=jnp.float32) / n))


def stft(y, n_fft, hop, window):
    # TODO(synk): FFT has no Pallas primitive; jnp.fft.rfft matches torch.stft
    #             (center=True, reflect pad, onesided). Framing via a single gather.
    B, N = y.shape
    pad = n_fft // 2
    y_pad = jnp.pad(y, ((0, 0), (pad, pad)), mode='reflect')
    n_frames = 1 + (y_pad.shape[1] - n_fft) // hop
    idx = jnp.arange(n_frames)[:, None] * hop + jnp.arange(n_fft)[None, :]
    frames = y_pad[:, idx] * window[None, None, :]            # [B, T, n_fft]
    spec = jnp.fft.rfft(frames, n=n_fft, axis=-1)             # [B, T, F]
    return jnp.transpose(spec, (0, 2, 1))                     # [B, F, T]


def istft(spec, n_fft, hop, window, length):
    # TODO(synk): inverse FFT + overlap-add in plain JAX (single scatter-add, matches torch.istft).
    B, F, T = spec.shape
    frames = jnp.fft.irfft(jnp.transpose(spec, (0, 2, 1)), n=n_fft, axis=-1)  # [B, T, n_fft]
    frames = frames * window[None, None, :]
    out_len = n_fft + hop * (T - 1)
    idx = (jnp.arange(T)[:, None] * hop + jnp.arange(n_fft)[None, :]).reshape(-1)
    y = jnp.zeros((B, out_len), jnp.float32).at[:, idx].add(frames.reshape(B, -1))
    wsum = jnp.zeros((out_len,), jnp.float32).at[idx].add(jnp.tile(window ** 2, T))
    pad = n_fft // 2
    y = y[:, pad:pad + length]
    wsum = wsum[pad:pad + length]
    return y / jnp.where(wsum > 1e-11, wsum, 1.0)

# =============================== full model ===============================


def model_forward(y, params):
    """y: [B, N] waveform -> enhanced [B, 1, N]."""
    B, N = y.shape
    window = hann_window(WIN)
    spec = stft(y, N_FFT, HOP, window)                        # [B, F, T] complex
    spec_real = jnp.stack([spec.real, spec.imag], axis=1)     # [B, 2, F, T]
    noisy_mag = jnp.abs(spec)[:, None, :, :] ** FDRC          # [B, 1, F, T]
    noisy_mag = noisy_mag[:, :, :-1, :]                       # [B, 1, F-1, T]

    # offline Laplace norm (mean over all non-batch dims), fused by XLA
    mu = jnp.mean(noisy_mag, axis=(1, 2, 3), keepdims=True)
    fb_in = (noisy_mag / (mu + EPSILON))[:, 0]                # [B, F-1, T]
    fb_out = fullband_forward(fb_in, params['fb_lstm'],
                              params['fb_fc_w'], params['fb_fc_b'])  # [B, F-1, T]
    fb_out = fb_out[:, None, :, :]                            # [B, 1, F-1, T]

    cRM = subband_forward(noisy_mag, fb_out, params['sb'])    # [B, 2, F-1, T]
    cRM = jnp.pad(cRM, ((0, 0), (0, 0), (0, 1), (0, 0)))      # [B, 2, F, T]

    # cRM applied as element-wise real products (matches reference: cRM * view_as_real(stft))
    enhanced = cRM * spec_real
    enhanced_complex = enhanced[:, 0] + 1j * enhanced[:, 1]   # [B, F, T]
    enhanced_y = istft(enhanced_complex, N_FFT, HOP, window, length=N)
    return enhanced_y[:, None, :]                             # [B, 1, N]

# =============================== deterministic parameter init ===============================


def init_lstm_stack(key, input_size, hidden, num_layers):
    # TODO(synk): single bias b per layer == (b_ih + b_hh) when porting real PyTorch weights.
    params = []
    scale = 1.0 / np.sqrt(hidden)
    for l in range(num_layers):
        isz = input_size if l == 0 else hidden
        key, k1, k2, k3 = jax.random.split(key, 4)
        w_ih = jax.random.uniform(k1, (isz, 4 * hidden), jnp.float32, -scale, scale)
        w_hh = jax.random.uniform(k2, (hidden, 4 * hidden), jnp.float32, -scale, scale)
        b = jax.random.uniform(k3, (1, 4 * hidden), jnp.float32, -scale, scale)
        params.append((w_ih, w_hh, b))
    return key, params


def init_linear_params(key, in_f, out_f):
    key, k1, k2 = jax.random.split(key, 3)
    scale = 1.0 / np.sqrt(in_f)
    w = jax.random.uniform(k1, (in_f, out_f), jnp.float32, -scale, scale)
    b = jax.random.uniform(k2, (1, out_f), jnp.float32, -scale, scale)
    return key, w, b


def init_params(key):
    params = {}
    F = NUM_FREQS - 1
    key, fb_lstm = init_lstm_stack(key, F, FB_HIDDEN, NUM_LAYERS)
    key, fb_w, fb_b = init_linear_params(key, FB_HIDDEN, F)
    params['fb_lstm'] = fb_lstm
    params['fb_fc_w'] = fb_w
    params['fb_fc_b'] = fb_b
    sb = []
    for idx in range(len(SB_CENTER)):
        in_sz = (SB_CENTER[idx] + 2 * SB_NEIGH[idx]) + (FB_CENTER[idx] + 2 * FB_NEIGH[idx])
        out_sz = SB_CENTER[idx] * 2
        key, lstm_p = init_lstm_stack(key, in_sz, SB_HIDDEN, NUM_LAYERS)
        key, w, b = init_linear_params(key, SB_HIDDEN, out_sz)
        sb.append((lstm_p, w, b))
    params['sb'] = sb
    return params


if __name__ == "__main__":
    key = jax.random.PRNGKey(0)
    k_param, k_data = jax.random.split(key)
    params = init_params(k_param)

    B = 2
    N_SAMPLES = 128          # -> 9 STFT frames with hop=16, center=True
    y = jax.random.normal(k_data, (B, N_SAMPLES), dtype=jnp.float32)

    fwd = jax.jit(model_forward)
    out = fwd(y, params)
    out = jax.block_until_ready(out)
    assert out.shape == (B, 1, N_SAMPLES), out.shape
    assert jnp.all(jnp.isfinite(out))
    print("KERNEL_OK")
</pallas_src>

<mosaic_0001>
module attributes {stable_mosaic.version = 11 : i64} {
  func.func private @main(%arg0: i32) attributes {dimension_semantics = [#tpu.dimension_semantics<core_parallel>], iteration_bounds = array<i64: 2>, tpu.core_type = #tpu.core_type<sc_scalar_subcore>, window_params = []} {
    return
  }
}

module attributes {stable_mosaic.version = 11 : i64} {
  func.func private @main(%arg0: i32) attributes {dimension_semantics = [#tpu.dimension_semantics<core_parallel>], iteration_bounds = array<i64: 2>, tpu.core_type = #tpu.core_type<sc_scalar_subcore>, window_params = []} {
    return
  }
}

module attributes {stable_mosaic.version = 11 : i64} {
  func.func @_fused_lstm2_kernel(%arg0: i32, %arg1: i32, %arg2: memref<1x12x8x128xbf16, #tpu.memory_space<vmem>>, %arg3: memref<1x32x128xbf16, #tpu.memory_space<vmem>>, %arg4: memref<1x64x128xbf16, #tpu.memory_space<vmem>>, %arg5: memref<1x1x128xf32, #tpu.memory_space<vmem>>, %arg6: memref<1x3x8x128xf32, #tpu.memory_space<vmem>>, %arg7: memref<1x8x128xf32, #tpu.memory_space<vmem>>) attributes {dimension_semantics = [#tpu.dimension_semantics<parallel>, #tpu.dimension_semantics<arbitrary>], iteration_bounds = array<i64: 1, 1>, scalar_prefetch = 0 : i64, scratch_operands = 1 : i64, tpu.core_type = #tpu.core_type<tc>, window_params = [{transform_indices = @transform_0, window_bounds = array<i64: 1, 12, 8, 128>}, {transform_indices = @transform_1, window_bounds = array<i64: 1, 32, 128>}, {transform_indices = @transform_2, window_bounds = array<i64: 1, 64, 128>}, {transform_indices = @transform_3, window_bounds = array<i64: 1, 1, 128>}, {transform_indices = @transform_4, window_bounds = array<i64: 1, 3, 8, 128>}]} {
    %c0_i32 = arith.constant 0 : i32
    %0 = arith.cmpi eq, %arg1, %c0_i32 : i32
    %1 = arith.extui %0 : i1 to i32
    %c0_i32_0 = arith.constant 0 : i32
    %2 = arith.cmpi ne, %1, %c0_i32_0 : i32
    scf.if %2 {
      %cst_111 = arith.constant 0.000000e+00 : f32
      %516 = vector.broadcast %cst_111 : f32 to vector<1x8x128xf32>
      %c0_112 = arith.constant 0 : index
      %c0_113 = arith.constant 0 : index
      %c0_114 = arith.constant 0 : index
      %517 = vector.load %arg7[%c0_112, %c0_113, %c0_114] : memref<1x8x128xf32, #tpu.memory_space<vmem>>, vector<1x8x128xf32>
      tpu.vector_store %arg7[%c0_112, %c0_113, %c0_114], %516 {strides = array<i32>} : memref<1x8x128xf32, #tpu.memory_space<vmem>>, vector<1x8x128xf32>,
    } else {
    }
    %3 = tpu.iota {dimensions = array<i32: 1>} : vector<8x128xi32>
    %c64_i32 = arith.constant 64 : i32
    %4 = vector.broadcast %c64_i32 : i32 to vector<8x128xi32>
    %5 = arith.cmpi sge, %3, %4 : vector<8x128xi32>
    %c96_i32 = arith.constant 96 : i32
    %6 = vector.broadcast %c96_i32 : i32 to vector<8x128xi32>
    %7 = arith.cmpi slt, %3, %6 : vector<8x128xi32>
    %8 = arith.andi %5, %7 : vector<8x128xi1>
    %cst = arith.constant 1.000000e+00 : f32
    %cst_1 = arith.constant 5.000000e-01 : f32
    %9 = vector.broadcast %cst : f32 to vector<8x128xf32>
    %10 = vector.broadcast %cst_1 : f32 to vector<8x128xf32>
    %11 = arith.select %8, %9, %10 : vector<8x128xi1>, vector<8x128xf32>
    %cst_2 = arith.constant 0.000000e+00 : f32
    %cst_3 = arith.constant 5.000000e-01 : f32
    %12 = vector.broadcast %cst_2 : f32 to vector<8x128xf32>
    %13 = vector.broadcast %cst_3 : f32 to vector<8x128xf32>
    %14 = arith.select %8, %12, %13 : vector<8x128xi1>, vector<8x128xf32>
    %c0 = arith.constant 0 : index
    %c0_4 = arith.constant 0 : index
    %c0_5 = arith.constant 0 : index
    %15 = vector.load %arg3[%c0, %c0_4, %c0_5] : memref<1x32x128xbf16, #tpu.memory_space<vmem>>, vector<1x32x128xbf16>
    %16 = vector.shape_cast %15 : vector<1x32x128xbf16> to vector<32x128xbf16>
    %c0_6 = arith.constant 0 : index
    %c0_7 = arith.constant 0 : index
    %c0_8 = arith.constant 0 : index
    %17 = vector.load %arg4[%c0_6, %c0_7, %c0_8] : memref<1x64x128xbf16, #tpu.memory_space<vmem>>, vector<1x64x128xbf16>
    %18 = vector.shape_cast %17 : vector<1x64x128xbf16> to vector<64x128xbf16>
    %c0_9 = arith.constant 0 : index
    %c0_10 = arith.constant 0 : index
    %c0_11 = arith.constant 0 : index
    %19 = vector.load %arg5[%c0_9, %c0_10, %c0_11] : memref<1x1x128xf32, #tpu.memory_space<vmem>>, vector<1x1x128xf32>
    %20 = vector.shape_cast %19 : vector<1x1x128xf32> to vector<1x128xf32>
    %21 = vector.shape_cast %20 : vector<1x128xf32> to vector<1x128xf32>
    %22 = vector.broadcast %21 : vector<1x128xf32> to vector<8x128xf32>
    %c0_12 = arith.constant 0 : index
    %c0_13 = arith.constant 0 : index
    %c0_14 = arith.constant 0 : index
    %23 = vector.load %arg7[%c0_12, %c0_13, %c0_14] : memref<1x8x128xf32, #tpu.memory_space<vmem>>, vector<1x8x128xf32>
    %24 = vector.shape_cast %23 : vector<1x8x128xf32> to vector<8x128xf32>
    %25 = vector.extract_strided_slice %24 {offsets = [0, 0], sizes = [8, 32], strides = [1, 1]} : vector<8x128xf32> to vector<8x32xf32>
    %26 = vector.extract_strided_slice %24 {offsets = [0, 32], sizes = [8, 32], strides = [1, 1]} : vector<8x128xf32> to vector<8x32xf32>
    %27 = vector.extract_strided_slice %24 {offsets = [0, 64], sizes = [8, 32], strides = [1, 1]} : vector<8x128xf32> to vector<8x32xf32>
    %28 = vector.extract_strided_slice %24 {offsets = [0, 96], sizes = [8, 32], strides = [1, 1]} : vector<8x128xf32> to vector<8x32xf32>
    %c0_i32_15 = arith.constant 0 : i32
    %c4_i32 = arith.constant 4 : i32
    %29 = arith.muli %c0_i32_15, %c4_i32 : i32
    %c0_i32_16 = arith.constant 0 : i32
    %30 = arith.addi %29, %c0_i32_16 : i32
    %c0_17 = arith.constant 0 : index
    %31 = arith.index_cast %30 : i32 to index
    %c0_18 = arith.constant 0 : index
    %c0_19 = arith.constant 0 : index
    %32 = vector.load %arg2[%c0_17, %31, %c0_18, %c0_19] : memref<1x12x8x128xbf16, #tpu.memory_space<vmem>>, vector<1x1x8x128xbf16>
    %33 = vector.shape_cast %32 : vector<1x1x8x128xbf16> to vector<8x128xbf16>
    %34 = arith.extf %33 : vector<8x128xbf16> to vector<8x128xf32>
    %35 = arith.truncf %25 : vector<8x32xf32> to vector<8x32xbf16>
    %cst_20 = arith.constant dense<0.000000e+00> : vector<8x128xf32>
    %36 = tpu.matmul %35, %16, %cst_20 {dimension_numbers = #tpu.dot_dimension_numbers<[1], [0], [0], [1], [0, 0, 1, 1], [], []>} : vector<8x32xbf16>, vector<32x128xbf16>, vector<8x128xf32> -> vector<8x128xf32>
    %37 = arith.addf %34, %36 : vector<8x128xf32>
    %38 = arith.mulf %37, %11 : vector<8x128xf32>
    %39 = math.tanh %38 : vector<8x128xf32>
    %40 = arith.mulf %39, %11 : vector<8x128xf32>
    %41 = arith.addf %40, %14 : vector<8x128xf32>
    %42 = vector.extract_strided_slice %41 {offsets = [0, 0], sizes = [8, 32], strides = [1, 1]} : vector<8x128xf32> to vector<8x32xf32>
    %43 = vector.extract_strided_slice %41 {offsets = [0, 32], sizes = [8, 32], strides = [1, 1]} : vector<8x128xf32> to vector<8x32xf32>
    %44 = vector.extract_strided_slice %41 {offsets = [0, 64], sizes = [8, 32], strides = [1, 1]} : vector<8x128xf32> to vector<8x32xf32>
    %45 = vector.extract_strided_slice %41 {offsets = [0, 96], sizes = [8, 32], strides = [1, 1]} : vector<8x128xf32> to vector<8x32xf32>
    %46 = arith.mulf %43, %26 : vector<8x32xf32>
    %47 = arith.mulf %42, %44 : vector<8x32xf32>
    %48 = arith.addf %46, %47 : vector<8x32xf32>
    %49 = math.tanh %48 : vector<8x32xf32>
    %50 = arith.mulf %45, %49 : vector<8x32xf32>
    %51 = tpu.concatenate %50, %27 in 1 : vector<8x32xf32>, vector<8x32xf32> -> vector<8x64xf32>
    %52 = arith.truncf %51 : vector<8x64xf32> to vector<8x64xbf16>
    %cst_21 = arith.constant dense<0.000000e+00> : vector<8x128xf32>
    %53 = tpu.matmul %52, %18, %cst_21 {dimension_numbers = #tpu.dot_dimension_numbers<[1], [0], [0], [1], [0, 0, 1, 1], [], []>} : vector<8x64xbf16>, vector<64x128xbf16>, vector<8x128xf32> -> vector<8x128xf32>
    %54 = arith.addf %53, %22 : vector<8x128xf32>
    %55 = arith.mulf %54, %11 : vector<8x128xf32>
    %56 = math.tanh %55 : vector<8x128xf32>
    %57 = arith.mulf %56, %11 : vector<8x128xf32>
    %58 = arith.addf %57, %14 : vector<8x128xf32>
    %59 = vector.extract_strided_slice %58 {offsets = [0, 0], sizes = [8, 32], strides = [1, 1]} : vector<8x128xf32> to vector<8x32xf32>
    %60 = vector.extract_strided_slice %58 {offsets = [0, 32], sizes = [8, 32], strides = [1, 1]} : vector<8x128xf32> to vector<8x32xf32>
    %61 = vector.extract_strided_slice %58 {offsets = [0, 64], sizes = [8, 32], strides = [1, 1]} : vector<8x128xf32> to vector<8x32xf32>
    %62 = vector.extract_strided_slice %58 {offsets = [0, 96], sizes = [8, 32], strides = [1, 1]} : vector<8x128xf32> to vector<8x32xf32>
    %63 = arith.mulf %60, %28 : vector<8x32xf32>
    %64 = arith.mulf %59, %61 : vector<8x32xf32>
    %65 = arith.addf %63, %64 : vector<8x32xf32>
    %66 = math.tanh %65 : vector<8x32xf32>
    %67 = arith.mulf %62, %66 : vector<8x32xf32>
    %c4_i32_22 = arith.constant 4 : i32
    %68 = arith.muli %c0_i32_15, %c4_i32_22 : i32
    %c1_i32 = arith.constant 1 : i32
    %69 = arith.addi %68, %c1_i32 : i32
    %c0_23 = arith.constant 0 : index
    %70 = arith.index_cast %69 : i32 to index
    %c0_24 = arith.constant 0 : index
    %c0_25 = arith.constant 0 : index
    %71 = vector.load %arg2[%c0_23, %70, %c0_24, %c0_25] : memref<1x12x8x128xbf16, #tpu.memory_space<vmem>>, vector<1x1x8x128xbf16>
    %72 = vector.shape_cast %71 : vector<1x1x8x128xbf16> to vector<8x128xbf16>
    %73 = arith.extf %72 : vector<8x128xbf16> to vector<8x128xf32>
    %74 = arith.truncf %50 : vector<8x32xf32> to vector<8x32xbf16>
    %cst_26 = arith.constant dense<0.000000e+00> : vector<8x128xf32>
    %75 = tpu.matmul %74, %16, %cst_26 {dimension_numbers = #tpu.dot_dimension_numbers<[1], [0], [0], [1], [0, 0, 1, 1], [], []>} : vector<8x32xbf16>, vector<32x128xbf16>, vector<8x128xf32> -> vector<8x128xf32>
    %76 = arith.addf %73, %75 : vector<8x128xf32>
    %77 = arith.mulf %76, %11 : vector<8x128xf32>
    %78 = math.tanh %77 : vector<8x128xf32>
    %79 = arith.mulf %78, %11 : vector<8x128xf32>
    %80 = arith.addf %79, %14 : vector<8x128xf32>
    %81 = vector.extract_strided_slice %80 {offsets = [0, 0], sizes = [8, 32], strides = [1, 1]} : vector<8x128xf32> to vector<8x32xf32>
    %82 = vector.extract_strided_slice %80 {offsets = [0, 32], sizes = [8, 32], strides = [1, 1]} : vector<8x128xf32> to vector<8x32xf32>
    %83 = vector.extract_strided_slice %80 {offsets = [0, 64], sizes = [8, 32], strides = [1, 1]} : vector<8x128xf32> to vector<8x32xf32>
    %84 = vector.extract_strided_slice %80 {offsets = [0, 96], sizes = [8, 32], strides = [1, 1]} : vector<8x128xf32> to vector<8x32xf32>
    %85 = arith.mulf %82, %48 : vector<8x32xf32>
    %86 = arith.mulf %81, %83 : vector<8x32xf32>
    %87 = arith.addf %85, %86 : vector<8x32xf32>
    %88 = math.tanh %87 : vector<8x32xf32>
    %89 = arith.mulf %84, %88 : vector<8x32xf32>
    %90 = tpu.concatenate %89, %67 in 1 : vector<8x32xf32>, vector<8x32xf32> -> vector<8x64xf32>
    %91 = arith.truncf %90 : vector<8x64xf32> to vector<8x64xbf16>
    %cst_27 = arith.constant dense<0.000000e+00> : vector<8x128xf32>
    %92 = tpu.matmul %91, %18, %cst_27 {dimension_numbers = #tpu.dot_dimension_numbers<[1], [0], [0], [1], [0, 0, 1, 1], [], []>} : vector<8x64xbf16>, vector<64x128xbf16>, vector<8x128xf32> -> vector<8x128xf32>
    %93 = arith.addf %92, %22 : vector<8x128xf32>
    %94 = arith.mulf %93, %11 : vector<8x128xf32>
    %95 = math.tanh %94 : vector<8x128xf32>
    %96 = arith.mulf %95, %11 : vector<8x128xf32>
    %97 = arith.addf %96, %14 : vector<8x128xf32>
    %98 = vector.extract_strided_slice %97 {offsets = [0, 0], sizes = [8, 32], strides = [1, 1]} : vector<8x128xf32> to vector<8x32xf32>
    %99 = vector.extract_strided_slice %97 {offsets = [0, 32], sizes = [8, 32], strides = [1, 1]} : vector<8x128xf32> to vector<8x32xf32>
    %100 = vector.extract_strided_slice %97 {offsets = [0, 64], sizes = [8, 32], strides = [1, 1]} : vector<8x128xf32> to vector<8x32xf32>
    %101 = vector.extract_strided_slice %97 {offsets = [0, 96], sizes = [8, 32], strides = [1, 1]} : vector<8x128xf32> to vector<8x32xf32>
    %102 = arith.mulf %99, %65 : vector<8x32xf32>
    %103 = arith.mulf %98, %100 : vector<8x32xf32>
    %104 = arith.addf %102, %103 : vector<8x32xf32>
    %105 = math.tanh %104 : vector<8x32xf32>
    %106 = arith.mulf %101, %105 : vector<8x32xf32>
    %c4_i32_28 = arith.constant 4 : i32
    %107 = arith.muli %c0_i32_15, %c4_i32_28 : i32
    %c2_i32 = arith.constant 2 : i32
    %108 = arith.addi %107, %c2_i32 : i32
    %c0_29 = arith.constant 0 : index
    %109 = arith.index_cast %108 : i32 to index
    %c0_30 = arith.constant 0 : index
    %c0_31 = arith.constant 0 : index
    %110 = vector.load %arg2[%c0_29, %109, %c0_30, %c0_31] : memref<1x12x8x128xbf16, #tpu.memory_space<vmem>>, vector<1x1x8x128xbf16>
    %111 = vector.shape_cast %110 : vector<1x1x8x128xbf16> to vector<8x128xbf16>
    %112 = arith.extf %111 : vector<8x128xbf16> to vector<8x128xf32>
    %113 = arith.truncf %89 : vector<8x32xf32> to vector<8x32xbf16>
    %cst_32 = arith.constant dense<0.000000e+00> : vector<8x128xf32>
    %114 = tpu.matmul %113, %16, %cst_32 {dimension_numbers = #tpu.dot_dimension_numbers<[1], [0], [0], [1], [0, 0, 1, 1], [], []>} : vector<8x32xbf16>, vector<32x128xbf16>, vector<8x128xf32> -> vector<8x128xf32>
    %115 = arith.addf %112, %114 : vector<8x128xf32>
    %116 = arith.mulf %115, %11 : vector<8x128xf32>
    %117 = math.tanh %116 : vector<8x128xf32>
    %118 = arith.mulf %117, %11 : vector<8x128xf32>
    %119 = arith.addf %118, %14 : vector<8x128xf32>
    %120 = vector.extract_strided_slice %119 {offsets = [0, 0], sizes = [8, 32], strides = [1, 1]} : vector<8x128xf32> to vector<8x32xf32>
    %121 = vector.extract_strided_slice %119 {offsets = [0, 32], sizes = [8, 32], strides = [1, 1]} : vector<8x128xf32> to vector<8x32xf32>
    %122 = vector.extract_strided_slice %119 {offsets = [0, 64], sizes = [8, 32], strides = [1, 1]} : vector<8x128xf32> to vector<8x32xf32>
    %123 = vector.extract_strided_slice %119 {offsets = [0, 96], sizes = [8, 32], strides = [1, 1]} : vector<8x128xf32> to vector<8x32xf32>
    %124 = arith.mulf %121, %87 : vector<8x32xf32>
    %125 = arith.mulf %120, %122 : vector<8x32xf32>
    %126 = arith.addf %124, %125 : vector<8x32xf32>
    %127 = math.tanh %126 : vector<8x32xf32>
    %128 = arith.mulf %123, %127 : vector<8x32xf32>
    %129 = tpu.concatenate %128, %106 in 1 : vector<8x32xf32>, vector<8x32xf32> -> vector<8x64xf32>
    %130 = arith.truncf %129 : vector<8x64xf32> to vector<8x64xbf16>
    %cst_33 = arith.constant dense<0.000000e+00> : vector<8x128xf32>
    %131 = tpu.matmul %130, %18, %cst_33 {dimension_numbers = #tpu.dot_dimension_numbers<[1], [0], [0], [1], [0, 0, 1, 1], [], []>} : vector<8x64xbf16>, vector<64x128xbf16>, vector<8x128xf32> -> vector<8x128xf32>
    %132 = arith.addf %131, %22 : vector<8x128xf32>
    %133 = arith.mulf %132, %11 : vector<8x128xf32>
    %134 = math.tanh %133 : vector<8x128xf32>
    %135 = arith.mulf %134, %11 : vector<8x128xf32>
    %136 = arith.addf %135, %14 : vector<8x128xf32>
    %137 = vector.extract_strided_slice %136 {offsets = [0, 0], sizes = [8, 32], strides = [1, 1]} : vector<8x128xf32> to vector<8x32xf32>
    %138 = vector.extract_strided_slice %136 {offsets = [0, 32], sizes = [8, 32], strides = [1, 1]} : vector<8x128xf32> to vector<8x32xf32>
    %139 = vector.extract_strided_slice %136 {offsets = [0, 64], sizes = [8, 32], strides = [1, 1]} : vector<8x128xf32> to vector<8x32xf32>
    %140 = vector.extract_strided_slice %136 {offsets = [0, 96], sizes = [8, 32], strides = [1, 1]} : vector<8x128xf32> to vector<8x32xf32>
    %141 = arith.mulf %138, %104 : vector<8x32xf32>
    %142 = arith.mulf %137, %139 : vector<8x32xf32>
    %143 = arith.addf %141, %142 : vector<8x32xf32>
    %144 = math.tanh %143 : vector<8x32xf32>
    %145 = arith.mulf %140, %144 : vector<8x32xf32>
    %c4_i32_34 = arith.constant 4 : i32
    %146 = arith.muli %c0_i32_15, %c4_i32_34 : i32
    %c3_i32 = arith.constant 3 : i32
    %147 = arith.addi %146, %c3_i32 : i32
    %c0_35 = arith.constant 0 : index
    %148 = arith.index_cast %147 : i32 to index
    %c0_36 = arith.constant 0 : index
    %c0_37 = arith.constant 0 : index
    %149 = vector.load %arg2[%c0_35, %148, %c0_36, %c0_37] : memref<1x12x8x128xbf16, #tpu.memory_space<vmem>>, vector<1x1x8x128xbf16>
    %150 = vector.shape_cast %149 : vector<1x1x8x128xbf16> to vector<8x128xbf16>
    %151 = arith.extf %150 : vector<8x128xbf16> to vector<8x128xf32>
    %152 = arith.truncf %128 : vector<8x32xf32> to vector<8x32xbf16>
    %cst_38 = arith.constant dense<0.000000e+00> : vector<8x128xf32>
    %153 = tpu.matmul %152, %16, %cst_38 {dimension_numbers = #tpu.dot_dimension_numbers<[1], [0], [0], [1], [0, 0, 1, 1], [], []>} : vector<8x32xbf16>, vector<32x128xbf16>, vector<8x128xf32> -> vector<8x128xf32>
    %154 = arith.addf %151, %153 : vector<8x128xf32>
    %155 = arith.mulf %154, %11 : vector<8x128xf32>
    %156 = math.tanh %155 : vector<8x128xf32>
    %157 = arith.mulf %156, %11 : vector<8x128xf32>
    %158 = arith.addf %157, %14 : vector<8x128xf32>
    %159 = vector.extract_strided_slice %158 {offsets = [0, 0], sizes = [8, 32], strides = [1, 1]} : vector<8x128xf32> to vector<8x32xf32>
    %160 = vector.extract_strided_slice %158 {offsets = [0, 32], sizes = [8, 32], strides = [1, 1]} : vector<8x128xf32> to vector<8x32xf32>
    %161 = vector.extract_strided_slice %158 {offsets = [0, 64], sizes = [8, 32], strides = [1, 1]} : vector<8x128xf32> to vector<8x32xf32>
    %162 = vector.extract_strided_slice %158 {offsets = [0, 96], sizes = [8, 32], strides = [1, 1]} : vector<8x128xf32> to vector<8x32xf32>
    %163 = arith.mulf %160, %126 : vector<8x32xf32>
    %164 = arith.mulf %159, %161 : vector<8x32xf32>
    %165 = arith.addf %163, %164 : vector<8x32xf32>
    %166 = math.tanh %165 : vector<8x32xf32>
    %167 = arith.mulf %162, %166 : vector<8x32xf32>
    %168 = tpu.concatenate %167, %145 in 1 : vector<8x32xf32>, vector<8x32xf32> -> vector<8x64xf32>
    %169 = arith.truncf %168 : vector<8x64xf32> to vector<8x64xbf16>
    %cst_39 = arith.constant dense<0.000000e+00> : vector<8x128xf32>
    %170 = tpu.matmul %169, %18, %cst_39 {dimension_numbers = #tpu.dot_dimension_numbers<[1], [0], [0], [1], [0, 0, 1, 1], [], []>} : vector<8x64xbf16>, vector<64x128xbf16>, vector<8x128xf32> -> vector<8x128xf32>
    %171 = arith.addf %170, %22 : vector<8x128xf32>
    %172 = arith.mulf %171, %11 : vector<8x128xf32>
    %173 = math.tanh %172 : vector<8x128xf32>
    %174 = arith.mulf %173, %11 : vector<8x128xf32>
    %175 = arith.addf %174, %14 : vector<8x128xf32>
    %176 = vector.extract_strided_slice %175 {offsets = [0, 0], sizes = [8, 32], strides = [1, 1]} : vector<8x128xf32> to vector<8x32xf32>
    %177 = vector.extract_strided_slice %175 {offsets = [0, 32], sizes = [8, 32], strides = [1, 1]} : vector<8x128xf32> to vector<8x32xf32>
    %178 = vector.extract_strided_slice %175 {offsets = [0, 64], sizes = [8, 32], strides = [1, 1]} : vector<8x128xf32> to vector<8x32xf32>
    %179 = vector.extract_strided_slice %175 {offsets = [0, 96], sizes = [8, 32], strides = [1, 1]} : vector<8x128xf32> to vector<8x32xf32>
    %180 = arith.mulf %177, %143 : vector<8x32xf32>
    %181 = arith.mulf %176, %178 : vector<8x32xf32>
    %182 = arith.addf %180, %181 : vector<8x32xf32>
    %183 = math.tanh %182 : vector<8x32xf32>
    %184 = arith.mulf %179, %183 : vector<8x32xf32>
    %185 = tpu.concatenate %67, %106, %145, %184 in 1 : vector<8x32xf32>, vector<8x32xf32>, vector<8x32xf32>, vector<8x32xf32> -> vector<8x128xf32>
    %c0_40 = arith.constant 0 : index
    %186 = arith.index_cast %c0_i32_15 : i32 to index
    %c0_41 = arith.constant 0 : index
    %c0_42 = arith.constant 0 : index
    %187 = vector.load %arg6[%c0_40, %186, %c0_41, %c0_42] : memref<1x3x8x128xf32, #tpu.memory_space<vmem>>, vector<1x1x8x128xf32>
    %188 = vector.shape_cast %187 : vector<1x1x8x128xf32> to vector<8x128xf32>
    %189 = vector.shape_cast %185 : vector<8x128xf32> to vector<1x1x8x128xf32>
    tpu.vector_store %arg6[%c0_40, %186, %c0_41, %c0_42], %189 {strides = array<i32>} : memref<1x3x8x128xf32, #tpu.memory_space<vmem>>, vector<1x1x8x128xf32>,
    %c1_i32_43 = arith.constant 1 : i32
    %c4_i32_44 = arith.constant 4 : i32
    %190 = arith.muli %c1_i32_43, %c4_i32_44 : i32
    %c0_i32_45 = arith.constant 0 : i32
    %191 = arith.addi %190, %c0_i32_45 : i32
    %c0_46 = arith.constant 0 : index
    %192 = arith.index_cast %191 : i32 to index
    %c0_47 = arith.constant 0 : index
    %c0_48 = arith.constant 0 : index
    %193 = vector.load %arg2[%c0_46, %192, %c0_47, %c0_48] : memref<1x12x8x128xbf16, #tpu.memory_space<vmem>>, vector<1x1x8x128xbf16>
    %194 = vector.shape_cast %193 : vector<1x1x8x128xbf16> to vector<8x128xbf16>
    %195 = arith.extf %194 : vector<8x128xbf16> to vector<8x128xf32>
    %196 = arith.truncf %167 : vector<8x32xf32> to vector<8x32xbf16>
    %cst_49 = arith.constant dense<0.000000e+00> : vector<8x128xf32>
    %197 = tpu.matmul %196, %16, %cst_49 {dimension_numbers = #tpu.dot_dimension_numbers<[1], [0], [0], [1], [0, 0, 1, 1], [], []>} : vector<8x32xbf16>, vector<32x128xbf16>, vector<8x128xf32> -> vector<8x128xf32>
    %198 = arith.addf %195, %197 : vector<8x128xf32>
    %199 = arith.mulf %198, %11 : vector<8x128xf32>
    %200 = math.tanh %199 : vector<8x128xf32>
    %201 = arith.mulf %200, %11 : vector<8x128xf32>
    %202 = arith.addf %201, %14 : vector<8x128xf32>
    %203 = vector.extract_strided_slice %202 {offsets = [0, 0], sizes = [8, 32], strides = [1, 1]} : vector<8x128xf32> to vector<8x32xf32>
    %204 = vector.extract_strided_slice %202 {offsets = [0, 32], sizes = [8, 32], strides = [1, 1]} : vector<8x128xf32> to vector<8x32xf32>
    %205 = vector.extract_strided_slice %202 {offsets = [0, 64], sizes = [8, 32], strides = [1, 1]} : vector<8x128xf32> to vector<8x32xf32>
    %206 = vector.extract_strided_slice %202 {offsets = [0, 96], sizes = [8, 32], strides = [1, 1]} : vector<8x128xf32> to vector<8x32xf32>
    %207 = arith.mulf %204, %165 : vector<8x32xf32>
    %208 = arith.mulf %203, %205 : vector<8x32xf32>
    %209 = arith.addf %207, %208 : vector<8x32xf32>
    %210 = math.tanh %209 : vector<8x32xf32>
    %211 = arith.mulf %206, %210 : vector<8x32xf32>
    %212 = tpu.concatenate %211, %184 in 1 : vector<8x32xf32>, vector<8x32xf32> -> vector<8x64xf32>
    %213 = arith.truncf %212 : vector<8x64xf32> to vector<8x64xbf16>
    %cst_50 = arith.constant dense<0.000000e+00> : vector<8x128xf32>
    %214 = tpu.matmul %213, %18, %cst_50 {dimension_numbers = #tpu.dot_dimension_numbers<[1], [0], [0], [1], [0, 0, 1, 1], [], []>} : vector<8x64xbf16>, vector<64x128xbf16>, vector<8x128xf32> -> vector<8x128xf32>
    %215 = arith.addf %214, %22 : vector<8x128xf32>
    %216 = arith.mulf %215, %11 : vector<8x128xf32>
    %217 = math.tanh %216 : vector<8x128xf32>
    %218 = arith.mulf %217, %11 : vector<8x128xf32>
    %219 = arith.addf %218, %14 : vector<8x128xf32>
    %220 = vector.extract_strided_slice %219 {offsets = [0, 0], sizes = [8, 32], strides = [1, 1]} : vector<8x128xf32> to vector<8x32xf32>
    %221 = vector.extract_strided_slice %219 {offsets = [0, 32], sizes = [8, 32], strides = [1, 1]} : vector<8x128xf32> to vector<8x32xf32>
    %222 = vector.extract_strided_slice %219 {offsets = [0, 64], sizes = [8, 32], strides = [1, 1]} : vector<8x128xf32> to vector<8x32xf32>
    %223 = vector.extract_strided_slice %219 {offsets = [0, 96], sizes = [8, 32], strides = [1, 1]} : vector<8x128xf32> to vector<8x32xf32>
    %224 = arith.mulf %221, %182 : vector<8x32xf32>
    %225 = arith.mulf %220, %222 : vector<8x32xf32>
    %226 = arith.addf %224, %225 : vector<8x32xf32>
    %227 = math.tanh %226 : vector<8x32xf32>
    %228 = arith.mulf %223, %227 : vector<8x32xf32>
    %c4_i32_51 = arith.constant 4 : i32
    %229 = arith.muli %c1_i32_43, %c4_i32_51 : i32
    %c1_i32_52 = arith.constant 1 : i32
    %230 = arith.addi %229, %c1_i32_52 : i32
    %c0_53 = arith.constant 0 : index
    %231 = arith.index_cast %230 : i32 to index
    %c0_54 = arith.constant 0 : index
    %c0_55 = arith.constant 0 : index
    %232 = vector.load %arg2[%c0_53, %231, %c0_54, %c0_55] : memref<1x12x8x128xbf16, #tpu.memory_space<vmem>>, vector<1x1x8x128xbf16>
    %233 = vector.shape_cast %232 : vector<1x1x8x128xbf16> to vector<8x128xbf16>
    %234 = arith.extf %233 : vector<8x128xbf16> to vector<8x128xf32>
    %235 = arith.truncf %211 : vector<8x32xf32> to vector<8x32xbf16>
    %cst_56 = arith.constant dense<0.000000e+00> : vector<8x128xf32>
    %236 = tpu.matmul %235, %16, %cst_56 {dimension_numbers = #tpu.dot_dimension_numbers<[1], [0], [0], [1], [0, 0, 1, 1], [], []>} : vector<8x32xbf16>, vector<32x128xbf16>, vector<8x128xf32> -> vector<8x128xf32>
    %237 = arith.addf %234, %236 : vector<8x128xf32>
    %238 = arith.mulf %237, %11 : vector<8x128xf32>
    %239 = math.tanh %238 : vector<8x128xf32>
    %240 = arith.mulf %239, %11 : vector<8x128xf32>
    %241 = arith.addf %240, %14 : vector<8x128xf32>
    %242 = vector.extract_strided_slice %241 {offsets = [0, 0], sizes = [8, 32], strides = [1, 1]} : vector<8x128xf32> to vector<8x32xf32>
    %243 = vector.extract_strided_slice %241 {offsets = [0, 32], sizes = [8, 32], strides = [1, 1]} : vector<8x128xf32> to vector<8x32xf32>
    %244 = vector.extract_strided_slice %241 {offsets = [0, 64], sizes = [8, 32], strides = [1, 1]} : vector<8x128xf32> to vector<8x32xf32>
    %245 = vector.extract_strided_slice %241 {offsets = [0, 96], sizes = [8, 32], strides = [1, 1]} : vector<8x128xf32> to vector<8x32xf32>
    %246 = arith.mulf %243, %209 : vector<8x32xf32>
    %247 = arith.mulf %242, %244 : vector<8x32xf32>
    %248 = arith.addf %246, %247 : vector<8x32xf32>
    %249 = math.tanh %248 : vector<8x32xf32>
    %250 = arith.mulf %245, %249 : vector<8x32xf32>
    %251 = tpu.concatenate %250, %228 in 1 : vector<8x32xf32>, vector<8x32xf32> -> vector<8x64xf32>
    %252 = arith.truncf %251 : vector<8x64xf32> to vector<8x64xbf16>
    %cst_57 = arith.constant dense<0.000000e+00> : vector<8x128xf32>
    %253 = tpu.matmul %252, %18, %cst_57 {dimension_numbers = #tpu.dot_dimension_numbers<[1], [0], [0], [1], [0, 0, 1, 1], [], []>} : vector<8x64xbf16>, vector<64x128xbf16>, vector<8x128xf32> -> vector<8x128xf32>
    %254 = arith.addf %253, %22 : vector<8x128xf32>
    %255 = arith.mulf %254, %11 : vector<8x128xf32>
    %256 = math.tanh %255 : vector<8x128xf32>
    %257 = arith.mulf %256, %11 : vector<8x128xf32>
    %258 = arith.addf %257, %14 : vector<8x128xf32>
    %259 = vector.extract_strided_slice %258 {offsets = [0, 0], sizes = [8, 32], strides = [1, 1]} : vector<8x128xf32> to vector<8x32xf32>
    %260 = vector.extract_strided_slice %258 {offsets = [0, 32], sizes = [8, 32], strides = [1, 1]} : vector<8x128xf32> to vector<8x32xf32>
    %261 = vector.extract_strided_slice %258 {offsets = [0, 64], sizes = [8, 32], strides = [1, 1]} : vector<8x128xf32> to vector<8x32xf32>
    %262 = vector.extract_strided_slice %258 {offsets = [0, 96], sizes = [8, 32], strides = [1, 1]} : vector<8x128xf32> to vector<8x32xf32>
    %263 = arith.mulf %260, %226 : vector<8x32xf32>
    %264 = arith.mulf %259, %261 : vector<8x32xf32>
    %265 = arith.addf %263, %264 : vector<8x32xf32>
    %266 = math.tanh %265 : vector<8x32xf32>
    %267 = arith.mulf %262, %266 : vector<8x32xf32>
    %c4_i32_58 = arith.constant 4 : i32
    %268 = arith.muli %c1_i32_43, %c4_i32_58 : i32
    %c2_i32_59 = arith.constant 2 : i32
    %269 = arith.addi %268, %c2_i32_59 : i32
    %c0_60 = arith.constant 0 : index
    %270 = arith.index_cast %269 : i32 to index
    %c0_61 = arith.constant 0 : index
    %c0_62 = arith.constant 0 : index
    %271 = vector.load %arg2[%c0_60, %270, %c0_61, %c0_62] : memref<1x12x8x128xbf16, #tpu.memory_space<vmem>>, vector<1x1x8x128xbf16>
    %272 = vector.shape_cast %271 : vector<1x1x8x128xbf16> to vector<8x128xbf16>
    %273 = arith.extf %272 : vector<8x128xbf16> to vector<8x128xf32>
    %274 = arith.truncf %250 : vector<8x32xf32> to vector<8x32xbf16>
    %cst_63 = arith.constant dense<0.000000e+00> : vector<8x128xf32>
    %275 = tpu.matmul %274, %16, %cst_63 {dimension_numbers = #tpu.dot_dimension_numbers<[1], [0], [0], [1], [0, 0, 1, 1], [], []>} : vector<8x32xbf16>, vector<32x128xbf16>, vector<8x128xf32> -> vector<8x128xf32>
    %276 = arith.addf %273, %275 : vector<8x128xf32>
    %277 = arith.mulf %276, %11 : vector<8x128xf32>
    %278 = math.tanh %277 : vector<8x128xf32>
    %279 = arith.mulf %278, %11 : vector<8x128xf32>
    %280 = arith.addf %279, %14 : vector<8x128xf32>
    %281 = vector.extract_strided_slice %280 {offsets = [0, 0], sizes = [8, 32], strides = [1, 1]} : vector<8x128xf32> to vector<8x32xf32>
    %282 = vector.extract_strided_slice %280 {offsets = [0, 32], sizes = [8, 32], strides = [1, 1]} : vector<8x128xf32> to vector<8x32xf32>
    %283 = vector.extract_strided_slice %280 {offsets = [0, 64], sizes = [8, 32], strides = [1, 1]} : vector<8x128xf32> to vector<8x32xf32>
    %284 = vector.extract_strided_slice %280 {offsets = [0, 96], sizes = [8, 32], strides = [1, 1]} : vector<8x128xf32> to vector<8x32xf32>
    %285 = arith.mulf %282, %248 : vector<8x32xf32>
    %286 = arith.mulf %281, %283 : vector<8x32xf32>
    %287 = arith.addf %285, %286 : vector<8x32xf32>
    %288 = math.tanh %287 : vector<8x32xf32>
    %289 = arith.mulf %284, %288 : vector<8x32xf32>
    %290 = tpu.concatenate %289, %267 in 1 : vector<8x32xf32>, vector<8x32xf32> -> vector<8x64xf32>
    %291 = arith.truncf %290 : vector<8x64xf32> to vector<8x64xbf16>
    %cst_64 = arith.constant dense<0.000000e+00> : vector<8x128xf32>
    %292 = tpu.matmul %291, %18, %cst_64 {dimension_numbers = #tpu.dot_dimension_numbers<[1], [0], [0], [1], [0, 0, 1, 1], [], []>} : vector<8x64xbf16>, vector<64x128xbf16>, vector<8x128xf32> -> vector<8x128xf32>
    %293 = arith.addf %292, %22 : vector<8x128xf32>
    %294 = arith.mulf %293, %11 : vector<8x128xf32>
    %295 = math.tanh %294 : vector<8x128xf32>
    %296 = arith.mulf %295, %11 : vector<8x128xf32>
    %297 = arith.addf %296, %14 : vector<8x128xf32>
    %298 = vector.extract_strided_slice %297 {offsets = [0, 0], sizes = [8, 32], strides = [1, 1]} : vector<8x128xf32> to vector<8x32xf32>
    %299 = vector.extract_strided_slice %297 {offsets = [0, 32], sizes = [8, 32], strides = [1, 1]} : vector<8x128xf32> to vector<8x32xf32>
    %300 = vector.extract_strided_slice %297 {offsets = [0, 64], sizes = [8, 32], strides = [1, 1]} : vector<8x128xf32> to vector<8x32xf32>
    %301 = vector.extract_strided_slice %297 {offsets = [0, 96], sizes = [8, 32], strides = [1, 1]} : vector<8x128xf32> to vector<8x32xf32>
    %302 = arith.mulf %299, %265 : vector<8x32xf32>
    %303 = arith.mulf %298, %300 : vector<8x32xf32>
    %304 = arith.addf %302, %303 : vector<8x32xf32>
    %305 = math.tanh %304 : vector<8x32xf32>
    %306 = arith.mulf %301, %305 : vector<8x32xf32>
    %c4_i32_65 = arith.constant 4 : i32
    %307 = arith.muli %c1_i32_43, %c4_i32_65 : i32
    %c3_i32_66 = arith.constant 3 : i32
    %308 = arith.addi %307, %c3_i32_66 : i32
    %c0_67 = arith.constant 0 : index
    %309 = arith.index_cast %308 : i32 to index
    %c0_68 = arith.constant 0 : index
    %c0_69 = arith.constant 0 : index
    %310 = vector.load %arg2[%c0_67, %309, %c0_68, %c0_69] : memref<1x12x8x128xbf16, #tpu.memory_space<vmem>>, vector<1x1x8x128xbf16>
    %311 = vector.shape_cast %310 : vector<1x1x8x128xbf16> to vector<8x128xbf16>
    %312 = arith.extf %311 : vector<8x128xbf16> to vector<8x128xf32>
    %313 = arith.truncf %289 : vector<8x32xf32> to vector<8x32xbf16>
    %cst_70 = arith.constant dense<0.000000e+00> : vector<8x128xf32>
    %314 = tpu.matmul %313, %16, %cst_70 {dimension_numbers = #tpu.dot_dimension_numbers<[1], [0], [0], [1], [0, 0, 1, 1], [], []>} : vector<8x32xbf16>, vector<32x128xbf16>, vector<8x128xf32> -> vector<8x128xf32>
    %315 = arith.addf %312, %314 : vector<8x128xf32>
    %316 = arith.mulf %315, %11 : vector<8x128xf32>
    %317 = math.tanh %316 : vector<8x128xf32>
    %318 = arith.mulf %317, %11 : vector<8x128xf32>
    %319 = arith.addf %318, %14 : vector<8x128xf32>
    %320 = vector.extract_strided_slice %319 {offsets = [0, 0], sizes = [8, 32], strides = [1, 1]} : vector<8x128xf32> to vector<8x32xf32>
    %321 = vector.extract_strided_slice %319 {offsets = [0, 32], sizes = [8, 32], strides = [1, 1]} : vector<8x128xf32> to vector<8x32xf32>
    %322 = vector.extract_strided_slice %319 {offsets = [0, 64], sizes = [8, 32], strides = [1, 1]} : vector<8x128xf32> to vector<8x32xf32>
    %323 = vector.extract_strided_slice %319 {offsets = [0, 96], sizes = [8, 32], strides = [1, 1]} : vector<8x128xf32> to vector<8x32xf32>
    %324 = arith.mulf %321, %287 : vector<8x32xf32>
    %325 = arith.mulf %320, %322 : vector<8x32xf32>
    %326 = arith.addf %324, %325 : vector<8x32xf32>
    %327 = math.tanh %326 : vector<8x32xf32>
    %328 = arith.mulf %323, %327 : vector<8x32xf32>
    %329 = tpu.concatenate %328, %306 in 1 : vector<8x32xf32>, vector<8x32xf32> -> vector<8x64xf32>
    %330 = arith.truncf %329 : vector<8x64xf32> to vector<8x64xbf16>
    %cst_71 = arith.constant dense<0.000000e+00> : vector<8x128xf32>
    %331 = tpu.matmul %330, %18, %cst_71 {dimension_numbers = #tpu.dot_dimension_numbers<[1], [0], [0], [1], [0, 0, 1, 1], [], []>} : vector<8x64xbf16>, vector<64x128xbf16>, vector<8x128xf32> -> vector<8x128xf32>
    %332 = arith.addf %331, %22 : vector<8x128xf32>
    %333 = arith.mulf %332, %11 : vector<8x128xf32>
    %334 = math.tanh %333 : vector<8x128xf32>
    %335 = arith.mulf %334, %11 : vector<8x128xf32>
    %336 = arith.addf %335, %14 : vector<8x128xf32>
    %337 = vector.extract_strided_slice %336 {offsets = [0, 0], sizes = [8, 32], strides = [1, 1]} : vector<8x128xf32> to vector<8x32xf32>
    %338 = vector.extract_strided_slice %336 {offsets = [0, 32], sizes = [8, 32], strides = [1, 1]} : vector<8x128xf32> to vector<8x32xf32>
    %339 = vector.extract_strided_slice %336 {offsets = [0, 64], sizes = [8, 32], strides = [1, 1]} : vector<8x128xf32> to vector<8x32xf32>
    %340 = vector.extract_strided_slice %336 {offsets = [0, 96], sizes = [8, 32], strides = [1, 1]} : vector<8x128xf32> to vector<8x32xf32>
    %341 = arith.mulf %338, %304 : vector<8x32xf32>
    %342 = arith.mulf %337, %339 : vector<8x32xf32>
    %343 = arith.addf %341, %342 : vector<8x32xf32>
    %344 = math.tanh %343 : vector<8x32xf32>
    %345 = arith.mulf %340, %344 : vector<8x32xf32>
    %346 = tpu.concatenate %228, %267, %306, %345 in 1 : vector<8x32xf32>, vector<8x32xf32>, vector<8x32xf32>, vector<8x32xf32> -> vector<8x128xf32>
    %c0_72 = arith.constant 0 : index
    %347 = arith.index_cast %c1_i32_43 : i32 to index
    %c0_73 = arith.constant 0 : index
    %c0_74 = arith.constant 0 : index
    %348 = vector.load %arg6[%c0_72, %347, %c0_73, %c0_74] : memref<1x3x8x128xf32, #tpu.memory_space<vmem>>, vector<1x1x8x128xf32>
    %349 = vector.shape_cast %348 : vector<1x1x8x128xf32> to vector<8x128xf32>
    %350 = vector.shape_cast %346 : vector<8x128xf32> to vector<1x1x8x128xf32>
    tpu.vector_store %arg6[%c0_72, %347, %c0_73, %c0_74], %350 {strides = array<i32>} : memref<1x3x8x128xf32, #tpu.memory_space<vmem>>, vector<1x1x8x128xf32>,
    %c2_i32_75 = arith.constant 2 : i32
    %c4_i32_76 = arith.constant 4 : i32
    %351 = arith.muli %c2_i32_75, %c4_i32_76 : i32
    %c0_i32_77 = arith.constant 0 : i32
    %352 = arith.addi %351, %c0_i32_77 : i32
    %c0_78 = arith.constant 0 : index
    %353 = arith.index_cast %352 : i32 to index
    %c0_79 = arith.constant 0 : index
    %c0_80 = arith.constant 0 : index
    %354 = vector.load %arg2[%c0_78, %353, %c0_79, %c0_80] : memref<1x12x8x128xbf16, #tpu.memory_space<vmem>>, vector<1x1x8x128xbf16>
    %355 = vector.shape_cast %354 : vector<1x1x8x128xbf16> to vector<8x128xbf16>
    %356 = arith.extf %355 : vector<8x128xbf16> to vector<8x128xf32>
    %357 = arith.truncf %328 : vector<8x32xf32> to vector<8x32xbf16>
    %cst_81 = arith.constant dense<0.000000e+00> : vector<8x128xf32>
    %358 = tpu.matmul %357, %16, %cst_81 {dimension_numbers = #tpu.dot_dimension_numbers<[1], [0], [0], [1], [0, 0, 1, 1], [], []>} : vector<8x32xbf16>, vector<32x128xbf16>, vector<8x128xf32> -> vector<8x128xf32>
    %359 = arith.addf %356, %358 : vector<8x128xf32>
    %360 = arith.mulf %359, %11 : vector<8x128xf32>
    %361 = math.tanh %360 : vector<8x128xf32>
    %362 = arith.mulf %361, %11 : vector<8x128xf32>
    %363 = arith.addf %362, %14 : vector<8x128xf32>
    %364 = vector.extract_strided_slice %363 {offsets = [0, 0], sizes = [8, 32], strides = [1, 1]} : vector<8x128xf32> to vector<8x32xf32>
    %365 = vector.extract_strided_slice %363 {offsets = [0, 32], sizes = [8, 32], strides = [1, 1]} : vector<8x128xf32> to vector<8x32xf32>
    %366 = vector.extract_strided_slice %363 {offsets = [0, 64], sizes = [8, 32], strides = [1, 1]} : vector<8x128xf32> to vector<8x32xf32>
    %367 = vector.extract_strided_slice %363 {offsets = [0, 96], sizes = [8, 32], strides = [1, 1]} : vector<8x128xf32> to vector<8x32xf32>
    %368 = arith.mulf %365, %326 : vector<8x32xf32>
    %369 = arith.mulf %364, %366 : vector<8x32xf32>
    %370 = arith.addf %368, %369 : vector<8x32xf32>
    %371 = math.tanh %370 : vector<8x32xf32>
    %372 = arith.mulf %367, %371 : vector<8x32xf32>
    %373 = tpu.concatenate %372, %345 in 1 : vector<8x32xf32>, vector<8x32xf32> -> vector<8x64xf32>
    %374 = arith.truncf %373 : vector<8x64xf32> to vector<8x64xbf16>
    %cst_82 = arith.constant dense<0.000000e+00> : vector<8x128xf32>
    %375 = tpu.matmul %374, %18, %cst_82 {dimension_numbers = #tpu.dot_dimension_numbers<[1], [0], [0], [1], [0, 0, 1, 1], [], []>} : vector<8x64xbf16>, vector<64x128xbf16>, vector<8x128xf32> -> vector<8x128xf32>
    %376 = arith.addf %375, %22 : vector<8x128xf32>
    %377 = arith.mulf %376, %11 : vector<8x128xf32>
    %378 = math.tanh %377 : vector<8x128xf32>
    %379 = arith.mulf %378, %11 : vector<8x128xf32>
    %380 = arith.addf %379, %14 : vector<8x128xf32>
    %381 = vector.extract_strided_slice %380 {offsets = [0, 0], sizes = [8, 32], strides = [1, 1]} : vector<8x128xf32> to vector<8x32xf32>
    %382 = vector.extract_strided_slice %380 {offsets = [0, 32], sizes = [8, 32], strides = [1, 1]} : vector<8x128xf32> to vector<8x32xf32>
    %383 = vector.extract_strided_slice %380 {offsets = [0, 64], sizes = [8, 32], strides = [1, 1]} : vector<8x128xf32> to vector<8x32xf32>
    %384 = vector.extract_strided_slice %380 {offsets = [0, 96], sizes = [8, 32], strides = [1, 1]} : vector<8x128xf32> to vector<8x32xf32>
    %385 = arith.mulf %382, %343 : vector<8x32xf32>
    %386 = arith.mulf %381, %383 : vector<8x32xf32>
    %387 = arith.addf %385, %386 : vector<8x32xf32>
    %388 = math.tanh %387 : vector<8x32xf32>
    %389 = arith.mulf %384, %388 : vector<8x32xf32>
    %c4_i32_83 = arith.constant 4 : i32
    %390 = arith.muli %c2_i32_75, %c4_i32_83 : i32
    %c1_i32_84 = arith.constant 1 : i32
    %391 = arith.addi %390, %c1_i32_84 : i32
    %c0_85 = arith.constant 0 : index
    %392 = arith.index_cast %391 : i32 to index
    %c0_86 = arith.constant 0 : index
    %c0_87 = arith.constant 0 : index
    %393 = vector.load %arg2[%c0_85, %392, %c0_86, %c0_87] : memref<1x12x8x128xbf16, #tpu.memory_space<vmem>>, vector<1x1x8x128xbf16>
    %394 = vector.shape_cast %393 : vector<1x1x8x128xbf16> to vector<8x128xbf16>
    %395 = arith.extf %394 : vector<8x128xbf16> to vector<8x128xf32>
    %396 = arith.truncf %372 : vector<8x32xf32> to vector<8x32xbf16>
    %cst_88 = arith.constant dense<0.000000e+00> : vector<8x128xf32>
    %397 = tpu.matmul %396, %16, %cst_88 {dimension_numbers = #tpu.dot_dimension_numbers<[1], [0], [0], [1], [0, 0, 1, 1], [], []>} : vector<8x32xbf16>, vector<32x128xbf16>, vector<8x128xf32> -> vector<8x128xf32>
    %398 = arith.addf %395, %397 : vector<8x128xf32>
    %399 = arith.mulf %398, %11 : vector<8x128xf32>
    %400 = math.tanh %399 : vector<8x128xf32>
    %401 = arith.mulf %400, %11 : vector<8x128xf32>
    %402 = arith.addf %401, %14 : vector<8x128xf32>
    %403 = vector.extract_strided_slice %402 {offsets = [0, 0], sizes = [8, 32], strides = [1, 1]} : vector<8x128xf32> to vector<8x32xf32>
    %404 = vector.extract_strided_slice %402 {offsets = [0, 32], sizes = [8, 32], strides = [1, 1]} : vector<8x128xf32> to vector<8x32xf32>
    %405 = vector.extract_strided_slice %402 {offsets = [0, 64], sizes = [8, 32], strides = [1, 1]} : vector<8x128xf32> to vector<8x32xf32>
    %406 = vector.extract_strided_slice %402 {offsets = [0, 96], sizes = [8, 32], strides = [1, 1]} : vector<8x128xf32> to vector<8x32xf32>
    %407 = arith.mulf %404, %370 : vector<8x32xf32>
    %408 = arith.mulf %403, %405 : vector<8x32xf32>
    %409 = arith.addf %407, %408 : vector<8x32xf32>
    %410 = math.tanh %409 : vector<8x32xf32>
    %411 = arith.mulf %406, %410 : vector<8x32xf32>
    %412 = tpu.concatenate %411, %389 in 1 : vector<8x32xf32>, vector<8x32xf32> -> vector<8x64xf32>
    %413 = arith.truncf %412 : vector<8x64xf32> to vector<8x64xbf16>
    %cst_89 = arith.constant dense<0.000000e+00> : vector<8x128xf32>
    %414 = tpu.matmul %413, %18, %cst_89 {dimension_numbers = #tpu.dot_dimension_numbers<[1], [0], [0], [1], [0, 0, 1, 1], [], []>} : vector<8x64xbf16>, vector<64x128xbf16>, vector<8x128xf32> -> vector<8x128xf32>
    %415 = arith.addf %414, %22 : vector<8x128xf32>
    %416 = arith.mulf %415, %11 : vector<8x128xf32>
    %417 = math.tanh %416 : vector<8x128xf32>
    %418 = arith.mulf %417, %11 : vector<8x128xf32>
    %419 = arith.addf %418, %14 : vector<8x128xf32>
    %420 = vector.extract_strided_slice %419 {offsets = [0, 0], sizes = [8, 32], strides = [1, 1]} : vector<8x128xf32> to vector<8x32xf32>
    %421 = vector.extract_strided_slice %419 {offsets = [0, 32], sizes = [8, 32], strides = [1, 1]} : vector<8x128xf32> to vector<8x32xf32>
    %422 = vector.extract_strided_slice %419 {offsets = [0, 64], sizes = [8, 32], strides = [1, 1]} : vector<8x128xf32> to vector<8x32xf32>
    %423 = vector.extract_strided_slice %419 {offsets = [0, 96], sizes = [8, 32], strides = [1, 1]} : vector<8x128xf32> to vector<8x32xf32>
    %424 = arith.mulf %421, %387 : vector<8x32xf32>
    %425 = arith.mulf %420, %422 : vector<8x32xf32>
    %426 = arith.addf %424, %425 : vector<8x32xf32>
    %427 = math.tanh %426 : vector<8x32xf32>
    %428 = arith.mulf %423, %427 : vector<8x32xf32>
    %c4_i32_90 = arith.constant 4 : i32
    %429 = arith.muli %c2_i32_75, %c4_i32_90 : i32
    %c2_i32_91 = arith.constant 2 : i32
    %430 = arith.addi %429, %c2_i32_91 : i32
    %c0_92 = arith.constant 0 : index
    %431 = arith.index_cast %430 : i32 to index
    %c0_93 = arith.constant 0 : index
    %c0_94 = arith.constant 0 : index
    %432 = vector.load %arg2[%c0_92, %431, %c0_93, %c0_94] : memref<1x12x8x128xbf16, #tpu.memory_space<vmem>>, vector<1x1x8x128xbf16>
    %433 = vector.shape_cast %432 : vector<1x1x8x128xbf16> to vector<8x128xbf16>
    %434 = arith.extf %433 : vector<8x128xbf16> to vector<8x128xf32>
    %435 = arith.truncf %411 : vector<8x32xf32> to vector<8x32xbf16>
    %cst_95 = arith.constant dense<0.000000e+00> : vector<8x128xf32>
    %436 = tpu.matmul %435, %16, %cst_95 {dimension_numbers = #tpu.dot_dimension_numbers<[1], [0], [0], [1], [0, 0, 1, 1], [], []>} : vector<8x32xbf16>, vector<32x128xbf16>, vector<8x128xf32> -> vector<8x128xf32>
    %437 = arith.addf %434, %436 : vector<8x128xf32>
    %438 = arith.mulf %437, %11 : vector<8x128xf32>
    %439 = math.tanh %438 : vector<8x128xf32>
    %440 = arith.mulf %439, %11 : vector<8x128xf32>
    %441 = arith.addf %440, %14 : vector<8x128xf32>
    %442 = vector.extract_strided_slice %441 {offsets = [0, 0], sizes = [8, 32], strides = [1, 1]} : vector<8x128xf32> to vector<8x32xf32>
    %443 = vector.extract_strided_slice %441 {offsets = [0, 32], sizes = [8, 32], strides = [1, 1]} : vector<8x128xf32> to vector<8x32xf32>
    %444 = vector.extract_strided_slice %441 {offsets = [0, 64], sizes = [8, 32], strides = [1, 1]} : vector<8x128xf32> to vector<8x32xf32>
    %445 = vector.extract_strided_slice %441 {offsets = [0, 96], sizes = [8, 32], strides = [1, 1]} : vector<8x128xf32> to vector<8x32xf32>
    %446 = arith.mulf %443, %409 : vector<8x32xf32>
    %447 = arith.mulf %442, %444 : vector<8x32xf32>
    %448 = arith.addf %446, %447 : vector<8x32xf32>
    %449 = math.tanh %448 : vector<8x32xf32>
    %450 = arith.mulf %445, %449 : vector<8x32xf32>
    %451 = tpu.concatenate %450, %428 in 1 : vector<8x32xf32>, vector<8x32xf32> -> vector<8x64xf32>
    %452 = arith.truncf %451 : vector<8x64xf32> to vector<8x64xbf16>
    %cst_96 = arith.constant dense<0.000000e+00> : vector<8x128xf32>
    %453 = tpu.matmul %452, %18, %cst_96 {dimension_numbers = #tpu.dot_dimension_numbers<[1], [0], [0], [1], [0, 0, 1, 1], [], []>} : vector<8x64xbf16>, vector<64x128xbf16>, vector<8x128xf32> -> vector<8x128xf32>
    %454 = arith.addf %453, %22 : vector<8x128xf32>
    %455 = arith.mulf %454, %11 : vector<8x128xf32>
    %456 = math.tanh %455 : vector<8x128xf32>
    %457 = arith.mulf %456, %11 : vector<8x128xf32>
    %458 = arith.addf %457, %14 : vector<8x128xf32>
    %459 = vector.extract_strided_slice %458 {offsets = [0, 0], sizes = [8, 32], strides = [1, 1]} : vector<8x128xf32> to vector<8x32xf32>
    %460 = vector.extract_strided_slice %458 {offsets = [0, 32], sizes = [8, 32], strides = [1, 1]} : vector<8x128xf32> to vector<8x32xf32>
    %461 = vector.extract_strided_slice %458 {offsets = [0, 64], sizes = [8, 32], strides = [1, 1]} : vector<8x128xf32> to vector<8x32xf32>
    %462 = vector.extract_strided_slice %458 {offsets = [0, 96], sizes = [8, 32], strides = [1, 1]} : vector<8x128xf32> to vector<8x32xf32>
    %463 = arith.mulf %460, %426 : vector<8x32xf32>
    %464 = arith.mulf %459, %461 : vector<8x32xf32>
    %465 = arith.addf %463, %464 : vector<8x32xf32>
    %466 = math.tanh %465 : vector<8x32xf32>
    %467 = arith.mulf %462, %466 : vector<8x32xf32>
    %c4_i32_97 = arith.constant 4 : i32
    %468 = arith.muli %c2_i32_75, %c4_i32_97 : i32
    %c3_i32_98 = arith.constant 3 : i32
    %469 = arith.addi %468, %c3_i32_98 : i32
    %c0_99 = arith.constant 0 : index
    %470 = arith.index_cast %469 : i32 to index
    %c0_100 = arith.constant 0 : index
    %c0_101 = arith.constant 0 : index
    %471 = vector.load %arg2[%c0_99, %470, %c0_100, %c0_101] : memref<1x12x8x128xbf16, #tpu.memory_space<vmem>>, vector<1x1x8x128xbf16>
    %472 = vector.shape_cast %471 : vector<1x1x8x128xbf16> to vector<8x128xbf16>
    %473 = arith.extf %472 : vector<8x128xbf16> to vector<8x128xf32>
    %474 = arith.truncf %450 : vector<8x32xf32> to vector<8x32xbf16>
    %cst_102 = arith.constant dense<0.000000e+00> : vector<8x128xf32>
    %475 = tpu.matmul %474, %16, %cst_102 {dimension_numbers = #tpu.dot_dimension_numbers<[1], [0], [0], [1], [0, 0, 1, 1], [], []>} : vector<8x32xbf16>, vector<32x128xbf16>, vector<8x128xf32> -> vector<8x128xf32>
    %476 = arith.addf %473, %475 : vector<8x128xf32>
    %477 = arith.mulf %476, %11 : vector<8x128xf32>
    %478 = math.tanh %477 : vector<8x128xf32>
    %479 = arith.mulf %478, %11 : vector<8x128xf32>
    %480 = arith.addf %479, %14 : vector<8x128xf32>
    %481 = vector.extract_strided_slice %480 {offsets = [0, 0], sizes = [8, 32], strides = [1, 1]} : vector<8x128xf32> to vector<8x32xf32>
    %482 = vector.extract_strided_slice %480 {offsets = [0, 32], sizes = [8, 32], strides = [1, 1]} : vector<8x128xf32> to vector<8x32xf32>
    %483 = vector.extract_strided_slice %480 {offsets = [0, 64], sizes = [8, 32], strides = [1, 1]} : vector<8x128xf32> to vector<8x32xf32>
    %484 = vector.extract_strided_slice %480 {offsets = [0, 96], sizes = [8, 32], strides = [1, 1]} : vector<8x128xf32> to vector<8x32xf32>
    %485 = arith.mulf %482, %448 : vector<8x32xf32>
    %486 = arith.mulf %481, %483 : vector<8x32xf32>
    %487 = arith.addf %485, %486 : vector<8x32xf32>
    %488 = math.tanh %487 : vector<8x32xf32>
    %489 = arith.mulf %484, %488 : vector<8x32xf32>
    %490 = tpu.concatenate %489, %467 in 1 : vector<8x32xf32>, vector<8x32xf32> -> vector<8x64xf32>
    %491 = arith.truncf %490 : vector<8x64xf32> to vector<8x64xbf16>
    %cst_103 = arith.constant dense<0.000000e+00> : vector<8x128xf32>
    %492 = tpu.matmul %491, %18, %cst_103 {dimension_numbers = #tpu.dot_dimension_numbers<[1], [0], [0], [1], [0, 0, 1, 1], [], []>} : vector<8x64xbf16>, vector<64x128xbf16>, vector<8x128xf32> -> vector<8x128xf32>
    %493 = arith.addf %492, %22 : vector<8x128xf32>
    %494 = arith.mulf %493, %11 : vector<8x128xf32>
    %495 = math.tanh %494 : vector<8x128xf32>
    %496 = arith.mulf %495, %11 : vector<8x128xf32>
    %497 = arith.addf %496, %14 : vector<8x128xf32>
    %498 = vector.extract_strided_slice %497 {offsets = [0, 0], sizes = [8, 32], strides = [1, 1]} : vector<8x128xf32> to vector<8x32xf32>
    %499 = vector.extract_strided_slice %497 {offsets = [0, 32], sizes = [8, 32], strides = [1, 1]} : vector<8x128xf32> to vector<8x32xf32>
    %500 = vector.extract_strided_slice %497 {offsets = [0, 64], sizes = [8, 32], strides = [1, 1]} : vector<8x128xf32> to vector<8x32xf32>
    %501 = vector.extract_strided_slice %497 {offsets = [0, 96], sizes = [8, 32], strides = [1, 1]} : vector<8x128xf32> to vector<8x32xf32>
    %502 = arith.mulf %499, %465 : vector<8x32xf32>
    %503 = arith.mulf %498, %500 : vector<8x32xf32>
    %504 = arith.addf %502, %503 : vector<8x32xf32>
    %505 = math.tanh %504 : vector<8x32xf32>
    %506 = arith.mulf %501, %505 : vector<8x32xf32>
    %507 = tpu.concatenate %389, %428, %467, %506 in 1 : vector<8x32xf32>, vector<8x32xf32>, vector<8x32xf32>, vector<8x32xf32> -> vector<8x128xf32>
    %c0_104 = arith.constant 0 : index
    %508 = arith.index_cast %c2_i32_75 : i32 to index
    %c0_105 = arith.constant 0 : index
    %c0_106 = arith.constant 0 : index
    %509 = vector.load %arg6[%c0_104, %508, %c0_105, %c0_106] : memref<1x3x8x128xf32, #tpu.memory_space<vmem>>, vector<1x1x8x128xf32>
    %510 = vector.shape_cast %509 : vector<1x1x8x128xf32> to vector<8x128xf32>
    %511 = vector.shape_cast %507 : vector<8x128xf32> to vector<1x1x8x128xf32>
    tpu.vector_store %arg6[%c0_104, %508, %c0_105, %c0_106], %511 {strides = array<i32>} : memref<1x3x8x128xf32, #tpu.memory_space<vmem>>, vector<1x1x8x128xf32>,
    %c3_i32_107 = arith.constant 3 : i32
    %512 = tpu.concatenate %489, %487, %506, %504 in 1 : vector<8x32xf32>, vector<8x32xf32>, vector<8x32xf32>, vector<8x32xf32> -> vector<8x128xf32>
    %c0_108 = arith.constant 0 : index
    %c0_109 = arith.constant 0 : index
    %c0_110 = arith.constant 0 : index
    %513 = vector.load %arg7[%c0_108, %c0_109, %c0_110] : memref<1x8x128xf32, #tpu.memory_space<vmem>>, vector<1x8x128xf32>
    %514 = vector.shape_cast %513 : vector<1x8x128xf32> to vector<8x128xf32>
    %515 = vector.shape_cast %512 : vector<8x128xf32> to vector<1x8x128xf32>
    tpu.vector_store %arg7[%c0_108, %c0_109, %c0_110], %515 {strides = array<i32>} : memref<1x8x128xf32, #tpu.memory_space<vmem>>, vector<1x8x128xf32>,
    return
  }
  func.func @transform_0(%arg0: i32, %arg1: i32) -> (i32, i32, i32, i32) {
    %c0_i32 = arith.constant 0 : i32
    %c0_i32_0 = arith.constant 0 : i32
    %c0_i32_1 = arith.constant 0 : i32
    return %arg0, %arg1, %c0_i32, %c0_i32_0 : i32, i32, i32, i32
  }
  func.func @transform_1(%arg0: i32, %arg1: i32) -> (i32, i32, i32) {
    %c0_i32 = arith.constant 0 : i32
    %c0_i32_0 = arith.constant 0 : i32
    %c0_i32_1 = arith.constant 0 : i32
    return %arg0, %c0_i32, %c0_i32_0 : i32, i32, i32
  }
  func.func @transform_2(%arg0: i32, %arg1: i32) -> (i32, i32, i32) {
    %c0_i32 = arith.constant 0 : i32
    %c0_i32_0 = arith.constant 0 : i32
    %c0_i32_1 = arith.constant 0 : i32
    return %arg0, %c0_i32, %c0_i32_0 : i32, i32, i32
  }
  func.func @transform_3(%arg0: i32, %arg1: i32) -> (i32, i32, i32) {
    %c0_i32 = arith.constant 0 : i32
    %c0_i32_0 = arith.constant 0 : i32
    %c0_i32_1 = arith.constant 0 : i32
    return %arg0, %c0_i32, %c0_i32_0 : i32, i32, i32
  }
  func.func @transform_4(%arg0: i32, %arg1: i32) -> (i32, i32, i32, i32) {
    %c0_i32 = arith.constant 0 : i32
    %c0_i32_0 = arith.constant 0 : i32
    %c0_i32_1 = arith.constant 0 : i32
    return %arg0, %arg1, %c0_i32, %c0_i32_0 : i32, i32, i32, i32
  }
}

module attributes {stable_mosaic.version = 11 : i64} {
  func.func @_fused_lstm2_kernel(%arg0: i32, %arg1: i32, %arg2: memref<2x12x8x128xbf16, #tpu.memory_space<vmem>>, %arg3: memref<2x32x128xbf16, #tpu.memory_space<vmem>>, %arg4: memref<2x64x128xbf16, #tpu.memory_space<vmem>>, %arg5: memref<2x1x128xf32, #tpu.memory_space<vmem>>, %arg6: memref<2x3x8x128xf32, #tpu.memory_space<vmem>>, %arg7: memref<2x8x128xf32, #tpu.memory_space<vmem>>) attributes {dimension_semantics = [#tpu.dimension_semantics<parallel>, #tpu.dimension_semantics<arbitrary>], iteration_bounds = array<i64: 2, 1>, scalar_prefetch = 0 : i64, scratch_operands = 1 : i64, tpu.core_type = #tpu.core_type<tc>, window_params = [{transform_indices = @transform_0, window_bounds = array<i64: 2, 12, 8, 128>}, {transform_indices = @transform_1, window_bounds = array<i64: 2, 32, 128>}, {transform_indices = @transform_2, window_bounds = array<i64: 2, 64, 128>}, {transform_indices = @transform_3, window_bounds = array<i64: 2, 1, 128>}, {transform_indices = @transform_4, window_bounds = array<i64: 2, 3, 8, 128>}]} {
    %c0_i32 = arith.constant 0 : i32
    %0 = arith.cmpi eq, %arg1, %c0_i32 : i32
    %1 = arith.extui %0 : i1 to i32
    %c0_i32_0 = arith.constant 0 : i32
    %2 = arith.cmpi ne, %1, %c0_i32_0 : i32
    scf.if %2 {
      %cst_218 = arith.constant 0.000000e+00 : f32
      %1017 = vector.broadcast %cst_218 : f32 to vector<2x8x128xf32>
      %c0_219 = arith.constant 0 : index
      %c0_220 = arith.constant 0 : index
      %c0_221 = arith.constant 0 : index
      %1018 = vector.load %arg7[%c0_219, %c0_220, %c0_221] : memref<2x8x128xf32, #tpu.memory_space<vmem>>, vector<2x8x128xf32>
      tpu.vector_store %arg7[%c0_219, %c0_220, %c0_221], %1017 {strides = array<i32>} : memref<2x8x128xf32, #tpu.memory_space<vmem>>, vector<2x8x128xf32>,
    } else {
    }
    %3 = tpu.iota {dimensions = array<i32: 1>} : vector<8x128xi32>
    %c64_i32 = arith.constant 64 : i32
    %4 = vector.broadcast %c64_i32 : i32 to vector<8x128xi32>
    %5 = arith.cmpi sge, %3, %4 : vector<8x128xi32>
    %c96_i32 = arith.constant 96 : i32
    %6 = vector.broadcast %c96_i32 : i32 to vector<8x128xi32>
    %7 = arith.cmpi slt, %3, %6 : vector<8x128xi32>
    %8 = arith.andi %5, %7 : vector<8x128xi1>
    %cst = arith.constant 1.000000e+00 : f32
    %cst_1 = arith.constant 5.000000e-01 : f32
    %9 = vector.broadcast %cst : f32 to vector<8x128xf32>
    %10 = vector.broadcast %cst_1 : f32 to vector<8x128xf32>
    %11 = arith.select %8, %9, %10 : vector<8x128xi1>, vector<8x128xf32>
    %cst_2 = arith.constant 0.000000e+00 : f32
    %cst_3 = arith.constant 5.000000e-01 : f32
    %12 = vector.broadcast %cst_2 : f32 to vector<8x128xf32>
    %13 = vector.broadcast %cst_3 : f32 to vector<8x128xf32>
    %14 = arith.select %8, %12, %13 : vector<8x128xi1>, vector<8x128xf32>
    %c0 = arith.constant 0 : index
    %c0_4 = arith.constant 0 : index
    %c0_5 = arith.constant 0 : index
    %15 = vector.load %arg3[%c0, %c0_4, %c0_5] : memref<2x32x128xbf16, #tpu.memory_space<vmem>>, vector<1x32x128xbf16>
    %16 = vector.shape_cast %15 : vector<1x32x128xbf16> to vector<32x128xbf16>
    %c1 = arith.constant 1 : index
    %c0_6 = arith.constant 0 : index
    %c0_7 = arith.constant 0 : index
    %17 = vector.load %arg3[%c1, %c0_6, %c0_7] : memref<2x32x128xbf16, #tpu.memory_space<vmem>>, vector<1x32x128xbf16>
    %18 = vector.shape_cast %17 : vector<1x32x128xbf16> to vector<32x128xbf16>
    %c0_8 = arith.constant 0 : index
    %c0_9 = arith.constant 0 : index
    %c0_10 = arith.constant 0 : index
    %19 = vector.load %arg4[%c0_8, %c0_9, %c0_10] : memref<2x64x128xbf16, #tpu.memory_space<vmem>>, vector<1x64x128xbf16>
    %20 = vector.shape_cast %19 : vector<1x64x128xbf16> to vector<64x128xbf16>
    %c1_11 = arith.constant 1 : index
    %c0_12 = arith.constant 0 : index
    %c0_13 = arith.constant 0 : index
    %21 = vector.load %arg4[%c1_11, %c0_12, %c0_13] : memref<2x64x128xbf16, #tpu.memory_space<vmem>>, vector<1x64x128xbf16>
    %22 = vector.shape_cast %21 : vector<1x64x128xbf16> to vector<64x128xbf16>
    %c0_14 = arith.constant 0 : index
    %c0_15 = arith.constant 0 : index
    %c0_16 = arith.constant 0 : index
    %23 = vector.load %arg5[%c0_14, %c0_15, %c0_16] : memref<2x1x128xf32, #tpu.memory_space<vmem>>, vector<1x1x128xf32>
    %24 = vector.shape_cast %23 : vector<1x1x128xf32> to vector<1x128xf32>
    %25 = vector.shape_cast %24 : vector<1x128xf32> to vector<1x128xf32>
    %26 = vector.broadcast %25 : vector<1x128xf32> to vector<8x128xf32>
    %c1_17 = arith.constant 1 : index
    %c0_18 = arith.constant 0 : index
    %c0_19 = arith.constant 0 : index
    %27 = vector.load %arg5[%c1_17, %c0_18, %c0_19] : memref<2x1x128xf32, #tpu.memory_space<vmem>>, vector<1x1x128xf32>
    %28 = vector.shape_cast %27 : vector<1x1x128xf32> to vector<1x128xf32>
    %29 = vector.shape_cast %28 : vector<1x128xf32> to vector<1x128xf32>
    %30 = vector.broadcast %29 : vector<1x128xf32> to vector<8x128xf32>
    %c0_20 = arith.constant 0 : index
    %c0_21 = arith.constant 0 : index
    %c0_22 = arith.constant 0 : index
    %31 = vector.load %arg7[%c0_20, %c0_21, %c0_22] : memref<2x8x128xf32, #tpu.memory_space<vmem>>, vector<1x8x128xf32>
    %32 = vector.shape_cast %31 : vector<1x8x128xf32> to vector<8x128xf32>
    %33 = vector.extract_strided_slice %32 {offsets = [0, 0], sizes = [8, 32], strides = [1, 1]} : vector<8x128xf32> to vector<8x32xf32>
    %34 = vector.extract_strided_slice %32 {offsets = [0, 32], sizes = [8, 32], strides = [1, 1]} : vector<8x128xf32> to vector<8x32xf32>
    %35 = vector.extract_strided_slice %32 {offsets = [0, 64], sizes = [8, 32], strides = [1, 1]} : vector<8x128xf32> to vector<8x32xf32>
    %36 = vector.extract_strided_slice %32 {offsets = [0, 96], sizes = [8, 32], strides = [1, 1]} : vector<8x128xf32> to vector<8x32xf32>
    %c1_23 = arith.constant 1 : index
    %c0_24 = arith.constant 0 : index
    %c0_25 = arith.constant 0 : index
    %37 = vector.load %arg7[%c1_23, %c0_24, %c0_25] : memref<2x8x128xf32, #tpu.memory_space<vmem>>, vector<1x8x128xf32>
    %38 = vector.shape_cast %37 : vector<1x8x128xf32> to vector<8x128xf32>
    %39 = vector.extract_strided_slice %38 {offsets = [0, 0], sizes = [8, 32], strides = [1, 1]} : vector<8x128xf32> to vector<8x32xf32>
    %40 = vector.extract_strided_slice %38 {offsets = [0, 32], sizes = [8, 32], strides = [1, 1]} : vector<8x128xf32> to vector<8x32xf32>
    %41 = vector.extract_strided_slice %38 {offsets = [0, 64], sizes = [8, 32], strides = [1, 1]} : vector<8x128xf32> to vector<8x32xf32>
    %42 = vector.extract_strided_slice %38 {offsets = [0, 96], sizes = [8, 32], strides = [1, 1]} : vector<8x128xf32> to vector<8x32xf32>
    %c0_i32_26 = arith.constant 0 : i32
    %c4_i32 = arith.constant 4 : i32
    %43 = arith.muli %c0_i32_26, %c4_i32 : i32
    %c0_i32_27 = arith.constant 0 : i32
    %44 = arith.addi %43, %c0_i32_27 : i32
    %c0_28 = arith.constant 0 : index
    %45 = arith.index_cast %44 : i32 to index
    %c0_29 = arith.constant 0 : index
    %c0_30 = arith.constant 0 : index
    %46 = vector.load %arg2[%c0_28, %45, %c0_29, %c0_30] : memref<2x12x8x128xbf16, #tpu.memory_space<vmem>>, vector<1x1x8x128xbf16>
    %47 = vector.shape_cast %46 : vector<1x1x8x128xbf16> to vector<8x128xbf16>
    %48 = arith.extf %47 : vector<8x128xbf16> to vector<8x128xf32>
    %49 = arith.truncf %33 : vector<8x32xf32> to vector<8x32xbf16>
    %cst_31 = arith.constant dense<0.000000e+00> : vector<8x128xf32>
    %50 = tpu.matmul %49, %16, %cst_31 {dimension_numbers = #tpu.dot_dimension_numbers<[1], [0], [0], [1], [0, 0, 1, 1], [], []>} : vector<8x32xbf16>, vector<32x128xbf16>, vector<8x128xf32> -> vector<8x128xf32>
    %51 = arith.addf %48, %50 : vector<8x128xf32>
    %52 = arith.mulf %51, %11 : vector<8x128xf32>
    %53 = math.tanh %52 : vector<8x128xf32>
    %54 = arith.mulf %53, %11 : vector<8x128xf32>
    %55 = arith.addf %54, %14 : vector<8x128xf32>
    %56 = vector.extract_strided_slice %55 {offsets = [0, 0], sizes = [8, 32], strides = [1, 1]} : vector<8x128xf32> to vector<8x32xf32>
    %57 = vector.extract_strided_slice %55 {offsets = [0, 32], sizes = [8, 32], strides = [1, 1]} : vector<8x128xf32> to vector<8x32xf32>
    %58 = vector.extract_strided_slice %55 {offsets = [0, 64], sizes = [8, 32], strides = [1, 1]} : vector<8x128xf32> to vector<8x32xf32>
    %59 = vector.extract_strided_slice %55 {offsets = [0, 96], sizes = [8, 32], strides = [1, 1]} : vector<8x128xf32> to vector<8x32xf32>
    %60 = arith.mulf %57, %34 : vector<8x32xf32>
    %61 = arith.mulf %56, %58 : vector<8x32xf32>
    %62 = arith.addf %60, %61 : vector<8x32xf32>
    %63 = math.tanh %62 : vector<8x32xf32>
    %64 = arith.mulf %59, %63 : vector<8x32xf32>
    %65 = tpu.concatenate %64, %35 in 1 : vector<8x32xf32>, vector<8x32xf32> -> vector<8x64xf32>
    %66 = arith.truncf %65 : vector<8x64xf32> to vector<8x64xbf16>
    %cst_32 = arith.constant dense<0.000000e+00> : vector<8x128xf32>
    %67 = tpu.matmul %66, %20, %cst_32 {dimension_numbers = #tpu.dot_dimension_numbers<[1], [0], [0], [1], [0, 0, 1, 1], [], []>} : vector<8x64xbf16>, vector<64x128xbf16>, vector<8x128xf32> -> vector<8x128xf32>
    %68 = arith.addf %67, %26 : vector<8x128xf32>
    %69 = arith.mulf %68, %11 : vector<8x128xf32>
    %70 = math.tanh %69 : vector<8x128xf32>
    %71 = arith.mulf %70, %11 : vector<8x128xf32>
    %72 = arith.addf %71, %14 : vector<8x128xf32>
    %73 = vector.extract_strided_slice %72 {offsets = [0, 0], sizes = [8, 32], strides = [1, 1]} : vector<8x128xf32> to vector<8x32xf32>
    %74 = vector.extract_strided_slice %72 {offsets = [0, 32], sizes = [8, 32], strides = [1, 1]} : vector<8x128xf32> to vector<8x32xf32>
    %75 = vector.extract_strided_slice %72 {offsets = [0, 64], sizes = [8, 32], strides = [1, 1]} : vector<8x128xf32> to vector<8x32xf32>
    %76 = vector.extract_strided_slice %72 {offsets = [0, 96], sizes = [8, 32], strides = [1, 1]} : vector<8x128xf32> to vector<8x32xf32>
    %77 = arith.mulf %74, %36 : vector<8x32xf32>
    %78 = arith.mulf %73, %75 : vector<8x32xf32>
    %79 = arith.addf %77, %78 : vector<8x32xf32>
    %80 = math.tanh %79 : vector<8x32xf32>
    %81 = arith.mulf %76, %80 : vector<8x32xf32>
    %c4_i32_33 = arith.constant 4 : i32
    %82 = arith.muli %c0_i32_26, %c4_i32_33 : i32
    %c1_i32 = arith.constant 1 : i32
    %83 = arith.addi %82, %c1_i32 : i32
    %c0_34 = arith.constant 0 : index
    %84 = arith.index_cast %83 : i32 to index
    %c0_35 = arith.constant 0 : index
    %c0_36 = arith.constant 0 : index
    %85 = vector.load %arg2[%c0_34, %84, %c0_35, %c0_36] : memref<2x12x8x128xbf16, #tpu.memory_space<vmem>>, vector<1x1x8x128xbf16>
    %86 = vector.shape_cast %85 : vector<1x1x8x128xbf16> to vector<8x128xbf16>
    %87 = arith.extf %86 : vector<8x128xbf16> to vector<8x128xf32>
    %88 = arith.truncf %64 : vector<8x32xf32> to vector<8x32xbf16>
    %cst_37 = arith.constant dense<0.000000e+00> : vector<8x128xf32>
    %89 = tpu.matmul %88, %16, %cst_37 {dimension_numbers = #tpu.dot_dimension_numbers<[1], [0], [0], [1], [0, 0, 1, 1], [], []>} : vector<8x32xbf16>, vector<32x128xbf16>, vector<8x128xf32> -> vector<8x128xf32>
    %90 = arith.addf %87, %89 : vector<8x128xf32>
    %91 = arith.mulf %90, %11 : vector<8x128xf32>
    %92 = math.tanh %91 : vector<8x128xf32>
    %93 = arith.mulf %92, %11 : vector<8x128xf32>
    %94 = arith.addf %93, %14 : vector<8x128xf32>
    %95 = vector.extract_strided_slice %94 {offsets = [0, 0], sizes = [8, 32], strides = [1, 1]} : vector<8x128xf32> to vector<8x32xf32>
    %96 = vector.extract_strided_slice %94 {offsets = [0, 32], sizes = [8, 32], strides = [1, 1]} : vector<8x128xf32> to vector<8x32xf32>
    %97 = vector.extract_strided_slice %94 {offsets = [0, 64], sizes = [8, 32], strides = [1, 1]} : vector<8x128xf32> to vector<8x32xf32>
    %98 = vector.extract_strided_slice %94 {offsets = [0, 96], sizes = [8, 32], strides = [1, 1]} : vector<8x128xf32> to vector<8x32xf32>
    %99 = arith.mulf %96, %62 : vector<8x32xf32>
    %100 = arith.mulf %95, %97 : vector<8x32xf32>
    %101 = arith.addf %99, %100 : vector<8x32xf32>
    %102 = math.tanh %101 : vector<8x32xf32>
    %103 = arith.mulf %98, %102 : vector<8x32xf32>
    %104 = tpu.concatenate %103, %81 in 1 : vector<8x32xf32>, vector<8x32xf32> -> vector<8x64xf32>
    %105 = arith.truncf %104 : vector<8x64xf32> to vector<8x64xbf16>
    %cst_38 = arith.constant dense<0.000000e+00> : vector<8x128xf32>
    %106 = tpu.matmul %105, %20, %cst_38 {dimension_numbers = #tpu.dot_dimension_numbers<[1], [0], [0], [1], [0, 0, 1, 1], [], []>} : vector<8x64xbf16>, vector<64x128xbf16>, vector<8x128xf32> -> vector<8x128xf32>
    %107 = arith.addf %106, %26 : vector<8x128xf32>
    %108 = arith.mulf %107, %11 : vector<8x128xf32>
    %109 = math.tanh %108 : vector<8x128xf32>
    %110 = arith.mulf %109, %11 : vector<8x128xf32>
    %111 = arith.addf %110, %14 : vector<8x128xf32>
    %112 = vector.extract_strided_slice %111 {offsets = [0, 0], sizes = [8, 32], strides = [1, 1]} : vector<8x128xf32> to vector<8x32xf32>
    %113 = vector.extract_strided_slice %111 {offsets = [0, 32], sizes = [8, 32], strides = [1, 1]} : vector<8x128xf32> to vector<8x32xf32>
    %114 = vector.extract_strided_slice %111 {offsets = [0, 64], sizes = [8, 32], strides = [1, 1]} : vector<8x128xf32> to vector<8x32xf32>
    %115 = vector.extract_strided_slice %111 {offsets = [0, 96], sizes = [8, 32], strides = [1, 1]} : vector<8x128xf32> to vector<8x32xf32>
    %116 = arith.mulf %113, %79 : vector<8x32xf32>
    %117 = arith.mulf %112, %114 : vector<8x32xf32>
    %118 = arith.addf %116, %117 : vector<8x32xf32>
    %119 = math.tanh %118 : vector<8x32xf32>
    %120 = arith.mulf %115, %119 : vector<8x32xf32>
    %c4_i32_39 = arith.constant 4 : i32
    %121 = arith.muli %c0_i32_26, %c4_i32_39 : i32
    %c2_i32 = arith.constant 2 : i32
    %122 = arith.addi %121, %c2_i32 : i32
    %c0_40 = arith.constant 0 : index
    %123 = arith.index_cast %122 : i32 to index
    %c0_41 = arith.constant 0 : index
    %c0_42 = arith.constant 0 : index
    %124 = vector.load %arg2[%c0_40, %123, %c0_41, %c0_42] : memref<2x12x8x128xbf16, #tpu.memory_space<vmem>>, vector<1x1x8x128xbf16>
    %125 = vector.shape_cast %124 : vector<1x1x8x128xbf16> to vector<8x128xbf16>
    %126 = arith.extf %125 : vector<8x128xbf16> to vector<8x128xf32>
    %127 = arith.truncf %103 : vector<8x32xf32> to vector<8x32xbf16>
    %cst_43 = arith.constant dense<0.000000e+00> : vector<8x128xf32>
    %128 = tpu.matmul %127, %16, %cst_43 {dimension_numbers = #tpu.dot_dimension_numbers<[1], [0], [0], [1], [0, 0, 1, 1], [], []>} : vector<8x32xbf16>, vector<32x128xbf16>, vector<8x128xf32> -> vector<8x128xf32>
    %129 = arith.addf %126, %128 : vector<8x128xf32>
    %130 = arith.mulf %129, %11 : vector<8x128xf32>
    %131 = math.tanh %130 : vector<8x128xf32>
    %132 = arith.mulf %131, %11 : vector<8x128xf32>
    %133 = arith.addf %132, %14 : vector<8x128xf32>
    %134 = vector.extract_strided_slice %133 {offsets = [0, 0], sizes = [8, 32], strides = [1, 1]} : vector<8x128xf32> to vector<8x32xf32>
    %135 = vector.extract_strided_slice %133 {offsets = [0, 32], sizes = [8, 32], strides = [1, 1]} : vector<8x128xf32> to vector<8x32xf32>
    %136 = vector.extract_strided_slice %133 {offsets = [0, 64], sizes = [8, 32], strides = [1, 1]} : vector<8x128xf32> to vector<8x32xf32>
    %137 = vector.extract_strided_slice %133 {offsets = [0, 96], sizes = [8, 32], strides = [1, 1]} : vector<8x128xf32> to vector<8x32xf32>
    %138 = arith.mulf %135, %101 : vector<8x32xf32>
    %139 = arith.mulf %134, %136 : vector<8x32xf32>
    %140 = arith.addf %138, %139 : vector<8x32xf32>
    %141 = math.tanh %140 : vector<8x32xf32>
    %142 = arith.mulf %137, %141 : vector<8x32xf32>
    %143 = tpu.concatenate %142, %120 in 1 : vector<8x32xf32>, vector<8x32xf32> -> vector<8x64xf32>
    %144 = arith.truncf %143 : vector<8x64xf32> to vector<8x64xbf16>
    %cst_44 = arith.constant dense<0.000000e+00> : vector<8x128xf32>
    %145 = tpu.matmul %144, %20, %cst_44 {dimension_numbers = #tpu.dot_dimension_numbers<[1], [0], [0], [1], [0, 0, 1, 1], [], []>} : vector<8x64xbf16>, vector<64x128xbf16>, vector<8x128xf32> -> vector<8x128xf32>
    %146 = arith.addf %145, %26 : vector<8x128xf32>
    %147 = arith.mulf %146, %11 : vector<8x128xf32>
    %148 = math.tanh %147 : vector<8x128xf32>
    %149 = arith.mulf %148, %11 : vector<8x128xf32>
    %150 = arith.addf %149, %14 : vector<8x128xf32>
    %151 = vector.extract_strided_slice %150 {offsets = [0, 0], sizes = [8, 32], strides = [1, 1]} : vector<8x128xf32> to vector<8x32xf32>
    %152 = vector.extract_strided_slice %150 {offsets = [0, 32], sizes = [8, 32], strides = [1, 1]} : vector<8x128xf32> to vector<8x32xf32>
    %153 = vector.extract_strided_slice %150 {offsets = [0, 64], sizes = [8, 32], strides = [1, 1]} : vector<8x128xf32> to vector<8x32xf32>
    %154 = vector.extract_strided_slice %150 {offsets = [0, 96], sizes = [8, 32], strides = [1, 1]} : vector<8x128xf32> to vector<8x32xf32>
    %155 = arith.mulf %152, %118 : vector<8x32xf32>
    %156 = arith.mulf %151, %153 : vector<8x32xf32>
    %157 = arith.addf %155, %156 : vector<8x32xf32>
    %158 = math.tanh %157 : vector<8x32xf32>
    %159 = arith.mulf %154, %158 : vector<8x32xf32>
    %c4_i32_45 = arith.constant 4 : i32
    %160 = arith.muli %c0_i32_26, %c4_i32_45 : i32
    %c3_i32 = arith.constant 3 : i32
    %161 = arith.addi %160, %c3_i32 : i32
    %c0_46 = arith.constant 0 : index
    %162 = arith.index_cast %161 : i32 to index
    %c0_47 = arith.constant 0 : index
    %c0_48 = arith.constant 0 : index
    %163 = vector.load %arg2[%c0_46, %162, %c0_47, %c0_48] : memref<2x12x8x128xbf16, #tpu.memory_space<vmem>>, vector<1x1x8x128xbf16>
    %164 = vector.shape_cast %163 : vector<1x1x8x128xbf16> to vector<8x128xbf16>
    %165 = arith.extf %164 : vector<8x128xbf16> to vector<8x128xf32>
    %166 = arith.truncf %142 : vector<8x32xf32> to vector<8x32xbf16>
    %cst_49 = arith.constant dense<0.000000e+00> : vector<8x128xf32>
    %167 = tpu.matmul %166, %16, %cst_49 {dimension_numbers = #tpu.dot_dimension_numbers<[1], [0], [0], [1], [0, 0, 1, 1], [], []>} : vector<8x32xbf16>, vector<32x128xbf16>, vector<8x128xf32> -> vector<8x128xf32>
    %168 = arith.addf %165, %167 : vector<8x128xf32>
    %169 = arith.mulf %168, %11 : vector<8x128xf32>
    %170 = math.tanh %169 : vector<8x128xf32>
    %171 = arith.mulf %170, %11 : vector<8x128xf32>
    %172 = arith.addf %171, %14 : vector<8x128xf32>
    %173 = vector.extract_strided_slice %172 {offsets = [0, 0], sizes = [8, 32], strides = [1, 1]} : vector<8x128xf32> to vector<8x32xf32>
    %174 = vector.extract_strided_slice %172 {offsets = [0, 32], sizes = [8, 32], strides = [1, 1]} : vector<8x128xf32> to vector<8x32xf32>
    %175 = vector.extract_strided_slice %172 {offsets = [0, 64], sizes = [8, 32], strides = [1, 1]} : vector<8x128xf32> to vector<8x32xf32>
    %176 = vector.extract_strided_slice %172 {offsets = [0, 96], sizes = [8, 32], strides = [1, 1]} : vector<8x128xf32> to vector<8x32xf32>
    %177 = arith.mulf %174, %140 : vector<8x32xf32>
    %178 = arith.mulf %173, %175 : vector<8x32xf32>
    %179 = arith.addf %177, %178 : vector<8x32xf32>
    %180 = math.tanh %179 : vector<8x32xf32>
    %181 = arith.mulf %176, %180 : vector<8x32xf32>
    %182 = tpu.concatenate %181, %159 in 1 : vector<8x32xf32>, vector<8x32xf32> -> vector<8x64xf32>
    %183 = arith.truncf %182 : vector<8x64xf32> to vector<8x64xbf16>
    %cst_50 = arith.constant dense<0.000000e+00> : vector<8x128xf32>
    %184 = tpu.matmul %183, %20, %cst_50 {dimension_numbers = #tpu.dot_dimension_numbers<[1], [0], [0], [1], [0, 0, 1, 1], [], []>} : vector<8x64xbf16>, vector<64x128xbf16>, vector<8x128xf32> -> vector<8x128xf32>
    %185 = arith.addf %184, %26 : vector<8x128xf32>
    %186 = arith.mulf %185, %11 : vector<8x128xf32>
    %187 = math.tanh %186 : vector<8x128xf32>
    %188 = arith.mulf %187, %11 : vector<8x128xf32>
    %189 = arith.addf %188, %14 : vector<8x128xf32>
    %190 = vector.extract_strided_slice %189 {offsets = [0, 0], sizes = [8, 32], strides = [1, 1]} : vector<8x128xf32> to vector<8x32xf32>
    %191 = vector.extract_strided_slice %189 {offsets = [0, 32], sizes = [8, 32], strides = [1, 1]} : vector<8x128xf32> to vector<8x32xf32>
    %192 = vector.extract_strided_slice %189 {offsets = [0, 64], sizes = [8, 32], strides = [1, 1]} : vector<8x128xf32> to vector<8x32xf32>
    %193 = vector.extract_strided_slice %189 {offsets = [0, 96], sizes = [8, 32], strides = [1, 1]} : vector<8x128xf32> to vector<8x32xf32>
    %194 = arith.mulf %191, %157 : vector<8x32xf32>
    %195 = arith.mulf %190, %192 : vector<8x32xf32>
    %196 = arith.addf %194, %195 : vector<8x32xf32>
    %197 = math.tanh %196 : vector<8x32xf32>
    %198 = arith.mulf %193, %197 : vector<8x32xf32>
    %199 = tpu.concatenate %81, %120, %159, %198 in 1 : vector<8x32xf32>, vector<8x32xf32>, vector<8x32xf32>, vector<8x32xf32> -> vector<8x128xf32>
    %c0_51 = arith.constant 0 : index
    %200 = arith.index_cast %c0_i32_26 : i32 to index
    %c0_52 = arith.constant 0 : index
    %c0_53 = arith.constant 0 : index
    %201 = vector.load %arg6[%c0_51, %200, %c0_52, %c0_53] : memref<2x3x8x128xf32, #tpu.memory_space<vmem>>, vector<1x1x8x128xf32>
    %202 = vector.shape_cast %201 : vector<1x1x8x128xf32> to vector<8x128xf32>
    %203 = vector.shape_cast %199 : vector<8x128xf32> to vector<1x1x8x128xf32>
    tpu.vector_store %arg6[%c0_51, %200, %c0_52, %c0_53], %203 {strides = array<i32>} : memref<2x3x8x128xf32, #tpu.memory_space<vmem>>, vector<1x1x8x128xf32>,
    %c4_i32_54 = arith.constant 4 : i32
    %204 = arith.muli %c0_i32_26, %c4_i32_54 : i32
    %c0_i32_55 = arith.constant 0 : i32
    %205 = arith.addi %204, %c0_i32_55 : i32
    %c1_56 = arith.constant 1 : index
    %206 = arith.index_cast %205 : i32 to index
    %c0_57 = arith.constant 0 : index
    %c0_58 = arith.constant 0 : index
    %207 = vector.load %arg2[%c1_56, %206, %c0_57, %c0_58] : memref<2x12x8x128xbf16, #tpu.memory_space<vmem>>, vector<1x1x8x128xbf16>
    %208 = vector.shape_cast %207 : vector<1x1x8x128xbf16> to vector<8x128xbf16>
    %209 = arith.extf %208 : vector<8x128xbf16> to vector<8x128xf32>
    %210 = arith.truncf %39 : vector<8x32xf32> to vector<8x32xbf16>
    %cst_59 = arith.constant dense<0.000000e+00> : vector<8x128xf32>
    %211 = tpu.matmul %210, %18, %cst_59 {dimension_numbers = #tpu.dot_dimension_numbers<[1], [0], [0], [1], [0, 0, 1, 1], [], []>} : vector<8x32xbf16>, vector<32x128xbf16>, vector<8x128xf32> -> vector<8x128xf32>
    %212 = arith.addf %209, %211 : vector<8x128xf32>
    %213 = arith.mulf %212, %11 : vector<8x128xf32>
    %214 = math.tanh %213 : vector<8x128xf32>
    %215 = arith.mulf %214, %11 : vector<8x128xf32>
    %216 = arith.addf %215, %14 : vector<8x128xf32>
    %217 = vector.extract_strided_slice %216 {offsets = [0, 0], sizes = [8, 32], strides = [1, 1]} : vector<8x128xf32> to vector<8x32xf32>
    %218 = vector.extract_strided_slice %216 {offsets = [0, 32], sizes = [8, 32], strides = [1, 1]} : vector<8x128xf32> to vector<8x32xf32>
    %219 = vector.extract_strided_slice %216 {offsets = [0, 64], sizes = [8, 32], strides = [1, 1]} : vector<8x128xf32> to vector<8x32xf32>
    %220 = vector.extract_strided_slice %216 {offsets = [0, 96], sizes = [8, 32], strides = [1, 1]} : vector<8x128xf32> to vector<8x32xf32>
    %221 = arith.mulf %218, %40 : vector<8x32xf32>
    %222 = arith.mulf %217, %219 : vector<8x32xf32>
    %223 = arith.addf %221, %222 : vector<8x32xf32>
    %224 = math.tanh %223 : vector<8x32xf32>
    %225 = arith.mulf %220, %224 : vector<8x32xf32>
    %226 = tpu.concatenate %225, %41 in 1 : vector<8x32xf32>, vector<8x32xf32> -> vector<8x64xf32>
    %227 = arith.truncf %226 : vector<8x64xf32> to vector<8x64xbf16>
    %cst_60 = arith.constant dense<0.000000e+00> : vector<8x128xf32>
    %228 = tpu.matmul %227, %22, %cst_60 {dimension_numbers = #tpu.dot_dimension_numbers<[1], [0], [0], [1], [0, 0, 1, 1], [], []>} : vector<8x64xbf16>, vector<64x128xbf16>, vector<8x128xf32> -> vector<8x128xf32>
    %229 = arith.addf %228, %30 : vector<8x128xf32>
    %230 = arith.mulf %229, %11 : vector<8x128xf32>
    %231 = math.tanh %230 : vector<8x128xf32>
    %232 = arith.mulf %231, %11 : vector<8x128xf32>
    %233 = arith.addf %232, %14 : vector<8x128xf32>
    %234 = vector.extract_strided_slice %233 {offsets = [0, 0], sizes = [8, 32], strides = [1, 1]} : vector<8x128xf32> to vector<8x32xf32>
    %235 = vector.extract_strided_slice %233 {offsets = [0, 32], sizes = [8, 32], strides = [1, 1]} : vector<8x128xf32> to vector<8x32xf32>
    %236 = vector.extract_strided_slice %233 {offsets = [0, 64], sizes = [8, 32], strides = [1, 1]} : vector<8x128xf32> to vector<8x32xf32>
    %237 = vector.extract_strided_slice %233 {offsets = [0, 96], sizes = [8, 32], strides = [1, 1]} : vector<8x128xf32> to vector<8x32xf32>
    %238 = arith.mulf %235, %42 : vector<8x32xf32>
    %239 = arith.mulf %234, %236 : vector<8x32xf32>
    %240 = arith.addf %238, %239 : vector<8x32xf32>
    %241 = math.tanh %240 : vector<8x32xf32>
    %242 = arith.mulf %237, %241 : vector<8x32xf32>
    %c4_i32_61 = arith.constant 4 : i32
    %243 = arith.muli %c0_i32_26, %c4_i32_61 : i32
    %c1_i32_62 = arith.constant 1 : i32
    %244 = arith.addi %243, %c1_i32_62 : i32
    %c1_63 = arith.constant 1 : index
    %245 = arith.index_cast %244 : i32 to index
    %c0_64 = arith.constant 0 : index
    %c0_65 = arith.constant 0 : index
    %246 = vector.load %arg2[%c1_63, %245, %c0_64, %c0_65] : memref<2x12x8x128xbf16, #tpu.memory_space<vmem>>, vector<1x1x8x128xbf16>
    %247 = vector.shape_cast %246 : vector<1x1x8x128xbf16> to vector<8x128xbf16>
    %248 = arith.extf %247 : vector<8x128xbf16> to vector<8x128xf32>
    %249 = arith.truncf %225 : vector<8x32xf32> to vector<8x32xbf16>
    %cst_66 = arith.constant dense<0.000000e+00> : vector<8x128xf32>
    %250 = tpu.matmul %249, %18, %cst_66 {dimension_numbers = #tpu.dot_dimension_numbers<[1], [0], [0], [1], [0, 0, 1, 1], [], []>} : vector<8x32xbf16>, vector<32x128xbf16>, vector<8x128xf32> -> vector<8x128xf32>
    %251 = arith.addf %248, %250 : vector<8x128xf32>
    %252 = arith.mulf %251, %11 : vector<8x128xf32>
    %253 = math.tanh %252 : vector<8x128xf32>
    %254 = arith.mulf %253, %11 : vector<8x128xf32>
    %255 = arith.addf %254, %14 : vector<8x128xf32>
    %256 = vector.extract_strided_slice %255 {offsets = [0, 0], sizes = [8, 32], strides = [1, 1]} : vector<8x128xf32> to vector<8x32xf32>
    %257 = vector.extract_strided_slice %255 {offsets = [0, 32], sizes = [8, 32], strides = [1, 1]} : vector<8x128xf32> to vector<8x32xf32>
    %258 = vector.extract_strided_slice %255 {offsets = [0, 64], sizes = [8, 32], strides = [1, 1]} : vector<8x128xf32> to vector<8x32xf32>
    %259 = vector.extract_strided_slice %255 {offsets = [0, 96], sizes = [8, 32], strides = [1, 1]} : vector<8x128xf32> to vector<8x32xf32>
    %260 = arith.mulf %257, %223 : vector<8x32xf32>
    %261 = arith.mulf %256, %258 : vector<8x32xf32>
    %262 = arith.addf %260, %261 : vector<8x32xf32>
    %263 = math.tanh %262 : vector<8x32xf32>
    %264 = arith.mulf %259, %263 : vector<8x32xf32>
    %265 = tpu.concatenate %264, %242 in 1 : vector<8x32xf32>, vector<8x32xf32> -> vector<8x64xf32>
    %266 = arith.truncf %265 : vector<8x64xf32> to vector<8x64xbf16>
    %cst_67 = arith.constant dense<0.000000e+00> : vector<8x128xf32>
    %267 = tpu.matmul %266, %22, %cst_67 {dimension_numbers = #tpu.dot_dimension_numbers<[1], [0], [0], [1], [0, 0, 1, 1], [], []>} : vector<8x64xbf16>, vector<64x128xbf16>, vector<8x128xf32> -> vector<8x128xf32>
    %268 = arith.addf %267, %30 : vector<8x128xf32>
    %269 = arith.mulf %268, %11 : vector<8x128xf32>
    %270 = math.tanh %269 : vector<8x128xf32>
    %271 = arith.mulf %270, %11 : vector<8x128xf32>
    %272 = arith.addf %271, %14 : vector<8x128xf32>
    %273 = vector.extract_strided_slice %272 {offsets = [0, 0], sizes = [8, 32], strides = [1, 1]} : vector<8x128xf32> to vector<8x32xf32>
    %274 = vector.extract_strided_slice %272 {offsets = [0, 32], sizes = [8, 32], strides = [1, 1]} : vector<8x128xf32> to vector<8x32xf32>
    %275 = vector.extract_strided_slice %272 {offsets = [0, 64], sizes = [8, 32], strides = [1, 1]} : vector<8x128xf32> to vector<8x32xf32>
    %276 = vector.extract_strided_slice %272 {offsets = [0, 96], sizes = [8, 32], strides = [1, 1]} : vector<8x128xf32> to vector<8x32xf32>
    %277 = arith.mulf %274, %240 : vector<8x32xf32>
    %278 = arith.mulf %273, %275 : vector<8x32xf32>
    %279 = arith.addf %277, %278 : vector<8x32xf32>
    %280 = math.tanh %279 : vector<8x32xf32>
    %281 = arith.mulf %276, %280 : vector<8x32xf32>
    %c4_i32_68 = arith.constant 4 : i32
    %282 = arith.muli %c0_i32_26, %c4_i32_68 : i32
    %c2_i32_69 = arith.constant 2 : i32
    %283 = arith.addi %282, %c2_i32_69 : i32
    %c1_70 = arith.constant 1 : index
    %284 = arith.index_cast %283 : i32 to index
    %c0_71 = arith.constant 0 : index
    %c0_72 = arith.constant 0 : index
    %285 = vector.load %arg2[%c1_70, %284, %c0_71, %c0_72] : memref<2x12x8x128xbf16, #tpu.memory_space<vmem>>, vector<1x1x8x128xbf16>
    %286 = vector.shape_cast %285 : vector<1x1x8x128xbf16> to vector<8x128xbf16>
    %287 = arith.extf %286 : vector<8x128xbf16> to vector<8x128xf32>
    %288 = arith.truncf %264 : vector<8x32xf32> to vector<8x32xbf16>
    %cst_73 = arith.constant dense<0.000000e+00> : vector<8x128xf32>
    %289 = tpu.matmul %288, %18, %cst_73 {dimension_numbers = #tpu.dot_dimension_numbers<[1], [0], [0], [1], [0, 0, 1, 1], [], []>} : vector<8x32xbf16>, vector<32x128xbf16>, vector<8x128xf32> -> vector<8x128xf32>
    %290 = arith.addf %287, %289 : vector<8x128xf32>
    %291 = arith.mulf %290, %11 : vector<8x128xf32>
    %292 = math.tanh %291 : vector<8x128xf32>
    %293 = arith.mulf %292, %11 : vector<8x128xf32>
    %294 = arith.addf %293, %14 : vector<8x128xf32>
    %295 = vector.extract_strided_slice %294 {offsets = [0, 0], sizes = [8, 32], strides = [1, 1]} : vector<8x128xf32> to vector<8x32xf32>
    %296 = vector.extract_strided_slice %294 {offsets = [0, 32], sizes = [8, 32], strides = [1, 1]} : vector<8x128xf32> to vector<8x32xf32>
    %297 = vector.extract_strided_slice %294 {offsets = [0, 64], sizes = [8, 32], strides = [1, 1]} : vector<8x128xf32> to vector<8x32xf32>
    %298 = vector.extract_strided_slice %294 {offsets = [0, 96], sizes = [8, 32], strides = [1, 1]} : vector<8x128xf32> to vector<8x32xf32>
    %299 = arith.mulf %296, %262 : vector<8x32xf32>
    %300 = arith.mulf %295, %297 : vector<8x32xf32>
    %301 = arith.addf %299, %300 : vector<8x32xf32>
    %302 = math.tanh %301 : vector<8x32xf32>
    %303 = arith.mulf %298, %302 : vector<8x32xf32>
    %304 = tpu.concatenate %303, %281 in 1 : vector<8x32xf32>, vector<8x32xf32> -> vector<8x64xf32>
    %305 = arith.truncf %304 : vector<8x64xf32> to vector<8x64xbf16>
    %cst_74 = arith.constant dense<0.000000e+00> : vector<8x128xf32>
    %306 = tpu.matmul %305, %22, %cst_74 {dimension_numbers = #tpu.dot_dimension_numbers<[1], [0], [0], [1], [0, 0, 1, 1], [], []>} : vector<8x64xbf16>, vector<64x128xbf16>, vector<8x128xf32> -> vector<8x128xf32>
    %307 = arith.addf %306, %30 : vector<8x128xf32>
    %308 = arith.mulf %307, %11 : vector<8x128xf32>
    %309 = math.tanh %308 : vector<8x128xf32>
    %310 = arith.mulf %309, %11 : vector<8x128xf32>
    %311 = arith.addf %310, %14 : vector<8x128xf32>
    %312 = vector.extract_strided_slice %311 {offsets = [0, 0], sizes = [8, 32], strides = [1, 1]} : vector<8x128xf32> to vector<8x32xf32>
    %313 = vector.extract_strided_slice %311 {offsets = [0, 32], sizes = [8, 32], strides = [1, 1]} : vector<8x128xf32> to vector<8x32xf32>
    %314 = vector.extract_strided_slice %311 {offsets = [0, 64], sizes = [8, 32], strides = [1, 1]} : vector<8x128xf32> to vector<8x32xf32>
    %315 = vector.extract_strided_slice %311 {offsets = [0, 96], sizes = [8, 32], strides = [1, 1]} : vector<8x128xf32> to vector<8x32xf32>
    %316 = arith.mulf %313, %279 : vector<8x32xf32>
    %317 = arith.mulf %312, %314 : vector<8x32xf32>
    %318 = arith.addf %316, %317 : vector<8x32xf32>
    %319 = math.tanh %318 : vector<8x32xf32>
    %320 = arith.mulf %315, %319 : vector<8x32xf32>
    %c4_i32_75 = arith.constant 4 : i32
    %321 = arith.muli %c0_i32_26, %c4_i32_75 : i32
    %c3_i32_76 = arith.constant 3 : i32
    %322 = arith.addi %321, %c3_i32_76 : i32
    %c1_77 = arith.constant 1 : index
    %323 = arith.index_cast %322 : i32 to index
    %c0_78 = arith.constant 0 : index
    %c0_79 = arith.constant 0 : index
    %324 = vector.load %arg2[%c1_77, %323, %c0_78, %c0_79] : memref<2x12x8x128xbf16, #tpu.memory_space<vmem>>, vector<1x1x8x128xbf16>
    %325 = vector.shape_cast %324 : vector<1x1x8x128xbf16> to vector<8x128xbf16>
    %326 = arith.extf %325 : vector<8x128xbf16> to vector<8x128xf32>
    %327 = arith.truncf %303 : vector<8x32xf32> to vector<8x32xbf16>
    %cst_80 = arith.constant dense<0.000000e+00> : vector<8x128xf32>
    %328 = tpu.matmul %327, %18, %cst_80 {dimension_numbers = #tpu.dot_dimension_numbers<[1], [0], [0], [1], [0, 0, 1, 1], [], []>} : vector<8x32xbf16>, vector<32x128xbf16>, vector<8x128xf32> -> vector<8x128xf32>
    %329 = arith.addf %326, %328 : vector<8x128xf32>
    %330 = arith.mulf %329, %11 : vector<8x128xf32>
    %331 = math.tanh %330 : vector<8x128xf32>
    %332 = arith.mulf %331, %11 : vector<8x128xf32>
    %333 = arith.addf %332, %14 : vector<8x128xf32>
    %334 = vector.extract_strided_slice %333 {offsets = [0, 0], sizes = [8, 32], strides = [1, 1]} : vector<8x128xf32> to vector<8x32xf32>
    %335 = vector.extract_strided_slice %333 {offsets = [0, 32], sizes = [8, 32], strides = [1, 1]} : vector<8x128xf32> to vector<8x32xf32>
    %336 = vector.extract_strided_slice %333 {offsets = [0, 64], sizes = [8, 32], strides = [1, 1]} : vector<8x128xf32> to vector<8x32xf32>
    %337 = vector.extract_strided_slice %333 {offsets = [0, 96], sizes = [8, 32], strides = [1, 1]} : vector<8x128xf32> to vector<8x32xf32>
    %338 = arith.mulf %335, %301 : vector<8x32xf32>
    %339 = arith.mulf %334, %336 : vector<8x32xf32>
    %340 = arith.addf %338, %339 : vector<8x32xf32>
    %341 = math.tanh %340 : vector<8x32xf32>
    %342 = arith.mulf %337, %341 : vector<8x32xf32>
    %343 = tpu.concatenate %342, %320 in 1 : vector<8x32xf32>, vector<8x32xf32> -> vector<8x64xf32>
    %344 = arith.truncf %343 : vector<8x64xf32> to vector<8x64xbf16>
    %cst_81 = arith.constant dense<0.000000e+00> : vector<8x128xf32>
    %345 = tpu.matmul %344, %22, %cst_81 {dimension_numbers = #tpu.dot_dimension_numbers<[1], [0], [0], [1], [0, 0, 1, 1], [], []>} : vector<8x64xbf16>, vector<64x128xbf16>, vector<8x128xf32> -> vector<8x128xf32>
    %346 = arith.addf %345, %30 : vector<8x128xf32>
    %347 = arith.mulf %346, %11 : vector<8x128xf32>
    %348 = math.tanh %347 : vector<8x128xf32>
    %349 = arith.mulf %348, %11 : vector<8x128xf32>
    %350 = arith.addf %349, %14 : vector<8x128xf32>
    %351 = vector.extract_strided_slice %350 {offsets = [0, 0], sizes = [8, 32], strides = [1, 1]} : vector<8x128xf32> to vector<8x32xf32>
    %352 = vector.extract_strided_slice %350 {offsets = [0, 32], sizes = [8, 32], strides = [1, 1]} : vector<8x128xf32> to vector<8x32xf32>
    %353 = vector.extract_strided_slice %350 {offsets = [0, 64], sizes = [8, 32], strides = [1, 1]} : vector<8x128xf32> to vector<8x32xf32>
    %354 = vector.extract_strided_slice %350 {offsets = [0, 96], sizes = [8, 32], strides = [1, 1]} : vector<8x128xf32> to vector<8x32xf32>
    %355 = arith.mulf %352, %318 : vector<8x32xf32>
    %356 = arith.mulf %351, %353 : vector<8x32xf32>
    %357 = arith.addf %355, %356 : vector<8x32xf32>
    %358 = math.tanh %357 : vector<8x32xf32>
    %359 = arith.mulf %354, %358 : vector<8x32xf32>
    %360 = tpu.concatenate %242, %281, %320, %359 in 1 : vector<8x32xf32>, vector<8x32xf32>, vector<8x32xf32>, vector<8x32xf32> -> vector<8x128xf32>
    %c1_82 = arith.constant 1 : index
    %361 = arith.index_cast %c0_i32_26 : i32 to index
    %c0_83 = arith.constant 0 : index
    %c0_84 = arith.constant 0 : index
    %362 = vector.load %arg6[%c1_82, %361, %c0_83, %c0_84] : memref<2x3x8x128xf32, #tpu.memory_space<vmem>>, vector<1x1x8x128xf32>
    %363 = vector.shape_cast %362 : vector<1x1x8x128xf32> to vector<8x128xf32>
    %364 = vector.shape_cast %360 : vector<8x128xf32> to vector<1x1x8x128xf32>
    tpu.vector_store %arg6[%c1_82, %361, %c0_83, %c0_84], %364 {strides = array<i32>} : memref<2x3x8x128xf32, #tpu.memory_space<vmem>>, vector<1x1x8x128xf32>,
    %c1_i32_85 = arith.constant 1 : i32
    %c4_i32_86 = arith.constant 4 : i32
    %365 = arith.muli %c1_i32_85, %c4_i32_86 : i32
    %c0_i32_87 = arith.constant 0 : i32
    %366 = arith.addi %365, %c0_i32_87 : i32
    %c0_88 = arith.constant 0 : index
    %367 = arith.index_cast %366 : i32 to index
    %c0_89 = arith.constant 0 : index
    %c0_90 = arith.constant 0 : index
    %368 = vector.load %arg2[%c0_88, %367, %c0_89, %c0_90] : memref<2x12x8x128xbf16, #tpu.memory_space<vmem>>, vector<1x1x8x128xbf16>
    %369 = vector.shape_cast %368 : vector<1x1x8x128xbf16> to vector<8x128xbf16>
    %370 = arith.extf %369 : vector<8x128xbf16> to vector<8x128xf32>
    %371 = arith.truncf %181 : vector<8x32xf32> to vector<8x32xbf16>
    %cst_91 = arith.constant dense<0.000000e+00> : vector<8x128xf32>
    %372 = tpu.matmul %371, %16, %cst_91 {dimension_numbers = #tpu.dot_dimension_numbers<[1], [0], [0], [1], [0, 0, 1, 1], [], []>} : vector<8x32xbf16>, vector<32x128xbf16>, vector<8x128xf32> -> vector<8x128xf32>
    %373 = arith.addf %370, %372 : vector<8x128xf32>
    %374 = arith.mulf %373, %11 : vector<8x128xf32>
    %375 = math.tanh %374 : vector<8x128xf32>
    %376 = arith.mulf %375, %11 : vector<8x128xf32>
    %377 = arith.addf %376, %14 : vector<8x128xf32>
    %378 = vector.extract_strided_slice %377 {offsets = [0, 0], sizes = [8, 32], strides = [1, 1]} : vector<8x128xf32> to vector<8x32xf32>
    %379 = vector.extract_strided_slice %377 {offsets = [0, 32], sizes = [8, 32], strides = [1, 1]} : vector<8x128xf32> to vector<8x32xf32>
    %380 = vector.extract_strided_slice %377 {offsets = [0, 64], sizes = [8, 32], strides = [1, 1]} : vector<8x128xf32> to vector<8x32xf32>
    %381 = vector.extract_strided_slice %377 {offsets = [0, 96], sizes = [8, 32], strides = [1, 1]} : vector<8x128xf32> to vector<8x32xf32>
    %382 = arith.mulf %379, %179 : vector<8x32xf32>
    %383 = arith.mulf %378, %380 : vector<8x32xf32>
    %384 = arith.addf %382, %383 : vector<8x32xf32>
    %385 = math.tanh %384 : vector<8x32xf32>
    %386 = arith.mulf %381, %385 : vector<8x32xf32>
    %387 = tpu.concatenate %386, %198 in 1 : vector<8x32xf32>, vector<8x32xf32> -> vector<8x64xf32>
    %388 = arith.truncf %387 : vector<8x64xf32> to vector<8x64xbf16>
    %cst_92 = arith.constant dense<0.000000e+00> : vector<8x128xf32>
    %389 = tpu.matmul %388, %20, %cst_92 {dimension_numbers = #tpu.dot_dimension_numbers<[1], [0], [0], [1], [0, 0, 1, 1], [], []>} : vector<8x64xbf16>, vector<64x128xbf16>, vector<8x128xf32> -> vector<8x128xf32>
    %390 = arith.addf %389, %26 : vector<8x128xf32>
    %391 = arith.mulf %390, %11 : vector<8x128xf32>
    %392 = math.tanh %391 : vector<8x128xf32>
    %393 = arith.mulf %392, %11 : vector<8x128xf32>
    %394 = arith.addf %393, %14 : vector<8x128xf32>
    %395 = vector.extract_strided_slice %394 {offsets = [0, 0], sizes = [8, 32], strides = [1, 1]} : vector<8x128xf32> to vector<8x32xf32>
    %396 = vector.extract_strided_slice %394 {offsets = [0, 32], sizes = [8, 32], strides = [1, 1]} : vector<8x128xf32> to vector<8x32xf32>
    %397 = vector.extract_strided_slice %394 {offsets = [0, 64], sizes = [8, 32], strides = [1, 1]} : vector<8x128xf32> to vector<8x32xf32>
    %398 = vector.extract_strided_slice %394 {offsets = [0, 96], sizes = [8, 32], strides = [1, 1]} : vector<8x128xf32> to vector<8x32xf32>
    %399 = arith.mulf %396, %196 : vector<8x32xf32>
    %400 = arith.mulf %395, %397 : vector<8x32xf32>
    %401 = arith.addf %399, %400 : vector<8x32xf32>
    %402 = math.tanh %401 : vector<8x32xf32>
    %403 = arith.mulf %398, %402 : vector<8x32xf32>
    %c4_i32_93 = arith.constant 4 : i32
    %404 = arith.muli %c1_i32_85, %c4_i32_93 : i32
    %c1_i32_94 = arith.constant 1 : i32
    %405 = arith.addi %404, %c1_i32_94 : i32
    %c0_95 = arith.constant 0 : index
    %406 = arith.index_cast %405 : i32 to index
    %c0_96 = arith.constant 0 : index
    %c0_97 = arith.constant 0 : index
    %407 = vector.load %arg2[%c0_95, %406, %c0_96, %c0_97] : memref<2x12x8x128xbf16, #tpu.memory_space<vmem>>, vector<1x1x8x128xbf16>
    %408 = vector.shape_cast %407 : vector<1x1x8x128xbf16> to vector<8x128xbf16>
    %409 = arith.extf %408 : vector<8x128xbf16> to vector<8x128xf32>
    %410 = arith.truncf %386 : vector<8x32xf32> to vector<8x32xbf16>
    %cst_98 = arith.constant dense<0.000000e+00> : vector<8x128xf32>
    %411 = tpu.matmul %410, %16, %cst_98 {dimension_numbers = #tpu.dot_dimension_numbers<[1], [0], [0], [1], [0, 0, 1, 1], [], []>} : vector<8x32xbf16>, vector<32x128xbf16>, vector<8x128xf32> -> vector<8x128xf32>
    %412 = arith.addf %409, %411 : vector<8x128xf32>
    %413 = arith.mulf %412, %11 : vector<8x128xf32>
    %414 = math.tanh %413 : vector<8x128xf32>
    %415 = arith.mulf %414, %11 : vector<8x128xf32>
    %416 = arith.addf %415, %14 : vector<8x128xf32>
    %417 = vector.extract_strided_slice %416 {offsets = [0, 0], sizes = [8, 32], strides = [1, 1]} : vector<8x128xf32> to vector<8x32xf32>
    %418 = vector.extract_strided_slice %416 {offsets = [0, 32], sizes = [8, 32], strides = [1, 1]} : vector<8x128xf32> to vector<8x32xf32>
    %419 = vector.extract_strided_slice %416 {offsets = [0, 64], sizes = [8, 32], strides = [1, 1]} : vector<8x128xf32> to vector<8x32xf32>
    %420 = vector.extract_strided_slice %416 {offsets = [0, 96], sizes = [8, 32], strides = [1, 1]} : vector<8x128xf32> to vector<8x32xf32>
    %421 = arith.mulf %418, %384 : vector<8x32xf32>
    %422 = arith.mulf %417, %419 : vector<8x32xf32>
    %423 = arith.addf %421, %422 : vector<8x32xf32>
    %424 = math.tanh %423 : vector<8x32xf32>
    %425 = arith.mulf %420, %424 : vector<8x32xf32>
    %426 = tpu.concatenate %425, %403 in 1 : vector<8x32xf32>, vector<8x32xf32> -> vector<8x64xf32>
    %427 = arith.truncf %426 : vector<8x64xf32> to vector<8x64xbf16>
    %cst_99 = arith.constant dense<0.000000e+00> : vector<8x128xf32>
    %428 = tpu.matmul %427, %20, %cst_99 {dimension_numbers = #tpu.dot_dimension_numbers<[1], [0], [0], [1], [0, 0, 1, 1], [], []>} : vector<8x64xbf16>, vector<64x128xbf16>, vector<8x128xf32> -> vector<8x128xf32>
    %429 = arith.addf %428, %26 : vector<8x128xf32>
    %430 = arith.mulf %429, %11 : vector<8x128xf32>
    %431 = math.tanh %430 : vector<8x128xf32>
    %432 = arith.mulf %431, %11 : vector<8x128xf32>
    %433 = arith.addf %432, %14 : vector<8x128xf32>
    %434 = vector.extract_strided_slice %433 {offsets = [0, 0], sizes = [8, 32], strides = [1, 1]} : vector<8x128xf32> to vector<8x32xf32>
    %435 = vector.extract_strided_slice %433 {offsets = [0, 32], sizes = [8, 32], strides = [1, 1]} : vector<8x128xf32> to vector<8x32xf32>
    %436 = vector.extract_strided_slice %433 {offsets = [0, 64], sizes = [8, 32], strides = [1, 1]} : vector<8x128xf32> to vector<8x32xf32>
    %437 = vector.extract_strided_slice %433 {offsets = [0, 96], sizes = [8, 32], strides = [1, 1]} : vector<8x128xf32> to vector<8x32xf32>
    %438 = arith.mulf %435, %401 : vector<8x32xf32>
    %439 = arith.mulf %434, %436 : vector<8x32xf32>
    %440 = arith.addf %438, %439 : vector<8x32xf32>
    %441 = math.tanh %440 : vector<8x32xf32>
    %442 = arith.mulf %437, %441 : vector<8x32xf32>
    %c4_i32_100 = arith.constant 4 : i32
    %443 = arith.muli %c1_i32_85, %c4_i32_100 : i32
    %c2_i32_101 = arith.constant 2 : i32
    %444 = arith.addi %443, %c2_i32_101 : i32
    %c0_102 = arith.constant 0 : index
    %445 = arith.index_cast %444 : i32 to index
    %c0_103 = arith.constant 0 : index
    %c0_104 = arith.constant 0 : index
    %446 = vector.load %arg2[%c0_102, %445, %c0_103, %c0_104] : memref<2x12x8x128xbf16, #tpu.memory_space<vmem>>, vector<1x1x8x128xbf16>
    %447 = vector.shape_cast %446 : vector<1x1x8x128xbf16> to vector<8x128xbf16>
    %448 = arith.extf %447 : vector<8x128xbf16> to vector<8x128xf32>
    %449 = arith.truncf %425 : vector<8x32xf32> to vector<8x32xbf16>
    %cst_105 = arith.constant dense<0.000000e+00> : vector<8x128xf32>
    %450 = tpu.matmul %449, %16, %cst_105 {dimension_numbers = #tpu.dot_dimension_numbers<[1], [0], [0], [1], [0, 0, 1, 1], [], []>} : vector<8x32xbf16>, vector<32x128xbf16>, vector<8x128xf32> -> vector<8x128xf32>
    %451 = arith.addf %448, %450 : vector<8x128xf32>
    %452 = arith.mulf %451, %11 : vector<8x128xf32>
    %453 = math.tanh %452 : vector<8x128xf32>
    %454 = arith.mulf %453, %11 : vector<8x128xf32>
    %455 = arith.addf %454, %14 : vector<8x128xf32>
    %456 = vector.extract_strided_slice %455 {offsets = [0, 0], sizes = [8, 32], strides = [1, 1]} : vector<8x128xf32> to vector<8x32xf32>
    %457 = vector.extract_strided_slice %455 {offsets = [0, 32], sizes = [8, 32], strides = [1, 1]} : vector<8x128xf32> to vector<8x32xf32>
    %458 = vector.extract_strided_slice %455 {offsets = [0, 64], sizes = [8, 32], strides = [1, 1]} : vector<8x128xf32> to vector<8x32xf32>
    %459 = vector.extract_strided_slice %455 {offsets = [0, 96], sizes = [8, 32], strides = [1, 1]} : vector<8x128xf32> to vector<8x32xf32>
    %460 = arith.mulf %457, %423 : vector<8x32xf32>
    %461 = arith.mulf %456, %458 : vector<8x32xf32>
    %462 = arith.addf %460, %461 : vector<8x32xf32>
    %463 = math.tanh %462 : vector<8x32xf32>
    %464 = arith.mulf %459, %463 : vector<8x32xf32>
    %465 = tpu.concatenate %464, %442 in 1 : vector<8x32xf32>, vector<8x32xf32> -> vector<8x64xf32>
    %466 = arith.truncf %465 : vector<8x64xf32> to vector<8x64xbf16>
    %cst_106 = arith.constant dense<0.000000e+00> : vector<8x128xf32>
    %467 = tpu.matmul %466, %20, %cst_106 {dimension_numbers = #tpu.dot_dimension_numbers<[1], [0], [0], [1], [0, 0, 1, 1], [], []>} : vector<8x64xbf16>, vector<64x128xbf16>, vector<8x128xf32> -> vector<8x128xf32>
    %468 = arith.addf %467, %26 : vector<8x128xf32>
    %469 = arith.mulf %468, %11 : vector<8x128xf32>
    %470 = math.tanh %469 : vector<8x128xf32>
    %471 = arith.mulf %470, %11 : vector<8x128xf32>
    %472 = arith.addf %471, %14 : vector<8x128xf32>
    %473 = vector.extract_strided_slice %472 {offsets = [0, 0], sizes = [8, 32], strides = [1, 1]} : vector<8x128xf32> to vector<8x32xf32>
    %474 = vector.extract_strided_slice %472 {offsets = [0, 32], sizes = [8, 32], strides = [1, 1]} : vector<8x128xf32> to vector<8x32xf32>
    %475 = vector.extract_strided_slice %472 {offsets = [0, 64], sizes = [8, 32], strides = [1, 1]} : vector<8x128xf32> to vector<8x32xf32>
    %476 = vector.extract_strided_slice %472 {offsets = [0, 96], sizes = [8, 32], strides = [1, 1]} : vector<8x128xf32> to vector<8x32xf32>
    %477 = arith.mulf %474, %440 : vector<8x32xf32>
    %478 = arith.mulf %473, %475 : vector<8x32xf32>
    %479 = arith.addf %477, %478 : vector<8x32xf32>
    %480 = math.tanh %479 : vector<8x32xf32>
    %481 = arith.mulf %476, %480 : vector<8x32xf32>
    %c4_i32_107 = arith.constant 4 : i32
    %482 = arith.muli %c1_i32_85, %c4_i32_107 : i32
    %c3_i32_108 = arith.constant 3 : i32
    %483 = arith.addi %482, %c3_i32_108 : i32
    %c0_109 = arith.constant 0 : index
    %484 = arith.index_cast %483 : i32 to index
    %c0_110 = arith.constant 0 : index
    %c0_111 = arith.constant 0 : index
    %485 = vector.load %arg2[%c0_109, %484, %c0_110, %c0_111] : memref<2x12x8x128xbf16, #tpu.memory_space<vmem>>, vector<1x1x8x128xbf16>
    %486 = vector.shape_cast %485 : vector<1x1x8x128xbf16> to vector<8x128xbf16>
    %487 = arith.extf %486 : vector<8x128xbf16> to vector<8x128xf32>
    %488 = arith.truncf %464 : vector<8x32xf32> to vector<8x32xbf16>
    %cst_112 = arith.constant dense<0.000000e+00> : vector<8x128xf32>
    %489 = tpu.matmul %488, %16, %cst_112 {dimension_numbers = #tpu.dot_dimension_numbers<[1], [0], [0], [1], [0, 0, 1, 1], [], []>} : vector<8x32xbf16>, vector<32x128xbf16>, vector<8x128xf32> -> vector<8x128xf32>
    %490 = arith.addf %487, %489 : vector<8x128xf32>
    %491 = arith.mulf %490, %11 : vector<8x128xf32>
    %492 = math.tanh %491 : vector<8x128xf32>
    %493 = arith.mulf %492, %11 : vector<8x128xf32>
    %494 = arith.addf %493, %14 : vector<8x128xf32>
    %495 = vector.extract_strided_slice %494 {offsets = [0, 0], sizes = [8, 32], strides = [1, 1]} : vector<8x128xf32> to vector<8x32xf32>
    %496 = vector.extract_strided_slice %494 {offsets = [0, 32], sizes = [8, 32], strides = [1, 1]} : vector<8x128xf32> to vector<8x32xf32>
    %497 = vector.extract_strided_slice %494 {offsets = [0, 64], sizes = [8, 32], strides = [1, 1]} : vector<8x128xf32> to vector<8x32xf32>
    %498 = vector.extract_strided_slice %494 {offsets = [0, 96], sizes = [8, 32], strides = [1, 1]} : vector<8x128xf32> to vector<8x32xf32>
    %499 = arith.mulf %496, %462 : vector<8x32xf32>
    %500 = arith.mulf %495, %497 : vector<8x32xf32>
    %501 = arith.addf %499, %500 : vector<8x32xf32>
    %502 = math.tanh %501 : vector<8x32xf32>
    %503 = arith.mulf %498, %502 : vector<8x32xf32>
    %504 = tpu.concatenate %503, %481 in 1 : vector<8x32xf32>, vector<8x32xf32> -> vector<8x64xf32>
    %505 = arith.truncf %504 : vector<8x64xf32> to vector<8x64xbf16>
    %cst_113 = arith.constant dense<0.000000e+00> : vector<8x128xf32>
    %506 = tpu.matmul %505, %20, %cst_113 {dimension_numbers = #tpu.dot_dimension_numbers<[1], [0], [0], [1], [0, 0, 1, 1], [], []>} : vector<8x64xbf16>, vector<64x128xbf16>, vector<8x128xf32> -> vector<8x128xf32>
    %507 = arith.addf %506, %26 : vector<8x128xf32>
    %508 = arith.mulf %507, %11 : vector<8x128xf32>
    %509 = math.tanh %508 : vector<8x128xf32>
    %510 = arith.mulf %509, %11 : vector<8x128xf32>
    %511 = arith.addf %510, %14 : vector<8x128xf32>
    %512 = vector.extract_strided_slice %511 {offsets = [0, 0], sizes = [8, 32], strides = [1, 1]} : vector<8x128xf32> to vector<8x32xf32>
    %513 = vector.extract_strided_slice %511 {offsets = [0, 32], sizes = [8, 32], strides = [1, 1]} : vector<8x128xf32> to vector<8x32xf32>
    %514 = vector.extract_strided_slice %511 {offsets = [0, 64], sizes = [8, 32], strides = [1, 1]} : vector<8x128xf32> to vector<8x32xf32>
    %515 = vector.extract_strided_slice %511 {offsets = [0, 96], sizes = [8, 32], strides = [1, 1]} : vector<8x128xf32> to vector<8x32xf32>
    %516 = arith.mulf %513, %479 : vector<8x32xf32>
    %517 = arith.mulf %512, %514 : vector<8x32xf32>
    %518 = arith.addf %516, %517 : vector<8x32xf32>
    %519 = math.tanh %518 : vector<8x32xf32>
    %520 = arith.mulf %515, %519 : vector<8x32xf32>
    %521 = tpu.concatenate %403, %442, %481, %520 in 1 : vector<8x32xf32>, vector<8x32xf32>, vector<8x32xf32>, vector<8x32xf32> -> vector<8x128xf32>
    %c0_114 = arith.constant 0 : index
    %522 = arith.index_cast %c1_i32_85 : i32 to index
    %c0_115 = arith.constant 0 : index
    %c0_116 = arith.constant 0 : index
    %523 = vector.load %arg6[%c0_114, %522, %c0_115, %c0_116] : memref<2x3x8x128xf32, #tpu.memory_space<vmem>>, vector<1x1x8x128xf32>
    %524 = vector.shape_cast %523 : vector<1x1x8x128xf32> to vector<8x128xf32>
    %525 = vector.shape_cast %521 : vector<8x128xf32> to vector<1x1x8x128xf32>
    tpu.vector_store %arg6[%c0_114, %522, %c0_115, %c0_116], %525 {strides = array<i32>} : memref<2x3x8x128xf32, #tpu.memory_space<vmem>>, vector<1x1x8x128xf32>,
    %c4_i32_117 = arith.constant 4 : i32
    %526 = arith.muli %c1_i32_85, %c4_i32_117 : i32
    %c0_i32_118 = arith.constant 0 : i32
    %527 = arith.addi %526, %c0_i32_118 : i32
    %c1_119 = arith.constant 1 : index
    %528 = arith.index_cast %527 : i32 to index
    %c0_120 = arith.constant 0 : index
    %c0_121 = arith.constant 0 : index
    %529 = vector.load %arg2[%c1_119, %528, %c0_120, %c0_121] : memref<2x12x8x128xbf16, #tpu.memory_space<vmem>>, vector<1x1x8x128xbf16>
    %530 = vector.shape_cast %529 : vector<1x1x8x128xbf16> to vector<8x128xbf16>
    %531 = arith.extf %530 : vector<8x128xbf16> to vector<8x128xf32>
    %532 = arith.truncf %342 : vector<8x32xf32> to vector<8x32xbf16>
    %cst_122 = arith.constant dense<0.000000e+00> : vector<8x128xf32>
    %533 = tpu.matmul %532, %18, %cst_122 {dimension_numbers = #tpu.dot_dimension_numbers<[1], [0], [0], [1], [0, 0, 1, 1], [], []>} : vector<8x32xbf16>, vector<32x128xbf16>, vector<8x128xf32> -> vector<8x128xf32>
    %534 = arith.addf %531, %533 : vector<8x128xf32>
    %535 = arith.mulf %534, %11 : vector<8x128xf32>
    %536 = math.tanh %535 : vector<8x128xf32>
    %537 = arith.mulf %536, %11 : vector<8x128xf32>
    %538 = arith.addf %537, %14 : vector<8x128xf32>
    %539 = vector.extract_strided_slice %538 {offsets = [0, 0], sizes = [8, 32], strides = [1, 1]} : vector<8x128xf32> to vector<8x32xf32>
    %540 = vector.extract_strided_slice %538 {offsets = [0, 32], sizes = [8, 32], strides = [1, 1]} : vector<8x128xf32> to vector<8x32xf32>
    %541 = vector.extract_strided_slice %538 {offsets = [0, 64], sizes = [8, 32], strides = [1, 1]} : vector<8x128xf32> to vector<8x32xf32>
    %542 = vector.extract_strided_slice %538 {offsets = [0, 96], sizes = [8, 32], strides = [1, 1]} : vector<8x128xf32> to vector<8x32xf32>
    %543 = arith.mulf %540, %340 : vector<8x32xf32>
    %544 = arith.mulf %539, %541 : vector<8x32xf32>
    %545 = arith.addf %543, %544 : vector<8x32xf32>
    %546 = math.tanh %545 : vector<8x32xf32>
    %547 = arith.mulf %542, %546 : vector<8x32xf32>
    %548 = tpu.concatenate %547, %359 in 1 : vector<8x32xf32>, vector<8x32xf32> -> vector<8x64xf32>
    %549 = arith.truncf %548 : vector<8x64xf32> to vector<8x64xbf16>
    %cst_123 = arith.constant dense<0.000000e+00> : vector<8x128xf32>
    %550 = tpu.matmul %549, %22, %cst_123 {dimension_numbers = #tpu.dot_dimension_numbers<[1], [0], [0], [1], [0, 0, 1, 1], [], []>} : vector<8x64xbf16>, vector<64x128xbf16>, vector<8x128xf32> -> vector<8x128xf32>
    %551 = arith.addf %550, %30 : vector<8x128xf32>
    %552 = arith.mulf %551, %11 : vector<8x128xf32>
    %553 = math.tanh %552 : vector<8x128xf32>
    %554 = arith.mulf %553, %11 : vector<8x128xf32>
    %555 = arith.addf %554, %14 : vector<8x128xf32>
    %556 = vector.extract_strided_slice %555 {offsets = [0, 0], sizes = [8, 32], strides = [1, 1]} : vector<8x128xf32> to vector<8x32xf32>
    %557 = vector.extract_strided_slice %555 {offsets = [0, 32], sizes = [8, 32], strides = [1, 1]} : vector<8x128xf32> to vector<8x32xf32>
    %558 = vector.extract_strided_slice %555 {offsets = [0, 64], sizes = [8, 32], strides = [1, 1]} : vector<8x128xf32> to vector<8x32xf32>
    %559 = vector.extract_strided_slice %555 {offsets = [0, 96], sizes = [8, 32], strides = [1, 1]} : vector<8x128xf32> to vector<8x32xf32>
    %560 = arith.mulf %557, %357 : vector<8x32xf32>
    %561 = arith.mulf %556, %558 : vector<8x32xf32>
    %562 = arith.addf %560, %561 : vector<8x32xf32>
    %563 = math.tanh %562 : vector<8x32xf32>
    %564 = arith.mulf %559, %563 : vector<8x32xf32>
    %c4_i32_124 = arith.constant 4 : i32
    %565 = arith.muli %c1_i32_85, %c4_i32_124 : i32
    %c1_i32_125 = arith.constant 1 : i32
    %566 = arith.addi %565, %c1_i32_125 : i32
    %c1_126 = arith.constant 1 : index
    %567 = arith.index_cast %566 : i32 to index
    %c0_127 = arith.constant 0 : index
    %c0_128 = arith.constant 0 : index
    %568 = vector.load %arg2[%c1_126, %567, %c0_127, %c0_128] : memref<2x12x8x128xbf16, #tpu.memory_space<vmem>>, vector<1x1x8x128xbf16>
    %569 = vector.shape_cast %568 : vector<1x1x8x128xbf16> to vector<8x128xbf16>
    %570 = arith.extf %569 : vector<8x128xbf16> to vector<8x128xf32>
    %571 = arith.truncf %547 : vector<8x32xf32> to vector<8x32xbf16>
    %cst_129 = arith.constant dense<0.000000e+00> : vector<8x128xf32>
    %572 = tpu.matmul %571, %18, %cst_129 {dimension_numbers = #tpu.dot_dimension_numbers<[1], [0], [0], [1], [0, 0, 1, 1], [], []>} : vector<8x32xbf16>, vector<32x128xbf16>, vector<8x128xf32> -> vector<8x128xf32>
    %573 = arith.addf %570, %572 : vector<8x128xf32>
    %574 = arith.mulf %573, %11 : vector<8x128xf32>
    %575 = math.tanh %574 : vector<8x128xf32>
    %576 = arith.mulf %575, %11 : vector<8x128xf32>
    %577 = arith.addf %576, %14 : vector<8x128xf32>
    %578 = vector.extract_strided_slice %577 {offsets = [0, 0], sizes = [8, 32], strides = [1, 1]} : vector<8x128xf32> to vector<8x32xf32>
    %579 = vector.extract_strided_slice %577 {offsets = [0, 32], sizes = [8, 32], strides = [1, 1]} : vector<8x128xf32> to vector<8x32xf32>
    %580 = vector.extract_strided_slice %577 {offsets = [0, 64], sizes = [8, 32], strides = [1, 1]} : vector<8x128xf32> to vector<8x32xf32>
    %581 = vector.extract_strided_slice %577 {offsets = [0, 96], sizes = [8, 32], strides = [1, 1]} : vector<8x128xf32> to vector<8x32xf32>
    %582 = arith.mulf %579, %545 : vector<8x32xf32>
    %583 = arith.mulf %578, %580 : vector<8x32xf32>
    %584 = arith.addf %582, %583 : vector<8x32xf32>
    %585 = math.tanh %584 : vector<8x32xf32>
    %586 = arith.mulf %581, %585 : vector<8x32xf32>
    %587 = tpu.concatenate %586, %564 in 1 : vector<8x32xf32>, vector<8x32xf32> -> vector<8x64xf32>
    %588 = arith.truncf %587 : vector<8x64xf32> to vector<8x64xbf16>
    %cst_130 = arith.constant dense<0.000000e+00> : vector<8x128xf32>
    %589 = tpu.matmul %588, %22, %cst_130 {dimension_numbers = #tpu.dot_dimension_numbers<[1], [0], [0], [1], [0, 0, 1, 1], [], []>} : vector<8x64xbf16>, vector<64x128xbf16>, vector<8x128xf32> -> vector<8x128xf32>
    %590 = arith.addf %589, %30 : vector<8x128xf32>
    %591 = arith.mulf %590, %11 : vector<8x128xf32>
    %592 = math.tanh %591 : vector<8x128xf32>
    %593 = arith.mulf %592, %11 : vector<8x128xf32>
    %594 = arith.addf %593, %14 : vector<8x128xf32>
    %595 = vector.extract_strided_slice %594 {offsets = [0, 0], sizes = [8, 32], strides = [1, 1]} : vector<8x128xf32> to vector<8x32xf32>
    %596 = vector.extract_strided_slice %594 {offsets = [0, 32], sizes = [8, 32], strides = [1, 1]} : vector<8x128xf32> to vector<8x32xf32>
    %597 = vector.extract_strided_slice %594 {offsets = [0, 64], sizes = [8, 32], strides = [1, 1]} : vector<8x128xf32> to vector<8x32xf32>
    %598 = vector.extract_strided_slice %594 {offsets = [0, 96], sizes = [8, 32], strides = [1, 1]} : vector<8x128xf32> to vector<8x32xf32>
    %599 = arith.mulf %596, %562 : vector<8x32xf32>
    %600 = arith.mulf %595, %597 : vector<8x32xf32>
    %601 = arith.addf %599, %600 : vector<8x32xf32>
    %602 = math.tanh %601 : vector<8x32xf32>
    %603 = arith.mulf %598, %602 : vector<8x32xf32>
    %c4_i32_131 = arith.constant 4 : i32
    %604 = arith.muli %c1_i32_85, %c4_i32_131 : i32
    %c2_i32_132 = arith.constant 2 : i32
    %605 = arith.addi %604, %c2_i32_132 : i32
    %c1_133 = arith.constant 1 : index
    %606 = arith.index_cast %605 : i32 to index
    %c0_134 = arith.constant 0 : index
    %c0_135 = arith.constant 0 : index
    %607 = vector.load %arg2[%c1_133, %606, %c0_134, %c0_135] : memref<2x12x8x128xbf16, #tpu.memory_space<vmem>>, vector<1x1x8x128xbf16>
    %608 = vector.shape_cast %607 : vector<1x1x8x128xbf16> to vector<8x128xbf16>
    %609 = arith.extf %608 : vector<8x128xbf16> to vector<8x128xf32>
    %610 = arith.truncf %586 : vector<8x32xf32> to vector<8x32xbf16>
    %cst_136 = arith.constant dense<0.000000e+00> : vector<8x128xf32>
    %611 = tpu.matmul %610, %18, %cst_136 {dimension_numbers = #tpu.dot_dimension_numbers<[1], [0], [0], [1], [0, 0, 1, 1], [], []>} : vector<8x32xbf16>, vector<32x128xbf16>, vector<8x128xf32> -> vector<8x128xf32>
    %612 = arith.addf %609, %611 : vector<8x128xf32>
    %613 = arith.mulf %612, %11 : vector<8x128xf32>
    %614 = math.tanh %613 : vector<8x128xf32>
    %615 = arith.mulf %614, %11 : vector<8x128xf32>
    %616 = arith.addf %615, %14 : vector<8x128xf32>
    %617 = vector.extract_strided_slice %616 {offsets = [0, 0], sizes = [8, 32], strides = [1, 1]} : vector<8x128xf32> to vector<8x32xf32>
    %618 = vector.extract_strided_slice %616 {offsets = [0, 32], sizes = [8, 32], strides = [1, 1]} : vector<8x128xf32> to vector<8x32xf32>
    %619 = vector.extract_strided_slice %616 {offsets = [0, 64], sizes = [8, 32], strides = [1, 1]} : vector<8x128xf32> to vector<8x32xf32>
    %620 = vector.extract_strided_slice %616 {offsets = [0, 96], sizes = [8, 32], strides = [1, 1]} : vector<8x128xf32> to vector<8x32xf32>
    %621 = arith.mulf %618, %584 : vector<8x32xf32>
    %622 = arith.mulf %617, %619 : vector<8x32xf32>
    %623 = arith.addf %621, %622 : vector<8x32xf32>
    %624 = math.tanh %623 : vector<8x32xf32>
    %625 = arith.mulf %620, %624 : vector<8x32xf32>
    %626 = tpu.concatenate %625, %603 in 1 : vector<8x32xf32>, vector<8x32xf32> -> vector<8x64xf32>
    %627 = arith.truncf %626 : vector<8x64xf32> to vector<8x64xbf16>
    %cst_137 = arith.constant dense<0.000000e+00> : vector<8x128xf32>
    %628 = tpu.matmul %627, %22, %cst_137 {dimension_numbers = #tpu.dot_dimension_numbers<[1], [0], [0], [1], [0, 0, 1, 1], [], []>} : vector<8x64xbf16>, vector<64x128xbf16>, vector<8x128xf32> -> vector<8x128xf32>
    %629 = arith.addf %628, %30 : vector<8x128xf32>
    %630 = arith.mulf %629, %11 : vector<8x128xf32>
    %631 = math.tanh %630 : vector<8x128xf32>
    %632 = arith.mulf %631, %11 : vector<8x128xf32>
    %633 = arith.addf %632, %14 : vector<8x128xf32>
    %634 = vector.extract_strided_slice %633 {offsets = [0, 0], sizes = [8, 32], strides = [1, 1]} : vector<8x128xf32> to vector<8x32xf32>
    %635 = vector.extract_strided_slice %633 {offsets = [0, 32], sizes = [8, 32], strides = [1, 1]} : vector<8x128xf32> to vector<8x32xf32>
    %636 = vector.extract_strided_slice %633 {offsets = [0, 64], sizes = [8, 32], strides = [1, 1]} : vector<8x128xf32> to vector<8x32xf32>
    %637 = vector.extract_strided_slice %633 {offsets = [0, 96], sizes = [8, 32], strides = [1, 1]} : vector<8x128xf32> to vector<8x32xf32>
    %638 = arith.mulf %635, %601 : vector<8x32xf32>
    %639 = arith.mulf %634, %636 : vector<8x32xf32>
    %640 = arith.addf %638, %639 : vector<8x32xf32>
    %641 = math.tanh %640 : vector<8x32xf32>
    %642 = arith.mulf %637, %641 : vector<8x32xf32>
    %c4_i32_138 = arith.constant 4 : i32
    %643 = arith.muli %c1_i32_85, %c4_i32_138 : i32
    %c3_i32_139 = arith.constant 3 : i32
    %644 = arith.addi %643, %c3_i32_139 : i32
    %c1_140 = arith.constant 1 : index
    %645 = arith.index_cast %644 : i32 to index
    %c0_141 = arith.constant 0 : index
    %c0_142 = arith.constant 0 : index
    %646 = vector.load %arg2[%c1_140, %645, %c0_141, %c0_142] : memref<2x12x8x128xbf16, #tpu.memory_space<vmem>>, vector<1x1x8x128xbf16>
    %647 = vector.shape_cast %646 : vector<1x1x8x128xbf16> to vector<8x128xbf16>
    %648 = arith.extf %647 : vector<8x128xbf16> to vector<8x128xf32>
    %649 = arith.truncf %625 : vector<8x32xf32> to vector<8x32xbf16>
    %cst_143 = arith.constant dense<0.000000e+00> : vector<8x128xf32>
    %650 = tpu.matmul %649, %18, %cst_143 {dimension_numbers = #tpu.dot_dimension_numbers<[1], [0], [0], [1], [0, 0, 1, 1], [], []>} : vector<8x32xbf16>, vector<32x128xbf16>, vector<8x128xf32> -> vector<8x128xf32>
    %651 = arith.addf %648, %650 : vector<8x128xf32>
    %652 = arith.mulf %651, %11 : vector<8x128xf32>
    %653 = math.tanh %652 : vector<8x128xf32>
    %654 = arith.mulf %653, %11 : vector<8x128xf32>
    %655 = arith.addf %654, %14 : vector<8x128xf32>
    %656 = vector.extract_strided_slice %655 {offsets = [0, 0], sizes = [8, 32], strides = [1, 1]} : vector<8x128xf32> to vector<8x32xf32>
    %657 = vector.extract_strided_slice %655 {offsets = [0, 32], sizes = [8, 32], strides = [1, 1]} : vector<8x128xf32> to vector<8x32xf32>
    %658 = vector.extract_strided_slice %655 {offsets = [0, 64], sizes = [8, 32], strides = [1, 1]} : vector<8x128xf32> to vector<8x32xf32>
    %659 = vector.extract_strided_slice %655 {offsets = [0, 96], sizes = [8, 32], strides = [1, 1]} : vector<8x128xf32> to vector<8x32xf32>
    %660 = arith.mulf %657, %623 : vector<8x32xf32>
    %661 = arith.mulf %656, %658 : vector<8x32xf32>
    %662 = arith.addf %660, %661 : vector<8x32xf32>
    %663 = math.tanh %662 : vector<8x32xf32>
    %664 = arith.mulf %659, %663 : vector<8x32xf32>
    %665 = tpu.concatenate %664, %642 in 1 : vector<8x32xf32>, vector<8x32xf32> -> vector<8x64xf32>
    %666 = arith.truncf %665 : vector<8x64xf32> to vector<8x64xbf16>
    %cst_144 = arith.constant dense<0.000000e+00> : vector<8x128xf32>
    %667 = tpu.matmul %666, %22, %cst_144 {dimension_numbers = #tpu.dot_dimension_numbers<[1], [0], [0], [1], [0, 0, 1, 1], [], []>} : vector<8x64xbf16>, vector<64x128xbf16>, vector<8x128xf32> -> vector<8x128xf32>
    %668 = arith.addf %667, %30 : vector<8x128xf32>
    %669 = arith.mulf %668, %11 : vector<8x128xf32>
    %670 = math.tanh %669 : vector<8x128xf32>
    %671 = arith.mulf %670, %11 : vector<8x128xf32>
    %672 = arith.addf %671, %14 : vector<8x128xf32>
    %673 = vector.extract_strided_slice %672 {offsets = [0, 0], sizes = [8, 32], strides = [1, 1]} : vector<8x128xf32> to vector<8x32xf32>
    %674 = vector.extract_strided_slice %672 {offsets = [0, 32], sizes = [8, 32], strides = [1, 1]} : vector<8x128xf32> to vector<8x32xf32>
    %675 = vector.extract_strided_slice %672 {offsets = [0, 64], sizes = [8, 32], strides = [1, 1]} : vector<8x128xf32> to vector<8x32xf32>
    %676 = vector.extract_strided_slice %672 {offsets = [0, 96], sizes = [8, 32], strides = [1, 1]} : vector<8x128xf32> to vector<8x32xf32>
    %677 = arith.mulf %674, %640 : vector<8x32xf32>
    %678 = arith.mulf %673, %675 : vector<8x32xf32>
    %679 = arith.addf %677, %678 : vector<8x32xf32>
    %680 = math.tanh %679 : vector<8x32xf32>
    %681 = arith.mulf %676, %680 : vector<8x32xf32>
    %682 = tpu.concatenate %564, %603, %642, %681 in 1 : vector<8x32xf32>, vector<8x32xf32>, vector<8x32xf32>, vector<8x32xf32> -> vector<8x128xf32>
    %c1_145 = arith.constant 1 : index
    %683 = arith.index_cast %c1_i32_85 : i32 to index
    %c0_146 = arith.constant 0 : index
    %c0_147 = arith.constant 0 : index
    %684 = vector.load %arg6[%c1_145, %683, %c0_146, %c0_147] : memref<2x3x8x128xf32, #tpu.memory_space<vmem>>, vector<1x1x8x128xf32>
    %685 = vector.shape_cast %684 : vector<1x1x8x128xf32> to vector<8x128xf32>
    %686 = vector.shape_cast %682 : vector<8x128xf32> to vector<1x1x8x128xf32>
    tpu.vector_store %arg6[%c1_145, %683, %c0_146, %c0_147], %686 {strides = array<i32>} : memref<2x3x8x128xf32, #tpu.memory_space<vmem>>, vector<1x1x8x128xf32>,
    %c2_i32_148 = arith.constant 2 : i32
    %c4_i32_149 = arith.constant 4 : i32
    %687 = arith.muli %c2_i32_148, %c4_i32_149 : i32
    %c0_i32_150 = arith.constant 0 : i32
    %688 = arith.addi %687, %c0_i32_150 : i32
    %c0_151 = arith.constant 0 : index
    %689 = arith.index_cast %688 : i32 to index
    %c0_152 = arith.constant 0 : index
    %c0_153 = arith.constant 0 : index
    %690 = vector.load %arg2[%c0_151, %689, %c0_152, %c0_153] : memref<2x12x8x128xbf16, #tpu.memory_space<vmem>>, vector<1x1x8x128xbf16>
    %691 = vector.shape_cast %690 : vector<1x1x8x128xbf16> to vector<8x128xbf16>
    %692 = arith.extf %691 : vector<8x128xbf16> to vector<8x128xf32>
    %693 = arith.truncf %503 : vector<8x32xf32> to vector<8x32xbf16>
    %cst_154 = arith.constant dense<0.000000e+00> : vector<8x128xf32>
    %694 = tpu.matmul %693, %16, %cst_154 {dimension_numbers = #tpu.dot_dimension_numbers<[1], [0], [0], [1], [0, 0, 1, 1], [], []>} : vector<8x32xbf16>, vector<32x128xbf16>, vector<8x128xf32> -> vector<8x128xf32>
    %695 = arith.addf %692, %694 : vector<8x128xf32>
    %696 = arith.mulf %695, %11 : vector<8x128xf32>
    %697 = math.tanh %696 : vector<8x128xf32>
    %698 = arith.mulf %697, %11 : vector<8x128xf32>
    %699 = arith.addf %698, %14 : vector<8x128xf32>
    %700 = vector.extract_strided_slice %699 {offsets = [0, 0], sizes = [8, 32], strides = [1, 1]} : vector<8x128xf32> to vector<8x32xf32>
    %701 = vector.extract_strided_slice %699 {offsets = [0, 32], sizes = [8, 32], strides = [1, 1]} : vector<8x128xf32> to vector<8x32xf32>
    %702 = vector.extract_strided_slice %699 {offsets = [0, 64], sizes = [8, 32], strides = [1, 1]} : vector<8x128xf32> to vector<8x32xf32>
    %703 = vector.extract_strided_slice %699 {offsets = [0, 96], sizes = [8, 32], strides = [1, 1]} : vector<8x128xf32> to vector<8x32xf32>
    %704 = arith.mulf %701, %501 : vector<8x32xf32>
    %705 = arith.mulf %700, %702 : vector<8x32xf32>
    %706 = arith.addf %704, %705 : vector<8x32xf32>
    %707 = math.tanh %706 : vector<8x32xf32>
    %708 = arith.mulf %703, %707 : vector<8x32xf32>
    %709 = tpu.concatenate %708, %520 in 1 : vector<8x32xf32>, vector<8x32xf32> -> vector<8x64xf32>
    %710 = arith.truncf %709 : vector<8x64xf32> to vector<8x64xbf16>
    %cst_155 = arith.constant dense<0.000000e+00> : vector<8x128xf32>
    %711 = tpu.matmul %710, %20, %cst_155 {dimension_numbers = #tpu.dot_dimension_numbers<[1], [0], [0], [1], [0, 0, 1, 1], [], []>} : vector<8x64xbf16>, vector<64x128xbf16>, vector<8x128xf32> -> vector<8x128xf32>
    %712 = arith.addf %711, %26 : vector<8x128xf32>
    %713 = arith.mulf %712, %11 : vector<8x128xf32>
    %714 = math.tanh %713 : vector<8x128xf32>
    %715 = arith.mulf %714, %11 : vector<8x128xf32>
    %716 = arith.addf %715, %14 : vector<8x128xf32>
    %717 = vector.extract_strided_slice %716 {offsets = [0, 0], sizes = [8, 32], strides = [1, 1]} : vector<8x128xf32> to vector<8x32xf32>
    %718 = vector.extract_strided_slice %716 {offsets = [0, 32], sizes = [8, 32], strides = [1, 1]} : vector<8x128xf32> to vector<8x32xf32>
    %719 = vector.extract_strided_slice %716 {offsets = [0, 64], sizes = [8, 32], strides = [1, 1]} : vector<8x128xf32> to vector<8x32xf32>
    %720 = vector.extract_strided_slice %716 {offsets = [0, 96], sizes = [8, 32], strides = [1, 1]} : vector<8x128xf32> to vector<8x32xf32>
    %721 = arith.mulf %718, %518 : vector<8x32xf32>
    %722 = arith.mulf %717, %719 : vector<8x32xf32>
    %723 = arith.addf %721, %722 : vector<8x32xf32>
    %724 = math.tanh %723 : vector<8x32xf32>
    %725 = arith.mulf %720, %724 : vector<8x32xf32>
    %c4_i32_156 = arith.constant 4 : i32
    %726 = arith.muli %c2_i32_148, %c4_i32_156 : i32
    %c1_i32_157 = arith.constant 1 : i32
    %727 = arith.addi %726, %c1_i32_157 : i32
    %c0_158 = arith.constant 0 : index
    %728 = arith.index_cast %727 : i32 to index
    %c0_159 = arith.constant 0 : index
    %c0_160 = arith.constant 0 : index
    %729 = vector.load %arg2[%c0_158, %728, %c0_159, %c0_160] : memref<2x12x8x128xbf16, #tpu.memory_space<vmem>>, vector<1x1x8x128xbf16>
    %730 = vector.shape_cast %729 : vector<1x1x8x128xbf16> to vector<8x128xbf16>
    %731 = arith.extf %730 : vector<8x128xbf16> to vector<8x128xf32>
    %732 = arith.truncf %708 : vector<8x32xf32> to vector<8x32xbf16>
    %cst_161 = arith.constant dense<0.000000e+00> : vector<8x128xf32>
    %733 = tpu.matmul %732, %16, %cst_161 {dimension_numbers = #tpu.dot_dimension_numbers<[1], [0], [0], [1], [0, 0, 1, 1], [], []>} : vector<8x32xbf16>, vector<32x128xbf16>, vector<8x128xf32> -> vector<8x128xf32>
    %734 = arith.addf %731, %733 : vector<8x128xf32>
    %735 = arith.mulf %734, %11 : vector<8x128xf32>
    %736 = math.tanh %735 : vector<8x128xf32>
    %737 = arith.mulf %736, %11 : vector<8x128xf32>
    %738 = arith.addf %737, %14 : vector<8x128xf32>
    %739 = vector.extract_strided_slice %738 {offsets = [0, 0], sizes = [8, 32], strides = [1, 1]} : vector<8x128xf32> to vector<8x32xf32>
    %740 = vector.extract_strided_slice %738 {offsets = [0, 32], sizes = [8, 32], strides = [1, 1]} : vector<8x128xf32> to vector<8x32xf32>
    %741 = vector.extract_strided_slice %738 {offsets = [0, 64], sizes = [8, 32], strides = [1, 1]} : vector<8x128xf32> to vector<8x32xf32>
    %742 = vector.extract_strided_slice %738 {offsets = [0, 96], sizes = [8, 32], strides = [1, 1]} : vector<8x128xf32> to vector<8x32xf32>
    %743 = arith.mulf %740, %706 : vector<8x32xf32>
    %744 = arith.mulf %739, %741 : vector<8x32xf32>
    %745 = arith.addf %743, %744 : vector<8x32xf32>
    %746 = math.tanh %745 : vector<8x32xf32>
    %747 = arith.mulf %742, %746 : vector<8x32xf32>
    %748 = tpu.concatenate %747, %725 in 1 : vector<8x32xf32>, vector<8x32xf32> -> vector<8x64xf32>
    %749 = arith.truncf %748 : vector<8x64xf32> to vector<8x64xbf16>
    %cst_162 = arith.constant dense<0.000000e+00> : vector<8x128xf32>
    %750 = tpu.matmul %749, %20, %cst_162 {dimension_numbers = #tpu.dot_dimension_numbers<[1], [0], [0], [1], [0, 0, 1, 1], [], []>} : vector<8x64xbf16>, vector<64x128xbf16>, vector<8x128xf32> -> vector<8x128xf32>
    %751 = arith.addf %750, %26 : vector<8x128xf32>
    %752 = arith.mulf %751, %11 : vector<8x128xf32>
    %753 = math.tanh %752 : vector<8x128xf32>
    %754 = arith.mulf %753, %11 : vector<8x128xf32>
    %755 = arith.addf %754, %14 : vector<8x128xf32>
    %756 = vector.extract_strided_slice %755 {offsets = [0, 0], sizes = [8, 32], strides = [1, 1]} : vector<8x128xf32> to vector<8x32xf32>
    %757 = vector.extract_strided_slice %755 {offsets = [0, 32], sizes = [8, 32], strides = [1, 1]} : vector<8x128xf32> to vector<8x32xf32>
    %758 = vector.extract_strided_slice %755 {offsets = [0, 64], sizes = [8, 32], strides = [1, 1]} : vector<8x128xf32> to vector<8x32xf32>
    %759 = vector.extract_strided_slice %755 {offsets = [0, 96], sizes = [8, 32], strides = [1, 1]} : vector<8x128xf32> to vector<8x32xf32>
    %760 = arith.mulf %757, %723 : vector<8x32xf32>
    %761 = arith.mulf %756, %758 : vector<8x32xf32>
    %762 = arith.addf %760, %761 : vector<8x32xf32>
    %763 = math.tanh %762 : vector<8x32xf32>
    %764 = arith.mulf %759, %763 : vector<8x32xf32>
    %c4_i32_163 = arith.constant 4 : i32
    %765 = arith.muli %c2_i32_148, %c4_i32_163 : i32
    %c2_i32_164 = arith.constant 2 : i32
    %766 = arith.addi %765, %c2_i32_164 : i32
    %c0_165 = arith.constant 0 : index
    %767 = arith.index_cast %766 : i32 to index
    %c0_166 = arith.constant 0 : index
    %c0_167 = arith.constant 0 : index
    %768 = vector.load %arg2[%c0_165, %767, %c0_166, %c0_167] : memref<2x12x8x128xbf16, #tpu.memory_space<vmem>>, vector<1x1x8x128xbf16>
    %769 = vector.shape_cast %768 : vector<1x1x8x128xbf16> to vector<8x128xbf16>
    %770 = arith.extf %769 : vector<8x128xbf16> to vector<8x128xf32>
    %771 = arith.truncf %747 : vector<8x32xf32> to vector<8x32xbf16>
    %cst_168 = arith.constant dense<0.000000e+00> : vector<8x128xf32>
    %772 = tpu.matmul %771, %16, %cst_168 {dimension_numbers = #tpu.dot_dimension_numbers<[1], [0], [0], [1], [0, 0, 1, 1], [], []>} : vector<8x32xbf16>, vector<32x128xbf16>, vector<8x128xf32> -> vector<8x128xf32>
    %773 = arith.addf %770, %772 : vector<8x128xf32>
    %774 = arith.mulf %773, %11 : vector<8x128xf32>
    %775 = math.tanh %774 : vector<8x128xf32>
    %776 = arith.mulf %775, %11 : vector<8x128xf32>
    %777 = arith.addf %776, %14 : vector<8x128xf32>
    %778 = vector.extract_strided_slice %777 {offsets = [0, 0], sizes = [8, 32], strides = [1, 1]} : vector<8x128xf32> to vector<8x32xf32>
    %779 = vector.extract_strided_slice %777 {offsets = [0, 32], sizes = [8, 32], strides = [1, 1]} : vector<8x128xf32> to vector<8x32xf32>
    %780 = vector.extract_strided_slice %777 {offsets = [0, 64], sizes = [8, 32], strides = [1, 1]} : vector<8x128xf32> to vector<8x32xf32>
    %781 = vector.extract_strided_slice %777 {offsets = [0, 96], sizes = [8, 32], strides = [1, 1]} : vector<8x128xf32> to vector<8x32xf32>
    %782 = arith.mulf %779, %745 : vector<8x32xf32>
    %783 = arith.mulf %778, %780 : vector<8x32xf32>
    %784 = arith.addf %782, %783 : vector<8x32xf32>
    %785 = math.tanh %784 : vector<8x32xf32>
    %786 = arith.mulf %781, %785 : vector<8x32xf32>
    %787 = tpu.concatenate %786, %764 in 1 : vector<8x32xf32>, vector<8x32xf32> -> vector<8x64xf32>
    %788 = arith.truncf %787 : vector<8x64xf32> to vector<8x64xbf16>
    %cst_169 = arith.constant dense<0.000000e+00> : vector<8x128xf32>
    %789 = tpu.matmul %788, %20, %cst_169 {dimension_numbers = #tpu.dot_dimension_numbers<[1], [0], [0], [1], [0, 0, 1, 1], [], []>} : vector<8x64xbf16>, vector<64x128xbf16>, vector<8x128xf32> -> vector<8x128xf32>
    %790 = arith.addf %789, %26 : vector<8x128xf32>
    %791 = arith.mulf %790, %11 : vector<8x128xf32>
    %792 = math.tanh %791 : vector<8x128xf32>
    %793 = arith.mulf %792, %11 : vector<8x128xf32>
    %794 = arith.addf %793, %14 : vector<8x128xf32>
    %795 = vector.extract_strided_slice %794 {offsets = [0, 0], sizes = [8, 32], strides = [1, 1]} : vector<8x128xf32> to vector<8x32xf32>
    %796 = vector.extract_strided_slice %794 {offsets = [0, 32], sizes = [8, 32], strides = [1, 1]} : vector<8x128xf32> to vector<8x32xf32>
    %797 = vector.extract_strided_slice %794 {offsets = [0, 64], sizes = [8, 32], strides = [1, 1]} : vector<8x128xf32> to vector<8x32xf32>
    %798 = vector.extract_strided_slice %794 {offsets = [0, 96], sizes = [8, 32], strides = [1, 1]} : vector<8x128xf32> to vector<8x32xf32>
    %799 = arith.mulf %796, %762 : vector<8x32xf32>
    %800 = arith.mulf %795, %797 : vector<8x32xf32>
    %801 = arith.addf %799, %800 : vector<8x32xf32>
    %802 = math.tanh %801 : vector<8x32xf32>
    %803 = arith.mulf %798, %802 : vector<8x32xf32>
    %c4_i32_170 = arith.constant 4 : i32
    %804 = arith.muli %c2_i32_148, %c4_i32_170 : i32
    %c3_i32_171 = arith.constant 3 : i32
    %805 = arith.addi %804, %c3_i32_171 : i32
    %c0_172 = arith.constant 0 : index
    %806 = arith.index_cast %805 : i32 to index
    %c0_173 = arith.constant 0 : index
    %c0_174 = arith.constant 0 : index
    %807 = vector.load %arg2[%c0_172, %806, %c0_173, %c0_174] : memref<2x12x8x128xbf16, #tpu.memory_space<vmem>>, vector<1x1x8x128xbf16>
    %808 = vector.shape_cast %807 : vector<1x1x8x128xbf16> to vector<8x128xbf16>
    %809 = arith.extf %808 : vector<8x128xbf16> to vector<8x128xf32>
    %810 = arith.truncf %786 : vector<8x32xf32> to vector<8x32xbf16>
    %cst_175 = arith.constant dense<0.000000e+00> : vector<8x128xf32>
    %811 = tpu.matmul %810, %16, %cst_175 {dimension_numbers = #tpu.dot_dimension_numbers<[1], [0], [0], [1], [0, 0, 1, 1], [], []>} : vector<8x32xbf16>, vector<32x128xbf16>, vector<8x128xf32> -> vector<8x128xf32>
    %812 = arith.addf %809, %811 : vector<8x128xf32>
    %813 = arith.mulf %812, %11 : vector<8x128xf32>
    %814 = math.tanh %813 : vector<8x128xf32>
    %815 = arith.mulf %814, %11 : vector<8x128xf32>
    %816 = arith.addf %815, %14 : vector<8x128xf32>
    %817 = vector.extract_strided_slice %816 {offsets = [0, 0], sizes = [8, 32], strides = [1, 1]} : vector<8x128xf32> to vector<8x32xf32>
    %818 = vector.extract_strided_slice %816 {offsets = [0, 32], sizes = [8, 32], strides = [1, 1]} : vector<8x128xf32> to vector<8x32xf32>
    %819 = vector.extract_strided_slice %816 {offsets = [0, 64], sizes = [8, 32], strides = [1, 1]} : vector<8x128xf32> to vector<8x32xf32>
    %820 = vector.extract_strided_slice %816 {offsets = [0, 96], sizes = [8, 32], strides = [1, 1]} : vector<8x128xf32> to vector<8x32xf32>
    %821 = arith.mulf %818, %784 : vector<8x32xf32>
    %822 = arith.mulf %817, %819 : vector<8x32xf32>
    %823 = arith.addf %821, %822 : vector<8x32xf32>
    %824 = math.tanh %823 : vector<8x32xf32>
    %825 = arith.mulf %820, %824 : vector<8x32xf32>
    %826 = tpu.concatenate %825, %803 in 1 : vector<8x32xf32>, vector<8x32xf32> -> vector<8x64xf32>
    %827 = arith.truncf %826 : vector<8x64xf32> to vector<8x64xbf16>
    %cst_176 = arith.constant dense<0.000000e+00> : vector<8x128xf32>
    %828 = tpu.matmul %827, %20, %cst_176 {dimension_numbers = #tpu.dot_dimension_numbers<[1], [0], [0], [1], [0, 0, 1, 1], [], []>} : vector<8x64xbf16>, vector<64x128xbf16>, vector<8x128xf32> -> vector<8x128xf32>
    %829 = arith.addf %828, %26 : vector<8x128xf32>
    %830 = arith.mulf %829, %11 : vector<8x128xf32>
    %831 = math.tanh %830 : vector<8x128xf32>
    %832 = arith.mulf %831, %11 : vector<8x128xf32>
    %833 = arith.addf %832, %14 : vector<8x128xf32>
    %834 = vector.extract_strided_slice %833 {offsets = [0, 0], sizes = [8, 32], strides = [1, 1]} : vector<8x128xf32> to vector<8x32xf32>
    %835 = vector.extract_strided_slice %833 {offsets = [0, 32], sizes = [8, 32], strides = [1, 1]} : vector<8x128xf32> to vector<8x32xf32>
    %836 = vector.extract_strided_slice %833 {offsets = [0, 64], sizes = [8, 32], strides = [1, 1]} : vector<8x128xf32> to vector<8x32xf32>
    %837 = vector.extract_strided_slice %833 {offsets = [0, 96], sizes = [8, 32], strides = [1, 1]} : vector<8x128xf32> to vector<8x32xf32>
    %838 = arith.mulf %835, %801 : vector<8x32xf32>
    %839 = arith.mulf %834, %836 : vector<8x32xf32>
    %840 = arith.addf %838, %839 : vector<8x32xf32>
    %841 = math.tanh %840 : vector<8x32xf32>
    %842 = arith.mulf %837, %841 : vector<8x32xf32>
    %843 = tpu.concatenate %725, %764, %803, %842 in 1 : vector<8x32xf32>, vector<8x32xf32>, vector<8x32xf32>, vector<8x32xf32> -> vector<8x128xf32>
    %c0_177 = arith.constant 0 : index
    %844 = arith.index_cast %c2_i32_148 : i32 to index
    %c0_178 = arith.constant 0 : index
    %c0_179 = arith.constant 0 : index
    %845 = vector.load %arg6[%c0_177, %844, %c0_178, %c0_179] : memref<2x3x8x128xf32, #tpu.memory_space<vmem>>, vector<1x1x8x128xf32>
    %846 = vector.shape_cast %845 : vector<1x1x8x128xf32> to vector<8x128xf32>
    %847 = vector.shape_cast %843 : vector<8x128xf32> to vector<1x1x8x128xf32>
    tpu.vector_store %arg6[%c0_177, %844, %c0_178, %c0_179], %847 {strides = array<i32>} : memref<2x3x8x128xf32, #tpu.memory_space<vmem>>, vector<1x1x8x128xf32>,
    %c4_i32_180 = arith.constant 4 : i32
    %848 = arith.muli %c2_i32_148, %c4_i32_180 : i32
    %c0_i32_181 = arith.constant 0 : i32
    %849 = arith.addi %848, %c0_i32_181 : i32
    %c1_182 = arith.constant 1 : index
    %850 = arith.index_cast %849 : i32 to index
    %c0_183 = arith.constant 0 : index
    %c0_184 = arith.constant 0 : index
    %851 = vector.load %arg2[%c1_182, %850, %c0_183, %c0_184] : memref<2x12x8x128xbf16, #tpu.memory_space<vmem>>, vector<1x1x8x128xbf16>
    %852 = vector.shape_cast %851 : vector<1x1x8x128xbf16> to vector<8x128xbf16>
    %853 = arith.extf %852 : vector<8x128xbf16> to vector<8x128xf32>
    %854 = arith.truncf %664 : vector<8x32xf32> to vector<8x32xbf16>
    %cst_185 = arith.constant dense<0.000000e+00> : vector<8x128xf32>
    %855 = tpu.matmul %854, %18, %cst_185 {dimension_numbers = #tpu.dot_dimension_numbers<[1], [0], [0], [1], [0, 0, 1, 1], [], []>} : vector<8x32xbf16>, vector<32x128xbf16>, vector<8x128xf32> -> vector<8x128xf32>
    %856 = arith.addf %853, %855 : vector<8x128xf32>
    %857 = arith.mulf %856, %11 : vector<8x128xf32>
    %858 = math.tanh %857 : vector<8x128xf32>
    %859 = arith.mulf %858, %11 : vector<8x128xf32>
    %860 = arith.addf %859, %14 : vector<8x128xf32>
    %861 = vector.extract_strided_slice %860 {offsets = [0, 0], sizes = [8, 32], strides = [1, 1]} : vector<8x128xf32> to vector<8x32xf32>
    %862 = vector.extract_strided_slice %860 {offsets = [0, 32], sizes = [8, 32], strides = [1, 1]} : vector<8x128xf32> to vector<8x32xf32>
    %863 = vector.extract_strided_slice %860 {offsets = [0, 64], sizes = [8, 32], strides = [1, 1]} : vector<8x128xf32> to vector<8x32xf32>
    %864 = vector.extract_strided_slice %860 {offsets = [0, 96], sizes = [8, 32], strides = [1, 1]} : vector<8x128xf32> to vector<8x32xf32>
    %865 = arith.mulf %862, %662 : vector<8x32xf32>
    %866 = arith.mulf %861, %863 : vector<8x32xf32>
    %867 = arith.addf %865, %866 : vector<8x32xf32>
    %868 = math.tanh %867 : vector<8x32xf32>
    %869 = arith.mulf %864, %868 : vector<8x32xf32>
    %870 = tpu.concatenate %869, %681 in 1 : vector<8x32xf32>, vector<8x32xf32> -> vector<8x64xf32>
    %871 = arith.truncf %870 : vector<8x64xf32> to vector<8x64xbf16>
    %cst_186 = arith.constant dense<0.000000e+00> : vector<8x128xf32>
    %872 = tpu.matmul %871, %22, %cst_186 {dimension_numbers = #tpu.dot_dimension_numbers<[1], [0], [0], [1], [0, 0, 1, 1], [], []>} : vector<8x64xbf16>, vector<64x128xbf16>, vector<8x128xf32> -> vector<8x128xf32>
    %873 = arith.addf %872, %30 : vector<8x128xf32>
    %874 = arith.mulf %873, %11 : vector<8x128xf32>
    %875 = math.tanh %874 : vector<8x128xf32>
    %876 = arith.mulf %875, %11 : vector<8x128xf32>
    %877 = arith.addf %876, %14 : vector<8x128xf32>
    %878 = vector.extract_strided_slice %877 {offsets = [0, 0], sizes = [8, 32], strides = [1, 1]} : vector<8x128xf32> to vector<8x32xf32>
    %879 = vector.extract_strided_slice %877 {offsets = [0, 32], sizes = [8, 32], strides = [1, 1]} : vector<8x128xf32> to vector<8x32xf32>
    %880 = vector.extract_strided_slice %877 {offsets = [0, 64], sizes = [8, 32], strides = [1, 1]} : vector<8x128xf32> to vector<8x32xf32>
    %881 = vector.extract_strided_slice %877 {offsets = [0, 96], sizes = [8, 32], strides = [1, 1]} : vector<8x128xf32> to vector<8x32xf32>
    %882 = arith.mulf %879, %679 : vector<8x32xf32>
    %883 = arith.mulf %878, %880 : vector<8x32xf32>
    %884 = arith.addf %882, %883 : vector<8x32xf32>
    %885 = math.tanh %884 : vector<8x32xf32>
    %886 = arith.mulf %881, %885 : vector<8x32xf32>
    %c4_i32_187 = arith.constant 4 : i32
    %887 = arith.muli %c2_i32_148, %c4_i32_187 : i32
    %c1_i32_188 = arith.constant 1 : i32
    %888 = arith.addi %887, %c1_i32_188 : i32
    %c1_189 = arith.constant 1 : index
    %889 = arith.index_cast %888 : i32 to index
    %c0_190 = arith.constant 0 : index
    %c0_191 = arith.constant 0 : index
    %890 = vector.load %arg2[%c1_189, %889, %c0_190, %c0_191] : memref<2x12x8x128xbf16, #tpu.memory_space<vmem>>, vector<1x1x8x128xbf16>
    %891 = vector.shape_cast %890 : vector<1x1x8x128xbf16> to vector<8x128xbf16>
    %892 = arith.extf %891 : vector<8x128xbf16> to vector<8x128xf32>
    %893 = arith.truncf %869 : vector<8x32xf32> to vector<8x32xbf16>
    %cst_192 = arith.constant dense<0.000000e+00> : vector<8x128xf32>
    %894 = tpu.matmul %893, %18, %cst_192 {dimension_numbers = #tpu.dot_dimension_numbers<[1], [0], [0], [1], [0, 0, 1, 1], [], []>} : vector<8x32xbf16>, vector<32x128xbf16>, vector<8x128xf32> -> vector<8x128xf32>
    %895 = arith.addf %892, %894 : vector<8x128xf32>
    %896 = arith.mulf %895, %11 : vector<8x128xf32>
    %897 = math.tanh %896 : vector<8x128xf32>
    %898 = arith.mulf %897, %11 : vector<8x128xf32>
    %899 = arith.addf %898, %14 : vector<8x128xf32>
    %900 = vector.extract_strided_slice %899 {offsets = [0, 0], sizes = [8, 32], strides = [1, 1]} : vector<8x128xf32> to vector<8x32xf32>
    %901 = vector.extract_strided_slice %899 {offsets = [0, 32], sizes = [8, 32], strides = [1, 1]} : vector<8x128xf32> to vector<8x32xf32>
    %902 = vector.extract_strided_slice %899 {offsets = [0, 64], sizes = [8, 32], strides = [1, 1]} : vector<8x128xf32> to vector<8x32xf32>
    %903 = vector.extract_strided_slice %899 {offsets = [0, 96], sizes = [8, 32], strides = [1, 1]} : vector<8x128xf32> to vector<8x32xf32>
    %904 = arith.mulf %901, %867 : vector<8x32xf32>
    %905 = arith.mulf %900, %902 : vector<8x32xf32>
    %906 = arith.addf %904, %905 : vector<8x32xf32>
    %907 = math.tanh %906 : vector<8x32xf32>
    %908 = arith.mulf %903, %907 : vector<8x32xf32>
    %909 = tpu.concatenate %908, %886 in 1 : vector<8x32xf32>, vector<8x32xf32> -> vector<8x64xf32>
    %910 = arith.truncf %909 : vector<8x64xf32> to vector<8x64xbf16>
    %cst_193 = arith.constant dense<0.000000e+00> : vector<8x128xf32>
    %911 = tpu.matmul %910, %22, %cst_193 {dimension_numbers = #tpu.dot_dimension_numbers<[1], [0], [0], [1], [0, 0, 1, 1], [], []>} : vector<8x64xbf16>, vector<64x128xbf16>, vector<8x128xf32> -> vector<8x128xf32>
    %912 = arith.addf %911, %30 : vector<8x128xf32>
    %913 = arith.mulf %912, %11 : vector<8x128xf32>
    %914 = math.tanh %913 : vector<8x128xf32>
    %915 = arith.mulf %914, %11 : vector<8x128xf32>
    %916 = arith.addf %915, %14 : vector<8x128xf32>
    %917 = vector.extract_strided_slice %916 {offsets = [0, 0], sizes = [8, 32], strides = [1, 1]} : vector<8x128xf32> to vector<8x32xf32>
    %918 = vector.extract_strided_slice %916 {offsets = [0, 32], sizes = [8, 32], strides = [1, 1]} : vector<8x128xf32> to vector<8x32xf32>
    %919 = vector.extract_strided_slice %916 {offsets = [0, 64], sizes = [8, 32], strides = [1, 1]} : vector<8x128xf32> to vector<8x32xf32>
    %920 = vector.extract_strided_slice %916 {offsets = [0, 96], sizes = [8, 32], strides = [1, 1]} : vector<8x128xf32> to vector<8x32xf32>
    %921 = arith.mulf %918, %884 : vector<8x32xf32>
    %922 = arith.mulf %917, %919 : vector<8x32xf32>
    %923 = arith.addf %921, %922 : vector<8x32xf32>
    %924 = math.tanh %923 : vector<8x32xf32>
    %925 = arith.mulf %920, %924 : vector<8x32xf32>
    %c4_i32_194 = arith.constant 4 : i32
    %926 = arith.muli %c2_i32_148, %c4_i32_194 : i32
    %c2_i32_195 = arith.constant 2 : i32
    %927 = arith.addi %926, %c2_i32_195 : i32
    %c1_196 = arith.constant 1 : index
    %928 = arith.index_cast %927 : i32 to index
    %c0_197 = arith.constant 0 : index
    %c0_198 = arith.constant 0 : index
    %929 = vector.load %arg2[%c1_196, %928, %c0_197, %c0_198] : memref<2x12x8x128xbf16, #tpu.memory_space<vmem>>, vector<1x1x8x128xbf16>
    %930 = vector.shape_cast %929 : vector<1x1x8x128xbf16> to vector<8x128xbf16>
    %931 = arith.extf %930 : vector<8x128xbf16> to vector<8x128xf32>
    %932 = arith.truncf %908 : vector<8x32xf32> to vector<8x32xbf16>
    %cst_199 = arith.constant dense<0.000000e+00> : vector<8x128xf32>
    %933 = tpu.matmul %932, %18, %cst_199 {dimension_numbers = #tpu.dot_dimension_numbers<[1], [0], [0], [1], [0, 0, 1, 1], [], []>} : vector<8x32xbf16>, vector<32x128xbf16>, vector<8x128xf32> -> vector<8x128xf32>
    %934 = arith.addf %931, %933 : vector<8x128xf32>
    %935 = arith.mulf %934, %11 : vector<8x128xf32>
    %936 = math.tanh %935 : vector<8x128xf32>
    %937 = arith.mulf %936, %11 : vector<8x128xf32>
    %938 = arith.addf %937, %14 : vector<8x128xf32>
    %939 = vector.extract_strided_slice %938 {offsets = [0, 0], sizes = [8, 32], strides = [1, 1]} : vector<8x128xf32> to vector<8x32xf32>
    %940 = vector.extract_strided_slice %938 {offsets = [0, 32], sizes = [8, 32], strides = [1, 1]} : vector<8x128xf32> to vector<8x32xf32>
    %941 = vector.extract_strided_slice %938 {offsets = [0, 64], sizes = [8, 32], strides = [1, 1]} : vector<8x128xf32> to vector<8x32xf32>
    %942 = vector.extract_strided_slice %938 {offsets = [0, 96], sizes = [8, 32], strides = [1, 1]} : vector<8x128xf32> to vector<8x32xf32>
    %943 = arith.mulf %940, %906 : vector<8x32xf32>
    %944 = arith.mulf %939, %941 : vector<8x32xf32>
    %945 = arith.addf %943, %944 : vector<8x32xf32>
    %946 = math.tanh %945 : vector<8x32xf32>
    %947 = arith.mulf %942, %946 : vector<8x32xf32>
    %948 = tpu.concatenate %947, %925 in 1 : vector<8x32xf32>, vector<8x32xf32> -> vector<8x64xf32>
    %949 = arith.truncf %948 : vector<8x64xf32> to vector<8x64xbf16>
    %cst_200 = arith.constant dense<0.000000e+00> : vector<8x128xf32>
    %950 = tpu.matmul %949, %22, %cst_200 {dimension_numbers = #tpu.dot_dimension_numbers<[1], [0], [0], [1], [0, 0, 1, 1], [], []>} : vector<8x64xbf16>, vector<64x128xbf16>, vector<8x128xf32> -> vector<8x128xf32>
    %951 = arith.addf %950, %30 : vector<8x128xf32>
    %952 = arith.mulf %951, %11 : vector<8x128xf32>
    %953 = math.tanh %952 : vector<8x128xf32>
    %954 = arith.mulf %953, %11 : vector<8x128xf32>
    %955 = arith.addf %954, %14 : vector<8x128xf32>
    %956 = vector.extract_strided_slice %955 {offsets = [0, 0], sizes = [8, 32], strides = [1, 1]} : vector<8x128xf32> to vector<8x32xf32>
    %957 = vector.extract_strided_slice %955 {offsets = [0, 32], sizes = [8, 32], strides = [1, 1]} : vector<8x128xf32> to vector<8x32xf32>
    %958 = vector.extract_strided_slice %955 {offsets = [0, 64], sizes = [8, 32], strides = [1, 1]} : vector<8x128xf32> to vector<8x32xf32>
    %959 = vector.extract_strided_slice %955 {offsets = [0, 96], sizes = [8, 32], strides = [1, 1]} : vector<8x128xf32> to vector<8x32xf32>
    %960 = arith.mulf %957, %923 : vector<8x32xf32>
    %961 = arith.mulf %956, %958 : vector<8x32xf32>
    %962 = arith.addf %960, %961 : vector<8x32xf32>
    %963 = math.tanh %962 : vector<8x32xf32>
    %964 = arith.mulf %959, %963 : vector<8x32xf32>
    %c4_i32_201 = arith.constant 4 : i32
    %965 = arith.muli %c2_i32_148, %c4_i32_201 : i32
    %c3_i32_202 = arith.constant 3 : i32
    %966 = arith.addi %965, %c3_i32_202 : i32
    %c1_203 = arith.constant 1 : index
    %967 = arith.index_cast %966 : i32 to index
    %c0_204 = arith.constant 0 : index
    %c0_205 = arith.constant 0 : index
    %968 = vector.load %arg2[%c1_203, %967, %c0_204, %c0_205] : memref<2x12x8x128xbf16, #tpu.memory_space<vmem>>, vector<1x1x8x128xbf16>
    %969 = vector.shape_cast %968 : vector<1x1x8x128xbf16> to vector<8x128xbf16>
    %970 = arith.extf %969 : vector<8x128xbf16> to vector<8x128xf32>
    %971 = arith.truncf %947 : vector<8x32xf32> to vector<8x32xbf16>
    %cst_206 = arith.constant dense<0.000000e+00> : vector<8x128xf32>
    %972 = tpu.matmul %971, %18, %cst_206 {dimension_numbers = #tpu.dot_dimension_numbers<[1], [0], [0], [1], [0, 0, 1, 1], [], []>} : vector<8x32xbf16>, vector<32x128xbf16>, vector<8x128xf32> -> vector<8x128xf32>
    %973 = arith.addf %970, %972 : vector<8x128xf32>
    %974 = arith.mulf %973, %11 : vector<8x128xf32>
    %975 = math.tanh %974 : vector<8x128xf32>
    %976 = arith.mulf %975, %11 : vector<8x128xf32>
    %977 = arith.addf %976, %14 : vector<8x128xf32>
    %978 = vector.extract_strided_slice %977 {offsets = [0, 0], sizes = [8, 32], strides = [1, 1]} : vector<8x128xf32> to vector<8x32xf32>
    %979 = vector.extract_strided_slice %977 {offsets = [0, 32], sizes = [8, 32], strides = [1, 1]} : vector<8x128xf32> to vector<8x32xf32>
    %980 = vector.extract_strided_slice %977 {offsets = [0, 64], sizes = [8, 32], strides = [1, 1]} : vector<8x128xf32> to vector<8x32xf32>
    %981 = vector.extract_strided_slice %977 {offsets = [0, 96], sizes = [8, 32], strides = [1, 1]} : vector<8x128xf32> to vector<8x32xf32>
    %982 = arith.mulf %979, %945 : vector<8x32xf32>
    %983 = arith.mulf %978, %980 : vector<8x32xf32>
    %984 = arith.addf %982, %983 : vector<8x32xf32>
    %985 = math.tanh %984 : vector<8x32xf32>
    %986 = arith.mulf %981, %985 : vector<8x32xf32>
    %987 = tpu.concatenate %986, %964 in 1 : vector<8x32xf32>, vector<8x32xf32> -> vector<8x64xf32>
    %988 = arith.truncf %987 : vector<8x64xf32> to vector<8x64xbf16>
    %cst_207 = arith.constant dense<0.000000e+00> : vector<8x128xf32>
    %989 = tpu.matmul %988, %22, %cst_207 {dimension_numbers = #tpu.dot_dimension_numbers<[1], [0], [0], [1], [0, 0, 1, 1], [], []>} : vector<8x64xbf16>, vector<64x128xbf16>, vector<8x128xf32> -> vector<8x128xf32>
    %990 = arith.addf %989, %30 : vector<8x128xf32>
    %991 = arith.mulf %990, %11 : vector<8x128xf32>
    %992 = math.tanh %991 : vector<8x128xf32>
    %993 = arith.mulf %992, %11 : vector<8x128xf32>
    %994 = arith.addf %993, %14 : vector<8x128xf32>
    %995 = vector.extract_strided_slice %994 {offsets = [0, 0], sizes = [8, 32], strides = [1, 1]} : vector<8x128xf32> to vector<8x32xf32>
    %996 = vector.extract_strided_slice %994 {offsets = [0, 32], sizes = [8, 32], strides = [1, 1]} : vector<8x128xf32> to vector<8x32xf32>
    %997 = vector.extract_strided_slice %994 {offsets = [0, 64], sizes = [8, 32], strides = [1, 1]} : vector<8x128xf32> to vector<8x32xf32>
    %998 = vector.extract_strided_slice %994 {offsets = [0, 96], sizes = [8, 32], strides = [1, 1]} : vector<8x128xf32> to vector<8x32xf32>
    %999 = arith.mulf %996, %962 : vector<8x32xf32>
    %1000 = arith.mulf %995, %997 : vector<8x32xf32>
    %1001 = arith.addf %999, %1000 : vector<8x32xf32>
    %1002 = math.tanh %1001 : vector<8x32xf32>
    %1003 = arith.mulf %998, %1002 : vector<8x32xf32>
    %1004 = tpu.concatenate %886, %925, %964, %1003 in 1 : vector<8x32xf32>, vector<8x32xf32>, vector<8x32xf32>, vector<8x32xf32> -> vector<8x128xf32>
    %c1_208 = arith.constant 1 : index
    %1005 = arith.index_cast %c2_i32_148 : i32 to index
    %c0_209 = arith.constant 0 : index
    %c0_210 = arith.constant 0 : index
    %1006 = vector.load %arg6[%c1_208, %1005, %c0_209, %c0_210] : memref<2x3x8x128xf32, #tpu.memory_space<vmem>>, vector<1x1x8x128xf32>
    %1007 = vector.shape_cast %1006 : vector<1x1x8x128xf32> to vector<8x128xf32>
    %1008 = vector.shape_cast %1004 : vector<8x128xf32> to vector<1x1x8x128xf32>
    tpu.vector_store %arg6[%c1_208, %1005, %c0_209, %c0_210], %1008 {strides = array<i32>} : memref<2x3x8x128xf32, #tpu.memory_space<vmem>>, vector<1x1x8x128xf32>,
    %c3_i32_211 = arith.constant 3 : i32
    %1009 = tpu.concatenate %825, %823, %842, %840 in 1 : vector<8x32xf32>, vector<8x32xf32>, vector<8x32xf32>, vector<8x32xf32> -> vector<8x128xf32>
    %c0_212 = arith.constant 0 : index
    %c0_213 = arith.constant 0 : index
    %c0_214 = arith.constant 0 : index
    %1010 = vector.load %arg7[%c0_212, %c0_213, %c0_214] : memref<2x8x128xf32, #tpu.memory_space<vmem>>, vector<1x8x128xf32>
    %1011 = vector.shape_cast %1010 : vector<1x8x128xf32> to vector<8x128xf32>
    %1012 = vector.shape_cast %1009 : vector<8x128xf32> to vector<1x8x128xf32>
    tpu.vector_store %arg7[%c0_212, %c0_213, %c0_214], %1012 {strides = array<i32>} : memref<2x8x128xf32, #tpu.memory_space<vmem>>, vector<1x8x128xf32>,
    %1013 = tpu.concatenate %986, %984, %1003, %1001 in 1 : vector<8x32xf32>, vector<8x32xf32>, vector<8x32xf32>, vector<8x32xf32> -> vector<8x128xf32>
    %c1_215 = arith.constant 1 : index
    %c0_216 = arith.constant 0 : index
    %c0_217 = arith.constant 0 : index
    %1014 = vector.load %arg7[%c1_215, %c0_216, %c0_217] : memref<2x8x128xf32, #tpu.memory_space<vmem>>, vector<1x8x128xf32>
    %1015 = vector.shape_cast %1014 : vector<1x8x128xf32> to vector<8x128xf32>
    %1016 = vector.shape_cast %1013 : vector<8x128xf32> to vector<1x8x128xf32>
    tpu.vector_store %arg7[%c1_215, %c0_216, %c0_217], %1016 {strides = array<i32>} : memref<2x8x128xf32, #tpu.memory_space<vmem>>, vector<1x8x128xf32>,
    return
  }
  func.func @transform_0(%arg0: i32, %arg1: i32) -> (i32, i32, i32, i32) {
    %c0_i32 = arith.constant 0 : i32
    %c0_i32_0 = arith.constant 0 : i32
    %c0_i32_1 = arith.constant 0 : i32
    return %arg0, %arg1, %c0_i32, %c0_i32_0 : i32, i32, i32, i32
  }
  func.func @transform_1(%arg0: i32, %arg1: i32) -> (i32, i32, i32) {
    %c0_i32 = arith.constant 0 : i32
    %c0_i32_0 = arith.constant 0 : i32
    %c0_i32_1 = arith.constant 0 : i32
    return %arg0, %c0_i32, %c0_i32_0 : i32, i32, i32
  }
  func.func @transform_2(%arg0: i32, %arg1: i32) -> (i32, i32, i32) {
    %c0_i32 = arith.constant 0 : i32
    %c0_i32_0 = arith.constant 0 : i32
    %c0_i32_1 = arith.constant 0 : i32
    return %arg0, %c0_i32, %c0_i32_0 : i32, i32, i32
  }
  func.func @transform_3(%arg0: i32, %arg1: i32) -> (i32, i32, i32) {
    %c0_i32 = arith.constant 0 : i32
    %c0_i32_0 = arith.constant 0 : i32
    %c0_i32_1 = arith.constant 0 : i32
    return %arg0, %c0_i32, %c0_i32_0 : i32, i32, i32
  }
  func.func @transform_4(%arg0: i32, %arg1: i32) -> (i32, i32, i32, i32) {
    %c0_i32 = arith.constant 0 : i32
    %c0_i32_0 = arith.constant 0 : i32
    %c0_i32_1 = arith.constant 0 : i32
    return %arg0, %arg1, %c0_i32, %c0_i32_0 : i32, i32, i32, i32
  }
}

</mosaic_0001>

<llo_original>
// kernel: model_forward.2
$region0: #{model_forward.2}
  #allocation0 [shape = 'u32[]', space=smem, size = 0x4, offset = 0x4, fixed_abs, tag = 'smem constant byte address 0x4 - core index']
  #allocation1 [shape = 'u32[144,128]{1,0:T(1,128)}', space=vmem, size = 0x12000, scoped, tag = 'internal scratch']
  #allocation2 [shape = 'f32[1,8,128]{2,1,0:T(8,128)}', space=vmem, size = 0x1000, scoped, tag = 'scratch operand']
  %s0 = inlined_call_operand.vmem [shape: bf16[1,12,8,128], index: 0, kind: input, shape index: {}]
  %s1 = inlined_call_operand.vmem [shape: bf16[1,32,128], index: 1, kind: input, shape index: {}]
  %s2 = inlined_call_operand.vmem [shape: bf16[1,64,128], index: 2, kind: input, shape index: {}]
  %s3 = inlined_call_operand.vmem [shape: f32[1,1,128], index: 3, kind: input, shape index: {}]
  %s4 = inlined_call_operand.vmem [shape: f32[1,3,8,128], index: 4, kind: output, shape index: {}]
  %s5 = sld [smem:[#allocation0]]
  $region30: #{model_forward.2} parent=0
    _
  %s7 = ssub.s32 1, %s5
  %s8 = scalar_select 0, %s7, %s5
  // Predicated region
  $region2: #{model_forward.2} parent=0 // pred_check
    _
  $region3: #{model_forward.2} parent=0 // pred_check_branch
    %10 = sbr.rel (0) target = $region5
  $region4: #{model_forward.2} parent=0 // pred_region
    _
  $region5: #{model_forward.2} parent=0 // pred_fallthru
    _
  // Predicated region
  $region6: #{model_forward.2} parent=0 // pred_check
    _
  $region7: #{model_forward.2} parent=0 // pred_check_branch
    %12 = sbr.rel (0) target = $region9
  $region8: #{model_forward.2} parent=0 // pred_region
    _
  $region9: #{model_forward.2} parent=0 // pred_fallthru
    _
  // Predicated region
  $region10: #{model_forward.2} parent=0 // pred_check
    _
  $region11: #{model_forward.2} parent=0 // pred_check_branch
    %14 = sbr.rel (0) target = $region13
  $region12: #{model_forward.2} parent=0 // pred_region
    _
  $region13: #{model_forward.2} parent=0 // pred_fallthru
    _
  // Predicated region
  $region14: #{model_forward.2} parent=0 // pred_check
    _
  $region15: #{model_forward.2} parent=0 // pred_check_branch
    %16 = sbr.rel (0) target = $region17
  $region16: #{model_forward.2} parent=0 // pred_region
    _
  $region17: #{model_forward.2} parent=0 // pred_fallthru
    _
  %p18 = scmp.eq.s32.totalorder 0, 0
  // Predicated region
  $region18: #{model_forward.2} parent=0 // pred_check
    %p19 = pneg %p18
  $region19: #{model_forward.2} parent=0 // pred_check_branch
    %21 = sbr.rel (%p19) target = $region21
  $region20: #{model_forward.2} parent=0 // pred_region
    %22 = vst [vmem:[#allocation2] sm:$0xff] 0.0
  $region21: #{model_forward.2} parent=0 // pred_fallthru
    _
  %v23 = vlaneseq
  %v24 = vand.u32 %v23, 127
  %vm25 = vcmp.ge.s32.totalorder %v24, 64
  %vm26 = vcmp.lt.s32.totalorder %v24, 96
  %vm27 = vmand %vm25, %vm26
  %v28 = vsel %vm27, 1.0, 0.5
  %v29 = vsel %vm27, 0.0, 0.5
  %v30 = vld [vmem:[%s1] sm:$0xf]
  %v31 = vld [vmem:[%s1 + $0x4] sm:$0xf]
  %v32 = vld [vmem:[%s1 + $0x8] sm:$0xf]
  %v33 = vld [vmem:[%s1 + $0xc] sm:$0xf]
  %v34 = vld [vmem:[%s2] sm:$0xf]
  %v35 = vld [vmem:[%s2 + $0x4] sm:$0xf]
  %v36 = vld [vmem:[%s2 + $0x8] sm:$0xf]
  %v37 = vld [vmem:[%s2 + $0xc] sm:$0xf]
  %v38 = vld [vmem:[%s2 + $0x10] sm:$0xf]
  %v39 = vld [vmem:[%s2 + $0x14] sm:$0xf]
  %v40 = vld [vmem:[%s2 + $0x18] sm:$0xf]
  %v41 = vld [vmem:[%s2 + $0x1c] sm:$0xf]
  %v42 = vld [vmem:[%s3] sm:$0x1]
  %v44 = vlaneseq
  %v45 = vshrl.u32 %v44, 7
  %v46 = vsub.s32 0, %v45
  %v47 = vrot.slane %v42, %v46
  %v49 = vld [vmem:[#allocation2] sm:$0xff]
  %v50 = vld [vmem:[%s0] sm:$0xf]
  %v51 = vunpack.c.l.bf16 %v50
  %v52 = vpack.c.bf16 %v49, %v49
  %v57 = vunpack.c.l.b16 %v30
  %v58 = vunpack.c.l.b16 %v31
  %v59 = vunpack.c.l.b16 %v32
  %v60 = vunpack.c.l.b16 %v33
  %v61 = vpack.c.b16 %v58, %v57
  %v62 = vpack.c.b16 %v60, %v59
  %vm65 = vcmask 261120
  %v67 = vsel %vm65, %v52, 0
  %69 = vmatprep.subr.bf16.mxu0 0
  %70 = vmatpush1.bf16.msra.mxu0 %v61
  %71 = vmatprep.subr.bf16.mxu0 0
  %72 = vmatpush1.bf16.msra.mxu0 %v62
  %73 = vmatprep.subr.bf16.mxu0 0
  %74 = vmatpush1.bf16.msra.mxu0 0
  %75 = vmatprep.subr.bf16.mxu0 0
  %76 = vmatpush1.bf16.msra.mxu0 0
  %77 = vmatprep.subr.bf16.mxu0 0
  %78 = vmatpush1.bf16.msra.mxu0 0
  %79 = vmatprep.subr.bf16.mxu0 0
  %80 = vmatpush1.bf16.msra.mxu0 0
  %81 = vmatprep.subr.bf16.mxu0 0
  %82 = vmatpush1.bf16.msra.mxu0 0
  %83 = vmatprep.subr.bf16.mxu0 0
  %84 = vmatpush1.bf16.msra.mxu0 0
  %85 = vmatprep.subr.bf16.mxu0 0
  %86 = vmatpush1.bf16.msra.mxu0 0
  %87 = vmatprep.subr.bf16.mxu0 0
  %88 = vmatpush1.bf16.msra.mxu0 0
  %89 = vmatprep.subr.bf16.mxu0 0
  %90 = vmatpush1.bf16.msra.mxu0 0
  %91 = vmatprep.subr.bf16.mxu0 0
  %92 = vmatpush1.bf16.msra.mxu0 0
  %93 = vmatprep.subr.bf16.mxu0 0
  %94 = vmatpush1.bf16.msra.mxu0 0
  %95 = vmatprep.subr.bf16.mxu0 0
  %96 = vmatpush1.bf16.msra.mxu0 0
  %97 = vmatprep.subr.bf16.mxu0 0
  %98 = vmatpush1.bf16.msra.mxu0 0
  %99 = vmatprep.subr.bf16.mxu0 0
  %100 = vmatpush1.bf16.msra.mxu0 0
  %101 = vmatprep.mubr.bf16.mxu0 0
  %102 = vmatmul.mubr.bf16.gmra.mrb[0].mxu0 %v67
  %v103 = vpop.f32.mrb[0].mxu0
  %v104 = vadd.f32 0.0, %v103
  %v105 = vpop.f32.mrb[0].mxu0
  %v106 = vpop.f32.mrb[0].mxu0
  %v107 = vpop.f32.mrb[0].mxu0
  %108 = vdwg.mxu0
  %v109 = vadd.f32 %v51, %v104
  %v110 = vmul.f32 %v109, %v28
  %v111 = vtanh.pop %v110
  %v112 = vmul.f32 %v111, %v28
  %v113 = vadd.f32 %v112, %v29
  %v114 = vmul.f32 %v113, %v49
  %116 = vrot.lane.b32.xlu0 %v113, 64
  %v117 = vpop.permute.xlu0 %116
  %v119 = vmul.f32 %v113, %v117
  %121 = vrot.lane.b32.xlu0 %v119, 32
  %v122 = vpop.permute.xlu0 %121
  %v124 = vadd.f32 %v114, %v122
  %v125 = vtanh.pop %v124
  %127 = vrot.lane.b32.xlu0 %v125, 64
  %v128 = vpop.permute.xlu0 %127
  %v130 = vmul.f32 %v113, %v128
  %132 = vrot.lane.b32.xlu0 %v130, 32
  %v133 = vpop.permute.xlu0 %132
  %136 = vrot.lane.b32.xlu0 %v49, 96
  %v137 = vpop.permute.xlu0 %136
  %v139 = vsel %vm65, %v133, %v137
  %v140 = vpack.c.bf16 %v139, %v139
  %v149 = vunpack.c.l.b16 %v34
  %v150 = vunpack.c.l.b16 %v35
  %v151 = vunpack.c.l.b16 %v36
  %v152 = vunpack.c.l.b16 %v37
  %v153 = vunpack.c.l.b16 %v38
  %v154 = vunpack.c.l.b16 %v39
  %v155 = vunpack.c.l.b16 %v40
  %v156 = vunpack.c.l.b16 %v41
  %v157 = vpack.c.b16 %v150, %v149
  %v158 = vpack.c.b16 %v152, %v151
  %v159 = vpack.c.b16 %v154, %v153
  %v160 = vpack.c.b16 %v156, %v155
  %vm165 = vcmask 523264
  %v167 = vsel %vm165, %v140, 0
  %169 = vmatprep.subr.bf16.mxu0 0
  %170 = vmatpush1.bf16.msra.mxu0 %v157
  %171 = vmatprep.subr.bf16.mxu0 0
  %172 = vmatpush1.bf16.msra.mxu0 %v158
  %173 = vmatprep.subr.bf16.mxu0 0
  %174 = vmatpush1.bf16.msra.mxu0 %v159
  %175 = vmatprep.subr.bf16.mxu0 0
  %176 = vmatpush1.bf16.msra.mxu0 %v160
  %177 = vmatprep.subr.bf16.mxu0 0
  %178 = vmatpush1.bf16.msra.mxu0 0
  %179 = vmatprep.subr.bf16.mxu0 0
  %180 = vmatpush1.bf16.msra.mxu0 0
  %181 = vmatprep.subr.bf16.mxu0 0
  %182 = vmatpush1.bf16.msra.mxu0 0
  %183 = vmatprep.subr.bf16.mxu0 0
  %184 = vmatpush1.bf16.msra.mxu0 0
  %185 = vmatprep.subr.bf16.mxu0 0
  %186 = vmatpush1.bf16.msra.mxu0 0
  %187 = vmatprep.subr.bf16.mxu0 0
  %188 = vmatpush1.bf16.msra.mxu0 0
  %189 = vmatprep.subr.bf16.mxu0 0
  %190 = vmatpush1.bf16.msra.mxu0 0
  %191 = vmatprep.subr.bf16.mxu0 0
  %192 = vmatpush1.bf16.msra.mxu0 0
  %193 = vmatprep.subr.bf16.mxu0 0
  %194 = vmatpush1.bf16.msra.mxu0 0
  %195 = vmatprep.subr.bf16.mxu0 0
  %196 = vmatpush1.bf16.msra.mxu0 0
  %197 = vmatprep.subr.bf16.mxu0 0
  %198 = vmatpush1.bf16.msra.mxu0 0
  %199 = vmatprep.subr.bf16.mxu0 0
  %200 = vmatpush1.bf16.msra.mxu0 0
  %201 = vmatprep.mubr.bf16.mxu0 0
  %202 = vmatmul.mubr.bf16.gmra.mrb[0].mxu0 %v167
  %v203 = vpop.f32.mrb[0].mxu0
  %v204 = vadd.f32 %v47, %v203
  %v205 = vpop.f32.mrb[0].mxu0
  %v206 = vpop.f32.mrb[0].mxu0
  %v207 = vpop.f32.mrb[0].mxu0
  %208 = vdwg.mxu0
  %v209 = vmul.f32 %v204, %v28
  %v210 = vtanh.pop %v209
  %v211 = vmul.f32 %v210, %v28
  %v212 = vadd.f32 %v211, %v29
  %213 = vrot.lane.b32.xlu0 %v49, 64
  %v214 = vpop.permute.xlu0 %213
  %v216 = vmul.f32 %v212, %v214
  %218 = vrot.lane.b32.xlu0 %v212, 64
  %v219 = vpop.permute.xlu0 %218
  %v221 = vmul.f32 %v212, %v219
  %223 = vrot.lane.b32.xlu0 %v221, 32
  %v224 = vpop.permute.xlu0 %223
  %v226 = vadd.f32 %v216, %v224
  %v227 = vtanh.pop %v226
  %229 = vrot.lane.b32.xlu0 %v227, 64
  %v230 = vpop.permute.xlu0 %229
  %v232 = vmul.f32 %v212, %v230
  %s233 = scalar_lea.vmem %s0, 4
  %v234 = vld [vmem:[%s233] sm:$0xf]
  %v235 = vunpack.c.l.bf16 %v234
  %v236 = vpack.c.bf16 %v130, %v130
  %238 = vrot.lane.b32.xlu0 %v236, 32
  %v239 = vpop.permute.xlu0 %238
  %v241 = vsel %vm65, %v239, 0
  %243 = vmatprep.subr.bf16.mxu0 0
  %244 = vmatpush1.bf16.msra.mxu0 %v61
  %245 = vmatprep.subr.bf16.mxu0 0
  %246 = vmatpush1.bf16.msra.mxu0 %v62
  %247 = vmatprep.subr.bf16.mxu0 0
  %248 = vmatpush1.bf16.msra.mxu0 0
  %249 = vmatprep.subr.bf16.mxu0 0
  %250 = vmatpush1.bf16.msra.mxu0 0
  %251 = vmatprep.subr.bf16.mxu0 0
  %252 = vmatpush1.bf16.msra.mxu0 0
  %253 = vmatprep.subr.bf16.mxu0 0
  %254 = vmatpush1.bf16.msra.mxu0 0
  %255 = vmatprep.subr.bf16.mxu0 0
  %256 = vmatpush1.bf16.msra.mxu0 0
  %257 = vmatprep.subr.bf16.mxu0 0
  %258 = vmatpush1.bf16.msra.mxu0 0
  %259 = vmatprep.subr.bf16.mxu0 0
  %260 = vmatpush1.bf16.msra.mxu0 0
  %261 = vmatprep.subr.bf16.mxu0 0
  %262 = vmatpush1.bf16.msra.mxu0 0
  %263 = vmatprep.subr.bf16.mxu0 0
  %264 = vmatpush1.bf16.msra.mxu0 0
  %265 = vmatprep.subr.bf16.mxu0 0
  %266 = vmatpush1.bf16.msra.mxu0 0
  %267 = vmatprep.subr.bf16.mxu0 0
  %268 = vmatpush1.bf16.msra.mxu0 0
  %269 = vmatprep.subr.bf16.mxu0 0
  %270 = vmatpush1.bf16.msra.mxu0 0
  %271 = vmatprep.subr.bf16.mxu0 0
  %272 = vmatpush1.bf16.msra.mxu0 0
  %273 = vmatprep.subr.bf16.mxu0 0
  %274 = vmatpush1.bf16.msra.mxu0 0
  %275 = vmatprep.mubr.bf16.mxu0 0
  %276 = vmatmul.mubr.bf16.gmra.mrb[0].mxu0 %v241
  %v277 = vpop.f32.mrb[0].mxu0
  %v278 = vadd.f32 0.0, %v277
  %v279 = vpop.f32.mrb[0].mxu0
  %v280 = vpop.f32.mrb[0].mxu0
  %v281 = vpop.f32.mrb[0].mxu0
  %282 = vdwg.mxu0
  %v283 = vadd.f32 %v235, %v278
  %v284 = vmul.f32 %v283, %v28
  %v285 = vtanh.pop %v284
  %v286 = vmul.f32 %v285, %v28
  %v287 = vadd.f32 %v286, %v29
  %v288 = vmul.f32 %v287, %v124
  %290 = vrot.lane.b32.xlu0 %v287, 64
  %v291 = vpop.permute.xlu0 %290
  %v293 = vmul.f32 %v287, %v291
  %295 = vrot.lane.b32.xlu0 %v293, 32
  %v296 = vpop.permute.xlu0 %295
  %v298 = vadd.f32 %v288, %v296
  %v299 = vtanh.pop %v298
  %301 = vrot.lane.b32.xlu0 %v299, 64
  %v302 = vpop.permute.xlu0 %301
  %v304 = vmul.f32 %v287, %v302
  %306 = vrot.lane.b32.xlu0 %v304, 32
  %v307 = vpop.permute.xlu0 %306
  %310 = vrot.lane.b32.xlu0 %v232, 64
  %v311 = vpop.permute.xlu0 %310
  %v313 = vsel %vm65, %v307, %v311
  %v314 = vpack.c.bf16 %v313, %v313
  %v316 = vsel %vm165, %v314, 0
  %318 = vmatprep.subr.bf16.mxu0 0
  %319 = vmatpush1.bf16.msra.mxu0 %v157
  %320 = vmatprep.subr.bf16.mxu0 0
  %321 = vmatpush1.bf16.msra.mxu0 %v158
  %322 = vmatprep.subr.bf16.mxu0 0
  %323 = vmatpush1.bf16.msra.mxu0 %v159
  %324 = vmatprep.subr.bf16.mxu0 0
  %325 = vmatpush1.bf16.msra.mxu0 %v160
  %326 = vmatprep.subr.bf16.mxu0 0
  %327 = vmatpush1.bf16.msra.mxu0 0
  %328 = vmatprep.subr.bf16.mxu0 0
  %329 = vmatpush1.bf16.msra.mxu0 0
  %330 = vmatprep.subr.bf16.mxu0 0
  %331 = vmatpush1.bf16.msra.mxu0 0
  %332 = vmatprep.subr.bf16.mxu0 0
  %333 = vmatpush1.bf16.msra.mxu0 0
  %334 = vmatprep.subr.bf16.mxu0 0
  %335 = vmatpush1.bf16.msra.mxu0 0
  %336 = vmatprep.subr.bf16.mxu0 0
  %337 = vmatpush1.bf16.msra.mxu0 0
  %338 = vmatprep.subr.bf16.mxu0 0
  %339 = vmatpush1.bf16.msra.mxu0 0
  %340 = vmatprep.subr.bf16.mxu0 0
  %341 = vmatpush1.bf16.msra.mxu0 0
  %342 = vmatprep.subr.bf16.mxu0 0
  %343 = vmatpush1.bf16.msra.mxu0 0
  %344 = vmatprep.subr.bf16.mxu0 0
  %345 = vmatpush1.bf16.msra.mxu0 0
  %346 = vmatprep.subr.bf16.mxu0 0
  %347 = vmatpush1.bf16.msra.mxu0 0
  %348 = vmatprep.subr.bf16.mxu0 0
  %349 = vmatpush1.bf16.msra.mxu0 0
  %350 = vmatprep.mubr.bf16.mxu0 0
  %351 = vmatmul.mubr.bf16.gmra.mrb[0].mxu0 %v316
  %v352 = vpop.f32.mrb[0].mxu0
  %v353 = vadd.f32 %v47, %v352
  %v354 = vpop.f32.mrb[0].mxu0
  %v355 = vpop.f32.mrb[0].mxu0
  %v356 = vpop.f32.mrb[0].mxu0
  %357 = vdwg.mxu0
  %v358 = vmul.f32 %v353, %v28
  %v359 = vtanh.pop %v358
  %v360 = vmul.f32 %v359, %v28
  %v361 = vadd.f32 %v360, %v29
  %v362 = vmul.f32 %v361, %v226
  %364 = vrot.lane.b32.xlu0 %v361, 64
  %v365 = vpop.permute.xlu0 %364
  %v367 = vmul.f32 %v361, %v365
  %369 = vrot.lane.b32.xlu0 %v367, 32
  %v370 = vpop.permute.xlu0 %369
  %v372 = vadd.f32 %v362, %v370
  %v373 = vtanh.pop %v372
  %375 = vrot.lane.b32.xlu0 %v373, 64
  %v376 = vpop.permute.xlu0 %375
  %v378 = vmul.f32 %v361, %v376
  %s379 = scalar_lea.vmem %s0, 8
  %v380 = vld [vmem:[%s379] sm:$0xf]
  %v381 = vunpack.c.l.bf16 %v380
  %v382 = vpack.c.bf16 %v304, %v304
  %384 = vrot.lane.b32.xlu0 %v382, 32
  %v385 = vpop.permute.xlu0 %384
  %v387 = vsel %vm65, %v385, 0
  %389 = vmatprep.subr.bf16.mxu0 0
  %390 = vmatpush1.bf16.msra.mxu0 %v61
  %391 = vmatprep.subr.bf16.mxu0 0
  %392 = vmatpush1.bf16.msra.mxu0 %v62
  %393 = vmatprep.subr.bf16.mxu0 0
  %394 = vmatpush1.bf16.msra.mxu0 0
  %395 = vmatprep.subr.bf16.mxu0 0
  %396 = vmatpush1.bf16.msra.mxu0 0
  %397 = vmatprep.subr.bf16.mxu0 0
  %398 = vmatpush1.bf16.msra.mxu0 0
  %399 = vmatprep.subr.bf16.mxu0 0
  %400 = vmatpush1.bf16.msra.mxu0 0
  %401 = vmatprep.subr.bf16.mxu0 0
  %402 = vmatpush1.bf16.msra.mxu0 0
  %403 = vmatprep.subr.bf16.mxu0 0
  %404 = vmatpush1.bf16.msra.mxu0 0
  %405 = vmatprep.subr.bf16.mxu0 0
  %406 = vmatpush1.bf16.msra.mxu0 0
  %407 = vmatprep.subr.bf16.mxu0 0
  %408 = vmatpush1.bf16.msra.mxu0 0
  %409 = vmatprep.subr.bf16.mxu0 0
  %410 = vmatpush1.bf16.msra.mxu0 0
  %411 = vmatprep.subr.bf16.mxu0 0
  %412 = vmatpush1.bf16.msra.mxu0 0
  %413 = vmatprep.subr.bf16.mxu0 0
  %414 = vmatpush1.bf16.msra.mxu0 0
  %415 = vmatprep.subr.bf16.mxu0 0
  %416 = vmatpush1.bf16.msra.mxu0 0
  %417 = vmatprep.subr.bf16.mxu0 0
  %418 = vmatpush1.bf16.msra.mxu0 0
  %419 = vmatprep.subr.bf16.mxu0 0
  %420 = vmatpush1.bf16.msra.mxu0 0
  %421 = vmatprep.mubr.bf16.mxu0 0
  %422 = vmatmul.mubr.bf16.gmra.mrb[0].mxu0 %v387
  %v423 = vpop.f32.mrb[0].mxu0
  %v424 = vadd.f32 0.0, %v423
  %v425 = vpop.f32.mrb[0].mxu0
  %v426 = vpop.f32.mrb[0].mxu0
  %v427 = vpop.f32.mrb[0].mxu0
  %428 = vdwg.mxu0
  %v429 = vadd.f32 %v381, %v424
  %v430 = vmul.f32 %v429, %v28
  %v431 = vtanh.pop %v430
  %v432 = vmul.f32 %v431, %v28
  %v433 = vadd.f32 %v432, %v29
  %v434 = vmul.f32 %v433, %v298
  %436 = vrot.lane.b32.xlu0 %v433, 64
  %v437 = vpop.permute.xlu0 %436
  %v439 = vmul.f32 %v433, %v437
  %441 = vrot.lane.b32.xlu0 %v439, 32
  %v442 = vpop.permute.xlu0 %441
  %v444 = vadd.f32 %v434, %v442
  %v445 = vtanh.pop %v444
  %447 = vrot.lane.b32.xlu0 %v445, 64
  %v448 = vpop.permute.xlu0 %447
  %v450 = vmul.f32 %v433, %v448
  %452 = vrot.lane.b32.xlu0 %v450, 32
  %v453 = vpop.permute.xlu0 %452
  %456 = vrot.lane.b32.xlu0 %v378, 64
  %v457 = vpop.permute.xlu0 %456
  %v459 = vsel %vm65, %v453, %v457
  %v460 = vpack.c.bf16 %v459, %v459
  %v462 = vsel %vm165, %v460, 0
  %464 = vmatprep.subr.bf16.mxu0 0
  %465 = vmatpush1.bf16.msra.mxu0 %v157
  %466 = vmatprep.subr.bf16.mxu0 0
  %467 = vmatpush1.bf16.msra.mxu0 %v158
  %468 = vmatprep.subr.bf16.mxu0 0
  %469 = vmatpush1.bf16.msra.mxu0 %v159
  %470 = vmatprep.subr.bf16.mxu0 0
  %471 = vmatpush1.bf16.msra.mxu0 %v160
  %472 = vmatprep.subr.bf16.mxu0 0
  %473 = vmatpush1.bf16.msra.mxu0 0
  %474 = vmatprep.subr.bf16.mxu0 0
  %475 = vmatpush1.bf16.msra.mxu0 0
  %476 = vmatprep.subr.bf16.mxu0 0
  %477 = vmatpush1.bf16.msra.mxu0 0
  %478 = vmatprep.subr.bf16.mxu0 0
  %479 = vmatpush1.bf16.msra.mxu0 0
  %480 = vmatprep.subr.bf16.mxu0 0
  %481 = vmatpush1.bf16.msra.mxu0 0
  %482 = vmatprep.subr.bf16.mxu0 0
  %483 = vmatpush1.bf16.msra.mxu0 0
  %484 = vmatprep.subr.bf16.mxu0 0
  %485 = vmatpush1.bf16.msra.mxu0 0
  %486 = vmatprep.subr.bf16.mxu0 0
  %487 = vmatpush1.bf16.msra.mxu0 0
  %488 = vmatprep.subr.bf16.mxu0 0
  %489 = vmatpush1.bf16.msra.mxu0 0
  %490 = vmatprep.subr.bf16.mxu0 0
  %491 = vmatpush1.bf16.msra.mxu0 0
  %492 = vmatprep.subr.bf16.mxu0 0
  %493 = vmatpush1.bf16.msra.mxu0 0
  %494 = vmatprep.subr.bf16.mxu0 0
  %495 = vmatpush1.bf16.msra.mxu0 0
  %496 = vmatprep.mubr.bf16.mxu0 0
  %497 = vmatmul.mubr.bf16.gmra.mrb[0].mxu0 %v462
  %v498 = vpop.f32.mrb[0].mxu0
  %v499 = vadd.f32 %v47, %v498
  %v500 = vpop.f32.mrb[0].mxu0
  %v501 = vpop.f32.mrb[0].mxu0
  %v502 = vpop.f32.mrb[0].mxu0
  %503 = vdwg.mxu0
  %v504 = vmul.f32 %v499, %v28
  %v505 = vtanh.pop %v504
  %v506 = vmul.f32 %v505, %v28
  %v507 = vadd.f32 %v506, %v29
  %v508 = vmul.f32 %v507, %v372
  %510 = vrot.lane.b32.xlu0 %v507, 64
  %v511 = vpop.permute.xlu0 %510
  %v513 = vmul.f32 %v507, %v511
  %515 = vrot.lane.b32.xlu0 %v513, 32
  %v516 = vpop.permute.xlu0 %515
  %v518 = vadd.f32 %v508, %v516
  %v519 = vtanh.pop %v518
  %521 = vrot.lane.b32.xlu0 %v519, 64
  %v522 = vpop.permute.xlu0 %521
  %v524 = vmul.f32 %v507, %v522
  %s525 = scalar_lea.vmem %s0, 12
  %v526 = vld [vmem:[%s525] sm:$0xf]
  %v527 = vunpack.c.l.bf16 %v526
  %v528 = vpack.c.bf16 %v450, %v450
  %530 = vrot.lane.b32.xlu0 %v528, 32
  %v531 = vpop.permute.xlu0 %530
  %v533 = vsel %vm65, %v531, 0
  %535 = vmatprep.subr.bf16.mxu0 0
  %536 = vmatpush1.bf16.msra.mxu0 %v61
  %537 = vmatprep.subr.bf16.mxu0 0
  %538 = vmatpush1.bf16.msra.mxu0 %v62
  %539 = vmatprep.subr.bf16.mxu0 0
  %540 = vmatpush1.bf16.msra.mxu0 0
  %541 = vmatprep.subr.bf16.mxu0 0
  %542 = vmatpush1.bf16.msra.mxu0 0
  %543 = vmatprep.subr.bf16.mxu0 0
  %544 = vmatpush1.bf16.msra.mxu0 0
  %545 = vmatprep.subr.bf16.mxu0 0
  %546 = vmatpush1.bf16.msra.mxu0 0
  %547 = vmatprep.subr.bf16.mxu0 0
  %548 = vmatpush1.bf16.msra.mxu0 0
  %549 = vmatprep.subr.bf16.mxu0 0
  %550 = vmatpush1.bf16.msra.mxu0 0
  %551 = vmatprep.subr.bf16.mxu0 0
  %552 = vmatpush1.bf16.msra.mxu0 0
  %553 = vmatprep.subr.bf16.mxu0 0
  %554 = vmatpush1.bf16.msra.mxu0 0
  %555 = vmatprep.subr.bf16.mxu0 0
  %556 = vmatpush1.bf16.msra.mxu0 0
  %557 = vmatprep.subr.bf16.mxu0 0
  %558 = vmatpush1.bf16.msra.mxu0 0
  %559 = vmatprep.subr.bf16.mxu0 0
  %560 = vmatpush1.bf16.msra.mxu0 0
  %561 = vmatprep.subr.bf16.mxu0 0
  %562 = vmatpush1.bf16.msra.mxu0 0
  %563 = vmatprep.subr.bf16.mxu0 0
  %564 = vmatpush1.bf16.msra.mxu0 0
  %565 = vmatprep.subr.bf16.mxu0 0
  %566 = vmatpush1.bf16.msra.mxu0 0
  %567 = vmatprep.mubr.bf16.mxu0 0
  %568 = vmatmul.mubr.bf16.gmra.mrb[0].mxu0 %v533
  %v569 = vpop.f32.mrb[0].mxu0
  %v570 = vadd.f32 0.0, %v569
  %v571 = vpop.f32.mrb[0].mxu0
  %v572 = vpop.f32.mrb[0].mxu0
  %v573 = vpop.f32.mrb[0].mxu0
  %574 = vdwg.mxu0
  %v575 = vadd.f32 %v527, %v570
  %v576 = vmul.f32 %v575, %v28
  %v577 = vtanh.pop %v576
  %v578 = vmul.f32 %v577, %v28
  %v579 = vadd.f32 %v578, %v29
  %v580 = vmul.f32 %v579, %v444
  %582 = vrot.lane.b32.xlu0 %v579, 64
  %v583 = vpop.permute.xlu0 %582
  %v585 = vmul.f32 %v579, %v583
  %587 = vrot.lane.b32.xlu0 %v585, 32
  %v588 = vpop.permute.xlu0 %587
  %v590 = vadd.f32 %v580, %v588
  %v591 = vtanh.pop %v590
  %593 = vrot.lane.b32.xlu0 %v591, 64
  %v594 = vpop.permute.xlu0 %593
  %v596 = vmul.f32 %v579, %v594
  %598 = vrot.lane.b32.xlu0 %v596, 32
  %v599 = vpop.permute.xlu0 %598
  %602 = vrot.lane.b32.xlu0 %v524, 64
  %v603 = vpop.permute.xlu0 %602
  %v605 = vsel %vm65, %v599, %v603
  %v606 = vpack.c.bf16 %v605, %v605
  %v608 = vsel %vm165, %v606, 0
  %610 = vmatprep.subr.bf16.mxu0 0
  %611 = vmatpush1.bf16.msra.mxu0 %v157
  %612 = vmatprep.subr.bf16.mxu0 0
  %613 = vmatpush1.bf16.msra.mxu0 %v158
  %614 = vmatprep.subr.bf16.mxu0 0
  %615 = vmatpush1.bf16.msra.mxu0 %v159
  %616 = vmatprep.subr.bf16.mxu0 0
  %617 = vmatpush1.bf16.msra.mxu0 %v160
  %618 = vmatprep.subr.bf16.mxu0 0
  %619 = vmatpush1.bf16.msra.mxu0 0
  %620 = vmatprep.subr.bf16.mxu0 0
  %621 = vmatpush1.bf16.msra.mxu0 0
  %622 = vmatprep.subr.bf16.mxu0 0
  %623 = vmatpush1.bf16.msra.mxu0 0
  %624 = vmatprep.subr.bf16.mxu0 0
  %625 = vmatpush1.bf16.msra.mxu0 0
  %626 = vmatprep.subr.bf16.mxu0 0
  %627 = vmatpush1.bf16.msra.mxu0 0
  %628 = vmatprep.subr.bf16.mxu0 0
  %629 = vmatpush1.bf16.msra.mxu0 0
  %630 = vmatprep.subr.bf16.mxu0 0
  %631 = vmatpush1.bf16.msra.mxu0 0
  %632 = vmatprep.subr.bf16.mxu0 0
  %633 = vmatpush1.bf16.msra.mxu0 0
  %634 = vmatprep.subr.bf16.mxu0 0
  %635 = vmatpush1.bf16.msra.mxu0 0
  %636 = vmatprep.subr.bf16.mxu0 0
  %637 = vmatpush1.bf16.msra.mxu0 0
  %638 = vmatprep.subr.bf16.mxu0 0
  %639 = vmatpush1.bf16.msra.mxu0 0
  %640 = vmatprep.subr.bf16.mxu0 0
  %641 = vmatpush1.bf16.msra.mxu0 0
  %642 = vmatprep.mubr.bf16.mxu0 0
  %643 = vmatmul.mubr.bf16.gmra.mrb[0].mxu0 %v608
  %v644 = vpop.f32.mrb[0].mxu0
  %v645 = vadd.f32 %v47, %v644
  %v646 = vpop.f32.mrb[0].mxu0
  %v647 = vpop.f32.mrb[0].mxu0
  %v648 = vpop.f32.mrb[0].mxu0
  %649 = vdwg.mxu0
  %v650 = vmul.f32 %v645, %v28
  %v651 = vtanh.pop %v650
  %v652 = vmul.f32 %v651, %v28
  %v653 = vadd.f32 %v652, %v29
  %v654 = vmul.f32 %v653, %v518
  %656 = vrot.lane.b32.xlu0 %v653, 64
  %v657 = vpop.permute.xlu0 %656
  %v659 = vmul.f32 %v653, %v657
  %661 = vrot.lane.b32.xlu0 %v659, 32
  %v662 = vpop.permute.xlu0 %661
  %v664 = vadd.f32 %v654, %v662
  %v665 = vtanh.pop %v664
  %667 = vrot.lane.b32.xlu0 %v665, 64
  %v668 = vpop.permute.xlu0 %667
  %v670 = vmul.f32 %v653, %v668
  %671 = vrot.lane.b32.xlu0 %v232, 32
  %v672 = vpop.permute.xlu0 %671
  %674 = vrot.lane.b32.xlu0 %v524, 96
  %v675 = vpop.permute.xlu0 %674
  %v677 = vsel %vm65, %v672, %v457
  %v678 = vsel %vm165, %v677, %v675
  %vm679 = vcmask 785408
  %v680 = vsel %vm679, %v678, %v670
  %681 = vst [vmem:[%s4] sm:$0xff] %v680
  %s682 = scalar_lea.vmem %s0, 16
  %v683 = vld [vmem:[%s682] sm:$0xf]
  %v684 = vunpack.c.l.bf16 %v683
  %v685 = vpack.c.bf16 %v596, %v596
  %687 = vrot.lane.b32.xlu0 %v685, 32
  %v688 = vpop.permute.xlu0 %687
  %v690 = vsel %vm65, %v688, 0
  %692 = vmatprep.subr.bf16.mxu0 0
  %693 = vmatpush1.bf16.msra.mxu0 %v61
  %694 = vmatprep.subr.bf16.mxu0 0
  %695 = vmatpush1.bf16.msra.mxu0 %v62
  %696 = vmatprep.subr.bf16.mxu0 0
  %697 = vmatpush1.bf16.msra.mxu0 0
  %698 = vmatprep.subr.bf16.mxu0 0
  %699 = vmatpush1.bf16.msra.mxu0 0
  %700 = vmatprep.subr.bf16.mxu0 0
  %701 = vmatpush1.bf16.msra.mxu0 0
  %702 = vmatprep.subr.bf16.mxu0 0
  %703 = vmatpush1.bf16.msra.mxu0 0
  %704 = vmatprep.subr.bf16.mxu0 0
  %705 = vmatpush1.bf16.msra.mxu0 0
  %706 = vmatprep.subr.bf16.mxu0 0
  %707 = vmatpush1.bf16.msra.mxu0 0
  %708 = vmatprep.subr.bf16.mxu0 0
  %709 = vmatpush1.bf16.msra.mxu0 0
  %710 = vmatprep.subr.bf16.mxu0 0
  %711 = vmatpush1.bf16.msra.mxu0 0
  %712 = vmatprep.subr.bf16.mxu0 0
  %713 = vmatpush1.bf16.msra.mxu0 0
  %714 = vmatprep.subr.bf16.mxu0 0
  %715 = vmatpush1.bf16.msra.mxu0 0
  %716 = vmatprep.subr.bf16.mxu0 0
  %717 = vmatpush1.bf16.msra.mxu0 0
  %718 = vmatprep.subr.bf16.mxu0 0
  %719 = vmatpush1.bf16.msra.mxu0 0
  %720 = vmatprep.subr.bf16.mxu0 0
  %721 = vmatpush1.bf16.msra.mxu0 0
  %722 = vmatprep.subr.bf16.mxu0 0
  %723 = vmatpush1.bf16.msra.mxu0 0
  %724 = vmatprep.mubr.bf16.mxu0 0
  %725 = vmatmul.mubr.bf16.gmra.mrb[0].mxu0 %v690
  %v726 = vpop.f32.mrb[0].mxu0
  %v727 = vadd.f32 0.0, %v726
  %v728 = vpop.f32.mrb[0].mxu0
  %v729 = vpop.f32.mrb[0].mxu0
  %v730 = vpop.f32.mrb[0].mxu0
  %731 = vdwg.mxu0
  %v732 = vadd.f32 %v684, %v727
  %v733 = vmul.f32 %v732, %v28
  %v734 = vtanh.pop %v733
  %v735 = vmul.f32 %v734, %v28
  %v736 = vadd.f32 %v735, %v29
  %v737 = vmul.f32 %v736, %v590
  %739 = vrot.lane.b32.xlu0 %v736, 64
  %v740 = vpop.permute.xlu0 %739
  %v742 = vmul.f32 %v736, %v740
  %744 = vrot.lane.b32.xlu0 %v742, 32
  %v745 = vpop.permute.xlu0 %744
  %v747 = vadd.f32 %v737, %v745
  %v748 = vtanh.pop %v747
  %750 = vrot.lane.b32.xlu0 %v748, 64
  %v751 = vpop.permute.xlu0 %750
  %v753 = vmul.f32 %v736, %v751
  %755 = vrot.lane.b32.xlu0 %v753, 32
  %v756 = vpop.permute.xlu0 %755
  %759 = vrot.lane.b32.xlu0 %v670, 64
  %v760 = vpop.permute.xlu0 %759
  %v762 = vsel %vm65, %v756, %v760
  %v763 = vpack.c.bf16 %v762, %v762
  %v765 = vsel %vm165, %v763, 0
  %767 = vmatprep.subr.bf16.mxu0 0
  %768 = vmatpush1.bf16.msra.mxu0 %v157
  %769 = vmatprep.subr.bf16.mxu0 0
  %770 = vmatpush1.bf16.msra.mxu0 %v158
  %771 = vmatprep.subr.bf16.mxu0 0
  %772 = vmatpush1.bf16.msra.mxu0 %v159
  %773 = vmatprep.subr.bf16.mxu0 0
  %774 = vmatpush1.bf16.msra.mxu0 %v160
  %775 = vmatprep.subr.bf16.mxu0 0
  %776 = vmatpush1.bf16.msra.mxu0 0
  %777 = vmatprep.subr.bf16.mxu0 0
  %778 = vmatpush1.bf16.msra.mxu0 0
  %779 = vmatprep.subr.bf16.mxu0 0
  %780 = vmatpush1.bf16.msra.mxu0 0
  %781 = vmatprep.subr.bf16.mxu0 0
  %782 = vmatpush1.bf16.msra.mxu0 0
  %783 = vmatprep.subr.bf16.mxu0 0
  %784 = vmatpush1.bf16.msra.mxu0 0
  %785 = vmatprep.subr.bf16.mxu0 0
  %786 = vmatpush1.bf16.msra.mxu0 0
  %787 = vmatprep.subr.bf16.mxu0 0
  %788 = vmatpush1.bf16.msra.mxu0 0
  %789 = vmatprep.subr.bf16.mxu0 0
  %790 = vmatpush1.bf16.msra.mxu0 0
  %791 = vmatprep.subr.bf16.mxu0 0
  %792 = vmatpush1.bf16.msra.mxu0 0
  %793 = vmatprep.subr.bf16.mxu0 0
  %794 = vmatpush1.bf16.msra.mxu0 0
  %795 = vmatprep.subr.bf16.mxu0 0
  %796 = vmatpush1.bf16.msra.mxu0 0
  %797 = vmatprep.subr.bf16.mxu0 0
  %798 = vmatpush1.bf16.msra.mxu0 0
  %799 = vmatprep.mubr.bf16.mxu0 0
  %800 = vmatmul.mubr.bf16.gmra.mrb[0].mxu0 %v765
  %v801 = vpop.f32.mrb[0].mxu0
  %v802 = vadd.f32 %v47, %v801
  %v803 = vpop.f32.mrb[0].mxu0
  %v804 = vpop.f32.mrb[0].mxu0
  %v805 = vpop.f32.mrb[0].mxu0
  %806 = vdwg.mxu0
  %v807 = vmul.f32 %v802, %v28
  %v808 = vtanh.pop %v807
  %v809 = vmul.f32 %v808, %v28
  %v810 = vadd.f32 %v809, %v29
  %v811 = vmul.f32 %v810, %v664
  %813 = vrot.lane.b32.xlu0 %v810, 64
  %v814 = vpop.permute.xlu0 %813
  %v816 = vmul.f32 %v810, %v814
  %818 = vrot.lane.b32.xlu0 %v816, 32
  %v819 = vpop.permute.xlu0 %818
  %v821 = vadd.f32 %v811, %v819
  %v822 = vtanh.pop %v821
  %824 = vrot.lane.b32.xlu0 %v822, 64
  %v825 = vpop.permute.xlu0 %824
  %v827 = vmul.f32 %v810, %v825
  %s828 = scalar_lea.vmem %s0, 20
  %v829 = vld [vmem:[%s828] sm:$0xf]
  %v830 = vunpack.c.l.bf16 %v829
  %v831 = vpack.c.bf16 %v753, %v753
  %833 = vrot.lane.b32.xlu0 %v831, 32
  %v834 = vpop.permute.xlu0 %833
  %v836 = vsel %vm65, %v834, 0
  %838 = vmatprep.subr.bf16.mxu0 0
  %839 = vmatpush1.bf16.msra.mxu0 %v61
  %840 = vmatprep.subr.bf16.mxu0 0
  %841 = vmatpush1.bf16.msra.mxu0 %v62
  %842 = vmatprep.subr.bf16.mxu0 0
  %843 = vmatpush1.bf16.msra.mxu0 0
  %844 = vmatprep.subr.bf16.mxu0 0
  %845 = vmatpush1.bf16.msra.mxu0 0
  %846 = vmatprep.subr.bf16.mxu0 0
  %847 = vmatpush1.bf16.msra.mxu0 0
  %848 = vmatprep.subr.bf16.mxu0 0
  %849 = vmatpush1.bf16.msra.mxu0 0
  %850 = vmatprep.subr.bf16.mxu0 0
  %851 = vmatpush1.bf16.msra.mxu0 0
  %852 = vmatprep.subr.bf16.mxu0 0
  %853 = vmatpush1.bf16.msra.mxu0 0
  %854 = vmatprep.subr.bf16.mxu0 0
  %855 = vmatpush1.bf16.msra.mxu0 0
  %856 = vmatprep.subr.bf16.mxu0 0
  %857 = vmatpush1.bf16.msra.mxu0 0
  %858 = vmatprep.subr.bf16.mxu0 0
  %859 = vmatpush1.bf16.msra.mxu0 0
  %860 = vmatprep.subr.bf16.mxu0 0
  %861 = vmatpush1.bf16.msra.mxu0 0
  %862 = vmatprep.subr.bf16.mxu0 0
  %863 = vmatpush1.bf16.msra.mxu0 0
  %864 = vmatprep.subr.bf16.mxu0 0
  %865 = vmatpush1.bf16.msra.mxu0 0
  %866 = vmatprep.subr.bf16.mxu0 0
  %867 = vmatpush1.bf16.msra.mxu0 0
  %868 = vmatprep.subr.bf16.mxu0 0
  %869 = vmatpush1.bf16.msra.mxu0 0
  %870 = vmatprep.mubr.bf16.mxu0 0
  %871 = vmatmul.mubr.bf16.gmra.mrb[0].mxu0 %v836
  %v872 = vpop.f32.mrb[0].mxu0
  %v873 = vadd.f32 0.0, %v872
  %v874 = vpop.f32.mrb[0].mxu0
  %v875 = vpop.f32.mrb[0].mxu0
  %v876 = vpop.f32.mrb[0].mxu0
  %877 = vdwg.mxu0
  %v878 = vadd.f32 %v830, %v873
  %v879 = vmul.f32 %v878, %v28
  %v880 = vtanh.pop %v879
  %v881 = vmul.f32 %v880, %v28
  %v882 = vadd.f32 %v881, %v29
  %v883 = vmul.f32 %v882, %v747
  %885 = vrot.lane.b32.xlu0 %v882, 64
  %v886 = vpop.permute.xlu0 %885
  %v888 = vmul.f32 %v882, %v886
  %890 = vrot.lane.b32.xlu0 %v888, 32
  %v891 = vpop.permute.xlu0 %890
  %v893 = vadd.f32 %v883, %v891
  %v894 = vtanh.pop %v893
  %896 = vrot.lane.b32.xlu0 %v894, 64
  %v897 = vpop.permute.xlu0 %896
  %v899 = vmul.f32 %v882, %v897
  %901 = vrot.lane.b32.xlu0 %v899, 32
  %v902 = vpop.permute.xlu0 %901
  %905 = vrot.lane.b32.xlu0 %v827, 64
  %v906 = vpop.permute.xlu0 %905
  %v908 = vsel %vm65, %v902, %v906
  %v909 = vpack.c.bf16 %v908, %v908
  %v911 = vsel %vm165, %v909, 0
  %913 = vmatprep.subr.bf16.mxu0 0
  %914 = vmatpush1.bf16.msra.mxu0 %v157
  %915 = vmatprep.subr.bf16.mxu0 0
  %916 = vmatpush1.bf16.msra.mxu0 %v158
  %917 = vmatprep.subr.bf16.mxu0 0
  %918 = vmatpush1.bf16.msra.mxu0 %v159
  %919 = vmatprep.subr.bf16.mxu0 0
  %920 = vmatpush1.bf16.msra.mxu0 %v160
  %921 = vmatprep.subr.bf16.mxu0 0
  %922 = vmatpush1.bf16.msra.mxu0 0
  %923 = vmatprep.subr.bf16.mxu0 0
  %924 = vmatpush1.bf16.msra.mxu0 0
  %925 = vmatprep.subr.bf16.mxu0 0
  %926 = vmatpush1.bf16.msra.mxu0 0
  %927 = vmatprep.subr.bf16.mxu0 0
  %928 = vmatpush1.bf16.msra.mxu0 0
  %929 = vmatprep.subr.bf16.mxu0 0
  %930 = vmatpush1.bf16.msra.mxu0 0
  %931 = vmatprep.subr.bf16.mxu0 0
  %932 = vmatpush1.bf16.msra.mxu0 0
  %933 = vmatprep.subr.bf16.mxu0 0
  %934 = vmatpush1.bf16.msra.mxu0 0
  %935 = vmatprep.subr.bf16.mxu0 0
  %936 = vmatpush1.bf16.msra.mxu0 0
  %937 = vmatprep.subr.bf16.mxu0 0
  %938 = vmatpush1.bf16.msra.mxu0 0
  %939 = vmatprep.subr.bf16.mxu0 0
  %940 = vmatpush1.bf16.msra.mxu0 0
  %941 = vmatprep.subr.bf16.mxu0 0
  %942 = vmatpush1.bf16.msra.mxu0 0
  %943 = vmatprep.subr.bf16.mxu0 0
  %944 = vmatpush1.bf16.msra.mxu0 0
  %945 = vmatprep.mubr.bf16.mxu0 0
  %946 = vmatmul.mubr.bf16.gmra.mrb[0].mxu0 %v911
  %v947 = vpop.f32.mrb[0].mxu0
  %v948 = vadd.f32 %v47, %v947
  %v949 = vpop.f32.mrb[0].mxu0
  %v950 = vpop.f32.mrb[0].mxu0
  %v951 = vpop.f32.mrb[0].mxu0
  %952 = vdwg.mxu0
  %v953 = vmul.f32 %v948, %v28
  %v954 = vtanh.pop %v953
  %v955 = vmul.f32 %v954, %v28
  %v956 = vadd.f32 %v955, %v29
  %v957 = vmul.f32 %v956, %v821
  %959 = vrot.lane.b32.xlu0 %v956, 64
  %v960 = vpop.permute.xlu0 %959
  %v962 = vmul.f32 %v956, %v960
  %964 = vrot.lane.b32.xlu0 %v962, 32
  %v965 = vpop.permute.xlu0 %964
  %v967 = vadd.f32 %v957, %v965
  %v968 = vtanh.pop %v967
  %970 = vrot.lane.b32.xlu0 %v968, 64
  %v971 = vpop.permute.xlu0 %970
  %v973 = vmul.f32 %v956, %v971
  %s974 = scalar_lea.vmem %s0, 24
  %v975 = vld [vmem:[%s974] sm:$0xf]
  %v976 = vunpack.c.l.bf16 %v975
  %v977 = vpack.c.bf16 %v899, %v899
  %979 = vrot.lane.b32.xlu0 %v977, 32
  %v980 = vpop.permute.xlu0 %979
  %v982 = vsel %vm65, %v980, 0
  %984 = vmatprep.subr.bf16.mxu0 0
  %985 = vmatpush1.bf16.msra.mxu0 %v61
  %986 = vmatprep.subr.bf16.mxu0 0
  %987 = vmatpush1.bf16.msra.mxu0 %v62
  %988 = vmatprep.subr.bf16.mxu0 0
  %989 = vmatpush1.bf16.msra.mxu0 0
  %990 = vmatprep.subr.bf16.mxu0 0
  %991 = vmatpush1.bf16.msra.mxu0 0
  %992 = vmatprep.subr.bf16.mxu0 0
  %993 = vmatpush1.bf16.msra.mxu0 0
  %994 = vmatprep.subr.bf16.mxu0 0
  %995 = vmatpush1.bf16.msra.mxu0 0
  %996 = vmatprep.subr.bf16.mxu0 0
  %997 = vmatpush1.bf16.msra.mxu0 0
  %998 = vmatprep.subr.bf16.mxu0 0
  %999 = vmatpush1.bf16.msra.mxu0 0
  %1000 = vmatprep.subr.bf16.mxu0 0
  %1001 = vmatpush1.bf16.msra.mxu0 0
  %1002 = vmatprep.subr.bf16.mxu0 0
  %1003 = vmatpush1.bf16.msra.mxu0 0
  %1004 = vmatprep.subr.bf16.mxu0 0
  %1005 = vmatpush1.bf16.msra.mxu0 0
  %1006 = vmatprep.subr.bf16.mxu0 0
  %1007 = vmatpush1.bf16.msra.mxu0 0
  %1008 = vmatprep.subr.bf16.mxu0 0
  %1009 = vmatpush1.bf16.msra.mxu0 0
  %1010 = vmatprep.subr.bf16.mxu0 0
  %1011 = vmatpush1.bf16.msra.mxu0 0
  %1012 = vmatprep.subr.bf16.mxu0 0
  %1013 = vmatpush1.bf16.msra.mxu0 0
  %1014 = vmatprep.subr.bf16.mxu0 0
  %1015 = vmatpush1.bf16.msra.mxu0 0
  %1016 = vmatprep.mubr.bf16.mxu0 0
  %1017 = vmatmul.mubr.bf16.gmra.mrb[0].mxu0 %v982
  %v1018 = vpop.f32.mrb[0].mxu0
  %v1019 = vadd.f32 0.0, %v1018
  %v1020 = vpop.f32.mrb[0].mxu0
  %v1021 = vpop.f32.mrb[0].mxu0
  %v1022 = vpop.f32.mrb[0].mxu0
  %1023 = vdwg.mxu0
  %v1024 = vadd.f32 %v976, %v1019
  %v1025 = vmul.f32 %v1024, %v28
  %v1026 = vtanh.pop %v1025
  %v1027 = vmul.f32 %v1026, %v28
  %v1028 = vadd.f32 %v1027, %v29
  %v1029 = vmul.f32 %v1028, %v893
  %1031 = vrot.lane.b32.xlu0 %v1028, 64
  %v1032 = vpop.permute.xlu0 %1031
  %v1034 = vmul.f32 %v1028, %v1032
  %1036 = vrot.lane.b32.xlu0 %v1034, 32
  %v1037 = vpop.permute.xlu0 %1036
  %v1039 = vadd.f32 %v1029, %v1037
  %v1040 = vtanh.pop %v1039
  %1042 = vrot.lane.b32.xlu0 %v1040, 64
  %v1043 = vpop.permute.xlu0 %1042
  %v1045 = vmul.f32 %v1028, %v1043
  %1047 = vrot.lane.b32.xlu0 %v1045, 32
  %v1048 = vpop.permute.xlu0 %1047
  %1051 = vrot.lane.b32.xlu0 %v973, 64
  %v1052 = vpop.permute.xlu0 %1051
  %v1054 = vsel %vm65, %v1048, %v1052
  %v1055 = vpack.c.bf16 %v1054, %v1054
  %v1057 = vsel %vm165, %v1055, 0
  %1059 = vmatprep.subr.bf16.mxu0 0
  %1060 = vmatpush1.bf16.msra.mxu0 %v157
  %1061 = vmatprep.subr.bf16.mxu0 0
  %1062 = vmatpush1.bf16.msra.mxu0 %v158
  %1063 = vmatprep.subr.bf16.mxu0 0
  %1064 = vmatpush1.bf16.msra.mxu0 %v159
  %1065 = vmatprep.subr.bf16.mxu0 0
  %1066 = vmatpush1.bf16.msra.mxu0 %v160
  %1067 = vmatprep.subr.bf16.mxu0 0
  %1068 = vmatpush1.bf16.msra.mxu0 0
  %1069 = vmatprep.subr.bf16.mxu0 0
  %1070 = vmatpush1.bf16.msra.mxu0 0
  %1071 = vmatprep.subr.bf16.mxu0 0
  %1072 = vmatpush1.bf16.msra.mxu0 0
  %1073 = vmatprep.subr.bf16.mxu0 0
  %1074 = vmatpush1.bf16.msra.mxu0 0
  %1075 = vmatprep.subr.bf16.mxu0 0
  %1076 = vmatpush1.bf16.msra.mxu0 0
  %1077 = vmatprep.subr.bf16.mxu0 0
  %1078 = vmatpush1.bf16.msra.mxu0 0
  %1079 = vmatprep.subr.bf16.mxu0 0
  %1080 = vmatpush1.bf16.msra.mxu0 0
  %1081 = vmatprep.subr.bf16.mxu0 0
  %1082 = vmatpush1.bf16.msra.mxu0 0
  %1083 = vmatprep.subr.bf16.mxu0 0
  %1084 = vmatpush1.bf16.msra.mxu0 0
  %1085 = vmatprep.subr.bf16.mxu0 0
  %1086 = vmatpush1.bf16.msra.mxu0 0
  %1087 = vmatprep.subr.bf16.mxu0 0
  %1088 = vmatpush1.bf16.msra.mxu0 0
  %1089 = vmatprep.subr.bf16.mxu0 0
  %1090 = vmatpush1.bf16.msra.mxu0 0
  %1091 = vmatprep.mubr.bf16.mxu0 0
  %1092 = vmatmul.mubr.bf16.gmra.mrb[0].mxu0 %v1057
  %v1093 = vpop.f32.mrb[0].mxu0
  %v1094 = vadd.f32 %v47, %v1093
  %v1095 = vpop.f32.mrb[0].mxu0
  %v1096 = vpop.f32.mrb[0].mxu0
  %v1097 = vpop.f32.mrb[0].mxu0
  %1098 = vdwg.mxu0
  %v1099 = vmul.f32 %v1094, %v28
  %v1100 = vtanh.pop %v1099
  %v1101 = vmul.f32 %v1100, %v28
  %v1102 = vadd.f32 %v1101, %v29
  %v1103 = vmul.f32 %v1102, %v967
  %1105 = vrot.lane.b32.xlu0 %v1102, 64
  %v1106 = vpop.permute.xlu0 %1105
  %v1108 = vmul.f32 %v1102, %v1106
  %1110 = vrot.lane.b32.xlu0 %v1108, 32
  %v1111 = vpop.permute.xlu0 %1110
  %v1113 = vadd.f32 %v1103, %v1111
  %v1114 = vtanh.pop %v1113
  %1116 = vrot.lane.b32.xlu0 %v1114, 64
  %v1117 = vpop.permute.xlu0 %1116
  %v1119 = vmul.f32 %v1102, %v1117
  %s1120 = scalar_lea.vmem %s0, 28
  %v1121 = vld [vmem:[%s1120] sm:$0xf]
  %v1122 = vunpack.c.l.bf16 %v1121
  %v1123 = vpack.c.bf16 %v1045, %v1045
  %1125 = vrot.lane.b32.xlu0 %v1123, 32
  %v1126 = vpop.permute.xlu0 %1125
  %v1128 = vsel %vm65, %v1126, 0
  %1130 = vmatprep.subr.bf16.mxu0 0
  %1131 = vmatpush1.bf16.msra.mxu0 %v61
  %1132 = vmatprep.subr.bf16.mxu0 0
  %1133 = vmatpush1.bf16.msra.mxu0 %v62
  %1134 = vmatprep.subr.bf16.mxu0 0
  %1135 = vmatpush1.bf16.msra.mxu0 0
  %1136 = vmatprep.subr.bf16.mxu0 0
  %1137 = vmatpush1.bf16.msra.mxu0 0
  %1138 = vmatprep.subr.bf16.mxu0 0
  %1139 = vmatpush1.bf16.msra.mxu0 0
  %1140 = vmatprep.subr.bf16.mxu0 0
  %1141 = vmatpush1.bf16.msra.mxu0 0
  %1142 = vmatprep.subr.bf16.mxu0 0
  %1143 = vmatpush1.bf16.msra.mxu0 0
  %1144 = vmatprep.subr.bf16.mxu0 0
  %1145 = vmatpush1.bf16.msra.mxu0 0
  %1146 = vmatprep.subr.bf16.mxu0 0
  %1147 = vmatpush1.bf16.msra.mxu0 0
  %1148 = vmatprep.subr.bf16.mxu0 0
  %1149 = vmatpush1.bf16.msra.mxu0 0
  %1150 = vmatprep.subr.bf16.mxu0 0
  %1151 = vmatpush1.bf16.msra.mxu0 0
  %1152 = vmatprep.subr.bf16.mxu0 0
  %1153 = vmatpush1.bf16.msra.mxu0 0
  %1154 = vmatprep.subr.bf16.mxu0 0
  %1155 = vmatpush1.bf16.msra.mxu0 0
  %1156 = vmatprep.subr.bf16.mxu0 0
  %1157 = vmatpush1.bf16.msra.mxu0 0
  %1158 = vmatprep.subr.bf16.mxu0 0
  %1159 = vmatpush1.bf16.msra.mxu0 0
  %1160 = vmatprep.subr.bf16.mxu0 0
  %1161 = vmatpush1.bf16.msra.mxu0 0
  %1162 = vmatprep.mubr.bf16.mxu0 0
  %1163 = vmatmul.mubr.bf16.gmra.mrb[0].mxu0 %v1128
  %v1164 = vpop.f32.mrb[0].mxu0
  %v1165 = vadd.f32 0.0, %v1164
  %v1166 = vpop.f32.mrb[0].mxu0
  %v1167 = vpop.f32.mrb[0].mxu0
  %v1168 = vpop.f32.mrb[0].mxu0
  %1169 = vdwg.mxu0
  %v1170 = vadd.f32 %v1122, %v1165
  %v1171 = vmul.f32 %v1170, %v28
  %v1172 = vtanh.pop %v1171
  %v1173 = vmul.f32 %v1172, %v28
  %v1174 = vadd.f32 %v1173, %v29
  %v1175 = vmul.f32 %v1174, %v1039
  %1177 = vrot.lane.b32.xlu0 %v1174, 64
  %v1178 = vpop.permute.xlu0 %1177
  %v1180 = vmul.f32 %v1174, %v1178
  %1182 = vrot.lane.b32.xlu0 %v1180, 32
  %v1183 = vpop.permute.xlu0 %1182
  %v1185 = vadd.f32 %v1175, %v1183
  %v1186 = vtanh.pop %v1185
  %1188 = vrot.lane.b32.xlu0 %v1186, 64
  %v1189 = vpop.permute.xlu0 %1188
  %v1191 = vmul.f32 %v1174, %v1189
  %1193 = vrot.lane.b32.xlu0 %v1191, 32
  %v1194 = vpop.permute.xlu0 %1193
  %1197 = vrot.lane.b32.xlu0 %v1119, 64
  %v1198 = vpop.permute.xlu0 %1197
  %v1200 = vsel %vm65, %v1194, %v1198
  %v1201 = vpack.c.bf16 %v1200, %v1200
  %v1203 = vsel %vm165, %v1201, 0
  %1205 = vmatprep.subr.bf16.mxu0 0
  %1206 = vmatpush1.bf16.msra.mxu0 %v157
  %1207 = vmatprep.subr.bf16.mxu0 0
  %1208 = vmatpush1.bf16.msra.mxu0 %v158
  %1209 = vmatprep.subr.bf16.mxu0 0
  %1210 = vmatpush1.bf16.msra.mxu0 %v159
  %1211 = vmatprep.subr.bf16.mxu0 0
  %1212 = vmatpush1.bf16.msra.mxu0 %v160
  %1213 = vmatprep.subr.bf16.mxu0 0
  %1214 = vmatpush1.bf16.msra.mxu0 0
  %1215 = vmatprep.subr.bf16.mxu0 0
  %1216 = vmatpush1.bf16.msra.mxu0 0
  %1217 = vmatprep.subr.bf16.mxu0 0
  %1218 = vmatpush1.bf16.msra.mxu0 0
  %1219 = vmatprep.subr.bf16.mxu0 0
  %1220 = vmatpush1.bf16.msra.mxu0 0
  %1221 = vmatprep.subr.bf16.mxu0 0
  %1222 = vmatpush1.bf16.msra.mxu0 0
  %1223 = vmatprep.subr.bf16.mxu0 0
  %1224 = vmatpush1.bf16.msra.mxu0 0
  %1225 = vmatprep.subr.bf16.mxu0 0
  %1226 = vmatpush1.bf16.msra.mxu0 0
  %1227 = vmatprep.subr.bf16.mxu0 0
  %1228 = vmatpush1.bf16.msra.mxu0 0
  %1229 = vmatprep.subr.bf16.mxu0 0
  %1230 = vmatpush1.bf16.msra.mxu0 0
  %1231 = vmatprep.subr.bf16.mxu0 0
  %1232 = vmatpush1.bf16.msra.mxu0 0
  %1233 = vmatprep.subr.bf16.mxu0 0
  %1234 = vmatpush1.bf16.msra.mxu0 0
  %1235 = vmatprep.subr.bf16.mxu0 0
  %1236 = vmatpush1.bf16.msra.mxu0 0
  %1237 = vmatprep.mubr.bf16.mxu0 0
  %1238 = vmatmul.mubr.bf16.gmra.mrb[0].mxu0 %v1203
  %v1239 = vpop.f32.mrb[0].mxu0
  %v1240 = vadd.f32 %v47, %v1239
  %v1241 = vpop.f32.mrb[0].mxu0
  %v1242 = vpop.f32.mrb[0].mxu0
  %v1243 = vpop.f32.mrb[0].mxu0
  %1244 = vdwg.mxu0
  %v1245 = vmul.f32 %v1240, %v28
  %v1246 = vtanh.pop %v1245
  %v1247 = vmul.f32 %v1246, %v28
  %v1248 = vadd.f32 %v1247, %v29
  %v1249 = vmul.f32 %v1248, %v1113
  %1251 = vrot.lane.b32.xlu0 %v1248, 64
  %v1252 = vpop.permute.xlu0 %1251
  %v1254 = vmul.f32 %v1248, %v1252
  %1256 = vrot.lane.b32.xlu0 %v1254, 32
  %v1257 = vpop.permute.xlu0 %1256
  %v1259 = vadd.f32 %v1249, %v1257
  %v1260 = vtanh.pop %v1259
  %1262 = vrot.lane.b32.xlu0 %v1260, 64
  %v1263 = vpop.permute.xlu0 %1262
  %v1265 = vmul.f32 %v1248, %v1263
  %1266 = vrot.lane.b32.xlu0 %v827, 32
  %v1267 = vpop.permute.xlu0 %1266
  %1269 = vrot.lane.b32.xlu0 %v1119, 96
  %v1270 = vpop.permute.xlu0 %1269
  %v1272 = vsel %vm65, %v1267, %v1052
  %v1273 = vsel %vm165, %v1272, %v1270
  %v1274 = vsel %vm679, %v1273, %v1265
  %s1275 = scalar_lea.vmem %s4, 8
  %1276 = vst [vmem:[%s1275] sm:$0xff] %v1274
  %s1277 = scalar_lea.vmem %s0, 32
  %v1278 = vld [vmem:[%s1277] sm:$0xf]
  %v1279 = vunpack.c.l.bf16 %v1278
  %v1280 = vpack.c.bf16 %v1191, %v1191
  %1282 = vrot.lane.b32.xlu0 %v1280, 32
  %v1283 = vpop.permute.xlu0 %1282
  %v1285 = vsel %vm65, %v1283, 0
  %1287 = vmatprep.subr.bf16.mxu0 0
  %1288 = vmatpush1.bf16.msra.mxu0 %v61
  %1289 = vmatprep.subr.bf16.mxu0 0
  %1290 = vmatpush1.bf16.msra.mxu0 %v62
  %1291 = vmatprep.subr.bf16.mxu0 0
  %1292 = vmatpush1.bf16.msra.mxu0 0
  %1293 = vmatprep.subr.bf16.mxu0 0
  %1294 = vmatpush1.bf16.msra.mxu0 0
  %1295 = vmatprep.subr.bf16.mxu0 0
  %1296 = vmatpush1.bf16.msra.mxu0 0
  %1297 = vmatprep.subr.bf16.mxu0 0
  %1298 = vmatpush1.bf16.msra.mxu0 0
  %1299 = vmatprep.subr.bf16.mxu0 0
  %1300 = vmatpush1.bf16.msra.mxu0 0
  %1301 = vmatprep.subr.bf16.mxu0 0
  %1302 = vmatpush1.bf16.msra.mxu0 0
  %1303 = vmatprep.subr.bf16.mxu0 0
  %1304 = vmatpush1.bf16.msra.mxu0 0
  %1305 = vmatprep.subr.bf16.mxu0 0
  %1306 = vmatpush1.bf16.msra.mxu0 0
  %1307 = vmatprep.subr.bf16.mxu0 0
  %1308 = vmatpush1.bf16.msra.mxu0 0
  %1309 = vmatprep.subr.bf16.mxu0 0
  %1310 = vmatpush1.bf16.msra.mxu0 0
  %1311 = vmatprep.subr.bf16.mxu0 0
  %1312 = vmatpush1.bf16.msra.mxu0 0
  %1313 = vmatprep.subr.bf16.mxu0 0
  %1314 = vmatpush1.bf16.msra.mxu0 0
  %1315 = vmatprep.subr.bf16.mxu0 0
  %1316 = vmatpush1.bf16.msra.mxu0 0
  %1317 = vmatprep.subr.bf16.mxu0 0
  %1318 = vmatpush1.bf16.msra.mxu0 0
  %1319 = vmatprep.mubr.bf16.mxu0 0
  %1320 = vmatmul.mubr.bf16.gmra.mrb[0].mxu0 %v1285
  %v1321 = vpop.f32.mrb[0].mxu0
  %v1322 = vadd.f32 0.0, %v1321
  %v1323 = vpop.f32.mrb[0].mxu0
  %v1324 = vpop.f32.mrb[0].mxu0
  %v1325 = vpop.f32.mrb[0].mxu0
  %1326 = vdwg.mxu0
  %v1327 = vadd.f32 %v1279, %v1322
  %v1328 = vmul.f32 %v1327, %v28
  %v1329 = vtanh.pop %v1328
  %v1330 = vmul.f32 %v1329, %v28
  %v1331 = vadd.f32 %v1330, %v29
  %v1332 = vmul.f32 %v1331, %v1185
  %1334 = vrot.lane.b32.xlu0 %v1331, 64
  %v1335 = vpop.permute.xlu0 %1334
  %v1337 = vmul.f32 %v1331, %v1335
  %1339 = vrot.lane.b32.xlu0 %v1337, 32
  %v1340 = vpop.permute.xlu0 %1339
  %v1342 = vadd.f32 %v1332, %v1340
  %v1343 = vtanh.pop %v1342
  %1345 = vrot.lane.b32.xlu0 %v1343, 64
  %v1346 = vpop.permute.xlu0 %1345
  %v1348 = vmul.f32 %v1331, %v1346
  %1350 = vrot.lane.b32.xlu0 %v1348, 32
  %v1351 = vpop.permute.xlu0 %1350
  %1354 = vrot.lane.b32.xlu0 %v1265, 64
  %v1355 = vpop.permute.xlu0 %1354
  %v1357 = vsel %vm65, %v1351, %v1355
  %v1358 = vpack.c.bf16 %v1357, %v1357
  %v1360 = vsel %vm165, %v1358, 0
  %1362 = vmatprep.subr.bf16.mxu0 0
  %1363 = vmatpush1.bf16.msra.mxu0 %v157
  %1364 = vmatprep.subr.bf16.mxu0 0
  %1365 = vmatpush1.bf16.msra.mxu0 %v158
  %1366 = vmatprep.subr.bf16.mxu0 0
  %1367 = vmatpush1.bf16.msra.mxu0 %v159
  %1368 = vmatprep.subr.bf16.mxu0 0
  %1369 = vmatpush1.bf16.msra.mxu0 %v160
  %1370 = vmatprep.subr.bf16.mxu0 0
  %1371 = vmatpush1.bf16.msra.mxu0 0
  %1372 = vmatprep.subr.bf16.mxu0 0
  %1373 = vmatpush1.bf16.msra.mxu0 0
  %1374 = vmatprep.subr.bf16.mxu0 0
  %1375 = vmatpush1.bf16.msra.mxu0 0
  %1376 = vmatprep.subr.bf16.mxu0 0
  %1377 = vmatpush1.bf16.msra.mxu0 0
  %1378 = vmatprep.subr.bf16.mxu0 0
  %1379 = vmatpush1.bf16.msra.mxu0 0
  %1380 = vmatprep.subr.bf16.mxu0 0
  %1381 = vmatpush1.bf16.msra.mxu0 0
  %1382 = vmatprep.subr.bf16.mxu0 0
  %1383 = vmatpush1.bf16.msra.mxu0 0
  %1384 = vmatprep.subr.bf16.mxu0 0
  %1385 = vmatpush1.bf16.msra.mxu0 0
  %1386 = vmatprep.subr.bf16.mxu0 0
  %1387 = vmatpush1.bf16.msra.mxu0 0
  %1388 = vmatprep.subr.bf16.mxu0 0
  %1389 = vmatpush1.bf16.msra.mxu0 0
  %1390 = vmatprep.subr.bf16.mxu0 0
  %1391 = vmatpush1.bf16.msra.mxu0 0
  %1392 = vmatprep.subr.bf16.mxu0 0
  %1393 = vmatpush1.bf16.msra.mxu0 0
  %1394 = vmatprep.mubr.bf16.mxu0 0
  %1395 = vmatmul.mubr.bf16.gmra.mrb[0].mxu0 %v1360
  %v1396 = vpop.f32.mrb[0].mxu0
  %v1397 = vadd.f32 %v47, %v1396
  %v1398 = vpop.f32.mrb[0].mxu0
  %v1399 = vpop.f32.mrb[0].mxu0
  %v1400 = vpop.f32.mrb[0].mxu0
  %1401 = vdwg.mxu0
  %v1402 = vmul.f32 %v1397, %v28
  %v1403 = vtanh.pop %v1402
  %v1404 = vmul.f32 %v1403, %v28
  %v1405 = vadd.f32 %v1404, %v29
  %v1406 = vmul.f32 %v1405, %v1259
  %1408 = vrot.lane.b32.xlu0 %v1405, 64
  %v1409 = vpop.permute.xlu0 %1408
  %v1411 = vmul.f32 %v1405, %v1409
  %1413 = vrot.lane.b32.xlu0 %v1411, 32
  %v1414 = vpop.permute.xlu0 %1413
  %v1416 = vadd.f32 %v1406, %v1414
  %v1417 = vtanh.pop %v1416
  %1419 = vrot.lane.b32.xlu0 %v1417, 64
  %v1420 = vpop.permute.xlu0 %1419
  %v1422 = vmul.f32 %v1405, %v1420
  %s1423 = scalar_lea.vmem %s0, 36
  %v1424 = vld [vmem:[%s1423] sm:$0xf]
  %v1425 = vunpack.c.l.bf16 %v1424
  %v1426 = vpack.c.bf16 %v1348, %v1348
  %1428 = vrot.lane.b32.xlu0 %v1426, 32
  %v1429 = vpop.permute.xlu0 %1428
  %v1431 = vsel %vm65, %v1429, 0
  %1433 = vmatprep.subr.bf16.mxu0 0
  %1434 = vmatpush1.bf16.msra.mxu0 %v61
  %1435 = vmatprep.subr.bf16.mxu0 0
  %1436 = vmatpush1.bf16.msra.mxu0 %v62
  %1437 = vmatprep.subr.bf16.mxu0 0
  %1438 = vmatpush1.bf16.msra.mxu0 0
  %1439 = vmatprep.subr.bf16.mxu0 0
  %1440 = vmatpush1.bf16.msra.mxu0 0
  %1441 = vmatprep.subr.bf16.mxu0 0
  %1442 = vmatpush1.bf16.msra.mxu0 0
  %1443 = vmatprep.subr.bf16.mxu0 0
  %1444 = vmatpush1.bf16.msra.mxu0 0
  %1445 = vmatprep.subr.bf16.mxu0 0
  %1446 = vmatpush1.bf16.msra.mxu0 0
  %1447 = vmatprep.subr.bf16.mxu0 0
  %1448 = vmatpush1.bf16.msra.mxu0 0
  %1449 = vmatprep.subr.bf16.mxu0 0
  %1450 = vmatpush1.bf16.msra.mxu0 0
  %1451 = vmatprep.subr.bf16.mxu0 0
  %1452 = vmatpush1.bf16.msra.mxu0 0
  %1453 = vmatprep.subr.bf16.mxu0 0
  %1454 = vmatpush1.bf16.msra.mxu0 0
  %1455 = vmatprep.subr.bf16.mxu0 0
  %1456 = vmatpush1.bf16.msra.mxu0 0
  %1457 = vmatprep.subr.bf16.mxu0 0
  %1458 = vmatpush1.bf16.msra.mxu0 0
  %1459 = vmatprep.subr.bf16.mxu0 0
  %1460 = vmatpush1.bf16.msra.mxu0 0
  %1461 = vmatprep.subr.bf16.mxu0 0
  %1462 = vmatpush1.bf16.msra.mxu0 0
  %1463 = vmatprep.subr.bf16.mxu0 0
  %1464 = vmatpush1.bf16.msra.mxu0 0
  %1465 = vmatprep.mubr.bf16.mxu0 0
  %1466 = vmatmul.mubr.bf16.gmra.mrb[0].mxu0 %v1431
  %v1467 = vpop.f32.mrb[0].mxu0
  %v1468 = vadd.f32 0.0, %v1467
  %v1469 = vpop.f32.mrb[0].mxu0
  %v1470 = vpop.f32.mrb[0].mxu0
  %v1471 = vpop.f32.mrb[0].mxu0
  %1472 = vdwg.mxu0
  %v1473 = vadd.f32 %v1425, %v1468
  %v1474 = vmul.f32 %v1473, %v28
  %v1475 = vtanh.pop %v1474
  %v1476 = vmul.f32 %v1475, %v28
  %v1477 = vadd.f32 %v1476, %v29
  %v1478 = vmul.f32 %v1477, %v1342
  %1480 = vrot.lane.b32.xlu0 %v1477, 64
  %v1481 = vpop.permute.xlu0 %1480
  %v1483 = vmul.f32 %v1477, %v1481
  %1485 = vrot.lane.b32.xlu0 %v1483, 32
  %v1486 = vpop.permute.xlu0 %1485
  %v1488 = vadd.f32 %v1478, %v1486
  %v1489 = vtanh.pop %v1488
  %1491 = vrot.lane.b32.xlu0 %v1489, 64
  %v1492 = vpop.permute.xlu0 %1491
  %v1494 = vmul.f32 %v1477, %v1492
  %1496 = vrot.lane.b32.xlu0 %v1494, 32
  %v1497 = vpop.permute.xlu0 %1496
  %1500 = vrot.lane.b32.xlu0 %v1422, 64
  %v1501 = vpop.permute.xlu0 %1500
  %v1503 = vsel %vm65, %v1497, %v1501
  %v1504 = vpack.c.bf16 %v1503, %v1503
  %v1506 = vsel %vm165, %v1504, 0
  %1508 = vmatprep.subr.bf16.mxu0 0
  %1509 = vmatpush1.bf16.msra.mxu0 %v157
  %1510 = vmatprep.subr.bf16.mxu0 0
  %1511 = vmatpush1.bf16.msra.mxu0 %v158
  %1512 = vmatprep.subr.bf16.mxu0 0
  %1513 = vmatpush1.bf16.msra.mxu0 %v159
  %1514 = vmatprep.subr.bf16.mxu0 0
  %1515 = vmatpush1.bf16.msra.mxu0 %v160
  %1516 = vmatprep.subr.bf16.mxu0 0
  %1517 = vmatpush1.bf16.msra.mxu0 0
  %1518 = vmatprep.subr.bf16.mxu0 0
  %1519 = vmatpush1.bf16.msra.mxu0 0
  %1520 = vmatprep.subr.bf16.mxu0 0
  %1521 = vmatpush1.bf16.msra.mxu0 0
  %1522 = vmatprep.subr.bf16.mxu0 0
  %1523 = vmatpush1.bf16.msra.mxu0 0
  %1524 = vmatprep.subr.bf16.mxu0 0
  %1525 = vmatpush1.bf16.msra.mxu0 0
  %1526 = vmatprep.subr.bf16.mxu0 0
  %1527 = vmatpush1.bf16.msra.mxu0 0
  %1528 = vmatprep.subr.bf16.mxu0 0
  %1529 = vmatpush1.bf16.msra.mxu0 0
  %1530 = vmatprep.subr.bf16.mxu0 0
  %1531 = vmatpush1.bf16.msra.mxu0 0
  %1532 = vmatprep.subr.bf16.mxu0 0
  %1533 = vmatpush1.bf16.msra.mxu0 0
  %1534 = vmatprep.subr.bf16.mxu0 0
  %1535 = vmatpush1.bf16.msra.mxu0 0
  %1536 = vmatprep.subr.bf16.mxu0 0
  %1537 = vmatpush1.bf16.msra.mxu0 0
  %1538 = vmatprep.subr.bf16.mxu0 0
  %1539 = vmatpush1.bf16.msra.mxu0 0
  %1540 = vmatprep.mubr.bf16.mxu0 0
  %1541 = vmatmul.mubr.bf16.gmra.mrb[0].mxu0 %v1506
  %v1542 = vpop.f32.mrb[0].mxu0
  %v1543 = vadd.f32 %v47, %v1542
  %v1544 = vpop.f32.mrb[0].mxu0
  %v1545 = vpop.f32.mrb[0].mxu0
  %v1546 = vpop.f32.mrb[0].mxu0
  %1547 = vdwg.mxu0
  %v1548 = vmul.f32 %v1543, %v28
  %v1549 = vtanh.pop %v1548
  %v1550 = vmul.f32 %v1549, %v28
  %v1551 = vadd.f32 %v1550, %v29
  %v1552 = vmul.f32 %v1551, %v1416
  %1554 = vrot.lane.b32.xlu0 %v1551, 64
  %v1555 = vpop.permute.xlu0 %1554
  %v1557 = vmul.f32 %v1551, %v1555
  %1559 = vrot.lane.b32.xlu0 %v1557, 32
  %v1560 = vpop.permute.xlu0 %1559
  %v1562 = vadd.f32 %v1552, %v1560
  %v1563 = vtanh.pop %v1562
  %1565 = vrot.lane.b32.xlu0 %v1563, 64
  %v1566 = vpop.permute.xlu0 %1565
  %v1568 = vmul.f32 %v1551, %v1566
  %s1569 = scalar_lea.vmem %s0, 40
  %v1570 = vld [vmem:[%s1569] sm:$0xf]
  %v1571 = vunpack.c.l.bf16 %v1570
  %v1572 = vpack.c.bf16 %v1494, %v1494
  %1574 = vrot.lane.b32.xlu0 %v1572, 32
  %v1575 = vpop.permute.xlu0 %1574
  %v1577 = vsel %vm65, %v1575, 0
  %1579 = vmatprep.subr.bf16.mxu0 0
  %1580 = vmatpush1.bf16.msra.mxu0 %v61
  %1581 = vmatprep.subr.bf16.mxu0 0
  %1582 = vmatpush1.bf16.msra.mxu0 %v62
  %1583 = vmatprep.subr.bf16.mxu0 0
  %1584 = vmatpush1.bf16.msra.mxu0 0
  %1585 = vmatprep.subr.bf16.mxu0 0
  %1586 = vmatpush1.bf16.msra.mxu0 0
  %1587 = vmatprep.subr.bf16.mxu0 0
  %1588 = vmatpush1.bf16.msra.mxu0 0
  %1589 = vmatprep.subr.bf16.mxu0 0
  %1590 = vmatpush1.bf16.msra.mxu0 0
  %1591 = vmatprep.subr.bf16.mxu0 0
  %1592 = vmatpush1.bf16.msra.mxu0 0
  %1593 = vmatprep.subr.bf16.mxu0 0
  %1594 = vmatpush1.bf16.msra.mxu0 0
  %1595 = vmatprep.subr.bf16.mxu0 0
  %1596 = vmatpush1.bf16.msra.mxu0 0
  %1597 = vmatprep.subr.bf16.mxu0 0
  %1598 = vmatpush1.bf16.msra.mxu0 0
  %1599 = vmatprep.subr.bf16.mxu0 0
  %1600 = vmatpush1.bf16.msra.mxu0 0
  %1601 = vmatprep.subr.bf16.mxu0 0
  %1602 = vmatpush1.bf16.msra.mxu0 0
  %1603 = vmatprep.subr.bf16.mxu0 0
  %1604 = vmatpush1.bf16.msra.mxu0 0
  %1605 = vmatprep.subr.bf16.mxu0 0
  %1606 = vmatpush1.bf16.msra.mxu0 0
  %1607 = vmatprep.subr.bf16.mxu0 0
  %1608 = vmatpush1.bf16.msra.mxu0 0
  %1609 = vmatprep.subr.bf16.mxu0 0
  %1610 = vmatpush1.bf16.msra.mxu0 0
  %1611 = vmatprep.mubr.bf16.mxu0 0
  %1612 = vmatmul.mubr.bf16.gmra.mrb[0].mxu0 %v1577
  %v1613 = vpop.f32.mrb[0].mxu0
  %v1614 = vadd.f32 0.0, %v1613
  %v1615 = vpop.f32.mrb[0].mxu0
  %v1616 = vpop.f32.mrb[0].mxu0
  %v1617 = vpop.f32.mrb[0].mxu0
  %1618 = vdwg.mxu0
  %v1619 = vadd.f32 %v1571, %v1614
  %v1620 = vmul.f32 %v1619, %v28
  %v1621 = vtanh.pop %v1620
  %v1622 = vmul.f32 %v1621, %v28
  %v1623 = vadd.f32 %v1622, %v29
  %v1624 = vmul.f32 %v1623, %v1488
  %1626 = vrot.lane.b32.xlu0 %v1623, 64
  %v1627 = vpop.permute.xlu0 %1626
  %v1629 = vmul.f32 %v1623, %v1627
  %1631 = vrot.lane.b32.xlu0 %v1629, 32
  %v1632 = vpop.permute.xlu0 %1631
  %v1634 = vadd.f32 %v1624, %v1632
  %v1635 = vtanh.pop %v1634
  %1637 = vrot.lane.b32.xlu0 %v1635, 64
  %v1638 = vpop.permute.xlu0 %1637
  %v1640 = vmul.f32 %v1623, %v1638
  %1642 = vrot.lane.b32.xlu0 %v1640, 32
  %v1643 = vpop.permute.xlu0 %1642
  %1646 = vrot.lane.b32.xlu0 %v1568, 64
  %v1647 = vpop.permute.xlu0 %1646
  %v1649 = vsel %vm65, %v1643, %v1647
  %v1650 = vpack.c.bf16 %v1649, %v1649
  %v1652 = vsel %vm165, %v1650, 0
  %1654 = vmatprep.subr.bf16.mxu0 0
  %1655 = vmatpush1.bf16.msra.mxu0 %v157
  %1656 = vmatprep.subr.bf16.mxu0 0
  %1657 = vmatpush1.bf16.msra.mxu0 %v158
  %1658 = vmatprep.subr.bf16.mxu0 0
  %1659 = vmatpush1.bf16.msra.mxu0 %v159
  %1660 = vmatprep.subr.bf16.mxu0 0
  %1661 = vmatpush1.bf16.msra.mxu0 %v160
  %1662 = vmatprep.subr.bf16.mxu0 0
  %1663 = vmatpush1.bf16.msra.mxu0 0
  %1664 = vmatprep.subr.bf16.mxu0 0
  %1665 = vmatpush1.bf16.msra.mxu0 0
  %1666 = vmatprep.subr.bf16.mxu0 0
  %1667 = vmatpush1.bf16.msra.mxu0 0
  %1668 = vmatprep.subr.bf16.mxu0 0
  %1669 = vmatpush1.bf16.msra.mxu0 0
  %1670 = vmatprep.subr.bf16.mxu0 0
  %1671 = vmatpush1.bf16.msra.mxu0 0
  %1672 = vmatprep.subr.bf16.mxu0 0
  %1673 = vmatpush1.bf16.msra.mxu0 0
  %1674 = vmatprep.subr.bf16.mxu0 0
  %1675 = vmatpush1.bf16.msra.mxu0 0
  %1676 = vmatprep.subr.bf16.mxu0 0
  %1677 = vmatpush1.bf16.msra.mxu0 0
  %1678 = vmatprep.subr.bf16.mxu0 0
  %1679 = vmatpush1.bf16.msra.mxu0 0
  %1680 = vmatprep.subr.bf16.mxu0 0
  %1681 = vmatpush1.bf16.msra.mxu0 0
  %1682 = vmatprep.subr.bf16.mxu0 0
  %1683 = vmatpush1.bf16.msra.mxu0 0
  %1684 = vmatprep.subr.bf16.mxu0 0
  %1685 = vmatpush1.bf16.msra.mxu0 0
  %1686 = vmatprep.mubr.bf16.mxu0 0
  %1687 = vmatmul.mubr.bf16.gmra.mrb[0].mxu0 %v1652
  %v1688 = vpop.f32.mrb[0].mxu0
  %v1689 = vadd.f32 %v47, %v1688
  %v1690 = vpop.f32.mrb[0].mxu0
  %v1691 = vpop.f32.mrb[0].mxu0
  %v1692 = vpop.f32.mrb[0].mxu0
  %1693 = vdwg.mxu0
  %v1694 = vmul.f32 %v1689, %v28
  %v1695 = vtanh.pop %v1694
  %v1696 = vmul.f32 %v1695, %v28
  %v1697 = vadd.f32 %v1696, %v29
  %v1698 = vmul.f32 %v1697, %v1562
  %1700 = vrot.lane.b32.xlu0 %v1697, 64
  %v1701 = vpop.permute.xlu0 %1700
  %v1703 = vmul.f32 %v1697, %v1701
  %1705 = vrot.lane.b32.xlu0 %v1703, 32
  %v1706 = vpop.permute.xlu0 %1705
  %v1708 = vadd.f32 %v1698, %v1706
  %v1709 = vtanh.pop %v1708
  %1711 = vrot.lane.b32.xlu0 %v1709, 64
  %v1712 = vpop.permute.xlu0 %1711
  %v1714 = vmul.f32 %v1697, %v1712
  %s1715 = scalar_lea.vmem %s0, 44
  %v1716 = vld [vmem:[%s1715] sm:$0xf]
  %v1717 = vunpack.c.l.bf16 %v1716
  %v1718 = vpack.c.bf16 %v1640, %v1640
  %1720 = vrot.lane.b32.xlu0 %v1718, 32
  %v1721 = vpop.permute.xlu0 %1720
  %v1723 = vsel %vm65, %v1721, 0
  %1725 = vmatprep.subr.bf16.mxu0 0
  %1726 = vmatpush1.bf16.msra.mxu0 %v61
  %1727 = vmatprep.subr.bf16.mxu0 0
  %1728 = vmatpush1.bf16.msra.mxu0 %v62
  %1729 = vmatprep.subr.bf16.mxu0 0
  %1730 = vmatpush1.bf16.msra.mxu0 0
  %1731 = vmatprep.subr.bf16.mxu0 0
  %1732 = vmatpush1.bf16.msra.mxu0 0
  %1733 = vmatprep.subr.bf16.mxu0 0
  %1734 = vmatpush1.bf16.msra.mxu0 0
  %1735 = vmatprep.subr.bf16.mxu0 0
  %1736 = vmatpush1.bf16.msra.mxu0 0
  %1737 = vmatprep.subr.bf16.mxu0 0
  %1738 = vmatpush1.bf16.msra.mxu0 0
  %1739 = vmatprep.subr.bf16.mxu0 0
  %1740 = vmatpush1.bf16.msra.mxu0 0
  %1741 = vmatprep.subr.bf16.mxu0 0
  %1742 = vmatpush1.bf16.msra.mxu0 0
  %1743 = vmatprep.subr.bf16.mxu0 0
  %1744 = vmatpush1.bf16.msra.mxu0 0
  %1745 = vmatprep.subr.bf16.mxu0 0
  %1746 = vmatpush1.bf16.msra.mxu0 0
  %1747 = vmatprep.subr.bf16.mxu0 0
  %1748 = vmatpush1.bf16.msra.mxu0 0
  %1749 = vmatprep.subr.bf16.mxu0 0
  %1750 = vmatpush1.bf16.msra.mxu0 0
  %1751 = vmatprep.subr.bf16.mxu0 0
  %1752 = vmatpush1.bf16.msra.mxu0 0
  %1753 = vmatprep.subr.bf16.mxu0 0
  %1754 = vmatpush1.bf16.msra.mxu0 0
  %1755 = vmatprep.subr.bf16.mxu0 0
  %1756 = vmatpush1.bf16.msra.mxu0 0
  %1757 = vmatprep.mubr.bf16.mxu0 0
  %1758 = vmatmul.mubr.bf16.gmra.mrb[0].mxu0 %v1723
  %v1759 = vpop.f32.mrb[0].mxu0
  %v1760 = vadd.f32 0.0, %v1759
  %v1761 = vpop.f32.mrb[0].mxu0
  %v1762 = vpop.f32.mrb[0].mxu0
  %v1763 = vpop.f32.mrb[0].mxu0
  %1764 = vdwg.mxu0
  %v1765 = vadd.f32 %v1717, %v1760
  %v1766 = vmul.f32 %v1765, %v28
  %v1767 = vtanh.pop %v1766
  %v1768 = vmul.f32 %v1767, %v28
  %v1769 = vadd.f32 %v1768, %v29
  %v1770 = vmul.f32 %v1769, %v1634
  %1772 = vrot.lane.b32.xlu0 %v1769, 64
  %v1773 = vpop.permute.xlu0 %1772
  %v1775 = vmul.f32 %v1769, %v1773
  %1777 = vrot.lane.b32.xlu0 %v1775, 32
  %v1778 = vpop.permute.xlu0 %1777
  %v1780 = vadd.f32 %v1770, %v1778
  %v1781 = vtanh.pop %v1780
  %1783 = vrot.lane.b32.xlu0 %v1781, 64
  %v1784 = vpop.permute.xlu0 %1783
  %v1786 = vmul.f32 %v1769, %v1784
  %1788 = vrot.lane.b32.xlu0 %v1786, 32
  %v1789 = vpop.permute.xlu0 %1788
  %1792 = vrot.lane.b32.xlu0 %v1714, 64
  %v1793 = vpop.permute.xlu0 %1792
  %v1795 = vsel %vm65, %v1789, %v1793
  %v1796 = vpack.c.bf16 %v1795, %v1795
  %v1798 = vsel %vm165, %v1796, 0
  %1800 = vmatprep.subr.bf16.mxu0 0
  %1801 = vmatpush1.bf16.msra.mxu0 %v157
  %1802 = vmatprep.subr.bf16.mxu0 0
  %1803 = vmatpush1.bf16.msra.mxu0 %v158
  %1804 = vmatprep.subr.bf16.mxu0 0
  %1805 = vmatpush1.bf16.msra.mxu0 %v159
  %1806 = vmatprep.subr.bf16.mxu0 0
  %1807 = vmatpush1.bf16.msra.mxu0 %v160
  %1808 = vmatprep.subr.bf16.mxu0 0
  %1809 = vmatpush1.bf16.msra.mxu0 0
  %1810 = vmatprep.subr.bf16.mxu0 0
  %1811 = vmatpush1.bf16.msra.mxu0 0
  %1812 = vmatprep.subr.bf16.mxu0 0
  %1813 = vmatpush1.bf16.msra.mxu0 0
  %1814 = vmatprep.subr.bf16.mxu0 0
  %1815 = vmatpush1.bf16.msra.mxu0 0
  %1816 = vmatprep.subr.bf16.mxu0 0
  %1817 = vmatpush1.bf16.msra.mxu0 0
  %1818 = vmatprep.subr.bf16.mxu0 0
  %1819 = vmatpush1.bf16.msra.mxu0 0
  %1820 = vmatprep.subr.bf16.mxu0 0
  %1821 = vmatpush1.bf16.msra.mxu0 0
  %1822 = vmatprep.subr.bf16.mxu0 0
  %1823 = vmatpush1.bf16.msra.mxu0 0
  %1824 = vmatprep.subr.bf16.mxu0 0
  %1825 = vmatpush1.bf16.msra.mxu0 0
  %1826 = vmatprep.subr.bf16.mxu0 0
  %1827 = vmatpush1.bf16.msra.mxu0 0
  %1828 = vmatprep.subr.bf16.mxu0 0
  %1829 = vmatpush1.bf16.msra.mxu0 0
  %1830 = vmatprep.subr.bf16.mxu0 0
  %1831 = vmatpush1.bf16.msra.mxu0 0
  %1832 = vmatprep.mubr.bf16.mxu0 0
  %1833 = vmatmul.mubr.bf16.gmra.mrb[0].mxu0 %v1798
  %v1834 = vpop.f32.mrb[0].mxu0
  %v1835 = vadd.f32 %v47, %v1834
  %v1836 = vpop.f32.mrb[0].mxu0
  %v1837 = vpop.f32.mrb[0].mxu0
  %v1838 = vpop.f32.mrb[0].mxu0
  %1839 = vdwg.mxu0
  %v1840 = vmul.f32 %v1835, %v28
  %v1841 = vtanh.pop %v1840
  %v1842 = vmul.f32 %v1841, %v28
  %v1843 = vadd.f32 %v1842, %v29
  %v1844 = vmul.f32 %v1843, %v1708
  %1846 = vrot.lane.b32.xlu0 %v1843, 64
  %v1847 = vpop.permute.xlu0 %1846
  %v1849 = vmul.f32 %v1843, %v1847
  %1851 = vrot.lane.b32.xlu0 %v1849, 32
  %v1852 = vpop.permute.xlu0 %1851
  %v1854 = vadd.f32 %v1844, %v1852
  %v1855 = vtanh.pop %v1854
  %1857 = vrot.lane.b32.xlu0 %v1855, 64
  %v1858 = vpop.permute.xlu0 %1857
  %v1860 = vmul.f32 %v1843, %v1858
  %1861 = vrot.lane.b32.xlu0 %v1422, 32
  %v1862 = vpop.permute.xlu0 %1861
  %1864 = vrot.lane.b32.xlu0 %v1714, 96
  %v1865 = vpop.permute.xlu0 %1864
  %v1867 = vsel %vm65, %v1862, %v1647
  %v1868 = vsel %vm165, %v1867, %v1865
  %v1869 = vsel %vm679, %v1868, %v1860
  %s1870 = scalar_lea.vmem %s4, 16
  %1871 = vst [vmem:[%s1870] sm:$0xff] %v1869
  %1873 = vrot.lane.b32.xlu0 %v1860, 96
  %v1874 = vpop.permute.xlu0 %1873
  %1877 = vrot.lane.b32.xlu0 %v1854, 64
  %v1878 = vpop.permute.xlu0 %1877
  %v1880 = vsel %vm65, %v1789, %v1780
  %v1881 = vsel %vm165, %v1880, %v1874
  %v1882 = vsel %vm679, %v1881, %v1878
  %1883 = vst [vmem:[#allocation2] sm:$0xff] %v1882
  // Predicated region
  $region22: #{model_forward.2} parent=0 // pred_check
    _
  $region23: #{model_forward.2} parent=0 // pred_check_branch
    %1885 = sbr.rel (0) target = $region25
  $region24: #{model_forward.2} parent=0 // pred_region
    _
  $region25: #{model_forward.2} parent=0 // pred_fallthru
    _
  // Predicated region
  $region26: #{model_forward.2} parent=0 // pred_check
    _
  $region27: #{model_forward.2} parent=0 // pred_check_branch
    %1887 = sbr.rel (0) target = $region29
  $region28: #{model_forward.2} parent=0 // pred_region
    _
  $region29: #{model_forward.2} parent=0 // pred_fallthru
    _

// kernel: reverse.0
$region0: #{reverse.0}
  %s0 = inlined_call_operand.vmem [shape: f32[2,9,31], index: 0, kind: input, shape index: {}]
  %s1 = inlined_call_operand.vmem [shape: f32[2,9,31], index: 1, kind: output, shape index: {}]
  %v2 = vlaneseq
  %v3 = vsub.s32 30, %v2
  %4 = vset.pattern.permute.xlu0 %v3
  $region1: #{reverse.0} parent=0
    #allocation0 [shape = 'u8[16384]{0}', space=vmem, size = 0x4000, scoped, tag = 'operand span for operand 0']
    #allocation1 [shape = 'u8[16384]{0}', space=vmem, size = 0x4000, scoped, tag = 'operand span for operand 1']
    // Predicated region
    $region2: #{reverse.0} parent=1 // pred_check
      _
    $region3: #{reverse.0} parent=1 // pred_check_branch
      %6 = sbr.rel (0) target = $region5
    $region4: #{reverse.0} parent=1 // pred_region
      // Predicated region
      $region6: #{reverse.0} parent=4 // pred_check
        _
      $region7: #{reverse.0} parent=4 // pred_check_branch
        %8 = sbr.rel (0) target = $region9
      $region8: #{reverse.0} parent=4 // pred_region
        // Predicated region
        $region21: #{reverse.0} parent=8 // pred_check
          _
        $region22: #{reverse.0} parent=8 // pred_check_branch
          %29 = sbr.rel (0) target = $region24
        $region23: #{reverse.0} parent=8 // pred_region
          loop: start=0, step=1, limit=1
          $region25: #{reverse.0} parent=23 // loop_pre_header
            _
          $region26: #{reverse.0} parent=23 // loop_header
            %s31 = sphi 0, %s35
            %p32 = scmp.ge.s32.totalorder %s31, 1
            %s36 = sphi %s0, %s0
            %s37 = sphi [#allocation0], [#allocation0]
          $region27: #{reverse.0} parent=23 // loop_header_branch
            %34 = sbr.rel (%p32) target = $region31
          $region28: #{reverse.0} parent=23 // loop_body
            %v38 = vld [vmem:[%s36] sm:$0xff]
            %39 = vst [vmem:[%s37] sm:$0xff] %v38
            %v40 = vld [vmem:[%s36 + $0x8] sm:$0xff]
            %41 = vst [vmem:[%s37 + $0x8] sm:$0xff] %v40
            %v42 = vld [vmem:[%s36 + $0x10] sm:$0xff]
            %43 = vst [vmem:[%s37 + $0x10] sm:$0xff] %v42
            %v44 = vld [vmem:[%s36 + $0x18] sm:$0xff]
            %45 = vst [vmem:[%s37 + $0x18] sm:$0xff] %v44
          $region29: #{reverse.0} parent=23 // loop_footer
            %s35 = sadd.s32 1, %s31
          $region30: #{reverse.0} parent=23 // loop_footer_branch
            %30 = sbr.rel target = $region26
          $region31: #{reverse.0} parent=23 // loop_exit
            _
        $region24: #{reverse.0} parent=8 // pred_fallthru
          _
        // Predicated region
        $region32: #{reverse.0} parent=8 // pred_check
          _
        $region33: #{reverse.0} parent=8 // pred_check_branch
          %47 = sbr.rel target = $region35
        $region34: #{reverse.0} parent=8 // pred_region
          _
        $region35: #{reverse.0} parent=8 // pred_fallthru
          _
      $region9: #{reverse.0} parent=4 // pred_fallthru
        _
      // Predicated region
      $region10: #{reverse.0} parent=4 // pred_check
        _
      $region11: #{reverse.0} parent=4 // pred_check_branch
        %10 = sbr.rel target = $region13
      $region12: #{reverse.0} parent=4 // pred_region
        loop: start=0, step=1, limit=1
        $region14: #{reverse.0} parent=12 // loop_pre_header
          _
        $region15: #{reverse.0} parent=12 // loop_header
          %s13 = sphi 0, %s17
          %p14 = scmp.ge.s32.totalorder %s13, 1
          %s18 = sphi %s0, %s0
          %s19 = sphi [#allocation0], [#allocation0]
        $region16: #{reverse.0} parent=12 // loop_header_branch
          %16 = sbr.rel (%p14) target = $region20
        $region17: #{reverse.0} parent=12 // loop_body
          %v20 = vld [vmem:[%s18] sm:$0xff]
          %21 = vst [vmem:[%s19] sm:$0xff] %v20
          %v22 = vld [vmem:[%s18 + $0x8] sm:$0xff]
          %23 = vst [vmem:[%s19 + $0x8] sm:$0xff] %v22
          %v24 = vld [vmem:[%s18 + $0x10] sm:$0xff]
          %25 = vst [vmem:[%s19 + $0x10] sm:$0xff] %v24
          %v26 = vld [vmem:[%s18 + $0x18] sm:$0xff]
          %27 = vst [vmem:[%s19 + $0x18] sm:$0xff] %v26
        $region18: #{reverse.0} parent=12 // loop_footer
          %s17 = sadd.s32 1, %s13
        $region19: #{reverse.0} parent=12 // loop_footer_branch
          %12 = sbr.rel target = $region15
        $region20: #{reverse.0} parent=12 // loop_exit
          _
      $region13: #{reverse.0} parent=4 // pred_fallthru
        _
    $region5: #{reverse.0} parent=1 // pred_fallthru
      _
    %48 = vnop
    %v49 = vld [vmem:[#allocation0] sm:$0xff]
    %50 = vperm.xlu0 %4, %v49
    %v51 = vpop.permute.xlu0 %50
    %52 = vst [vmem:[#allocation1] sm:$0xff] %v51
    %s53 = scalar_lea.vmem [#allocation1], 8
    %s54 = scalar_lea.vmem [#allocation0], 8
    %v55 = vld [vmem:[%s54] sm:$0xff]
    %56 = vperm.xlu0 %4, %v55
    %v57 = vpop.permute.xlu0 %56
    %58 = vst [vmem:[%s53] sm:$0xff] %v57
    %s59 = scalar_lea.vmem [#allocation1], 16
    %s60 = scalar_lea.vmem [#allocation0], 16
    %v61 = vld [vmem:[%s60] sm:$0xff]
    %62 = vperm.xlu0 %4, %v61
    %v63 = vpop.permute.xlu0 %62
    %64 = vst [vmem:[%s59] sm:$0xff] %v63
    %s65 = scalar_lea.vmem %s59, 8 [#allocation1]
    %s66 = scalar_lea.vmem %s60, 8 [#allocation0]
    %v67 = vld [vmem:[%s66] sm:$0xff]
    %68 = vperm.xlu0 %4, %v67
    %v69 = vpop.permute.xlu0 %68
    %70 = vst [vmem:[%s65] sm:$0xff] %v69
    // Predicated region
    $region36: #{reverse.0} parent=1 // pred_check
      _
    $region37: #{reverse.0} parent=1 // pred_check_branch
      %72 = sbr.rel (0) target = $region39
    $region38: #{reverse.0} parent=1 // pred_region
      // Predicated region
      $region40: #{reverse.0} parent=38 // pred_check
        _
      $region41: #{reverse.0} parent=38 // pred_check_branch
        %74 = sbr.rel (0) target = $region43
      $region42: #{reverse.0} parent=38 // pred_region
        // Predicated region
        $region55: #{reverse.0} parent=42 // pred_check
          _
        $region56: #{reverse.0} parent=42 // pred_check_branch
          %95 = sbr.rel (0) target = $region58
        $region57: #{reverse.0} parent=42 // pred_region
          loop: start=0, step=1, limit=1
          $region59: #{reverse.0} parent=57 // loop_pre_header
            _
          $region60: #{reverse.0} parent=57 // loop_header
            %s97 = sphi 0, %s101
            %p98 = scmp.ge.s32.totalorder %s97, 1
            %s102 = sphi [#allocation1], [#allocation1]
            %s103 = sphi %s1, %s1
          $region61: #{reverse.0} parent=57 // loop_header_branch
            %100 = sbr.rel (%p98) target = $region65
          $region62: #{reverse.0} parent=57 // loop_body
            %v104 = vld [vmem:[%s102] sm:$0xff]
            %105 = vst [vmem:[%s103] sm:$0xff] %v104
            %v106 = vld [vmem:[%s102 + $0x8] sm:$0xff]
            %107 = vst [vmem:[%s103 + $0x8] sm:$0xff] %v106
            %v108 = vld [vmem:[%s102 + $0x10] sm:$0xff]
            %109 = vst [vmem:[%s103 + $0x10] sm:$0xff] %v108
            %v110 = vld [vmem:[%s102 + $0x18] sm:$0xff]
            %111 = vst [vmem:[%s103 + $0x18] sm:$0xff] %v110
          $region63: #{reverse.0} parent=57 // loop_footer
            %s101 = sadd.s32 1, %s97
          $region64: #{reverse.0} parent=57 // loop_footer_branch
            %96 = sbr.rel target = $region60
          $region65: #{reverse.0} parent=57 // loop_exit
            _
        $region58: #{reverse.0} parent=42 // pred_fallthru
          _
        // Predicated region
        $region66: #{reverse.0} parent=42 // pred_check
          _
        $region67: #{reverse.0} parent=42 // pred_check_branch
          %113 = sbr.rel target = $region69
        $region68: #{reverse.0} parent=42 // pred_region
          _
        $region69: #{reverse.0} parent=42 // pred_fallthru
          _
      $region43: #{reverse.0} parent=38 // pred_fallthru
        _
      // Predicated region
      $region44: #{reverse.0} parent=38 // pred_check
        _
      $region45: #{reverse.0} parent=38 // pred_check_branch
        %76 = sbr.rel target = $region47
      $region46: #{reverse.0} parent=38 // pred_region
        loop: start=0, step=1, limit=1
        $region48: #{reverse.0} parent=46 // loop_pre_header
          _
        $region49: #{reverse.0} parent=46 // loop_header
          %s79 = sphi 0, %s83
          %p80 = scmp.ge.s32.totalorder %s79, 1
          %s84 = sphi [#allocation1], [#allocation1]
          %s85 = sphi %s1, %s1
        $region50: #{reverse.0} parent=46 // loop_header_branch
          %82 = sbr.rel (%p80) target = $region54
        $region51: #{reverse.0} parent=46 // loop_body
          %v86 = vld [vmem:[%s84] sm:$0xff]
          %87 = vst [vmem:[%s85] sm:$0xff] %v86
          %v88 = vld [vmem:[%s84 + $0x8] sm:$0xff]
          %89 = vst [vmem:[%s85 + $0x8] sm:$0xff] %v88
          %v90 = vld [vmem:[%s84 + $0x10] sm:$0xff]
          %91 = vst [vmem:[%s85 + $0x10] sm:$0xff] %v90
          %v92 = vld [vmem:[%s84 + $0x18] sm:$0xff]
          %93 = vst [vmem:[%s85 + $0x18] sm:$0xff] %v92
        $region52: #{reverse.0} parent=46 // loop_footer
          %s83 = sadd.s32 1, %s79
        $region53: #{reverse.0} parent=46 // loop_footer_branch
          %78 = sbr.rel target = $region49
        $region54: #{reverse.0} parent=46 // loop_exit
          _
      $region47: #{reverse.0} parent=38 // pred_fallthru
        _
    $region39: #{reverse.0} parent=1 // pred_fallthru
      _
    %114 = vnop

// kernel: tile.8
$region0: #{tile.8}
  #allocation0 [shape = 's32[1]{0}', space=sflag, size = 0x4, scoped, tag = 'scoped memory for tile.8']
  %s0 = inlined_call_operand.vmem [shape: f32[64], index: 0, kind: input, shape index: {}]
  %s1 = inlined_call_operand.vmem [shape: f32[9,64], index: 1, kind: output, shape index: {}]
  // Predicated region
  $region2: #{tile.8} parent=0 // pred_check
    _
  $region3: #{tile.8} parent=0 // pred_check_branch
    %3 = sbr.rel (0) target = $region5
  $region4: #{tile.8} parent=0 // pred_region
    _
  $region5: #{tile.8} parent=0 // pred_fallthru
    _
  %v4 = vld [vmem:[%s0] ss:$0 sm:$0xff]
  %5 = vst [vmem:[%s1] sm:$0xff] %v4
  %s6 = scalar_lea.vmem %s1, 8
  %7 = vst [vmem:[%s6] sm:$0xff] %v4

// kernel: model_forward.3
$region0: #{model_forward.3}
  #allocation0 [shape = 'u32[]', space=smem, size = 0x4, offset = 0x4, fixed_abs, tag = 'smem constant byte address 0x4 - core index']
  #allocation1 [shape = 'u32[144,128]{1,0:T(1,128)}', space=vmem, size = 0x12000, scoped, tag = 'internal scratch']
  #allocation2 [shape = 'f32[2,8,128]{2,1,0:T(8,128)}', space=vmem, size = 0x2000, scoped, tag = 'scratch operand']
  %s0 = inlined_call_operand.vmem [shape: bf16[4,12,8,128], index: 0, kind: input, shape index: {}]
  %s1 = inlined_call_operand.vmem [shape: bf16[4,32,128], index: 1, kind: input, shape index: {}]
  %s2 = inlined_call_operand.vmem [shape: bf16[4,64,128], index: 2, kind: input, shape index: {}]
  %s3 = inlined_call_operand.vmem [shape: f32[4,1,128], index: 3, kind: input, shape index: {}]
  %s4 = inlined_call_operand.vmem [shape: f32[4,3,8,128], index: 4, kind: output, shape index: {}]
  %s5 = sld [smem:[#allocation0]]
  $region53: #{model_forward.3} parent=0
    _
  %s7 = ssub.s32 1, %s5
  %s8 = scalar_select 0, %s7, %s5
  loop: start=0, step=1, limit=4
  $region2: #{model_forward.3} parent=0 // loop_pre_header
    _
  $region3: #{model_forward.3} parent=0 // loop_header
    %s10 = sphi 0, %s14
    %p11 = scmp.ge.s32.totalorder %s10, 4
    %s17 = sphi 0, %s29
    %s18 = sphi 0, %s25
    %s19 = sphi 0, %s17
    %s20 = sphi 0, %s18
    %s21 = sphi 0, %s19
    %s22 = sphi 0, %s20
    %s34 = sphi 0, %s36
    %s37 = sphi 0, %s34
    %s38 = sphi 0, %s37
    %s54 = sphi 0, %s38
    %s60 = sphi 0, %s62
    %s63 = sphi 0, %s60
    %s64 = sphi 0, %s63
    %s80 = sphi 0, %s64
    %s86 = sphi 0, %s88
    %s89 = sphi 0, %s86
    %s90 = sphi 0, %s89
    %s106 = sphi 0, %s90
    %s112 = sphi 0, %s114
    %s115 = sphi 0, %s112
    %s116 = sphi 0, %s115
    %s132 = sphi 0, %s116
    %s140 = sphi 0, %s142
    %s143 = sphi 0, %s140
    %s144 = sphi 0, %s143
    %s160 = sphi 0, %s144
  $region4: #{model_forward.3} parent=0 // loop_header_branch
    %13 = sbr.rel (%p11) target = $region8
  $region5: #{model_forward.3} parent=0 // loop_body
    %s15 = ssub.s32 %s10, 1
    %s16 = ssub.s32 %s10, 2
    %s23 = sadd.s32 1, %s18
    %p24 = scmp.ge.s32.totalorder %s23, 1
    %s25 = scalar_select %p24, 0, %s23
    %s26 = sadd.s32 1, %s17
    %s27 = scalar_select %p24, %s26, %s17
    %p28 = scmp.ge.s32.totalorder %s27, 2
    %s29 = scalar_select %p28, 0, %s27
    %s30 = ssub.s32 %s17, %s29
    %s31 = ssub.s32 %s18, %s25
    %s32 = sor.u32 %s30, %s31
    %p33 = scmp.eq.s32.totalorder %s32, 0
    %s35 = sadd.s32 %s34, 1
    %s36 = scalar_select %p33, %s34, %s35
    %p39 = pneg %p33
    %p40 = scmp.eq.s32.totalorder %s10, 1
    %p41 = por %p39, %p40
    %p42 = scmp.ne.s32.totalorder %s34, %s37
    %p43 = scmp.eq.s32.totalorder %s10, 0
    %p44 = por %p42, %p43
    %p45 = scmp.ne.s32.totalorder %s34, %s37
    %p46 = scmp.eq.s32.totalorder %s15, 1
    %p47 = por %p45, %p46
    %p48 = scmp.ne.s32.totalorder %s37, %s38
    %p49 = scmp.eq.s32.totalorder %s15, 0
    %p50 = por %p48, %p49
    %p51 = scmp.ne.s32.totalorder %s37, %s38
    %p52 = scmp.eq.s32.totalorder %s16, 1
    %p53 = por %p51, %p52
    %p55 = scmp.ne.s32.totalorder %s38, %s54
    %p56 = scmp.eq.s32.totalorder %s16, 0
    %p57 = por %p55, %p56
    %s58 = ssub.s32 %s17, %s29
    %p59 = scmp.eq.s32.totalorder %s58, 0
    %s61 = sadd.s32 %s60, 1
    %s62 = scalar_select %p59, %s60, %s61
    %p65 = pneg %p59
    %p66 = scmp.eq.s32.totalorder %s10, 1
    %p67 = por %p65, %p66
    %p68 = scmp.ne.s32.totalorder %s60, %s63
    %p69 = scmp.eq.s32.totalorder %s10, 0
    %p70 = por %p68, %p69
    %p71 = scmp.ne.s32.totalorder %s60, %s63
    %p72 = scmp.eq.s32.totalorder %s15, 1
    %p73 = por %p71, %p72
    %p74 = scmp.ne.s32.totalorder %s63, %s64
    %p75 = scmp.eq.s32.totalorder %s15, 0
    %p76 = por %p74, %p75
    %p77 = scmp.ne.s32.totalorder %s63, %s64
    %p78 = scmp.eq.s32.totalorder %s16, 1
    %p79 = por %p77, %p78
    %p81 = scmp.ne.s32.totalorder %s64, %s80
    %p82 = scmp.eq.s32.totalorder %s16, 0
    %p83 = por %p81, %p82
    %s84 = ssub.s32 %s17, %s29
    %p85 = scmp.eq.s32.totalorder %s84, 0
    %s87 = sadd.s32 %s86, 1
    %s88 = scalar_select %p85, %s86, %s87
    %p91 = pneg %p85
    %p92 = scmp.eq.s32.totalorder %s10, 1
    %p93 = por %p91, %p92
    %p94 = scmp.ne.s32.totalorder %s86, %s89
    %p95 = scmp.eq.s32.totalorder %s10, 0
    %p96 = por %p94, %p95
    %p97 = scmp.ne.s32.totalorder %s86, %s89
    %p98 = scmp.eq.s32.totalorder %s15, 1
    %p99 = por %p97, %p98
    %p100 = scmp.ne.s32.totalorder %s89, %s90
    %p101 = scmp.eq.s32.totalorder %s15, 0
    %p102 = por %p100, %p101
    %p103 = scmp.ne.s32.totalorder %s89, %s90
    %p104 = scmp.eq.s32.totalorder %s16, 1
    %p105 = por %p103, %p104
    %p107 = scmp.ne.s32.totalorder %s90, %s106
    %p108 = scmp.eq.s32.totalorder %s16, 0
    %p109 = por %p107, %p108
    %s110 = ssub.s32 %s17, %s29
    %p111 = scmp.eq.s32.totalorder %s110, 0
    %s113 = sadd.s32 %s112, 1
    %s114 = scalar_select %p111, %s112, %s113
    %p117 = pneg %p111
    %p118 = scmp.eq.s32.totalorder %s10, 1
    %p119 = por %p117, %p118
    %p120 = scmp.ne.s32.totalorder %s112, %s115
    %p121 = scmp.eq.s32.totalorder %s10, 0
    %p122 = por %p120, %p121
    %p123 = scmp.ne.s32.totalorder %s112, %s115
    %p124 = scmp.eq.s32.totalorder %s15, 1
    %p125 = por %p123, %p124
    %p126 = scmp.ne.s32.totalorder %s115, %s116
    %p127 = scmp.eq.s32.totalorder %s15, 0
    %p128 = por %p126, %p127
    %p129 = scmp.ne.s32.totalorder %s115, %s116
    %p130 = scmp.eq.s32.totalorder %s16, 1
    %p131 = por %p129, %p130
    %p133 = scmp.ne.s32.totalorder %s116, %s132
    %p134 = scmp.eq.s32.totalorder %s16, 0
    %p135 = por %p133, %p134
    %s136 = ssub.s32 %s17, %s29
    %s137 = ssub.s32 %s18, %s25
    %s138 = sor.u32 %s136, %s137
    %p139 = scmp.eq.s32.totalorder %s138, 0
    %s141 = sadd.s32 %s140, 1
    %s142 = scalar_select %p139, %s140, %s141
    %p145 = pneg %p139
    %p146 = scmp.eq.s32.totalorder %s10, 1
    %p147 = por %p145, %p146
    %p148 = scmp.ne.s32.totalorder %s140, %s143
    %p149 = scmp.eq.s32.totalorder %s10, 0
    %p150 = por %p148, %p149
    %p151 = scmp.ne.s32.totalorder %s140, %s143
    %p152 = scmp.eq.s32.totalorder %s15, 1
    %p153 = por %p151, %p152
    %p154 = scmp.ne.s32.totalorder %s143, %s144
    %p155 = scmp.eq.s32.totalorder %s15, 0
    %p156 = por %p154, %p155
    %p157 = scmp.ne.s32.totalorder %s143, %s144
    %p158 = scmp.eq.s32.totalorder %s16, 1
    %p159 = por %p157, %p158
    %p161 = scmp.ne.s32.totalorder %s144, %s160
    %p162 = scmp.eq.s32.totalorder %s16, 0
    %p163 = por %p161, %p162
    %p164 = scmp.le.s32.totalorder 1, %s10
    %p165 = scmp.lt.s32.totalorder %s10, 3
    %p166 = pnand %p164, %p165
    %p167 = pneg %p166
    // Predicated region
    $region9: #{model_forward.3} parent=5 // pred_check
      _
    $region10: #{model_forward.3} parent=5 // pred_check_branch
      %169 = sbr.rel (%p166) target = $region12
    $region11: #{model_forward.3} parent=5 // pred_region
      %s170 = ssub.s32 %s10, 1
    $region12: #{model_forward.3} parent=5 // pred_fallthru
      _
    %p171 = scmp.lt.s32.totalorder %s10, 2
    // Predicated region
    $region13: #{model_forward.3} parent=5 // pred_check
      %p172 = pneg %p171
    $region14: #{model_forward.3} parent=5 // pred_check_branch
      %174 = sbr.rel (%p172) target = $region16
    $region15: #{model_forward.3} parent=5 // pred_region
      // Predicated region
      $region17: #{model_forward.3} parent=15 // pred_check
        %p175 = pneg %p44
      $region18: #{model_forward.3} parent=15 // pred_check_branch
        %177 = sbr.rel (%p175) target = $region20
      $region19: #{model_forward.3} parent=15 // pred_region
        %s178 = smul.u32 2, %s17
        %s179 = smul.u32 12, %s18
        %p180 = scmp.lt.s32.totalorder %s178, 3
        %s181 = scalar_select %p180, %s178, 3
        %p182 = scmp.lt.s32.totalorder %s179, 11
        %s183 = scalar_select %p182, %s179, 11
        %s184 = smul.addr %s181, 12
        %s185 = sadd.s32 %s183, %s184
        %s186 = smul.addr %s185, 4
        %s187 = scalar_lea.vmem %s0, %s186
        %s188 = smul.u32 2, %s17
        %s189 = smul.u32 12, %s18
      $region20: #{model_forward.3} parent=15 // pred_fallthru
        _
      // Predicated region
      $region21: #{model_forward.3} parent=15 // pred_check
        %p190 = pneg %p70
      $region22: #{model_forward.3} parent=15 // pred_check_branch
        %192 = sbr.rel (%p190) target = $region24
      $region23: #{model_forward.3} parent=15 // pred_region
        %s193 = smul.u32 2, %s17
        %p194 = scmp.lt.s32.totalorder %s193, 3
        %s195 = scalar_select %p194, %s193, 3
        %s196 = smul.addr %s195, 4
        %s197 = smul.addr %s196, 4
        %s198 = scalar_lea.vmem %s1, %s197
        %s199 = smul.u32 2, %s17
      $region24: #{model_forward.3} parent=15 // pred_fallthru
        _
      // Predicated region
      $region25: #{model_forward.3} parent=15 // pred_check
        %p200 = pneg %p96
      $region26: #{model_forward.3} parent=15 // pred_check_branch
        %202 = sbr.rel (%p200) target = $region28
      $region27: #{model_forward.3} parent=15 // pred_region
        %s203 = smul.u32 2, %s17
        %p204 = scmp.lt.s32.totalorder %s203, 3
        %s205 = scalar_select %p204, %s203, 3
        %s206 = smul.addr %s205, 8
        %s207 = smul.addr %s206, 4
        %s208 = scalar_lea.vmem %s2, %s207
        %s209 = smul.u32 2, %s17
      $region28: #{model_forward.3} parent=15 // pred_fallthru
        _
      // Predicated region
      $region29: #{model_forward.3} parent=15 // pred_check
        %p210 = pneg %p122
      $region30: #{model_forward.3} parent=15 // pred_check_branch
        %212 = sbr.rel (%p210) target = $region32
      $region31: #{model_forward.3} parent=15 // pred_region
        %s213 = smul.u32 2, %s17
        %p214 = scmp.lt.s32.totalorder %s213, 3
        %s215 = scalar_select %p214, %s213, 3
        %s216 = scalar_lea.vmem %s3, %s215
        %s217 = smul.u32 2, %s17
      $region32: #{model_forward.3} parent=15 // pred_fallthru
        _
    $region16: #{model_forward.3} parent=5 // pred_fallthru
      _
    %p218 = scmp.le.s32.totalorder 1, %s10
    %p219 = scmp.lt.s32.totalorder %s10, 3
    %p220 = pnand %p218, %p219
    %p221 = pneg %p220
    // Predicated region
    $region33: #{model_forward.3} parent=5 // pred_check
      _
    $region34: #{model_forward.3} parent=5 // pred_check_branch
      %223 = sbr.rel (%p220) target = $region36
    $region35: #{model_forward.3} parent=5 // pred_region
      %s224 = ssub.s32 %s10, 1
      %s225 = smul.u32 2, %s19
      %s226 = smul.u32 12, %s20
      %p227 = scmp.lt.s32.totalorder %s225, 3
      %s228 = scalar_select %p227, %s225, 3
      %p229 = scmp.lt.s32.totalorder %s226, 11
      %s230 = scalar_select %p229, %s226, 11
      %s231 = smul.addr %s228, 12
      %s232 = sadd.s32 %s230, %s231
      %s233 = smul.addr %s232, 4
      %s234 = scalar_lea.vmem %s0, %s233
      %p235 = pneg %p50
      %p236 = pneg %p47
      %s237 = smul.u32 2, %s19
      %p238 = scmp.lt.s32.totalorder %s237, 3
      %s239 = scalar_select %p238, %s237, 3
      %s240 = smul.addr %s239, 4
      %s241 = smul.addr %s240, 4
      %s242 = scalar_lea.vmem %s1, %s241
      %p243 = pneg %p76
      %p244 = pneg %p73
      %s245 = smul.u32 2, %s19
      %p246 = scmp.lt.s32.totalorder %s245, 3
      %s247 = scalar_select %p246, %s245, 3
      %s248 = smul.addr %s247, 8
      %s249 = smul.addr %s248, 4
      %s250 = scalar_lea.vmem %s2, %s249
      %p251 = pneg %p102
      %p252 = pneg %p99
      %s253 = smul.u32 2, %s19
      %p254 = scmp.lt.s32.totalorder %s253, 3
      %s255 = scalar_select %p254, %s253, 3
      %s256 = scalar_lea.vmem %s3, %s255
      %p257 = pneg %p128
      %p258 = pneg %p125
      %p259 = pneg %p156
      %p260 = pneg %p153
      %s261 = smul.u32 2, %s19
      %s262 = smul.u32 3, %s20
      %p263 = scmp.lt.s32.totalorder %s261, 3
      %s264 = scalar_select %p263, %s261, 3
      %p265 = scmp.lt.s32.totalorder %s262, 2
      %s266 = scalar_select %p265, %s262, 2
      %s267 = smul.addr %s264, 3
      %s268 = sadd.s32 %s266, %s267
      %s269 = smul.addr %s268, 8
      %s270 = scalar_lea.vmem %s4, %s269
      %s271 = smul.u32 2, %s19
      %s272 = smul.u32 12, %s20
      %p273 = scmp.lt.s32.totalorder %s271, 3
      %s274 = scalar_select %p273, %s271, 3
      %p275 = scmp.lt.s32.totalorder %s272, 11
      %s276 = scalar_select %p275, %s272, 11
      %s277 = smul.addr %s274, 12
      %s278 = sadd.s32 %s276, %s277
      %s279 = smul.addr %s278, 4
      %s280 = scalar_lea.vmem %s0, %s279
      %s281 = smul.u32 2, %s19
      %s282 = smul.u32 12, %s20
      %s283 = smul.u32 2, %s19
      %p284 = scmp.lt.s32.totalorder %s283, 3
      %s285 = scalar_select %p284, %s283, 3
      %s286 = smul.addr %s285, 4
      %s287 = smul.addr %s286, 4
      %s288 = scalar_lea.vmem %s1, %s287
      %s289 = smul.u32 2, %s19
      %s290 = smul.u32 2, %s19
      %p291 = scmp.lt.s32.totalorder %s290, 3
      %s292 = scalar_select %p291, %s290, 3
      %s293 = smul.addr %s292, 8
      %s294 = smul.addr %s293, 4
      %s295 = scalar_lea.vmem %s2, %s294
      %s296 = smul.u32 2, %s19
      %s297 = smul.u32 2, %s19
      %p298 = scmp.lt.s32.totalorder %s297, 3
      %s299 = scalar_select %p298, %s297, 3
      %s300 = scalar_lea.vmem %s3, %s299
      %s301 = smul.u32 2, %s19
      %s302 = smul.u32 2, %s19
      %s303 = smul.u32 3, %s20
      %p304 = scmp.lt.s32.totalorder %s302, 3
      %s305 = scalar_select %p304, %s302, 3
      %p306 = scmp.lt.s32.totalorder %s303, 2
      %s307 = scalar_select %p306, %s303, 2
      %s308 = smul.addr %s305, 3
      %s309 = sadd.s32 %s307, %s308
      %s310 = smul.addr %s309, 8
      %s311 = scalar_lea.vmem %s4, %s310
      %s312 = smul.u32 2, %s19
      %s313 = smul.u32 3, %s20
      %p315 = scmp.eq.s32.totalorder %s20, 0
      // Predicated region
      $region37: #{model_forward.3} parent=35 // pred_check
        %p316 = pneg %p315
      $region38: #{model_forward.3} parent=35 // pred_check_branch
        %318 = sbr.rel (%p316) target = $region40
      $region39: #{model_forward.3} parent=35 // pred_region
        %319 = vst [vmem:[#allocation2] sm:$0xff] 0.0
        %320 = vst [vmem:[#allocation2 + $0x8] sm:$0xff] 0.0
      $region40: #{model_forward.3} parent=35 // pred_fallthru
        _
      %v321 = vlaneseq
      %v322 = vand.u32 %v321, 127
      %vm323 = vcmp.ge.s32.totalorder %v322, 64
      %vm324 = vcmp.lt.s32.totalorder %v322, 96
      %vm325 = vmand %vm323, %vm324
      %v326 = vsel %vm325, 1.0, 0.5
      %v327 = vsel %vm325, 0.0, 0.5
      %v328 = vld [vmem:[%s288] sm:$0xf]
      %v329 = vld [vmem:[%s288 + $0x4] sm:$0xf]
      %v330 = vld [vmem:[%s288 + $0x8] sm:$0xf]
      %v331 = vld [vmem:[%s288 + $0xc] sm:$0xf]
      %s332 = scalar_lea.vmem %s288, 16
      %v333 = vld [vmem:[%s332] sm:$0xf]
      %v334 = vld [vmem:[%s332 + $0x4] sm:$0xf]
      %v335 = vld [vmem:[%s332 + $0x8] sm:$0xf]
      %v336 = vld [vmem:[%s332 + $0xc] sm:$0xf]
      %v337 = vld [vmem:[%s295] sm:$0xf]
      %v338 = vld [vmem:[%s295 + $0x4] sm:$0xf]
      %v339 = vld [vmem:[%s295 + $0x8] sm:$0xf]
      %v340 = vld [vmem:[%s295 + $0xc] sm:$0xf]
      %v341 = vld [vmem:[%s295 + $0x10] sm:$0xf]
      %v342 = vld [vmem:[%s295 + $0x14] sm:$0xf]
      %v343 = vld [vmem:[%s295 + $0x18] sm:$0xf]
      %v344 = vld [vmem:[%s295 + $0x1c] sm:$0xf]
      %s345 = scalar_lea.vmem %s295, 32
      %v346 = vld [vmem:[%s345] sm:$0xf]
      %v347 = vld [vmem:[%s345 + $0x4] sm:$0xf]
      %v348 = vld [vmem:[%s345 + $0x8] sm:$0xf]
      %v349 = vld [vmem:[%s345 + $0xc] sm:$0xf]
      %v350 = vld [vmem:[%s345 + $0x10] sm:$0xf]
      %v351 = vld [vmem:[%s345 + $0x14] sm:$0xf]
      %v352 = vld [vmem:[%s345 + $0x18] sm:$0xf]
      %v353 = vld [vmem:[%s345 + $0x1c] sm:$0xf]
      %v354 = vld [vmem:[%s300] sm:$0x1]
      %v356 = vlaneseq
      %v357 = vshrl.u32 %v356, 7
      %v358 = vsub.s32 0, %v357
      %v359 = vrot.slane %v354, %v358
      %s361 = scalar_lea.vmem %s300, 1
      %v362 = vld [vmem:[%s361] sm:$0x1]
      %v364 = vlaneseq
      %v365 = vshrl.u32 %v364, 7
      %v366 = vsub.s32 0, %v365
      %v367 = vrot.slane %v362, %v366
      %v369 = vld [vmem:[#allocation2] sm:$0xff]
      %s370 = scalar_lea.vmem [#allocation2], 8
      %v371 = vld [vmem:[%s370] sm:$0xff]
      %v372 = vld [vmem:[%s280] sm:$0xf]
      %v373 = vunpack.c.l.bf16 %v372
      %v374 = vpack.c.bf16 %v369, %v369
      %v379 = vunpack.c.l.b16 %v328
      %v380 = vunpack.c.l.b16 %v329
      %v381 = vunpack.c.l.b16 %v330
      %v382 = vunpack.c.l.b16 %v331
      %v383 = vpack.c.b16 %v380, %v379
      %v384 = vpack.c.b16 %v382, %v381
      %vm387 = vcmask 261120
      %v389 = vsel %vm387, %v374, 0
      %391 = vmatprep.subr.bf16.mxu0 0
      %392 = vmatpush1.bf16.msra.mxu0 %v383
      %393 = vmatprep.subr.bf16.mxu0 0
      %394 = vmatpush1.bf16.msra.mxu0 %v384
      %395 = vmatprep.subr.bf16.mxu0 0
      %396 = vmatpush1.bf16.msra.mxu0 0
      %397 = vmatprep.subr.bf16.mxu0 0
      %398 = vmatpush1.bf16.msra.mxu0 0
      %399 = vmatprep.subr.bf16.mxu0 0
      %400 = vmatpush1.bf16.msra.mxu0 0
      %401 = vmatprep.subr.bf16.mxu0 0
      %402 = vmatpush1.bf16.msra.mxu0 0
      %403 = vmatprep.subr.bf16.mxu0 0
      %404 = vmatpush1.bf16.msra.mxu0 0
      %405 = vmatprep.subr.bf16.mxu0 0
      %406 = vmatpush1.bf16.msra.mxu0 0
      %407 = vmatprep.subr.bf16.mxu0 0
      %408 = vmatpush1.bf16.msra.mxu0 0
      %409 = vmatprep.subr.bf16.mxu0 0
      %410 = vmatpush1.bf16.msra.mxu0 0
      %411 = vmatprep.subr.bf16.mxu0 0
      %412 = vmatpush1.bf16.msra.mxu0 0
      %413 = vmatprep.subr.bf16.mxu0 0
      %414 = vmatpush1.bf16.msra.mxu0 0
      %415 = vmatprep.subr.bf16.mxu0 0
      %416 = vmatpush1.bf16.msra.mxu0 0
      %417 = vmatprep.subr.bf16.mxu0 0
      %418 = vmatpush1.bf16.msra.mxu0 0
      %419 = vmatprep.subr.bf16.mxu0 0
      %420 = vmatpush1.bf16.msra.mxu0 0
      %421 = vmatprep.subr.bf16.mxu0 0
      %422 = vmatpush1.bf16.msra.mxu0 0
      %423 = vmatprep.mubr.bf16.mxu0 0
      %424 = vmatmul.mubr.bf16.gmra.mrb[0].mxu0 %v389
      %v425 = vpop.f32.mrb[0].mxu0
      %v426 = vadd.f32 0.0, %v425
      %v427 = vpop.f32.mrb[0].mxu0
      %v428 = vpop.f32.mrb[0].mxu0
      %v429 = vpop.f32.mrb[0].mxu0
      %430 = vdwg.mxu0
      %v431 = vadd.f32 %v373, %v426
      %v432 = vmul.f32 %v431, %v326
      %v433 = vtanh.pop %v432
      %v434 = vmul.f32 %v433, %v326
      %v435 = vadd.f32 %v434, %v327
      %v436 = vmul.f32 %v435, %v369
      %438 = vrot.lane.b32.xlu0 %v435, 64
      %v439 = vpop.permute.xlu0 %438
      %v441 = vmul.f32 %v435, %v439
      %443 = vrot.lane.b32.xlu0 %v441, 32
      %v444 = vpop.permute.xlu0 %443
      %v446 = vadd.f32 %v436, %v444
      %v447 = vtanh.pop %v446
      %449 = vrot.lane.b32.xlu0 %v447, 64
      %v450 = vpop.permute.xlu0 %449
      %v452 = vmul.f32 %v435, %v450
      %454 = vrot.lane.b32.xlu0 %v452, 32
      %v455 = vpop.permute.xlu0 %454
      %458 = vrot.lane.b32.xlu0 %v369, 96
      %v459 = vpop.permute.xlu0 %458
      %v461 = vsel %vm387, %v455, %v459
      %v462 = vpack.c.bf16 %v461, %v461
      %v471 = vunpack.c.l.b16 %v337
      %v472 = vunpack.c.l.b16 %v338
      %v473 = vunpack.c.l.b16 %v339
      %v474 = vunpack.c.l.b16 %v340
      %v475 = vunpack.c.l.b16 %v341
      %v476 = vunpack.c.l.b16 %v342
      %v477 = vunpack.c.l.b16 %v343
      %v478 = vunpack.c.l.b16 %v344
      %v479 = vpack.c.b16 %v472, %v471
      %v480 = vpack.c.b16 %v474, %v473
      %v481 = vpack.c.b16 %v476, %v475
      %v482 = vpack.c.b16 %v478, %v477
      %vm487 = vcmask 523264
      %v489 = vsel %vm487, %v462, 0
      %491 = vmatprep.subr.bf16.mxu0 0
      %492 = vmatpush1.bf16.msra.mxu0 %v479
      %493 = vmatprep.subr.bf16.mxu0 0
      %494 = vmatpush1.bf16.msra.mxu0 %v480
      %495 = vmatprep.subr.bf16.mxu0 0
      %496 = vmatpush1.bf16.msra.mxu0 %v481
      %497 = vmatprep.subr.bf16.mxu0 0
      %498 = vmatpush1.bf16.msra.mxu0 %v482
      %499 = vmatprep.subr.bf16.mxu0 0
      %500 = vmatpush1.bf16.msra.mxu0 0
      %501 = vmatprep.subr.bf16.mxu0 0
      %502 = vmatpush1.bf16.msra.mxu0 0
      %503 = vmatprep.subr.bf16.mxu0 0
      %504 = vmatpush1.bf16.msra.mxu0 0
      %505 = vmatprep.subr.bf16.mxu0 0
      %506 = vmatpush1.bf16.msra.mxu0 0
      %507 = vmatprep.subr.bf16.mxu0 0
      %508 = vmatpush1.bf16.msra.mxu0 0
      %509 = vmatprep.subr.bf16.mxu0 0
      %510 = vmatpush1.bf16.msra.mxu0 0
      %511 = vmatprep.subr.bf16.mxu0 0
      %512 = vmatpush1.bf16.msra.mxu0 0
      %513 = vmatprep.subr.bf16.mxu0 0
      %514 = vmatpush1.bf16.msra.mxu0 0
      %515 = vmatprep.subr.bf16.mxu0 0
      %516 = vmatpush1.bf16.msra.mxu0 0
      %517 = vmatprep.subr.bf16.mxu0 0
      %518 = vmatpush1.bf16.msra.mxu0 0
      %519 = vmatprep.subr.bf16.mxu0 0
      %520 = vmatpush1.bf16.msra.mxu0 0
      %521 = vmatprep.subr.bf16.mxu0 0
      %522 = vmatpush1.bf16.msra.mxu0 0
      %523 = vmatprep.mubr.bf16.mxu0 0
      %524 = vmatmul.mubr.bf16.gmra.mrb[0].mxu0 %v489
      %v525 = vpop.f32.mrb[0].mxu0
      %v526 = vadd.f32 %v359, %v525
      %v527 = vpop.f32.mrb[0].mxu0
      %v528 = vpop.f32.mrb[0].mxu0
      %v529 = vpop.f32.mrb[0].mxu0
      %530 = vdwg.mxu0
      %v531 = vmul.f32 %v526, %v326
      %v532 = vtanh.pop %v531
      %v533 = vmul.f32 %v532, %v326
      %v534 = vadd.f32 %v533, %v327
      %535 = vrot.lane.b32.xlu0 %v369, 64
      %v536 = vpop.permute.xlu0 %535
      %v538 = vmul.f32 %v534, %v536
      %540 = vrot.lane.b32.xlu0 %v534, 64
      %v541 = vpop.permute.xlu0 %540
      %v543 = vmul.f32 %v534, %v541
      %545 = vrot.lane.b32.xlu0 %v543, 32
      %v546 = vpop.permute.xlu0 %545
      %v548 = vadd.f32 %v538, %v546
      %v549 = vtanh.pop %v548
      %551 = vrot.lane.b32.xlu0 %v549, 64
      %v552 = vpop.permute.xlu0 %551
      %v554 = vmul.f32 %v534, %v552
      %s555 = scalar_lea.vmem %s280, 4
      %v556 = vld [vmem:[%s555] sm:$0xf]
      %v557 = vunpack.c.l.bf16 %v556
      %v558 = vpack.c.bf16 %v452, %v452
      %560 = vrot.lane.b32.xlu0 %v558, 32
      %v561 = vpop.permute.xlu0 %560
      %v563 = vsel %vm387, %v561, 0
      %565 = vmatprep.subr.bf16.mxu0 0
      %566 = vmatpush1.bf16.msra.mxu0 %v383
      %567 = vmatprep.subr.bf16.mxu0 0
      %568 = vmatpush1.bf16.msra.mxu0 %v384
      %569 = vmatprep.subr.bf16.mxu0 0
      %570 = vmatpush1.bf16.msra.mxu0 0
      %571 = vmatprep.subr.bf16.mxu0 0
      %572 = vmatpush1.bf16.msra.mxu0 0
      %573 = vmatprep.subr.bf16.mxu0 0
      %574 = vmatpush1.bf16.msra.mxu0 0
      %575 = vmatprep.subr.bf16.mxu0 0
      %576 = vmatpush1.bf16.msra.mxu0 0
      %577 = vmatprep.subr.bf16.mxu0 0
      %578 = vmatpush1.bf16.msra.mxu0 0
      %579 = vmatprep.subr.bf16.mxu0 0
      %580 = vmatpush1.bf16.msra.mxu0 0
      %581 = vmatprep.subr.bf16.mxu0 0
      %582 = vmatpush1.bf16.msra.mxu0 0
      %583 = vmatprep.subr.bf16.mxu0 0
      %584 = vmatpush1.bf16.msra.mxu0 0
      %585 = vmatprep.subr.bf16.mxu0 0
      %586 = vmatpush1.bf16.msra.mxu0 0
      %587 = vmatprep.subr.bf16.mxu0 0
      %588 = vmatpush1.bf16.msra.mxu0 0
      %589 = vmatprep.subr.bf16.mxu0 0
      %590 = vmatpush1.bf16.msra.mxu0 0
      %591 = vmatprep.subr.bf16.mxu0 0
      %592 = vmatpush1.bf16.msra.mxu0 0
      %593 = vmatprep.subr.bf16.mxu0 0
      %594 = vmatpush1.bf16.msra.mxu0 0
      %595 = vmatprep.subr.bf16.mxu0 0
      %596 = vmatpush1.bf16.msra.mxu0 0
      %597 = vmatprep.mubr.bf16.mxu0 0
      %598 = vmatmul.mubr.bf16.gmra.mrb[0].mxu0 %v563
      %v599 = vpop.f32.mrb[0].mxu0
      %v600 = vadd.f32 0.0, %v599
      %v601 = vpop.f32.mrb[0].mxu0
      %v602 = vpop.f32.mrb[0].mxu0
      %v603 = vpop.f32.mrb[0].mxu0
      %604 = vdwg.mxu0
      %v605 = vadd.f32 %v557, %v600
      %v606 = vmul.f32 %v605, %v326
      %v607 = vtanh.pop %v606
      %v608 = vmul.f32 %v607, %v326
      %v609 = vadd.f32 %v608, %v327
      %v610 = vmul.f32 %v609, %v446
      %612 = vrot.lane.b32.xlu0 %v609, 64
      %v613 = vpop.permute.xlu0 %612
      %v615 = vmul.f32 %v609, %v613
      %617 = vrot.lane.b32.xlu0 %v615, 32
      %v618 = vpop.permute.xlu0 %617
      %v620 = vadd.f32 %v610, %v618
      %v621 = vtanh.pop %v620
      %623 = vrot.lane.b32.xlu0 %v621, 64
      %v624 = vpop.permute.xlu0 %623
      %v626 = vmul.f32 %v609, %v624
      %628 = vrot.lane.b32.xlu0 %v626, 32
      %v629 = vpop.permute.xlu0 %628
      %632 = vrot.lane.b32.xlu0 %v554, 64
      %v633 = vpop.permute.xlu0 %632
      %v635 = vsel %vm387, %v629, %v633
      %v636 = vpack.c.bf16 %v635, %v635
      %v638 = vsel %vm487, %v636, 0
      %640 = vmatprep.subr.bf16.mxu0 0
      %641 = vmatpush1.bf16.msra.mxu0 %v479
      %642 = vmatprep.subr.bf16.mxu0 0
      %643 = vmatpush1.bf16.msra.mxu0 %v480
      %644 = vmatprep.subr.bf16.mxu0 0
      %645 = vmatpush1.bf16.msra.mxu0 %v481
      %646 = vmatprep.subr.bf16.mxu0 0
      %647 = vmatpush1.bf16.msra.mxu0 %v482
      %648 = vmatprep.subr.bf16.mxu0 0
      %649 = vmatpush1.bf16.msra.mxu0 0
      %650 = vmatprep.subr.bf16.mxu0 0
      %651 = vmatpush1.bf16.msra.mxu0 0
      %652 = vmatprep.subr.bf16.mxu0 0
      %653 = vmatpush1.bf16.msra.mxu0 0
      %654 = vmatprep.subr.bf16.mxu0 0
      %655 = vmatpush1.bf16.msra.mxu0 0
      %656 = vmatprep.subr.bf16.mxu0 0
      %657 = vmatpush1.bf16.msra.mxu0 0
      %658 = vmatprep.subr.bf16.mxu0 0
      %659 = vmatpush1.bf16.msra.mxu0 0
      %660 = vmatprep.subr.bf16.mxu0 0
      %661 = vmatpush1.bf16.msra.mxu0 0
      %662 = vmatprep.subr.bf16.mxu0 0
      %663 = vmatpush1.bf16.msra.mxu0 0
      %664 = vmatprep.subr.bf16.mxu0 0
      %665 = vmatpush1.bf16.msra.mxu0 0
      %666 = vmatprep.subr.bf16.mxu0 0
      %667 = vmatpush1.bf16.msra.mxu0 0
      %668 = vmatprep.subr.bf16.mxu0 0
      %669 = vmatpush1.bf16.msra.mxu0 0
      %670 = vmatprep.subr.bf16.mxu0 0
      %671 = vmatpush1.bf16.msra.mxu0 0
      %672 = vmatprep.mubr.bf16.mxu0 0
      %673 = vmatmul.mubr.bf16.gmra.mrb[0].mxu0 %v638
      %v674 = vpop.f32.mrb[0].mxu0
      %v675 = vadd.f32 %v359, %v674
      %v676 = vpop.f32.mrb[0].mxu0
      %v677 = vpop.f32.mrb[0].mxu0
      %v678 = vpop.f32.mrb[0].mxu0
      %679 = vdwg.mxu0
      %v680 = vmul.f32 %v675, %v326
      %v681 = vtanh.pop %v680
      %v682 = vmul.f32 %v681, %v326
      %v683 = vadd.f32 %v682, %v327
      %v684 = vmul.f32 %v683, %v548
      %686 = vrot.lane.b32.xlu0 %v683, 64
      %v687 = vpop.permute.xlu0 %686
      %v689 = vmul.f32 %v683, %v687
      %691 = vrot.lane.b32.xlu0 %v689, 32
      %v692 = vpop.permute.xlu0 %691
      %v694 = vadd.f32 %v684, %v692
      %v695 = vtanh.pop %v694
      %697 = vrot.lane.b32.xlu0 %v695, 64
      %v698 = vpop.permute.xlu0 %697
      %v700 = vmul.f32 %v683, %v698
      %s701 = scalar_lea.vmem %s280, 8
      %v702 = vld [vmem:[%s701] sm:$0xf]
      %v703 = vunpack.c.l.bf16 %v702
      %v704 = vpack.c.bf16 %v626, %v626
      %706 = vrot.lane.b32.xlu0 %v704, 32
      %v707 = vpop.permute.xlu0 %706
      %v709 = vsel %vm387, %v707, 0
      %711 = vmatprep.subr.bf16.mxu0 0
      %712 = vmatpush1.bf16.msra.mxu0 %v383
      %713 = vmatprep.subr.bf16.mxu0 0
      %714 = vmatpush1.bf16.msra.mxu0 %v384
      %715 = vmatprep.subr.bf16.mxu0 0
      %716 = vmatpush1.bf16.msra.mxu0 0
      %717 = vmatprep.subr.bf16.mxu0 0
      %718 = vmatpush1.bf16.msra.mxu0 0
      %719 = vmatprep.subr.bf16.mxu0 0
      %720 = vmatpush1.bf16.msra.mxu0 0
      %721 = vmatprep.subr.bf16.mxu0 0
      %722 = vmatpush1.bf16.msra.mxu0 0
      %723 = vmatprep.subr.bf16.mxu0 0
      %724 = vmatpush1.bf16.msra.mxu0 0
      %725 = vmatprep.subr.bf16.mxu0 0
      %726 = vmatpush1.bf16.msra.mxu0 0
      %727 = vmatprep.subr.bf16.mxu0 0
      %728 = vmatpush1.bf16.msra.mxu0 0
      %729 = vmatprep.subr.bf16.mxu0 0
      %730 = vmatpush1.bf16.msra.mxu0 0
      %731 = vmatprep.subr.bf16.mxu0 0
      %732 = vmatpush1.bf16.msra.mxu0 0
      %733 = vmatprep.subr.bf16.mxu0 0
      %734 = vmatpush1.bf16.msra.mxu0 0
      %735 = vmatprep.subr.bf16.mxu0 0
      %736 = vmatpush1.bf16.msra.mxu0 0
      %737 = vmatprep.subr.bf16.mxu0 0
      %738 = vmatpush1.bf16.msra.mxu0 0
      %739 = vmatprep.subr.bf16.mxu0 0
      %740 = vmatpush1.bf16.msra.mxu0 0
      %741 = vmatprep.subr.bf16.mxu0 0
      %742 = vmatpush1.bf16.msra.mxu0 0
      %743 = vmatprep.mubr.bf16.mxu0 0
      %744 = vmatmul.mubr.bf16.gmra.mrb[0].mxu0 %v709
      %v745 = vpop.f32.mrb[0].mxu0
      %v746 = vadd.f32 0.0, %v745
      %v747 = vpop.f32.mrb[0].mxu0
      %v748 = vpop.f32.mrb[0].mxu0
      %v749 = vpop.f32.mrb[0].mxu0
      %750 = vdwg.mxu0
      %v751 = vadd.f32 %v703, %v746
      %v752 = vmul.f32 %v751, %v326
      %v753 = vtanh.pop %v752
      %v754 = vmul.f32 %v753, %v326
      %v755 = vadd.f32 %v754, %v327
      %v756 = vmul.f32 %v755, %v620
      %758 = vrot.lane.b32.xlu0 %v755, 64
      %v759 = vpop.permute.xlu0 %758
      %v761 = vmul.f32 %v755, %v759
      %763 = vrot.lane.b32.xlu0 %v761, 32
      %v764 = vpop.permute.xlu0 %763
      %v766 = vadd.f32 %v756, %v764
      %v767 = vtanh.pop %v766
      %769 = vrot.lane.b32.xlu0 %v767, 64
      %v770 = vpop.permute.xlu0 %769
      %v772 = vmul.f32 %v755, %v770
      %774 = vrot.lane.b32.xlu0 %v772, 32
      %v775 = vpop.permute.xlu0 %774
      %778 = vrot.lane.b32.xlu0 %v700, 64
      %v779 = vpop.permute.xlu0 %778
      %v781 = vsel %vm387, %v775, %v779
      %v782 = vpack.c.bf16 %v781, %v781
      %v784 = vsel %vm487, %v782, 0
      %786 = vmatprep.subr.bf16.mxu0 0
      %787 = vmatpush1.bf16.msra.mxu0 %v479
      %788 = vmatprep.subr.bf16.mxu0 0
      %789 = vmatpush1.bf16.msra.mxu0 %v480
      %790 = vmatprep.subr.bf16.mxu0 0
      %791 = vmatpush1.bf16.msra.mxu0 %v481
      %792 = vmatprep.subr.bf16.mxu0 0
      %793 = vmatpush1.bf16.msra.mxu0 %v482
      %794 = vmatprep.subr.bf16.mxu0 0
      %795 = vmatpush1.bf16.msra.mxu0 0
      %796 = vmatprep.subr.bf16.mxu0 0
      %797 = vmatpush1.bf16.msra.mxu0 0
      %798 = vmatprep.subr.bf16.mxu0 0
      %799 = vmatpush1.bf16.msra.mxu0 0
      %800 = vmatprep.subr.bf16.mxu0 0
      %801 = vmatpush1.bf16.msra.mxu0 0
      %802 = vmatprep.subr.bf16.mxu0 0
      %803 = vmatpush1.bf16.msra.mxu0 0
      %804 = vmatprep.subr.bf16.mxu0 0
      %805 = vmatpush1.bf16.msra.mxu0 0
      %806 = vmatprep.subr.bf16.mxu0 0
      %807 = vmatpush1.bf16.msra.mxu0 0
      %808 = vmatprep.subr.bf16.mxu0 0
      %809 = vmatpush1.bf16.msra.mxu0 0
      %810 = vmatprep.subr.bf16.mxu0 0
      %811 = vmatpush1.bf16.msra.mxu0 0
      %812 = vmatprep.subr.bf16.mxu0 0
      %813 = vmatpush1.bf16.msra.mxu0 0
      %814 = vmatprep.subr.bf16.mxu0 0
      %815 = vmatpush1.bf16.msra.mxu0 0
      %816 = vmatprep.subr.bf16.mxu0 0
      %817 = vmatpush1.bf16.msra.mxu0 0
      %818 = vmatprep.mubr.bf16.mxu0 0
      %819 = vmatmul.mubr.bf16.gmra.mrb[0].mxu0 %v784
      %v820 = vpop.f32.mrb[0].mxu0
      %v821 = vadd.f32 %v359, %v820
      %v822 = vpop.f32.mrb[0].mxu0
      %v823 = vpop.f32.mrb[0].mxu0
      %v824 = vpop.f32.mrb[0].mxu0
      %825 = vdwg.mxu0
      %v826 = vmul.f32 %v821, %v326
      %v827 = vtanh.pop %v826
      %v828 = vmul.f32 %v827, %v326
      %v829 = vadd.f32 %v828, %v327
      %v830 = vmul.f32 %v829, %v694
      %832 = vrot.lane.b32.xlu0 %v829, 64
      %v833 = vpop.permute.xlu0 %832
      %v835 = vmul.f32 %v829, %v833
      %837 = vrot.lane.b32.xlu0 %v835, 32
      %v838 = vpop.permute.xlu0 %837
      %v840 = vadd.f32 %v830, %v838
      %v841 = vtanh.pop %v840
      %843 = vrot.lane.b32.xlu0 %v841, 64
      %v844 = vpop.permute.xlu0 %843
      %v846 = vmul.f32 %v829, %v844
      %s847 = scalar_lea.vmem %s280, 12
      %v848 = vld [vmem:[%s847] sm:$0xf]
      %v849 = vunpack.c.l.bf16 %v848
      %v850 = vpack.c.bf16 %v772, %v772
      %852 = vrot.lane.b32.xlu0 %v850, 32
      %v853 = vpop.permute.xlu0 %852
      %v855 = vsel %vm387, %v853, 0
      %857 = vmatprep.subr.bf16.mxu0 0
      %858 = vmatpush1.bf16.msra.mxu0 %v383
      %859 = vmatprep.subr.bf16.mxu0 0
      %860 = vmatpush1.bf16.msra.mxu0 %v384
      %861 = vmatprep.subr.bf16.mxu0 0
      %862 = vmatpush1.bf16.msra.mxu0 0
      %863 = vmatprep.subr.bf16.mxu0 0
      %864 = vmatpush1.bf16.msra.mxu0 0
      %865 = vmatprep.subr.bf16.mxu0 0
      %866 = vmatpush1.bf16.msra.mxu0 0
      %867 = vmatprep.subr.bf16.mxu0 0
      %868 = vmatpush1.bf16.msra.mxu0 0
      %869 = vmatprep.subr.bf16.mxu0 0
      %870 = vmatpush1.bf16.msra.mxu0 0
      %871 = vmatprep.subr.bf16.mxu0 0
      %872 = vmatpush1.bf16.msra.mxu0 0
      %873 = vmatprep.subr.bf16.mxu0 0
      %874 = vmatpush1.bf16.msra.mxu0 0
      %875 = vmatprep.subr.bf16.mxu0 0
      %876 = vmatpush1.bf16.msra.mxu0 0
      %877 = vmatprep.subr.bf16.mxu0 0
      %878 = vmatpush1.bf16.msra.mxu0 0
      %879 = vmatprep.subr.bf16.mxu0 0
      %880 = vmatpush1.bf16.msra.mxu0 0
      %881 = vmatprep.subr.bf16.mxu0 0
      %882 = vmatpush1.bf16.msra.mxu0 0
      %883 = vmatprep.subr.bf16.mxu0 0
      %884 = vmatpush1.bf16.msra.mxu0 0
      %885 = vmatprep.subr.bf16.mxu0 0
      %886 = vmatpush1.bf16.msra.mxu0 0
      %887 = vmatprep.subr.bf16.mxu0 0
      %888 = vmatpush1.bf16.msra.mxu0 0
      %889 = vmatprep.mubr.bf16.mxu0 0
      %890 = vmatmul.mubr.bf16.gmra.mrb[0].mxu0 %v855
      %v891 = vpop.f32.mrb[0].mxu0
      %v892 = vadd.f32 0.0, %v891
      %v893 = vpop.f32.mrb[0].mxu0
      %v894 = vpop.f32.mrb[0].mxu0
      %v895 = vpop.f32.mrb[0].mxu0
      %896 = vdwg.mxu0
      %v897 = vadd.f32 %v849, %v892
      %v898 = vmul.f32 %v897, %v326
      %v899 = vtanh.pop %v898
      %v900 = vmul.f32 %v899, %v326
      %v901 = vadd.f32 %v900, %v327
      %v902 = vmul.f32 %v901, %v766
      %904 = vrot.lane.b32.xlu0 %v901, 64
      %v905 = vpop.permute.xlu0 %904
      %v907 = vmul.f32 %v901, %v905
      %909 = vrot.lane.b32.xlu0 %v907, 32
      %v910 = vpop.permute.xlu0 %909
      %v912 = vadd.f32 %v902, %v910
      %v913 = vtanh.pop %v912
      %915 = vrot.lane.b32.xlu0 %v913, 64
      %v916 = vpop.permute.xlu0 %915
      %v918 = vmul.f32 %v901, %v916
      %920 = vrot.lane.b32.xlu0 %v918, 32
      %v921 = vpop.permute.xlu0 %920
      %924 = vrot.lane.b32.xlu0 %v846, 64
      %v925 = vpop.permute.xlu0 %924
      %v927 = vsel %vm387, %v921, %v925
      %v928 = vpack.c.bf16 %v927, %v927
      %v930 = vsel %vm487, %v928, 0
      %932 = vmatprep.subr.bf16.mxu0 0
      %933 = vmatpush1.bf16.msra.mxu0 %v479
      %934 = vmatprep.subr.bf16.mxu0 0
      %935 = vmatpush1.bf16.msra.mxu0 %v480
      %936 = vmatprep.subr.bf16.mxu0 0
      %937 = vmatpush1.bf16.msra.mxu0 %v481
      %938 = vmatprep.subr.bf16.mxu0 0
      %939 = vmatpush1.bf16.msra.mxu0 %v482
      %940 = vmatprep.subr.bf16.mxu0 0
      %941 = vmatpush1.bf16.msra.mxu0 0
      %942 = vmatprep.subr.bf16.mxu0 0
      %943 = vmatpush1.bf16.msra.mxu0 0
      %944 = vmatprep.subr.bf16.mxu0 0
      %945 = vmatpush1.bf16.msra.mxu0 0
      %946 = vmatprep.subr.bf16.mxu0 0
      %947 = vmatpush1.bf16.msra.mxu0 0
      %948 = vmatprep.subr.bf16.mxu0 0
      %949 = vmatpush1.bf16.msra.mxu0 0
      %950 = vmatprep.subr.bf16.mxu0 0
      %951 = vmatpush1.bf16.msra.mxu0 0
      %952 = vmatprep.subr.bf16.mxu0 0
      %953 = vmatpush1.bf16.msra.mxu0 0
      %954 = vmatprep.subr.bf16.mxu0 0
      %955 = vmatpush1.bf16.msra.mxu0 0
      %956 = vmatprep.subr.bf16.mxu0 0
      %957 = vmatpush1.bf16.msra.mxu0 0
      %958 = vmatprep.subr.bf16.mxu0 0
      %959 = vmatpush1.bf16.msra.mxu0 0
      %960 = vmatprep.subr.bf16.mxu0 0
      %961 = vmatpush1.bf16.msra.mxu0 0
      %962 = vmatprep.subr.bf16.mxu0 0
      %963 = vmatpush1.bf16.msra.mxu0 0
      %964 = vmatprep.mubr.bf16.mxu0 0
      %965 = vmatmul.mubr.bf16.gmra.mrb[0].mxu0 %v930
      %v966 = vpop.f32.mrb[0].mxu0
      %v967 = vadd.f32 %v359, %v966
      %v968 = vpop.f32.mrb[0].mxu0
      %v969 = vpop.f32.mrb[0].mxu0
      %v970 = vpop.f32.mrb[0].mxu0
      %971 = vdwg.mxu0
      %v972 = vmul.f32 %v967, %v326
      %v973 = vtanh.pop %v972
      %v974 = vmul.f32 %v973, %v326
      %v975 = vadd.f32 %v974, %v327
      %v976 = vmul.f32 %v975, %v840
      %978 = vrot.lane.b32.xlu0 %v975, 64
      %v979 = vpop.permute.xlu0 %978
      %v981 = vmul.f32 %v975, %v979
      %983 = vrot.lane.b32.xlu0 %v981, 32
      %v984 = vpop.permute.xlu0 %983
      %v986 = vadd.f32 %v976, %v984
      %v987 = vtanh.pop %v986
      %989 = vrot.lane.b32.xlu0 %v987, 64
      %v990 = vpop.permute.xlu0 %989
      %v992 = vmul.f32 %v975, %v990
      %993 = vrot.lane.b32.xlu0 %v554, 32
      %v994 = vpop.permute.xlu0 %993
      %996 = vrot.lane.b32.xlu0 %v846, 96
      %v997 = vpop.permute.xlu0 %996
      %v999 = vsel %vm387, %v994, %v779
      %v1000 = vsel %vm487, %v999, %v997
      %vm1001 = vcmask 785408
      %v1002 = vsel %vm1001, %v1000, %v992
      %1003 = vst [vmem:[%s311] sm:$0xff] %v1002
      %s1004 = scalar_lea.vmem %s280, 48
      %v1005 = vld [vmem:[%s1004] sm:$0xf]
      %v1006 = vunpack.c.l.bf16 %v1005
      %v1007 = vpack.c.bf16 %v371, %v371
      %v1012 = vunpack.c.l.b16 %v333
      %v1013 = vunpack.c.l.b16 %v334
      %v1014 = vunpack.c.l.b16 %v335
      %v1015 = vunpack.c.l.b16 %v336
      %v1016 = vpack.c.b16 %v1013, %v1012
      %v1017 = vpack.c.b16 %v1015, %v1014
      %v1021 = vsel %vm387, %v1007, 0
      %1023 = vmatprep.subr.bf16.mxu0 0
      %1024 = vmatpush1.bf16.msra.mxu0 %v1016
      %1025 = vmatprep.subr.bf16.mxu0 0
      %1026 = vmatpush1.bf16.msra.mxu0 %v1017
      %1027 = vmatprep.subr.bf16.mxu0 0
      %1028 = vmatpush1.bf16.msra.mxu0 0
      %1029 = vmatprep.subr.bf16.mxu0 0
      %1030 = vmatpush1.bf16.msra.mxu0 0
      %1031 = vmatprep.subr.bf16.mxu0 0
      %1032 = vmatpush1.bf16.msra.mxu0 0
      %1033 = vmatprep.subr.bf16.mxu0 0
      %1034 = vmatpush1.bf16.msra.mxu0 0
      %1035 = vmatprep.subr.bf16.mxu0 0
      %1036 = vmatpush1.bf16.msra.mxu0 0
      %1037 = vmatprep.subr.bf16.mxu0 0
      %1038 = vmatpush1.bf16.msra.mxu0 0
      %1039 = vmatprep.subr.bf16.mxu0 0
      %1040 = vmatpush1.bf16.msra.mxu0 0
      %1041 = vmatprep.subr.bf16.mxu0 0
      %1042 = vmatpush1.bf16.msra.mxu0 0
      %1043 = vmatprep.subr.bf16.mxu0 0
      %1044 = vmatpush1.bf16.msra.mxu0 0
      %1045 = vmatprep.subr.bf16.mxu0 0
      %1046 = vmatpush1.bf16.msra.mxu0 0
      %1047 = vmatprep.subr.bf16.mxu0 0
      %1048 = vmatpush1.bf16.msra.mxu0 0
      %1049 = vmatprep.subr.bf16.mxu0 0
      %1050 = vmatpush1.bf16.msra.mxu0 0
      %1051 = vmatprep.subr.bf16.mxu0 0
      %1052 = vmatpush1.bf16.msra.mxu0 0
      %1053 = vmatprep.subr.bf16.mxu0 0
      %1054 = vmatpush1.bf16.msra.mxu0 0
      %1055 = vmatprep.mubr.bf16.mxu0 0
      %1056 = vmatmul.mubr.bf16.gmra.mrb[0].mxu0 %v1021
      %v1057 = vpop.f32.mrb[0].mxu0
      %v1058 = vadd.f32 0.0, %v1057
      %v1059 = vpop.f32.mrb[0].mxu0
      %v1060 = vpop.f32.mrb[0].mxu0
      %v1061 = vpop.f32.mrb[0].mxu0
      %1062 = vdwg.mxu0
      %v1063 = vadd.f32 %v1006, %v1058
      %v1064 = vmul.f32 %v1063, %v326
      %v1065 = vtanh.pop %v1064
      %v1066 = vmul.f32 %v1065, %v326
      %v1067 = vadd.f32 %v1066, %v327
      %v1068 = vmul.f32 %v1067, %v371
      %1070 = vrot.lane.b32.xlu0 %v1067, 64
      %v1071 = vpop.permute.xlu0 %1070
      %v1073 = vmul.f32 %v1067, %v1071
      %1075 = vrot.lane.b32.xlu0 %v1073, 32
      %v1076 = vpop.permute.xlu0 %1075
      %v1078 = vadd.f32 %v1068, %v1076
      %v1079 = vtanh.pop %v1078
      %1081 = vrot.lane.b32.xlu0 %v1079, 64
      %v1082 = vpop.permute.xlu0 %1081
      %v1084 = vmul.f32 %v1067, %v1082
      %1086 = vrot.lane.b32.xlu0 %v1084, 32
      %v1087 = vpop.permute.xlu0 %1086
      %1090 = vrot.lane.b32.xlu0 %v371, 96
      %v1091 = vpop.permute.xlu0 %1090
      %v1093 = vsel %vm387, %v1087, %v1091
      %v1094 = vpack.c.bf16 %v1093, %v1093
      %v1103 = vunpack.c.l.b16 %v346
      %v1104 = vunpack.c.l.b16 %v347
      %v1105 = vunpack.c.l.b16 %v348
      %v1106 = vunpack.c.l.b16 %v349
      %v1107 = vunpack.c.l.b16 %v350
      %v1108 = vunpack.c.l.b16 %v351
      %v1109 = vunpack.c.l.b16 %v352
      %v1110 = vunpack.c.l.b16 %v353
      %v1111 = vpack.c.b16 %v1104, %v1103
      %v1112 = vpack.c.b16 %v1106, %v1105
      %v1113 = vpack.c.b16 %v1108, %v1107
      %v1114 = vpack.c.b16 %v1110, %v1109
      %v1120 = vsel %vm487, %v1094, 0
      %1122 = vmatprep.subr.bf16.mxu0 0
      %1123 = vmatpush1.bf16.msra.mxu0 %v1111
      %1124 = vmatprep.subr.bf16.mxu0 0
      %1125 = vmatpush1.bf16.msra.mxu0 %v1112
      %1126 = vmatprep.subr.bf16.mxu0 0
      %1127 = vmatpush1.bf16.msra.mxu0 %v1113
      %1128 = vmatprep.subr.bf16.mxu0 0
      %1129 = vmatpush1.bf16.msra.mxu0 %v1114
      %1130 = vmatprep.subr.bf16.mxu0 0
      %1131 = vmatpush1.bf16.msra.mxu0 0
      %1132 = vmatprep.subr.bf16.mxu0 0
      %1133 = vmatpush1.bf16.msra.mxu0 0
      %1134 = vmatprep.subr.bf16.mxu0 0
      %1135 = vmatpush1.bf16.msra.mxu0 0
      %1136 = vmatprep.subr.bf16.mxu0 0
      %1137 = vmatpush1.bf16.msra.mxu0 0
      %1138 = vmatprep.subr.bf16.mxu0 0
      %1139 = vmatpush1.bf16.msra.mxu0 0
      %1140 = vmatprep.subr.bf16.mxu0 0
      %1141 = vmatpush1.bf16.msra.mxu0 0
      %1142 = vmatprep.subr.bf16.mxu0 0
      %1143 = vmatpush1.bf16.msra.mxu0 0
      %1144 = vmatprep.subr.bf16.mxu0 0
      %1145 = vmatpush1.bf16.msra.mxu0 0
      %1146 = vmatprep.subr.bf16.mxu0 0
      %1147 = vmatpush1.bf16.msra.mxu0 0
      %1148 = vmatprep.subr.bf16.mxu0 0
      %1149 = vmatpush1.bf16.msra.mxu0 0
      %1150 = vmatprep.subr.bf16.mxu0 0
      %1151 = vmatpush1.bf16.msra.mxu0 0
      %1152 = vmatprep.subr.bf16.mxu0 0
      %1153 = vmatpush1.bf16.msra.mxu0 0
      %1154 = vmatprep.mubr.bf16.mxu0 0
      %1155 = vmatmul.mubr.bf16.gmra.mrb[0].mxu0 %v1120
      %v1156 = vpop.f32.mrb[0].mxu0
      %v1157 = vadd.f32 %v367, %v1156
      %v1158 = vpop.f32.mrb[0].mxu0
      %v1159 = vpop.f32.mrb[0].mxu0
      %v1160 = vpop.f32.mrb[0].mxu0
      %1161 = vdwg.mxu0
      %v1162 = vmul.f32 %v1157, %v326
      %v1163 = vtanh.pop %v1162
      %v1164 = vmul.f32 %v1163, %v326
      %v1165 = vadd.f32 %v1164, %v327
      %1166 = vrot.lane.b32.xlu0 %v371, 64
      %v1167 = vpop.permute.xlu0 %1166
      %v1169 = vmul.f32 %v1165, %v1167
      %1171 = vrot.lane.b32.xlu0 %v1165, 64
      %v1172 = vpop.permute.xlu0 %1171
      %v1174 = vmul.f32 %v1165, %v1172
      %1176 = vrot.lane.b32.xlu0 %v1174, 32
      %v1177 = vpop.permute.xlu0 %1176
      %v1179 = vadd.f32 %v1169, %v1177
      %v1180 = vtanh.pop %v1179
      %1182 = vrot.lane.b32.xlu0 %v1180, 64
      %v1183 = vpop.permute.xlu0 %1182
      %v1185 = vmul.f32 %v1165, %v1183
      %s1186 = scalar_lea.vmem %s280, 52
      %v1187 = vld [vmem:[%s1186] sm:$0xf]
      %v1188 = vunpack.c.l.bf16 %v1187
      %v1189 = vpack.c.bf16 %v1084, %v1084
      %1191 = vrot.lane.b32.xlu0 %v1189, 32
      %v1192 = vpop.permute.xlu0 %1191
      %v1194 = vsel %vm387, %v1192, 0
      %1196 = vmatprep.subr.bf16.mxu0 0
      %1197 = vmatpush1.bf16.msra.mxu0 %v1016
      %1198 = vmatprep.subr.bf16.mxu0 0
      %1199 = vmatpush1.bf16.msra.mxu0 %v1017
      %1200 = vmatprep.subr.bf16.mxu0 0
      %1201 = vmatpush1.bf16.msra.mxu0 0
      %1202 = vmatprep.subr.bf16.mxu0 0
      %1203 = vmatpush1.bf16.msra.mxu0 0
      %1204 = vmatprep.subr.bf16.mxu0 0
      %1205 = vmatpush1.bf16.msra.mxu0 0
      %1206 = vmatprep.subr.bf16.mxu0 0
      %1207 = vmatpush1.bf16.msra.mxu0 0
      %1208 = vmatprep.subr.bf16.mxu0 0
      %1209 = vmatpush1.bf16.msra.mxu0 0
      %1210 = vmatprep.subr.bf16.mxu0 0
      %1211 = vmatpush1.bf16.msra.mxu0 0
      %1212 = vmatprep.subr.bf16.mxu0 0
      %1213 = vmatpush1.bf16.msra.mxu0 0
      %1214 = vmatprep.subr.bf16.mxu0 0
      %1215 = vmatpush1.bf16.msra.mxu0 0
      %1216 = vmatprep.subr.bf16.mxu0 0
      %1217 = vmatpush1.bf16.msra.mxu0 0
      %1218 = vmatprep.subr.bf16.mxu0 0
      %1219 = vmatpush1.bf16.msra.mxu0 0
      %1220 = vmatprep.subr.bf16.mxu0 0
      %1221 = vmatpush1.bf16.msra.mxu0 0
      %1222 = vmatprep.subr.bf16.mxu0 0
      %1223 = vmatpush1.bf16.msra.mxu0 0
      %1224 = vmatprep.subr.bf16.mxu0 0
      %1225 = vmatpush1.bf16.msra.mxu0 0
      %1226 = vmatprep.subr.bf16.mxu0 0
      %1227 = vmatpush1.bf16.msra.mxu0 0
      %1228 = vmatprep.mubr.bf16.mxu0 0
      %1229 = vmatmul.mubr.bf16.gmra.mrb[0].mxu0 %v1194
      %v1230 = vpop.f32.mrb[0].mxu0
      %v1231 = vadd.f32 0.0, %v1230
      %v1232 = vpop.f32.mrb[0].mxu0
      %v1233 = vpop.f32.mrb[0].mxu0
      %v1234 = vpop.f32.mrb[0].mxu0
      %1235 = vdwg.mxu0
      %v1236 = vadd.f32 %v1188, %v1231
      %v1237 = vmul.f32 %v1236, %v326
      %v1238 = vtanh.pop %v1237
      %v1239 = vmul.f32 %v1238, %v326
      %v1240 = vadd.f32 %v1239, %v327
      %v1241 = vmul.f32 %v1240, %v1078
      %1243 = vrot.lane.b32.xlu0 %v1240, 64
      %v1244 = vpop.permute.xlu0 %1243
      %v1246 = vmul.f32 %v1240, %v1244
      %1248 = vrot.lane.b32.xlu0 %v1246, 32
      %v1249 = vpop.permute.xlu0 %1248
      %v1251 = vadd.f32 %v1241, %v1249
      %v1252 = vtanh.pop %v1251
      %1254 = vrot.lane.b32.xlu0 %v1252, 64
      %v1255 = vpop.permute.xlu0 %1254
      %v1257 = vmul.f32 %v1240, %v1255
      %1259 = vrot.lane.b32.xlu0 %v1257, 32
      %v1260 = vpop.permute.xlu0 %1259
      %1263 = vrot.lane.b32.xlu0 %v1185, 64
      %v1264 = vpop.permute.xlu0 %1263
      %v1266 = vsel %vm387, %v1260, %v1264
      %v1267 = vpack.c.bf16 %v1266, %v1266
      %v1269 = vsel %vm487, %v1267, 0
      %1271 = vmatprep.subr.bf16.mxu0 0
      %1272 = vmatpush1.bf16.msra.mxu0 %v1111
      %1273 = vmatprep.subr.bf16.mxu0 0
      %1274 = vmatpush1.bf16.msra.mxu0 %v1112
      %1275 = vmatprep.subr.bf16.mxu0 0
      %1276 = vmatpush1.bf16.msra.mxu0 %v1113
      %1277 = vmatprep.subr.bf16.mxu0 0
      %1278 = vmatpush1.bf16.msra.mxu0 %v1114
      %1279 = vmatprep.subr.bf16.mxu0 0
      %1280 = vmatpush1.bf16.msra.mxu0 0
      %1281 = vmatprep.subr.bf16.mxu0 0
      %1282 = vmatpush1.bf16.msra.mxu0 0
      %1283 = vmatprep.subr.bf16.mxu0 0
      %1284 = vmatpush1.bf16.msra.mxu0 0
      %1285 = vmatprep.subr.bf16.mxu0 0
      %1286 = vmatpush1.bf16.msra.mxu0 0
      %1287 = vmatprep.subr.bf16.mxu0 0
      %1288 = vmatpush1.bf16.msra.mxu0 0
      %1289 = vmatprep.subr.bf16.mxu0 0
      %1290 = vmatpush1.bf16.msra.mxu0 0
      %1291 = vmatprep.subr.bf16.mxu0 0
      %1292 = vmatpush1.bf16.msra.mxu0 0
      %1293 = vmatprep.subr.bf16.mxu0 0
      %1294 = vmatpush1.bf16.msra.mxu0 0
      %1295 = vmatprep.subr.bf16.mxu0 0
      %1296 = vmatpush1.bf16.msra.mxu0 0
      %1297 = vmatprep.subr.bf16.mxu0 0
      %1298 = vmatpush1.bf16.msra.mxu0 0
      %1299 = vmatprep.subr.bf16.mxu0 0
      %1300 = vmatpush1.bf16.msra.mxu0 0
      %1301 = vmatprep.subr.bf16.mxu0 0
      %1302 = vmatpush1.bf16.msra.mxu0 0
      %1303 = vmatprep.mubr.bf16.mxu0 0
      %1304 = vmatmul.mubr.bf16.gmra.mrb[0].mxu0 %v1269
      %v1305 = vpop.f32.mrb[0].mxu0
      %v1306 = vadd.f32 %v367, %v1305
      %v1307 = vpop.f32.mrb[0].mxu0
      %v1308 = vpop.f32.mrb[0].mxu0
      %v1309 = vpop.f32.mrb[0].mxu0
      %1310 = vdwg.mxu0
      %v1311 = vmul.f32 %v1306, %v326
      %v1312 = vtanh.pop %v1311
      %v1313 = vmul.f32 %v1312, %v326
      %v1314 = vadd.f32 %v1313, %v327
      %v1315 = vmul.f32 %v1314, %v1179
      %1317 = vrot.lane.b32.xlu0 %v1314, 64
      %v1318 = vpop.permute.xlu0 %1317
      %v1320 = vmul.f32 %v1314, %v1318
      %1322 = vrot.lane.b32.xlu0 %v1320, 32
      %v1323 = vpop.permute.xlu0 %1322
      %v1325 = vadd.f32 %v1315, %v1323
      %v1326 = vtanh.pop %v1325
      %1328 = vrot.lane.b32.xlu0 %v1326, 64
      %v1329 = vpop.permute.xlu0 %1328
      %v1331 = vmul.f32 %v1314, %v1329
      %s1332 = scalar_lea.vmem %s280, 56
      %v1333 = vld [vmem:[%s1332] sm:$0xf]
      %v1334 = vunpack.c.l.bf16 %v1333
      %v1335 = vpack.c.bf16 %v1257, %v1257
      %1337 = vrot.lane.b32.xlu0 %v1335, 32
      %v1338 = vpop.permute.xlu0 %1337
      %v1340 = vsel %vm387, %v1338, 0
      %1342 = vmatprep.subr.bf16.mxu0 0
      %1343 = vmatpush1.bf16.msra.mxu0 %v1016
      %1344 = vmatprep.subr.bf16.mxu0 0
      %1345 = vmatpush1.bf16.msra.mxu0 %v1017
      %1346 = vmatprep.subr.bf16.mxu0 0
      %1347 = vmatpush1.bf16.msra.mxu0 0
      %1348 = vmatprep.subr.bf16.mxu0 0
      %1349 = vmatpush1.bf16.msra.mxu0 0
      %1350 = vmatprep.subr.bf16.mxu0 0
      %1351 = vmatpush1.bf16.msra.mxu0 0
      %1352 = vmatprep.subr.bf16.mxu0 0
      %1353 = vmatpush1.bf16.msra.mxu0 0
      %1354 = vmatprep.subr.bf16.mxu0 0
      %1355 = vmatpush1.bf16.msra.mxu0 0
      %1356 = vmatprep.subr.bf16.mxu0 0
      %1357 = vmatpush1.bf16.msra.mxu0 0
      %1358 = vmatprep.subr.bf16.mxu0 0
      %1359 = vmatpush1.bf16.msra.mxu0 0
      %1360 = vmatprep.subr.bf16.mxu0 0
      %1361 = vmatpush1.bf16.msra.mxu0 0
      %1362 = vmatprep.subr.bf16.mxu0 0
      %1363 = vmatpush1.bf16.msra.mxu0 0
      %1364 = vmatprep.subr.bf16.mxu0 0
      %1365 = vmatpush1.bf16.msra.mxu0 0
      %1366 = vmatprep.subr.bf16.mxu0 0
      %1367 = vmatpush1.bf16.msra.mxu0 0
      %1368 = vmatprep.subr.bf16.mxu0 0
      %1369 = vmatpush1.bf16.msra.mxu0 0
      %1370 = vmatprep.subr.bf16.mxu0 0
      %1371 = vmatpush1.bf16.msra.mxu0 0
      %1372 = vmatprep.subr.bf16.mxu0 0
      %1373 = vmatpush1.bf16.msra.mxu0 0
      %1374 = vmatprep.mubr.bf16.mxu0 0
      %1375 = vmatmul.mubr.bf16.gmra.mrb[0].mxu0 %v1340
      %v1376 = vpop.f32.mrb[0].mxu0
      %v1377 = vadd.f32 0.0, %v1376
      %v1378 = vpop.f32.mrb[0].mxu0
      %v1379 = vpop.f32.mrb[0].mxu0
      %v1380 = vpop.f32.mrb[0].mxu0
      %1381 = vdwg.mxu0
      %v1382 = vadd.f32 %v1334, %v1377
      %v1383 = vmul.f32 %v1382, %v326
      %v1384 = vtanh.pop %v1383
      %v1385 = vmul.f32 %v1384, %v326
      %v1386 = vadd.f32 %v1385, %v327
      %v1387 = vmul.f32 %v1386, %v1251
      %1389 = vrot.lane.b32.xlu0 %v1386, 64
      %v1390 = vpop.permute.xlu0 %1389
      %v1392 = vmul.f32 %v1386, %v1390
      %1394 = vrot.lane.b32.xlu0 %v1392, 32
      %v1395 = vpop.permute.xlu0 %1394
      %v1397 = vadd.f32 %v1387, %v1395
      %v1398 = vtanh.pop %v1397
      %1400 = vrot.lane.b32.xlu0 %v1398, 64
      %v1401 = vpop.permute.xlu0 %1400
      %v1403 = vmul.f32 %v1386, %v1401
      %1405 = vrot.lane.b32.xlu0 %v1403, 32
      %v1406 = vpop.permute.xlu0 %1405
      %1409 = vrot.lane.b32.xlu0 %v1331, 64
      %v1410 = vpop.permute.xlu0 %1409
      %v1412 = vsel %vm387, %v1406, %v1410
      %v1413 = vpack.c.bf16 %v1412, %v1412
      %v1415 = vsel %vm487, %v1413, 0
      %1417 = vmatprep.subr.bf16.mxu0 0
      %1418 = vmatpush1.bf16.msra.mxu0 %v1111
      %1419 = vmatprep.subr.bf16.mxu0 0
      %1420 = vmatpush1.bf16.msra.mxu0 %v1112
      %1421 = vmatprep.subr.bf16.mxu0 0
      %1422 = vmatpush1.bf16.msra.mxu0 %v1113
      %1423 = vmatprep.subr.bf16.mxu0 0
      %1424 = vmatpush1.bf16.msra.mxu0 %v1114
      %1425 = vmatprep.subr.bf16.mxu0 0
      %1426 = vmatpush1.bf16.msra.mxu0 0
      %1427 = vmatprep.subr.bf16.mxu0 0
      %1428 = vmatpush1.bf16.msra.mxu0 0
      %1429 = vmatprep.subr.bf16.mxu0 0
      %1430 = vmatpush1.bf16.msra.mxu0 0
      %1431 = vmatprep.subr.bf16.mxu0 0
      %1432 = vmatpush1.bf16.msra.mxu0 0
      %1433 = vmatprep.subr.bf16.mxu0 0
      %1434 = vmatpush1.bf16.msra.mxu0 0
      %1435 = vmatprep.subr.bf16.mxu0 0
      %1436 = vmatpush1.bf16.msra.mxu0 0
      %1437 = vmatprep.subr.bf16.mxu0 0
      %1438 = vmatpush1.bf16.msra.mxu0 0
      %1439 = vmatprep.subr.bf16.mxu0 0
      %1440 = vmatpush1.bf16.msra.mxu0 0
      %1441 = vmatprep.subr.bf16.mxu0 0
      %1442 = vmatpush1.bf16.msra.mxu0 0
      %1443 = vmatprep.subr.bf16.mxu0 0
      %1444 = vmatpush1.bf16.msra.mxu0 0
      %1445 = vmatprep.subr.bf16.mxu0 0
      %1446 = vmatpush1.bf16.msra.mxu0 0
      %1447 = vmatprep.subr.bf16.mxu0 0
      %1448 = vmatpush1.bf16.msra.mxu0 0
      %1449 = vmatprep.mubr.bf16.mxu0 0
      %1450 = vmatmul.mubr.bf16.gmra.mrb[0].mxu0 %v1415
      %v1451 = vpop.f32.mrb[0].mxu0
      %v1452 = vadd.f32 %v367, %v1451
      %v1453 = vpop.f32.mrb[0].mxu0
      %v1454 = vpop.f32.mrb[0].mxu0
      %v1455 = vpop.f32.mrb[0].mxu0
      %1456 = vdwg.mxu0
      %v1457 = vmul.f32 %v1452, %v326
      %v1458 = vtanh.pop %v1457
      %v1459 = vmul.f32 %v1458, %v326
      %v1460 = vadd.f32 %v1459, %v327
      %v1461 = vmul.f32 %v1460, %v1325
      %1463 = vrot.lane.b32.xlu0 %v1460, 64
      %v1464 = vpop.permute.xlu0 %1463
      %v1466 = vmul.f32 %v1460, %v1464
      %1468 = vrot.lane.b32.xlu0 %v1466, 32
      %v1469 = vpop.permute.xlu0 %1468
      %v1471 = vadd.f32 %v1461, %v1469
      %v1472 = vtanh.pop %v1471
      %1474 = vrot.lane.b32.xlu0 %v1472, 64
      %v1475 = vpop.permute.xlu0 %1474
      %v1477 = vmul.f32 %v1460, %v1475
      %s1478 = scalar_lea.vmem %s280, 60
      %v1479 = vld [vmem:[%s1478] sm:$0xf]
      %v1480 = vunpack.c.l.bf16 %v1479
      %v1481 = vpack.c.bf16 %v1403, %v1403
      %1483 = vrot.lane.b32.xlu0 %v1481, 32
      %v1484 = vpop.permute.xlu0 %1483
      %v1486 = vsel %vm387, %v1484, 0
      %1488 = vmatprep.subr.bf16.mxu0 0
      %1489 = vmatpush1.bf16.msra.mxu0 %v1016
      %1490 = vmatprep.subr.bf16.mxu0 0
      %1491 = vmatpush1.bf16.msra.mxu0 %v1017
      %1492 = vmatprep.subr.bf16.mxu0 0
      %1493 = vmatpush1.bf16.msra.mxu0 0
      %1494 = vmatprep.subr.bf16.mxu0 0
      %1495 = vmatpush1.bf16.msra.mxu0 0
      %1496 = vmatprep.subr.bf16.mxu0 0
      %1497 = vmatpush1.bf16.msra.mxu0 0
      %1498 = vmatprep.subr.bf16.mxu0 0
      %1499 = vmatpush1.bf16.msra.mxu0 0
      %1500 = vmatprep.subr.bf16.mxu0 0
      %1501 = vmatpush1.bf16.msra.mxu0 0
      %1502 = vmatprep.subr.bf16.mxu0 0
      %1503 = vmatpush1.bf16.msra.mxu0 0
      %1504 = vmatprep.subr.bf16.mxu0 0
      %1505 = vmatpush1.bf16.msra.mxu0 0
      %1506 = vmatprep.subr.bf16.mxu0 0
      %1507 = vmatpush1.bf16.msra.mxu0 0
      %1508 = vmatprep.subr.bf16.mxu0 0
      %1509 = vmatpush1.bf16.msra.mxu0 0
      %1510 = vmatprep.subr.bf16.mxu0 0
      %1511 = vmatpush1.bf16.msra.mxu0 0
      %1512 = vmatprep.subr.bf16.mxu0 0
      %1513 = vmatpush1.bf16.msra.mxu0 0
      %1514 = vmatprep.subr.bf16.mxu0 0
      %1515 = vmatpush1.bf16.msra.mxu0 0
      %1516 = vmatprep.subr.bf16.mxu0 0
      %1517 = vmatpush1.bf16.msra.mxu0 0
      %1518 = vmatprep.subr.bf16.mxu0 0
      %1519 = vmatpush1.bf16.msra.mxu0 0
      %1520 = vmatprep.mubr.bf16.mxu0 0
      %1521 = vmatmul.mubr.bf16.gmra.mrb[0].mxu0 %v1486
      %v1522 = vpop.f32.mrb[0].mxu0
      %v1523 = vadd.f32 0.0, %v1522
      %v1524 = vpop.f32.mrb[0].mxu0
      %v1525 = vpop.f32.mrb[0].mxu0
      %v1526 = vpop.f32.mrb[0].mxu0
      %1527 = vdwg.mxu0
      %v1528 = vadd.f32 %v1480, %v1523
      %v1529 = vmul.f32 %v1528, %v326
      %v1530 = vtanh.pop %v1529
      %v1531 = vmul.f32 %v1530, %v326
      %v1532 = vadd.f32 %v1531, %v327
      %v1533 = vmul.f32 %v1532, %v1397
      %1535 = vrot.lane.b32.xlu0 %v1532, 64
      %v1536 = vpop.permute.xlu0 %1535
      %v1538 = vmul.f32 %v1532, %v1536
      %1540 = vrot.lane.b32.xlu0 %v1538, 32
      %v1541 = vpop.permute.xlu0 %1540
      %v1543 = vadd.f32 %v1533, %v1541
      %v1544 = vtanh.pop %v1543
      %1546 = vrot.lane.b32.xlu0 %v1544, 64
      %v1547 = vpop.permute.xlu0 %1546
      %v1549 = vmul.f32 %v1532, %v1547
      %1551 = vrot.lane.b32.xlu0 %v1549, 32
      %v1552 = vpop.permute.xlu0 %1551
      %1555 = vrot.lane.b32.xlu0 %v1477, 64
      %v1556 = vpop.permute.xlu0 %1555
      %v1558 = vsel %vm387, %v1552, %v1556
      %v1559 = vpack.c.bf16 %v1558, %v1558
      %v1561 = vsel %vm487, %v1559, 0
      %1563 = vmatprep.subr.bf16.mxu0 0
      %1564 = vmatpush1.bf16.msra.mxu0 %v1111
      %1565 = vmatprep.subr.bf16.mxu0 0
      %1566 = vmatpush1.bf16.msra.mxu0 %v1112
      %1567 = vmatprep.subr.bf16.mxu0 0
      %1568 = vmatpush1.bf16.msra.mxu0 %v1113
      %1569 = vmatprep.subr.bf16.mxu0 0
      %1570 = vmatpush1.bf16.msra.mxu0 %v1114
      %1571 = vmatprep.subr.bf16.mxu0 0
      %1572 = vmatpush1.bf16.msra.mxu0 0
      %1573 = vmatprep.subr.bf16.mxu0 0
      %1574 = vmatpush1.bf16.msra.mxu0 0
      %1575 = vmatprep.subr.bf16.mxu0 0
      %1576 = vmatpush1.bf16.msra.mxu0 0
      %1577 = vmatprep.subr.bf16.mxu0 0
      %1578 = vmatpush1.bf16.msra.mxu0 0
      %1579 = vmatprep.subr.bf16.mxu0 0
      %1580 = vmatpush1.bf16.msra.mxu0 0
      %1581 = vmatprep.subr.bf16.mxu0 0
      %1582 = vmatpush1.bf16.msra.mxu0 0
      %1583 = vmatprep.subr.bf16.mxu0 0
      %1584 = vmatpush1.bf16.msra.mxu0 0
      %1585 = vmatprep.subr.bf16.mxu0 0
      %1586 = vmatpush1.bf16.msra.mxu0 0
      %1587 = vmatprep.subr.bf16.mxu0 0
      %1588 = vmatpush1.bf16.msra.mxu0 0
      %1589 = vmatprep.subr.bf16.mxu0 0
      %1590 = vmatpush1.bf16.msra.mxu0 0
      %1591 = vmatprep.subr.bf16.mxu0 0
      %1592 = vmatpush1.bf16.msra.mxu0 0
      %1593 = vmatprep.subr.bf16.mxu0 0
      %1594 = vmatpush1.bf16.msra.mxu0 0
      %1595 = vmatprep.mubr.bf16.mxu0 0
      %1596 = vmatmul.mubr.bf16.gmra.mrb[0].mxu0 %v1561
      %v1597 = vpop.f32.mrb[0].mxu0
      %v1598 = vadd.f32 %v367, %v1597
      %v1599 = vpop.f32.mrb[0].mxu0
      %v1600 = vpop.f32.mrb[0].mxu0
      %v1601 = vpop.f32.mrb[0].mxu0
      %1602 = vdwg.mxu0
      %v1603 = vmul.f32 %v1598, %v326
      %v1604 = vtanh.pop %v1603
      %v1605 = vmul.f32 %v1604, %v326
      %v1606 = vadd.f32 %v1605, %v327
      %v1607 = vmul.f32 %v1606, %v1471
      %1609 = vrot.lane.b32.xlu0 %v1606, 64
      %v1610 = vpop.permute.xlu0 %1609
      %v1612 = vmul.f32 %v1606, %v1610
      %1614 = vrot.lane.b32.xlu0 %v1612, 32
      %v1615 = vpop.permute.xlu0 %1614
      %v1617 = vadd.f32 %v1607, %v1615
      %v1618 = vtanh.pop %v1617
      %1620 = vrot.lane.b32.xlu0 %v1618, 64
      %v1621 = vpop.permute.xlu0 %1620
      %v1623 = vmul.f32 %v1606, %v1621
      %1624 = vrot.lane.b32.xlu0 %v1185, 32
      %v1625 = vpop.permute.xlu0 %1624
      %1627 = vrot.lane.b32.xlu0 %v1477, 96
      %v1628 = vpop.permute.xlu0 %1627
      %v1630 = vsel %vm387, %v1625, %v1410
      %v1631 = vsel %vm487, %v1630, %v1628
      %v1632 = vsel %vm1001, %v1631, %v1623
      %s1633 = scalar_lea.vmem %s311, 24
      %1634 = vst [vmem:[%s1633] sm:$0xff] %v1632
      %s1635 = scalar_lea.vmem %s280, 16
      %v1636 = vld [vmem:[%s1635] sm:$0xf]
      %v1637 = vunpack.c.l.bf16 %v1636
      %v1638 = vpack.c.bf16 %v918, %v918
      %1640 = vrot.lane.b32.xlu0 %v1638, 32
      %v1641 = vpop.permute.xlu0 %1640
      %v1643 = vsel %vm387, %v1641, 0
      %1645 = vmatprep.subr.bf16.mxu0 0
      %1646 = vmatpush1.bf16.msra.mxu0 %v383
      %1647 = vmatprep.subr.bf16.mxu0 0
      %1648 = vmatpush1.bf16.msra.mxu0 %v384
      %1649 = vmatprep.subr.bf16.mxu0 0
      %1650 = vmatpush1.bf16.msra.mxu0 0
      %1651 = vmatprep.subr.bf16.mxu0 0
      %1652 = vmatpush1.bf16.msra.mxu0 0
      %1653 = vmatprep.subr.bf16.mxu0 0
      %1654 = vmatpush1.bf16.msra.mxu0 0
      %1655 = vmatprep.subr.bf16.mxu0 0
      %1656 = vmatpush1.bf16.msra.mxu0 0
      %1657 = vmatprep.subr.bf16.mxu0 0
      %1658 = vmatpush1.bf16.msra.mxu0 0
      %1659 = vmatprep.subr.bf16.mxu0 0
      %1660 = vmatpush1.bf16.msra.mxu0 0
      %1661 = vmatprep.subr.bf16.mxu0 0
      %1662 = vmatpush1.bf16.msra.mxu0 0
      %1663 = vmatprep.subr.bf16.mxu0 0
      %1664 = vmatpush1.bf16.msra.mxu0 0
      %1665 = vmatprep.subr.bf16.mxu0 0
      %1666 = vmatpush1.bf16.msra.mxu0 0
      %1667 = vmatprep.subr.bf16.mxu0 0
      %1668 = vmatpush1.bf16.msra.mxu0 0
      %1669 = vmatprep.subr.bf16.mxu0 0
      %1670 = vmatpush1.bf16.msra.mxu0 0
      %1671 = vmatprep.subr.bf16.mxu0 0
      %1672 = vmatpush1.bf16.msra.mxu0 0
      %1673 = vmatprep.subr.bf16.mxu0 0
      %1674 = vmatpush1.bf16.msra.mxu0 0
      %1675 = vmatprep.subr.bf16.mxu0 0
      %1676 = vmatpush1.bf16.msra.mxu0 0
      %1677 = vmatprep.mubr.bf16.mxu0 0
      %1678 = vmatmul.mubr.bf16.gmra.mrb[0].mxu0 %v1643
      %v1679 = vpop.f32.mrb[0].mxu0
      %v1680 = vadd.f32 0.0, %v1679
      %v1681 = vpop.f32.mrb[0].mxu0
      %v1682 = vpop.f32.mrb[0].mxu0
      %v1683 = vpop.f32.mrb[0].mxu0
      %1684 = vdwg.mxu0
      %v1685 = vadd.f32 %v1637, %v1680
      %v1686 = vmul.f32 %v1685, %v326
      %v1687 = vtanh.pop %v1686
      %v1688 = vmul.f32 %v1687, %v326
      %v1689 = vadd.f32 %v1688, %v327
      %v1690 = vmul.f32 %v1689, %v912
      %1692 = vrot.lane.b32.xlu0 %v1689, 64
      %v1693 = vpop.permute.xlu0 %1692
      %v1695 = vmul.f32 %v1689, %v1693
      %1697 = vrot.lane.b32.xlu0 %v1695, 32
      %v1698 = vpop.permute.xlu0 %1697
      %v1700 = vadd.f32 %v1690, %v1698
      %v1701 = vtanh.pop %v1700
      %1703 = vrot.lane.b32.xlu0 %v1701, 64
      %v1704 = vpop.permute.xlu0 %1703
      %v1706 = vmul.f32 %v1689, %v1704
      %1708 = vrot.lane.b32.xlu0 %v1706, 32
      %v1709 = vpop.permute.xlu0 %1708
      %1712 = vrot.lane.b32.xlu0 %v992, 64
      %v1713 = vpop.permute.xlu0 %1712
      %v1715 = vsel %vm387, %v1709, %v1713
      %v1716 = vpack.c.bf16 %v1715, %v1715
      %v1718 = vsel %vm487, %v1716, 0
      %1720 = vmatprep.subr.bf16.mxu0 0
      %1721 = vmatpush1.bf16.msra.mxu0 %v479
      %1722 = vmatprep.subr.bf16.mxu0 0
      %1723 = vmatpush1.bf16.msra.mxu0 %v480
      %1724 = vmatprep.subr.bf16.mxu0 0
      %1725 = vmatpush1.bf16.msra.mxu0 %v481
      %1726 = vmatprep.subr.bf16.mxu0 0
      %1727 = vmatpush1.bf16.msra.mxu0 %v482
      %1728 = vmatprep.subr.bf16.mxu0 0
      %1729 = vmatpush1.bf16.msra.mxu0 0
      %1730 = vmatprep.subr.bf16.mxu0 0
      %1731 = vmatpush1.bf16.msra.mxu0 0
      %1732 = vmatprep.subr.bf16.mxu0 0
      %1733 = vmatpush1.bf16.msra.mxu0 0
      %1734 = vmatprep.subr.bf16.mxu0 0
      %1735 = vmatpush1.bf16.msra.mxu0 0
      %1736 = vmatprep.subr.bf16.mxu0 0
      %1737 = vmatpush1.bf16.msra.mxu0 0
      %1738 = vmatprep.subr.bf16.mxu0 0
      %1739 = vmatpush1.bf16.msra.mxu0 0
      %1740 = vmatprep.subr.bf16.mxu0 0
      %1741 = vmatpush1.bf16.msra.mxu0 0
      %1742 = vmatprep.subr.bf16.mxu0 0
      %1743 = vmatpush1.bf16.msra.mxu0 0
      %1744 = vmatprep.subr.bf16.mxu0 0
      %1745 = vmatpush1.bf16.msra.mxu0 0
      %1746 = vmatprep.subr.bf16.mxu0 0
      %1747 = vmatpush1.bf16.msra.mxu0 0
      %1748 = vmatprep.subr.bf16.mxu0 0
      %1749 = vmatpush1.bf16.msra.mxu0 0
      %1750 = vmatprep.subr.bf16.mxu0 0
      %1751 = vmatpush1.bf16.msra.mxu0 0
      %1752 = vmatprep.mubr.bf16.mxu0 0
      %1753 = vmatmul.mubr.bf16.gmra.mrb[0].mxu0 %v1718
      %v1754 = vpop.f32.mrb[0].mxu0
      %v1755 = vadd.f32 %v359, %v1754
      %v1756 = vpop.f32.mrb[0].mxu0
      %v1757 = vpop.f32.mrb[0].mxu0
      %v1758 = vpop.f32.mrb[0].mxu0
      %1759 = vdwg.mxu0
      %v1760 = vmul.f32 %v1755, %v326
      %v1761 = vtanh.pop %v1760
      %v1762 = vmul.f32 %v1761, %v326
      %v1763 = vadd.f32 %v1762, %v327
      %v1764 = vmul.f32 %v1763, %v986
      %1766 = vrot.lane.b32.xlu0 %v1763, 64
      %v1767 = vpop.permute.xlu0 %1766
      %v1769 = vmul.f32 %v1763, %v1767
      %1771 = vrot.lane.b32.xlu0 %v1769, 32
      %v1772 = vpop.permute.xlu0 %1771
      %v1774 = vadd.f32 %v1764, %v1772
      %v1775 = vtanh.pop %v1774
      %1777 = vrot.lane.b32.xlu0 %v1775, 64
      %v1778 = vpop.permute.xlu0 %1777
      %v1780 = vmul.f32 %v1763, %v1778
      %s1781 = scalar_lea.vmem %s280, 20
      %v1782 = vld [vmem:[%s1781] sm:$0xf]
      %v1783 = vunpack.c.l.bf16 %v1782
      %v1784 = vpack.c.bf16 %v1706, %v1706
      %1786 = vrot.lane.b32.xlu0 %v1784, 32
      %v1787 = vpop.permute.xlu0 %1786
      %v1789 = vsel %vm387, %v1787, 0
      %1791 = vmatprep.subr.bf16.mxu0 0
      %1792 = vmatpush1.bf16.msra.mxu0 %v383
      %1793 = vmatprep.subr.bf16.mxu0 0
      %1794 = vmatpush1.bf16.msra.mxu0 %v384
      %1795 = vmatprep.subr.bf16.mxu0 0
      %1796 = vmatpush1.bf16.msra.mxu0 0
      %1797 = vmatprep.subr.bf16.mxu0 0
      %1798 = vmatpush1.bf16.msra.mxu0 0
      %1799 = vmatprep.subr.bf16.mxu0 0
      %1800 = vmatpush1.bf16.msra.mxu0 0
      %1801 = vmatprep.subr.bf16.mxu0 0
      %1802 = vmatpush1.bf16.msra.mxu0 0
      %1803 = vmatprep.subr.bf16.mxu0 0
      %1804 = vmatpush1.bf16.msra.mxu0 0
      %1805 = vmatprep.subr.bf16.mxu0 0
      %1806 = vmatpush1.bf16.msra.mxu0 0
      %1807 = vmatprep.subr.bf16.mxu0 0
      %1808 = vmatpush1.bf16.msra.mxu0 0
      %1809 = vmatprep.subr.bf16.mxu0 0
      %1810 = vmatpush1.bf16.msra.mxu0 0
      %1811 = vmatprep.subr.bf16.mxu0 0
      %1812 = vmatpush1.bf16.msra.mxu0 0
      %1813 = vmatprep.subr.bf16.mxu0 0
      %1814 = vmatpush1.bf16.msra.mxu0 0
      %1815 = vmatprep.subr.bf16.mxu0 0
      %1816 = vmatpush1.bf16.msra.mxu0 0
      %1817 = vmatprep.subr.bf16.mxu0 0
      %1818 = vmatpush1.bf16.msra.mxu0 0
      %1819 = vmatprep.subr.bf16.mxu0 0
      %1820 = vmatpush1.bf16.msra.mxu0 0
      %1821 = vmatprep.subr.bf16.mxu0 0
      %1822 = vmatpush1.bf16.msra.mxu0 0
      %1823 = vmatprep.mubr.bf16.mxu0 0
      %1824 = vmatmul.mubr.bf16.gmra.mrb[0].mxu0 %v1789
      %v1825 = vpop.f32.mrb[0].mxu0
      %v1826 = vadd.f32 0.0, %v1825
      %v1827 = vpop.f32.mrb[0].mxu0
      %v1828 = vpop.f32.mrb[0].mxu0
      %v1829 = vpop.f32.mrb[0].mxu0
      %1830 = vdwg.mxu0
      %v1831 = vadd.f32 %v1783, %v1826
      %v1832 = vmul.f32 %v1831, %v326
      %v1833 = vtanh.pop %v1832
      %v1834 = vmul.f32 %v1833, %v326
      %v1835 = vadd.f32 %v1834, %v327
      %v1836 = vmul.f32 %v1835, %v1700
      %1838 = vrot.lane.b32.xlu0 %v1835, 64
      %v1839 = vpop.permute.xlu0 %1838
      %v1841 = vmul.f32 %v1835, %v1839
      %1843 = vrot.lane.b32.xlu0 %v1841, 32
      %v1844 = vpop.permute.xlu0 %1843
      %v1846 = vadd.f32 %v1836, %v1844
      %v1847 = vtanh.pop %v1846
      %1849 = vrot.lane.b32.xlu0 %v1847, 64
      %v1850 = vpop.permute.xlu0 %1849
      %v1852 = vmul.f32 %v1835, %v1850
      %1854 = vrot.lane.b32.xlu0 %v1852, 32
      %v1855 = vpop.permute.xlu0 %1854
      %1858 = vrot.lane.b32.xlu0 %v1780, 64
      %v1859 = vpop.permute.xlu0 %1858
      %v1861 = vsel %vm387, %v1855, %v1859
      %v1862 = vpack.c.bf16 %v1861, %v1861
      %v1864 = vsel %vm487, %v1862, 0
      %1866 = vmatprep.subr.bf16.mxu0 0
      %1867 = vmatpush1.bf16.msra.mxu0 %v479
      %1868 = vmatprep.subr.bf16.mxu0 0
      %1869 = vmatpush1.bf16.msra.mxu0 %v480
      %1870 = vmatprep.subr.bf16.mxu0 0
      %1871 = vmatpush1.bf16.msra.mxu0 %v481
      %1872 = vmatprep.subr.bf16.mxu0 0
      %1873 = vmatpush1.bf16.msra.mxu0 %v482
      %1874 = vmatprep.subr.bf16.mxu0 0
      %1875 = vmatpush1.bf16.msra.mxu0 0
      %1876 = vmatprep.subr.bf16.mxu0 0
      %1877 = vmatpush1.bf16.msra.mxu0 0
      %1878 = vmatprep.subr.bf16.mxu0 0
      %1879 = vmatpush1.bf16.msra.mxu0 0
      %1880 = vmatprep.subr.bf16.mxu0 0
      %1881 = vmatpush1.bf16.msra.mxu0 0
      %1882 = vmatprep.subr.bf16.mxu0 0
      %1883 = vmatpush1.bf16.msra.mxu0 0
      %1884 = vmatprep.subr.bf16.mxu0 0
      %1885 = vmatpush1.bf16.msra.mxu0 0
      %1886 = vmatprep.subr.bf16.mxu0 0
      %1887 = vmatpush1.bf16.msra.mxu0 0
      %1888 = vmatprep.subr.bf16.mxu0 0
      %1889 = vmatpush1.bf16.msra.mxu0 0
      %1890 = vmatprep.subr.bf16.mxu0 0
      %1891 = vmatpush1.bf16.msra.mxu0 0
      %1892 = vmatprep.subr.bf16.mxu0 0
      %1893 = vmatpush1.bf16.msra.mxu0 0
      %1894 = vmatprep.subr.bf16.mxu0 0
      %1895 = vmatpush1.bf16.msra.mxu0 0
      %1896 = vmatprep.subr.bf16.mxu0 0
      %1897 = vmatpush1.bf16.msra.mxu0 0
      %1898 = vmatprep.mubr.bf16.mxu0 0
      %1899 = vmatmul.mubr.bf16.gmra.mrb[0].mxu0 %v1864
      %v1900 = vpop.f32.mrb[0].mxu0
      %v1901 = vadd.f32 %v359, %v1900
      %v1902 = vpop.f32.mrb[0].mxu0
      %v1903 = vpop.f32.mrb[0].mxu0
      %v1904 = vpop.f32.mrb[0].mxu0
      %1905 = vdwg.mxu0
      %v1906 = vmul.f32 %v1901, %v326
      %v1907 = vtanh.pop %v1906
      %v1908 = vmul.f32 %v1907, %v326
      %v1909 = vadd.f32 %v1908, %v327
      %v1910 = vmul.f32 %v1909, %v1774
      %1912 = vrot.lane.b32.xlu0 %v1909, 64
      %v1913 = vpop.permute.xlu0 %1912
      %v1915 = vmul.f32 %v1909, %v1913
      %1917 = vrot.lane.b32.xlu0 %v1915, 32
      %v1918 = vpop.permute.xlu0 %1917
      %v1920 = vadd.f32 %v1910, %v1918
      %v1921 = vtanh.pop %v1920
      %1923 = vrot.lane.b32.xlu0 %v1921, 64
      %v1924 = vpop.permute.xlu0 %1923
      %v1926 = vmul.f32 %v1909, %v1924
      %s1927 = scalar_lea.vmem %s280, 24
      %v1928 = vld [vmem:[%s1927] sm:$0xf]
      %v1929 = vunpack.c.l.bf16 %v1928
      %v1930 = vpack.c.bf16 %v1852, %v1852
      %1932 = vrot.lane.b32.xlu0 %v1930, 32
      %v1933 = vpop.permute.xlu0 %1932
      %v1935 = vsel %vm387, %v1933, 0
      %1937 = vmatprep.subr.bf16.mxu0 0
      %1938 = vmatpush1.bf16.msra.mxu0 %v383
      %1939 = vmatprep.subr.bf16.mxu0 0
      %1940 = vmatpush1.bf16.msra.mxu0 %v384
      %1941 = vmatprep.subr.bf16.mxu0 0
      %1942 = vmatpush1.bf16.msra.mxu0 0
      %1943 = vmatprep.subr.bf16.mxu0 0
      %1944 = vmatpush1.bf16.msra.mxu0 0
      %1945 = vmatprep.subr.bf16.mxu0 0
      %1946 = vmatpush1.bf16.msra.mxu0 0
      %1947 = vmatprep.subr.bf16.mxu0 0
      %1948 = vmatpush1.bf16.msra.mxu0 0
      %1949 = vmatprep.subr.bf16.mxu0 0
      %1950 = vmatpush1.bf16.msra.mxu0 0
      %1951 = vmatprep.subr.bf16.mxu0 0
      %1952 = vmatpush1.bf16.msra.mxu0 0
      %1953 = vmatprep.subr.bf16.mxu0 0
      %1954 = vmatpush1.bf16.msra.mxu0 0
      %1955 = vmatprep.subr.bf16.mxu0 0
      %1956 = vmatpush1.bf16.msra.mxu0 0
      %1957 = vmatprep.subr.bf16.mxu0 0
      %1958 = vmatpush1.bf16.msra.mxu0 0
      %1959 = vmatprep.subr.bf16.mxu0 0
      %1960 = vmatpush1.bf16.msra.mxu0 0
      %1961 = vmatprep.subr.bf16.mxu0 0
      %1962 = vmatpush1.bf16.msra.mxu0 0
      %1963 = vmatprep.subr.bf16.mxu0 0
      %1964 = vmatpush1.bf16.msra.mxu0 0
      %1965 = vmatprep.subr.bf16.mxu0 0
      %1966 = vmatpush1.bf16.msra.mxu0 0
      %1967 = vmatprep.subr.bf16.mxu0 0
      %1968 = vmatpush1.bf16.msra.mxu0 0
      %1969 = vmatprep.mubr.bf16.mxu0 0
      %1970 = vmatmul.mubr.bf16.gmra.mrb[0].mxu0 %v1935
      %v1971 = vpop.f32.mrb[0].mxu0
      %v1972 = vadd.f32 0.0, %v1971
      %v1973 = vpop.f32.mrb[0].mxu0
      %v1974 = vpop.f32.mrb[0].mxu0
      %v1975 = vpop.f32.mrb[0].mxu0
      %1976 = vdwg.mxu0
      %v1977 = vadd.f32 %v1929, %v1972
      %v1978 = vmul.f32 %v1977, %v326
      %v1979 = vtanh.pop %v1978
      %v1980 = vmul.f32 %v1979, %v326
      %v1981 = vadd.f32 %v1980, %v327
      %v1982 = vmul.f32 %v1981, %v1846
      %1984 = vrot.lane.b32.xlu0 %v1981, 64
      %v1985 = vpop.permute.xlu0 %1984
      %v1987 = vmul.f32 %v1981, %v1985
      %1989 = vrot.lane.b32.xlu0 %v1987, 32
      %v1990 = vpop.permute.xlu0 %1989
      %v1992 = vadd.f32 %v1982, %v1990
      %v1993 = vtanh.pop %v1992
      %1995 = vrot.lane.b32.xlu0 %v1993, 64
      %v1996 = vpop.permute.xlu0 %1995
      %v1998 = vmul.f32 %v1981, %v1996
      %2000 = vrot.lane.b32.xlu0 %v1998, 32
      %v2001 = vpop.permute.xlu0 %2000
      %2004 = vrot.lane.b32.xlu0 %v1926, 64
      %v2005 = vpop.permute.xlu0 %2004
      %v2007 = vsel %vm387, %v2001, %v2005
      %v2008 = vpack.c.bf16 %v2007, %v2007
      %v2010 = vsel %vm487, %v2008, 0
      %2012 = vmatprep.subr.bf16.mxu0 0
      %2013 = vmatpush1.bf16.msra.mxu0 %v479
      %2014 = vmatprep.subr.bf16.mxu0 0
      %2015 = vmatpush1.bf16.msra.mxu0 %v480
      %2016 = vmatprep.subr.bf16.mxu0 0
      %2017 = vmatpush1.bf16.msra.mxu0 %v481
      %2018 = vmatprep.subr.bf16.mxu0 0
      %2019 = vmatpush1.bf16.msra.mxu0 %v482
      %2020 = vmatprep.subr.bf16.mxu0 0
      %2021 = vmatpush1.bf16.msra.mxu0 0
      %2022 = vmatprep.subr.bf16.mxu0 0
      %2023 = vmatpush1.bf16.msra.mxu0 0
      %2024 = vmatprep.subr.bf16.mxu0 0
      %2025 = vmatpush1.bf16.msra.mxu0 0
      %2026 = vmatprep.subr.bf16.mxu0 0
      %2027 = vmatpush1.bf16.msra.mxu0 0
      %2028 = vmatprep.subr.bf16.mxu0 0
      %2029 = vmatpush1.bf16.msra.mxu0 0
      %2030 = vmatprep.subr.bf16.mxu0 0
      %2031 = vmatpush1.bf16.msra.mxu0 0
      %2032 = vmatprep.subr.bf16.mxu0 0
      %2033 = vmatpush1.bf16.msra.mxu0 0
      %2034 = vmatprep.subr.bf16.mxu0 0
      %2035 = vmatpush1.bf16.msra.mxu0 0
      %2036 = vmatprep.subr.bf16.mxu0 0
      %2037 = vmatpush1.bf16.msra.mxu0 0
      %2038 = vmatprep.subr.bf16.mxu0 0
      %2039 = vmatpush1.bf16.msra.mxu0 0
      %2040 = vmatprep.subr.bf16.mxu0 0
      %2041 = vmatpush1.bf16.msra.mxu0 0
      %2042 = vmatprep.subr.bf16.mxu0 0
      %2043 = vmatpush1.bf16.msra.mxu0 0
      %2044 = vmatprep.mubr.bf16.mxu0 0
      %2045 = vmatmul.mubr.bf16.gmra.mrb[0].mxu0 %v2010
      %v2046 = vpop.f32.mrb[0].mxu0
      %v2047 = vadd.f32 %v359, %v2046
      %v2048 = vpop.f32.mrb[0].mxu0
      %v2049 = vpop.f32.mrb[0].mxu0
      %v2050 = vpop.f32.mrb[0].mxu0
      %2051 = vdwg.mxu0
      %v2052 = vmul.f32 %v2047, %v326
      %v2053 = vtanh.pop %v2052
      %v2054 = vmul.f32 %v2053, %v326
      %v2055 = vadd.f32 %v2054, %v327
      %v2056 = vmul.f32 %v2055, %v1920
      %2058 = vrot.lane.b32.xlu0 %v2055, 64
      %v2059 = vpop.permute.xlu0 %2058
      %v2061 = vmul.f32 %v2055, %v2059
      %2063 = vrot.lane.b32.xlu0 %v2061, 32
      %v2064 = vpop.permute.xlu0 %2063
      %v2066 = vadd.f32 %v2056, %v2064
      %v2067 = vtanh.pop %v2066
      %2069 = vrot.lane.b32.xlu0 %v2067, 64
      %v2070 = vpop.permute.xlu0 %2069
      %v2072 = vmul.f32 %v2055, %v2070
      %s2073 = scalar_lea.vmem %s280, 28
      %v2074 = vld [vmem:[%s2073] sm:$0xf]
      %v2075 = vunpack.c.l.bf16 %v2074
      %v2076 = vpack.c.bf16 %v1998, %v1998
      %2078 = vrot.lane.b32.xlu0 %v2076, 32
      %v2079 = vpop.permute.xlu0 %2078
      %v2081 = vsel %vm387, %v2079, 0
      %2083 = vmatprep.subr.bf16.mxu0 0
      %2084 = vmatpush1.bf16.msra.mxu0 %v383
      %2085 = vmatprep.subr.bf16.mxu0 0
      %2086 = vmatpush1.bf16.msra.mxu0 %v384
      %2087 = vmatprep.subr.bf16.mxu0 0
      %2088 = vmatpush1.bf16.msra.mxu0 0
      %2089 = vmatprep.subr.bf16.mxu0 0
      %2090 = vmatpush1.bf16.msra.mxu0 0
      %2091 = vmatprep.subr.bf16.mxu0 0
      %2092 = vmatpush1.bf16.msra.mxu0 0
      %2093 = vmatprep.subr.bf16.mxu0 0
      %2094 = vmatpush1.bf16.msra.mxu0 0
      %2095 = vmatprep.subr.bf16.mxu0 0
      %2096 = vmatpush1.bf16.msra.mxu0 0
      %2097 = vmatprep.subr.bf16.mxu0 0
      %2098 = vmatpush1.bf16.msra.mxu0 0
      %2099 = vmatprep.subr.bf16.mxu0 0
      %2100 = vmatpush1.bf16.msra.mxu0 0
      %2101 = vmatprep.subr.bf16.mxu0 0
      %2102 = vmatpush1.bf16.msra.mxu0 0
      %2103 = vmatprep.subr.bf16.mxu0 0
      %2104 = vmatpush1.bf16.msra.mxu0 0
      %2105 = vmatprep.subr.bf16.mxu0 0
      %2106 = vmatpush1.bf16.msra.mxu0 0
      %2107 = vmatprep.subr.bf16.mxu0 0
      %2108 = vmatpush1.bf16.msra.mxu0 0
      %2109 = vmatprep.subr.bf16.mxu0 0
      %2110 = vmatpush1.bf16.msra.mxu0 0
      %2111 = vmatprep.subr.bf16.mxu0 0
      %2112 = vmatpush1.bf16.msra.mxu0 0
      %2113 = vmatprep.subr.bf16.mxu0 0
      %2114 = vmatpush1.bf16.msra.mxu0 0
      %2115 = vmatprep.mubr.bf16.mxu0 0
      %2116 = vmatmul.mubr.bf16.gmra.mrb[0].mxu0 %v2081
      %v2117 = vpop.f32.mrb[0].mxu0
      %v2118 = vadd.f32 0.0, %v2117
      %v2119 = vpop.f32.mrb[0].mxu0
      %v2120 = vpop.f32.mrb[0].mxu0
      %v2121 = vpop.f32.mrb[0].mxu0
      %2122 = vdwg.mxu0
      %v2123 = vadd.f32 %v2075, %v2118
      %v2124 = vmul.f32 %v2123, %v326
      %v2125 = vtanh.pop %v2124
      %v2126 = vmul.f32 %v2125, %v326
      %v2127 = vadd.f32 %v2126, %v327
      %v2128 = vmul.f32 %v2127, %v1992
      %2130 = vrot.lane.b32.xlu0 %v2127, 64
      %v2131 = vpop.permute.xlu0 %2130
      %v2133 = vmul.f32 %v2127, %v2131
      %2135 = vrot.lane.b32.xlu0 %v2133, 32
      %v2136 = vpop.permute.xlu0 %2135
      %v2138 = vadd.f32 %v2128, %v2136
      %v2139 = vtanh.pop %v2138
      %2141 = vrot.lane.b32.xlu0 %v2139, 64
      %v2142 = vpop.permute.xlu0 %2141
      %v2144 = vmul.f32 %v2127, %v2142
      %2146 = vrot.lane.b32.xlu0 %v2144, 32
      %v2147 = vpop.permute.xlu0 %2146
      %2150 = vrot.lane.b32.xlu0 %v2072, 64
      %v2151 = vpop.permute.xlu0 %2150
      %v2153 = vsel %vm387, %v2147, %v2151
      %v2154 = vpack.c.bf16 %v2153, %v2153
      %v2156 = vsel %vm487, %v2154, 0
      %2158 = vmatprep.subr.bf16.mxu0 0
      %2159 = vmatpush1.bf16.msra.mxu0 %v479
      %2160 = vmatprep.subr.bf16.mxu0 0
      %2161 = vmatpush1.bf16.msra.mxu0 %v480
      %2162 = vmatprep.subr.bf16.mxu0 0
      %2163 = vmatpush1.bf16.msra.mxu0 %v481
      %2164 = vmatprep.subr.bf16.mxu0 0
      %2165 = vmatpush1.bf16.msra.mxu0 %v482
      %2166 = vmatprep.subr.bf16.mxu0 0
      %2167 = vmatpush1.bf16.msra.mxu0 0
      %2168 = vmatprep.subr.bf16.mxu0 0
      %2169 = vmatpush1.bf16.msra.mxu0 0
      %2170 = vmatprep.subr.bf16.mxu0 0
      %2171 = vmatpush1.bf16.msra.mxu0 0
      %2172 = vmatprep.subr.bf16.mxu0 0
      %2173 = vmatpush1.bf16.msra.mxu0 0
      %2174 = vmatprep.subr.bf16.mxu0 0
      %2175 = vmatpush1.bf16.msra.mxu0 0
      %2176 = vmatprep.subr.bf16.mxu0 0
      %2177 = vmatpush1.bf16.msra.mxu0 0
      %2178 = vmatprep.subr.bf16.mxu0 0
      %2179 = vmatpush1.bf16.msra.mxu0 0
      %2180 = vmatprep.subr.bf16.mxu0 0
      %2181 = vmatpush1.bf16.msra.mxu0 0
      %2182 = vmatprep.subr.bf16.mxu0 0
      %2183 = vmatpush1.bf16.msra.mxu0 0
      %2184 = vmatprep.subr.bf16.mxu0 0
      %2185 = vmatpush1.bf16.msra.mxu0 0
      %2186 = vmatprep.subr.bf16.mxu0 0
      %2187 = vmatpush1.bf16.msra.mxu0 0
      %2188 = vmatprep.subr.bf16.mxu0 0
      %2189 = vmatpush1.bf16.msra.mxu0 0
      %2190 = vmatprep.mubr.bf16.mxu0 0
      %2191 = vmatmul.mubr.bf16.gmra.mrb[0].mxu0 %v2156
      %v2192 = vpop.f32.mrb[0].mxu0
      %v2193 = vadd.f32 %v359, %v2192
      %v2194 = vpop.f32.mrb[0].mxu0
      %v2195 = vpop.f32.mrb[0].mxu0
      %v2196 = vpop.f32.mrb[0].mxu0
      %2197 = vdwg.mxu0
      %v2198 = vmul.f32 %v2193, %v326
      %v2199 = vtanh.pop %v2198
      %v2200 = vmul.f32 %v2199, %v326
      %v2201 = vadd.f32 %v2200, %v327
      %v2202 = vmul.f32 %v2201, %v2066
      %2204 = vrot.lane.b32.xlu0 %v2201, 64
      %v2205 = vpop.permute.xlu0 %2204
      %v2207 = vmul.f32 %v2201, %v2205
      %2209 = vrot.lane.b32.xlu0 %v2207, 32
      %v2210 = vpop.permute.xlu0 %2209
      %v2212 = vadd.f32 %v2202, %v2210
      %v2213 = vtanh.pop %v2212
      %2215 = vrot.lane.b32.xlu0 %v2213, 64
      %v2216 = vpop.permute.xlu0 %2215
      %v2218 = vmul.f32 %v2201, %v2216
      %2219 = vrot.lane.b32.xlu0 %v1780, 32
      %v2220 = vpop.permute.xlu0 %2219
      %2222 = vrot.lane.b32.xlu0 %v2072, 96
      %v2223 = vpop.permute.xlu0 %2222
      %v2225 = vsel %vm387, %v2220, %v2005
      %v2226 = vsel %vm487, %v2225, %v2223
      %v2227 = vsel %vm1001, %v2226, %v2218
      %s2228 = scalar_lea.vmem %s311, 8
      %2229 = vst [vmem:[%s2228] sm:$0xff] %v2227
      %s2230 = scalar_lea.vmem %s280, 64
      %v2231 = vld [vmem:[%s2230] sm:$0xf]
      %v2232 = vunpack.c.l.bf16 %v2231
      %v2233 = vpack.c.bf16 %v1549, %v1549
      %2235 = vrot.lane.b32.xlu0 %v2233, 32
      %v2236 = vpop.permute.xlu0 %2235
      %v2238 = vsel %vm387, %v2236, 0
      %2240 = vmatprep.subr.bf16.mxu0 0
      %2241 = vmatpush1.bf16.msra.mxu0 %v1016
      %2242 = vmatprep.subr.bf16.mxu0 0
      %2243 = vmatpush1.bf16.msra.mxu0 %v1017
      %2244 = vmatprep.subr.bf16.mxu0 0
      %2245 = vmatpush1.bf16.msra.mxu0 0
      %2246 = vmatprep.subr.bf16.mxu0 0
      %2247 = vmatpush1.bf16.msra.mxu0 0
      %2248 = vmatprep.subr.bf16.mxu0 0
      %2249 = vmatpush1.bf16.msra.mxu0 0
      %2250 = vmatprep.subr.bf16.mxu0 0
      %2251 = vmatpush1.bf16.msra.mxu0 0
      %2252 = vmatprep.subr.bf16.mxu0 0
      %2253 = vmatpush1.bf16.msra.mxu0 0
      %2254 = vmatprep.subr.bf16.mxu0 0
      %2255 = vmatpush1.bf16.msra.mxu0 0
      %2256 = vmatprep.subr.bf16.mxu0 0
      %2257 = vmatpush1.bf16.msra.mxu0 0
      %2258 = vmatprep.subr.bf16.mxu0 0
      %2259 = vmatpush1.bf16.msra.mxu0 0
      %2260 = vmatprep.subr.bf16.mxu0 0
      %2261 = vmatpush1.bf16.msra.mxu0 0
      %2262 = vmatprep.subr.bf16.mxu0 0
      %2263 = vmatpush1.bf16.msra.mxu0 0
      %2264 = vmatprep.subr.bf16.mxu0 0
      %2265 = vmatpush1.bf16.msra.mxu0 0
      %2266 = vmatprep.subr.bf16.mxu0 0
      %2267 = vmatpush1.bf16.msra.mxu0 0
      %2268 = vmatprep.subr.bf16.mxu0 0
      %2269 = vmatpush1.bf16.msra.mxu0 0
      %2270 = vmatprep.subr.bf16.mxu0 0
      %2271 = vmatpush1.bf16.msra.mxu0 0
      %2272 = vmatprep.mubr.bf16.mxu0 0
      %2273 = vmatmul.mubr.bf16.gmra.mrb[0].mxu0 %v2238
      %v2274 = vpop.f32.mrb[0].mxu0
      %v2275 = vadd.f32 0.0, %v2274
      %v2276 = vpop.f32.mrb[0].mxu0
      %v2277 = vpop.f32.mrb[0].mxu0
      %v2278 = vpop.f32.mrb[0].mxu0
      %2279 = vdwg.mxu0
      %v2280 = vadd.f32 %v2232, %v2275
      %v2281 = vmul.f32 %v2280, %v326
      %v2282 = vtanh.pop %v2281
      %v2283 = vmul.f32 %v2282, %v326
      %v2284 = vadd.f32 %v2283, %v327
      %v2285 = vmul.f32 %v2284, %v1543
      %2287 = vrot.lane.b32.xlu0 %v2284, 64
      %v2288 = vpop.permute.xlu0 %2287
      %v2290 = vmul.f32 %v2284, %v2288
      %2292 = vrot.lane.b32.xlu0 %v2290, 32
      %v2293 = vpop.permute.xlu0 %2292
      %v2295 = vadd.f32 %v2285, %v2293
      %v2296 = vtanh.pop %v2295
      %2298 = vrot.lane.b32.xlu0 %v2296, 64
      %v2299 = vpop.permute.xlu0 %2298
      %v2301 = vmul.f32 %v2284, %v2299
      %2303 = vrot.lane.b32.xlu0 %v2301, 32
      %v2304 = vpop.permute.xlu0 %2303
      %2307 = vrot.lane.b32.xlu0 %v1623, 64
      %v2308 = vpop.permute.xlu0 %2307
      %v2310 = vsel %vm387, %v2304, %v2308
      %v2311 = vpack.c.bf16 %v2310, %v2310
      %v2313 = vsel %vm487, %v2311, 0
      %2315 = vmatprep.subr.bf16.mxu0 0
      %2316 = vmatpush1.bf16.msra.mxu0 %v1111
      %2317 = vmatprep.subr.bf16.mxu0 0
      %2318 = vmatpush1.bf16.msra.mxu0 %v1112
      %2319 = vmatprep.subr.bf16.mxu0 0
      %2320 = vmatpush1.bf16.msra.mxu0 %v1113
      %2321 = vmatprep.subr.bf16.mxu0 0
      %2322 = vmatpush1.bf16.msra.mxu0 %v1114
      %2323 = vmatprep.subr.bf16.mxu0 0
      %2324 = vmatpush1.bf16.msra.mxu0 0
      %2325 = vmatprep.subr.bf16.mxu0 0
      %2326 = vmatpush1.bf16.msra.mxu0 0
      %2327 = vmatprep.subr.bf16.mxu0 0
      %2328 = vmatpush1.bf16.msra.mxu0 0
      %2329 = vmatprep.subr.bf16.mxu0 0
      %2330 = vmatpush1.bf16.msra.mxu0 0
      %2331 = vmatprep.subr.bf16.mxu0 0
      %2332 = vmatpush1.bf16.msra.mxu0 0
      %2333 = vmatprep.subr.bf16.mxu0 0
      %2334 = vmatpush1.bf16.msra.mxu0 0
      %2335 = vmatprep.subr.bf16.mxu0 0
      %2336 = vmatpush1.bf16.msra.mxu0 0
      %2337 = vmatprep.subr.bf16.mxu0 0
      %2338 = vmatpush1.bf16.msra.mxu0 0
      %2339 = vmatprep.subr.bf16.mxu0 0
      %2340 = vmatpush1.bf16.msra.mxu0 0
      %2341 = vmatprep.subr.bf16.mxu0 0
      %2342 = vmatpush1.bf16.msra.mxu0 0
      %2343 = vmatprep.subr.bf16.mxu0 0
      %2344 = vmatpush1.bf16.msra.mxu0 0
      %2345 = vmatprep.subr.bf16.mxu0 0
      %2346 = vmatpush1.bf16.msra.mxu0 0
      %2347 = vmatprep.mubr.bf16.mxu0 0
      %2348 = vmatmul.mubr.bf16.gmra.mrb[0].mxu0 %v2313
      %v2349 = vpop.f32.mrb[0].mxu0
      %v2350 = vadd.f32 %v367, %v2349
      %v2351 = vpop.f32.mrb[0].mxu0
      %v2352 = vpop.f32.mrb[0].mxu0
      %v2353 = vpop.f32.mrb[0].mxu0
      %2354 = vdwg.mxu0
      %v2355 = vmul.f32 %v2350, %v326
      %v2356 = vtanh.pop %v2355
      %v2357 = vmul.f32 %v2356, %v326
      %v2358 = vadd.f32 %v2357, %v327
      %v2359 = vmul.f32 %v2358, %v1617
      %2361 = vrot.lane.b32.xlu0 %v2358, 64
      %v2362 = vpop.permute.xlu0 %2361
      %v2364 = vmul.f32 %v2358, %v2362
      %2366 = vrot.lane.b32.xlu0 %v2364, 32
      %v2367 = vpop.permute.xlu0 %2366
      %v2369 = vadd.f32 %v2359, %v2367
      %v2370 = vtanh.pop %v2369
      %2372 = vrot.lane.b32.xlu0 %v2370, 64
      %v2373 = vpop.permute.xlu0 %2372
      %v2375 = vmul.f32 %v2358, %v2373
      %s2376 = scalar_lea.vmem %s280, 68
      %v2377 = vld [vmem:[%s2376] sm:$0xf]
      %v2378 = vunpack.c.l.bf16 %v2377
      %v2379 = vpack.c.bf16 %v2301, %v2301
      %2381 = vrot.lane.b32.xlu0 %v2379, 32
      %v2382 = vpop.permute.xlu0 %2381
      %v2384 = vsel %vm387, %v2382, 0
      %2386 = vmatprep.subr.bf16.mxu0 0
      %2387 = vmatpush1.bf16.msra.mxu0 %v1016
      %2388 = vmatprep.subr.bf16.mxu0 0
      %2389 = vmatpush1.bf16.msra.mxu0 %v1017
      %2390 = vmatprep.subr.bf16.mxu0 0
      %2391 = vmatpush1.bf16.msra.mxu0 0
      %2392 = vmatprep.subr.bf16.mxu0 0
      %2393 = vmatpush1.bf16.msra.mxu0 0
      %2394 = vmatprep.subr.bf16.mxu0 0
      %2395 = vmatpush1.bf16.msra.mxu0 0
      %2396 = vmatprep.subr.bf16.mxu0 0
      %2397 = vmatpush1.bf16.msra.mxu0 0
      %2398 = vmatprep.subr.bf16.mxu0 0
      %2399 = vmatpush1.bf16.msra.mxu0 0
      %2400 = vmatprep.subr.bf16.mxu0 0
      %2401 = vmatpush1.bf16.msra.mxu0 0
      %2402 = vmatprep.subr.bf16.mxu0 0
      %2403 = vmatpush1.bf16.msra.mxu0 0
      %2404 = vmatprep.subr.bf16.mxu0 0
      %2405 = vmatpush1.bf16.msra.mxu0 0
      %2406 = vmatprep.subr.bf16.mxu0 0
      %2407 = vmatpush1.bf16.msra.mxu0 0
      %2408 = vmatprep.subr.bf16.mxu0 0
      %2409 = vmatpush1.bf16.msra.mxu0 0
      %2410 = vmatprep.subr.bf16.mxu0 0
      %2411 = vmatpush1.bf16.msra.mxu0 0
      %2412 = vmatprep.subr.bf16.mxu0 0
      %2413 = vmatpush1.bf16.msra.mxu0 0
      %2414 = vmatprep.subr.bf16.mxu0 0
      %2415 = vmatpush1.bf16.msra.mxu0 0
      %2416 = vmatprep.subr.bf16.mxu0 0
      %2417 = vmatpush1.bf16.msra.mxu0 0
      %2418 = vmatprep.mubr.bf16.mxu0 0
      %2419 = vmatmul.mubr.bf16.gmra.mrb[0].mxu0 %v2384
      %v2420 = vpop.f32.mrb[0].mxu0
      %v2421 = vadd.f32 0.0, %v2420
      %v2422 = vpop.f32.mrb[0].mxu0
      %v2423 = vpop.f32.mrb[0].mxu0
      %v2424 = vpop.f32.mrb[0].mxu0
      %2425 = vdwg.mxu0
      %v2426 = vadd.f32 %v2378, %v2421
      %v2427 = vmul.f32 %v2426, %v326
      %v2428 = vtanh.pop %v2427
      %v2429 = vmul.f32 %v2428, %v326
      %v2430 = vadd.f32 %v2429, %v327
      %v2431 = vmul.f32 %v2430, %v2295
      %2433 = vrot.lane.b32.xlu0 %v2430, 64
      %v2434 = vpop.permute.xlu0 %2433
      %v2436 = vmul.f32 %v2430, %v2434
      %2438 = vrot.lane.b32.xlu0 %v2436, 32
      %v2439 = vpop.permute.xlu0 %2438
      %v2441 = vadd.f32 %v2431, %v2439
      %v2442 = vtanh.pop %v2441
      %2444 = vrot.lane.b32.xlu0 %v2442, 64
      %v2445 = vpop.permute.xlu0 %2444
      %v2447 = vmul.f32 %v2430, %v2445
      %2449 = vrot.lane.b32.xlu0 %v2447, 32
      %v2450 = vpop.permute.xlu0 %2449
      %2453 = vrot.lane.b32.xlu0 %v2375, 64
      %v2454 = vpop.permute.xlu0 %2453
      %v2456 = vsel %vm387, %v2450, %v2454
      %v2457 = vpack.c.bf16 %v2456, %v2456
      %v2459 = vsel %vm487, %v2457, 0
      %2461 = vmatprep.subr.bf16.mxu0 0
      %2462 = vmatpush1.bf16.msra.mxu0 %v1111
      %2463 = vmatprep.subr.bf16.mxu0 0
      %2464 = vmatpush1.bf16.msra.mxu0 %v1112
      %2465 = vmatprep.subr.bf16.mxu0 0
      %2466 = vmatpush1.bf16.msra.mxu0 %v1113
      %2467 = vmatprep.subr.bf16.mxu0 0
      %2468 = vmatpush1.bf16.msra.mxu0 %v1114
      %2469 = vmatprep.subr.bf16.mxu0 0
      %2470 = vmatpush1.bf16.msra.mxu0 0
      %2471 = vmatprep.subr.bf16.mxu0 0
      %2472 = vmatpush1.bf16.msra.mxu0 0
      %2473 = vmatprep.subr.bf16.mxu0 0
      %2474 = vmatpush1.bf16.msra.mxu0 0
      %2475 = vmatprep.subr.bf16.mxu0 0
      %2476 = vmatpush1.bf16.msra.mxu0 0
      %2477 = vmatprep.subr.bf16.mxu0 0
      %2478 = vmatpush1.bf16.msra.mxu0 0
      %2479 = vmatprep.subr.bf16.mxu0 0
      %2480 = vmatpush1.bf16.msra.mxu0 0
      %2481 = vmatprep.subr.bf16.mxu0 0
      %2482 = vmatpush1.bf16.msra.mxu0 0
      %2483 = vmatprep.subr.bf16.mxu0 0
      %2484 = vmatpush1.bf16.msra.mxu0 0
      %2485 = vmatprep.subr.bf16.mxu0 0
      %2486 = vmatpush1.bf16.msra.mxu0 0
      %2487 = vmatprep.subr.bf16.mxu0 0
      %2488 = vmatpush1.bf16.msra.mxu0 0
      %2489 = vmatprep.subr.bf16.mxu0 0
      %2490 = vmatpush1.bf16.msra.mxu0 0
      %2491 = vmatprep.subr.bf16.mxu0 0
      %2492 = vmatpush1.bf16.msra.mxu0 0
      %2493 = vmatprep.mubr.bf16.mxu0 0
      %2494 = vmatmul.mubr.bf16.gmra.mrb[0].mxu0 %v2459
      %v2495 = vpop.f32.mrb[0].mxu0
      %v2496 = vadd.f32 %v367, %v2495
      %v2497 = vpop.f32.mrb[0].mxu0
      %v2498 = vpop.f32.mrb[0].mxu0
      %v2499 = vpop.f32.mrb[0].mxu0
      %2500 = vdwg.mxu0
      %v2501 = vmul.f32 %v2496, %v326
      %v2502 = vtanh.pop %v2501
      %v2503 = vmul.f32 %v2502, %v326
      %v2504 = vadd.f32 %v2503, %v327
      %v2505 = vmul.f32 %v2504, %v2369
      %2507 = vrot.lane.b32.xlu0 %v2504, 64
      %v2508 = vpop.permute.xlu0 %2507
      %v2510 = vmul.f32 %v2504, %v2508
      %2512 = vrot.lane.b32.xlu0 %v2510, 32
      %v2513 = vpop.permute.xlu0 %2512
      %v2515 = vadd.f32 %v2505, %v2513
      %v2516 = vtanh.pop %v2515
      %2518 = vrot.lane.b32.xlu0 %v2516, 64
      %v2519 = vpop.permute.xlu0 %2518
      %v2521 = vmul.f32 %v2504, %v2519
      %s2522 = scalar_lea.vmem %s280, 72
      %v2523 = vld [vmem:[%s2522] sm:$0xf]
      %v2524 = vunpack.c.l.bf16 %v2523
      %v2525 = vpack.c.bf16 %v2447, %v2447
      %2527 = vrot.lane.b32.xlu0 %v2525, 32
      %v2528 = vpop.permute.xlu0 %2527
      %v2530 = vsel %vm387, %v2528, 0
      %2532 = vmatprep.subr.bf16.mxu0 0
      %2533 = vmatpush1.bf16.msra.mxu0 %v1016
      %2534 = vmatprep.subr.bf16.mxu0 0
      %2535 = vmatpush1.bf16.msra.mxu0 %v1017
      %2536 = vmatprep.subr.bf16.mxu0 0
      %2537 = vmatpush1.bf16.msra.mxu0 0
      %2538 = vmatprep.subr.bf16.mxu0 0
      %2539 = vmatpush1.bf16.msra.mxu0 0
      %2540 = vmatprep.subr.bf16.mxu0 0
      %2541 = vmatpush1.bf16.msra.mxu0 0
      %2542 = vmatprep.subr.bf16.mxu0 0
      %2543 = vmatpush1.bf16.msra.mxu0 0
      %2544 = vmatprep.subr.bf16.mxu0 0
      %2545 = vmatpush1.bf16.msra.mxu0 0
      %2546 = vmatprep.subr.bf16.mxu0 0
      %2547 = vmatpush1.bf16.msra.mxu0 0
      %2548 = vmatprep.subr.bf16.mxu0 0
      %2549 = vmatpush1.bf16.msra.mxu0 0
      %2550 = vmatprep.subr.bf16.mxu0 0
      %2551 = vmatpush1.bf16.msra.mxu0 0
      %2552 = vmatprep.subr.bf16.mxu0 0
      %2553 = vmatpush1.bf16.msra.mxu0 0
      %2554 = vmatprep.subr.bf16.mxu0 0
      %2555 = vmatpush1.bf16.msra.mxu0 0
      %2556 = vmatprep.subr.bf16.mxu0 0
      %2557 = vmatpush1.bf16.msra.mxu0 0
      %2558 = vmatprep.subr.bf16.mxu0 0
      %2559 = vmatpush1.bf16.msra.mxu0 0
      %2560 = vmatprep.subr.bf16.mxu0 0
      %2561 = vmatpush1.bf16.msra.mxu0 0
      %2562 = vmatprep.subr.bf16.mxu0 0
      %2563 = vmatpush1.bf16.msra.mxu0 0
      %2564 = vmatprep.mubr.bf16.mxu0 0
      %2565 = vmatmul.mubr.bf16.gmra.mrb[0].mxu0 %v2530
      %v2566 = vpop.f32.mrb[0].mxu0
      %v2567 = vadd.f32 0.0, %v2566
      %v2568 = vpop.f32.mrb[0].mxu0
      %v2569 = vpop.f32.mrb[0].mxu0
      %v2570 = vpop.f32.mrb[0].mxu0
      %2571 = vdwg.mxu0
      %v2572 = vadd.f32 %v2524, %v2567
      %v2573 = vmul.f32 %v2572, %v326
      %v2574 = vtanh.pop %v2573
      %v2575 = vmul.f32 %v2574, %v326
      %v2576 = vadd.f32 %v2575, %v327
      %v2577 = vmul.f32 %v2576, %v2441
      %2579 = vrot.lane.b32.xlu0 %v2576, 64
      %v2580 = vpop.permute.xlu0 %2579
      %v2582 = vmul.f32 %v2576, %v2580
      %2584 = vrot.lane.b32.xlu0 %v2582, 32
      %v2585 = vpop.permute.xlu0 %2584
      %v2587 = vadd.f32 %v2577, %v2585
      %v2588 = vtanh.pop %v2587
      %2590 = vrot.lane.b32.xlu0 %v2588, 64
      %v2591 = vpop.permute.xlu0 %2590
      %v2593 = vmul.f32 %v2576, %v2591
      %2595 = vrot.lane.b32.xlu0 %v2593, 32
      %v2596 = vpop.permute.xlu0 %2595
      %2599 = vrot.lane.b32.xlu0 %v2521, 64
      %v2600 = vpop.permute.xlu0 %2599
      %v2602 = vsel %vm387, %v2596, %v2600
      %v2603 = vpack.c.bf16 %v2602, %v2602
      %v2605 = vsel %vm487, %v2603, 0
      %2607 = vmatprep.subr.bf16.mxu0 0
      %2608 = vmatpush1.bf16.msra.mxu0 %v1111
      %2609 = vmatprep.subr.bf16.mxu0 0
      %2610 = vmatpush1.bf16.msra.mxu0 %v1112
      %2611 = vmatprep.subr.bf16.mxu0 0
      %2612 = vmatpush1.bf16.msra.mxu0 %v1113
      %2613 = vmatprep.subr.bf16.mxu0 0
      %2614 = vmatpush1.bf16.msra.mxu0 %v1114
      %2615 = vmatprep.subr.bf16.mxu0 0
      %2616 = vmatpush1.bf16.msra.mxu0 0
      %2617 = vmatprep.subr.bf16.mxu0 0
      %2618 = vmatpush1.bf16.msra.mxu0 0
      %2619 = vmatprep.subr.bf16.mxu0 0
      %2620 = vmatpush1.bf16.msra.mxu0 0
      %2621 = vmatprep.subr.bf16.mxu0 0
      %2622 = vmatpush1.bf16.msra.mxu0 0
      %2623 = vmatprep.subr.bf16.mxu0 0
      %2624 = vmatpush1.bf16.msra.mxu0 0
      %2625 = vmatprep.subr.bf16.mxu0 0
      %2626 = vmatpush1.bf16.msra.mxu0 0
      %2627 = vmatprep.subr.bf16.mxu0 0
      %2628 = vmatpush1.bf16.msra.mxu0 0
      %2629 = vmatprep.subr.bf16.mxu0 0
      %2630 = vmatpush1.bf16.msra.mxu0 0
      %2631 = vmatprep.subr.bf16.mxu0 0
      %2632 = vmatpush1.bf16.msra.mxu0 0
      %2633 = vmatprep.subr.bf16.mxu0 0
      %2634 = vmatpush1.bf16.msra.mxu0 0
      %2635 = vmatprep.subr.bf16.mxu0 0
      %2636 = vmatpush1.bf16.msra.mxu0 0
      %2637 = vmatprep.subr.bf16.mxu0 0
      %2638 = vmatpush1.bf16.msra.mxu0 0
      %2639 = vmatprep.mubr.bf16.mxu0 0
      %2640 = vmatmul.mubr.bf16.gmra.mrb[0].mxu0 %v2605
      %v2641 = vpop.f32.mrb[0].mxu0
      %v2642 = vadd.f32 %v367, %v2641
      %v2643 = vpop.f32.mrb[0].mxu0
      %v2644 = vpop.f32.mrb[0].mxu0
      %v2645 = vpop.f32.mrb[0].mxu0
      %2646 = vdwg.mxu0
      %v2647 = vmul.f32 %v2642, %v326
      %v2648 = vtanh.pop %v2647
      %v2649 = vmul.f32 %v2648, %v326
      %v2650 = vadd.f32 %v2649, %v327
      %v2651 = vmul.f32 %v2650, %v2515
      %2653 = vrot.lane.b32.xlu0 %v2650, 64
      %v2654 = vpop.permute.xlu0 %2653
      %v2656 = vmul.f32 %v2650, %v2654
      %2658 = vrot.lane.b32.xlu0 %v2656, 32
      %v2659 = vpop.permute.xlu0 %2658
      %v2661 = vadd.f32 %v2651, %v2659
      %v2662 = vtanh.pop %v2661
      %2664 = vrot.lane.b32.xlu0 %v2662, 64
      %v2665 = vpop.permute.xlu0 %2664
      %v2667 = vmul.f32 %v2650, %v2665
      %s2668 = scalar_lea.vmem %s280, 76
      %v2669 = vld [vmem:[%s2668] sm:$0xf]
      %v2670 = vunpack.c.l.bf16 %v2669
      %v2671 = vpack.c.bf16 %v2593, %v2593
      %2673 = vrot.lane.b32.xlu0 %v2671, 32
      %v2674 = vpop.permute.xlu0 %2673
      %v2676 = vsel %vm387, %v2674, 0
      %2678 = vmatprep.subr.bf16.mxu0 0
      %2679 = vmatpush1.bf16.msra.mxu0 %v1016
      %2680 = vmatprep.subr.bf16.mxu0 0
      %2681 = vmatpush1.bf16.msra.mxu0 %v1017
      %2682 = vmatprep.subr.bf16.mxu0 0
      %2683 = vmatpush1.bf16.msra.mxu0 0
      %2684 = vmatprep.subr.bf16.mxu0 0
      %2685 = vmatpush1.bf16.msra.mxu0 0
      %2686 = vmatprep.subr.bf16.mxu0 0
      %2687 = vmatpush1.bf16.msra.mxu0 0
      %2688 = vmatprep.subr.bf16.mxu0 0
      %2689 = vmatpush1.bf16.msra.mxu0 0
      %2690 = vmatprep.subr.bf16.mxu0 0
      %2691 = vmatpush1.bf16.msra.mxu0 0
      %2692 = vmatprep.subr.bf16.mxu0 0
      %2693 = vmatpush1.bf16.msra.mxu0 0
      %2694 = vmatprep.subr.bf16.mxu0 0
      %2695 = vmatpush1.bf16.msra.mxu0 0
      %2696 = vmatprep.subr.bf16.mxu0 0
      %2697 = vmatpush1.bf16.msra.mxu0 0
      %2698 = vmatprep.subr.bf16.mxu0 0
      %2699 = vmatpush1.bf16.msra.mxu0 0
      %2700 = vmatprep.subr.bf16.mxu0 0
      %2701 = vmatpush1.bf16.msra.mxu0 0
      %2702 = vmatprep.subr.bf16.mxu0 0
      %2703 = vmatpush1.bf16.msra.mxu0 0
      %2704 = vmatprep.subr.bf16.mxu0 0
      %2705 = vmatpush1.bf16.msra.mxu0 0
      %2706 = vmatprep.subr.bf16.mxu0 0
      %2707 = vmatpush1.bf16.msra.mxu0 0
      %2708 = vmatprep.subr.bf16.mxu0 0
      %2709 = vmatpush1.bf16.msra.mxu0 0
      %2710 = vmatprep.mubr.bf16.mxu0 0
      %2711 = vmatmul.mubr.bf16.gmra.mrb[0].mxu0 %v2676
      %v2712 = vpop.f32.mrb[0].mxu0
      %v2713 = vadd.f32 0.0, %v2712
      %v2714 = vpop.f32.mrb[0].mxu0
      %v2715 = vpop.f32.mrb[0].mxu0
      %v2716 = vpop.f32.mrb[0].mxu0
      %2717 = vdwg.mxu0
      %v2718 = vadd.f32 %v2670, %v2713
      %v2719 = vmul.f32 %v2718, %v326
      %v2720 = vtanh.pop %v2719
      %v2721 = vmul.f32 %v2720, %v326
      %v2722 = vadd.f32 %v2721, %v327
      %v2723 = vmul.f32 %v2722, %v2587
      %2725 = vrot.lane.b32.xlu0 %v2722, 64
      %v2726 = vpop.permute.xlu0 %2725
      %v2728 = vmul.f32 %v2722, %v2726
      %2730 = vrot.lane.b32.xlu0 %v2728, 32
      %v2731 = vpop.permute.xlu0 %2730
      %v2733 = vadd.f32 %v2723, %v2731
      %v2734 = vtanh.pop %v2733
      %2736 = vrot.lane.b32.xlu0 %v2734, 64
      %v2737 = vpop.permute.xlu0 %2736
      %v2739 = vmul.f32 %v2722, %v2737
      %2741 = vrot.lane.b32.xlu0 %v2739, 32
      %v2742 = vpop.permute.xlu0 %2741
      %2745 = vrot.lane.b32.xlu0 %v2667, 64
      %v2746 = vpop.permute.xlu0 %2745
      %v2748 = vsel %vm387, %v2742, %v2746
      %v2749 = vpack.c.bf16 %v2748, %v2748
      %v2751 = vsel %vm487, %v2749, 0
      %2753 = vmatprep.subr.bf16.mxu0 0
      %2754 = vmatpush1.bf16.msra.mxu0 %v1111
      %2755 = vmatprep.subr.bf16.mxu0 0
      %2756 = vmatpush1.bf16.msra.mxu0 %v1112
      %2757 = vmatprep.subr.bf16.mxu0 0
      %2758 = vmatpush1.bf16.msra.mxu0 %v1113
      %2759 = vmatprep.subr.bf16.mxu0 0
      %2760 = vmatpush1.bf16.msra.mxu0 %v1114
      %2761 = vmatprep.subr.bf16.mxu0 0
      %2762 = vmatpush1.bf16.msra.mxu0 0
      %2763 = vmatprep.subr.bf16.mxu0 0
      %2764 = vmatpush1.bf16.msra.mxu0 0
      %2765 = vmatprep.subr.bf16.mxu0 0
      %2766 = vmatpush1.bf16.msra.mxu0 0
      %2767 = vmatprep.subr.bf16.mxu0 0
      %2768 = vmatpush1.bf16.msra.mxu0 0
      %2769 = vmatprep.subr.bf16.mxu0 0
      %2770 = vmatpush1.bf16.msra.mxu0 0
      %2771 = vmatprep.subr.bf16.mxu0 0
      %2772 = vmatpush1.bf16.msra.mxu0 0
      %2773 = vmatprep.subr.bf16.mxu0 0
      %2774 = vmatpush1.bf16.msra.mxu0 0
      %2775 = vmatprep.subr.bf16.mxu0 0
      %2776 = vmatpush1.bf16.msra.mxu0 0
      %2777 = vmatprep.subr.bf16.mxu0 0
      %2778 = vmatpush1.bf16.msra.mxu0 0
      %2779 = vmatprep.subr.bf16.mxu0 0
      %2780 = vmatpush1.bf16.msra.mxu0 0
      %2781 = vmatprep.subr.bf16.mxu0 0
      %2782 = vmatpush1.bf16.msra.mxu0 0
      %2783 = vmatprep.subr.bf16.mxu0 0
      %2784 = vmatpush1.bf16.msra.mxu0 0
      %2785 = vmatprep.mubr.bf16.mxu0 0
      %2786 = vmatmul.mubr.bf16.gmra.mrb[0].mxu0 %v2751
      %v2787 = vpop.f32.mrb[0].mxu0
      %v2788 = vadd.f32 %v367, %v2787
      %v2789 = vpop.f32.mrb[0].mxu0
      %v2790 = vpop.f32.mrb[0].mxu0
      %v2791 = vpop.f32.mrb[0].mxu0
      %2792 = vdwg.mxu0
      %v2793 = vmul.f32 %v2788, %v326
      %v2794 = vtanh.pop %v2793
      %v2795 = vmul.f32 %v2794, %v326
      %v2796 = vadd.f32 %v2795, %v327
      %v2797 = vmul.f32 %v2796, %v2661
      %2799 = vrot.lane.b32.xlu0 %v2796, 64
      %v2800 = vpop.permute.xlu0 %2799
      %v2802 = vmul.f32 %v2796, %v2800
      %2804 = vrot.lane.b32.xlu0 %v2802, 32
      %v2805 = vpop.permute.xlu0 %2804
      %v2807 = vadd.f32 %v2797, %v2805
      %v2808 = vtanh.pop %v2807
      %2810 = vrot.lane.b32.xlu0 %v2808, 64
      %v2811 = vpop.permute.xlu0 %2810
      %v2813 = vmul.f32 %v2796, %v2811
      %2814 = vrot.lane.b32.xlu0 %v2375, 32
      %v2815 = vpop.permute.xlu0 %2814
      %2817 = vrot.lane.b32.xlu0 %v2667, 96
      %v2818 = vpop.permute.xlu0 %2817
      %v2820 = vsel %vm387, %v2815, %v2600
      %v2821 = vsel %vm487, %v2820, %v2818
      %v2822 = vsel %vm1001, %v2821, %v2813
      %s2823 = scalar_lea.vmem %s311, 32
      %2824 = vst [vmem:[%s2823] sm:$0xff] %v2822
      %s2825 = scalar_lea.vmem %s280, 32
      %v2826 = vld [vmem:[%s2825] sm:$0xf]
      %v2827 = vunpack.c.l.bf16 %v2826
      %v2828 = vpack.c.bf16 %v2144, %v2144
      %2830 = vrot.lane.b32.xlu0 %v2828, 32
      %v2831 = vpop.permute.xlu0 %2830
      %v2833 = vsel %vm387, %v2831, 0
      %2835 = vmatprep.subr.bf16.mxu0 0
      %2836 = vmatpush1.bf16.msra.mxu0 %v383
      %2837 = vmatprep.subr.bf16.mxu0 0
      %2838 = vmatpush1.bf16.msra.mxu0 %v384
      %2839 = vmatprep.subr.bf16.mxu0 0
      %2840 = vmatpush1.bf16.msra.mxu0 0
      %2841 = vmatprep.subr.bf16.mxu0 0
      %2842 = vmatpush1.bf16.msra.mxu0 0
      %2843 = vmatprep.subr.bf16.mxu0 0
      %2844 = vmatpush1.bf16.msra.mxu0 0
      %2845 = vmatprep.subr.bf16.mxu0 0
      %2846 = vmatpush1.bf16.msra.mxu0 0
      %2847 = vmatprep.subr.bf16.mxu0 0
      %2848 = vmatpush1.bf16.msra.mxu0 0
      %2849 = vmatprep.subr.bf16.mxu0 0
      %2850 = vmatpush1.bf16.msra.mxu0 0
      %2851 = vmatprep.subr.bf16.mxu0 0
      %2852 = vmatpush1.bf16.msra.mxu0 0
      %2853 = vmatprep.subr.bf16.mxu0 0
      %2854 = vmatpush1.bf16.msra.mxu0 0
      %2855 = vmatprep.subr.bf16.mxu0 0
      %2856 = vmatpush1.bf16.msra.mxu0 0
      %2857 = vmatprep.subr.bf16.mxu0 0
      %2858 = vmatpush1.bf16.msra.mxu0 0
      %2859 = vmatprep.subr.bf16.mxu0 0
      %2860 = vmatpush1.bf16.msra.mxu0 0
      %2861 = vmatprep.subr.bf16.mxu0 0
      %2862 = vmatpush1.bf16.msra.mxu0 0
      %2863 = vmatprep.subr.bf16.mxu0 0
      %2864 = vmatpush1.bf16.msra.mxu0 0
      %2865 = vmatprep.subr.bf16.mxu0 0
      %2866 = vmatpush1.bf16.msra.mxu0 0
      %2867 = vmatprep.mubr.bf16.mxu0 0
      %2868 = vmatmul.mubr.bf16.gmra.mrb[0].mxu0 %v2833
      %v2869 = vpop.f32.mrb[0].mxu0
      %v2870 = vadd.f32 0.0, %v2869
      %v2871 = vpop.f32.mrb[0].mxu0
      %v2872 = vpop.f32.mrb[0].mxu0
      %v2873 = vpop.f32.mrb[0].mxu0
      %2874 = vdwg.mxu0
      %v2875 = vadd.f32 %v2827, %v2870
      %v2876 = vmul.f32 %v2875, %v326
      %v2877 = vtanh.pop %v2876
      %v2878 = vmul.f32 %v2877, %v326
      %v2879 = vadd.f32 %v2878, %v327
      %v2880 = vmul.f32 %v2879, %v2138
      %2882 = vrot.lane.b32.xlu0 %v2879, 64
      %v2883 = vpop.permute.xlu0 %2882
      %v2885 = vmul.f32 %v2879, %v2883
      %2887 = vrot.lane.b32.xlu0 %v2885, 32
      %v2888 = vpop.permute.xlu0 %2887
      %v2890 = vadd.f32 %v2880, %v2888
      %v2891 = vtanh.pop %v2890
      %2893 = vrot.lane.b32.xlu0 %v2891, 64
      %v2894 = vpop.permute.xlu0 %2893
      %v2896 = vmul.f32 %v2879, %v2894
      %2898 = vrot.lane.b32.xlu0 %v2896, 32
      %v2899 = vpop.permute.xlu0 %2898
      %2902 = vrot.lane.b32.xlu0 %v2218, 64
      %v2903 = vpop.permute.xlu0 %2902
      %v2905 = vsel %vm387, %v2899, %v2903
      %v2906 = vpack.c.bf16 %v2905, %v2905
      %v2908 = vsel %vm487, %v2906, 0
      %2910 = vmatprep.subr.bf16.mxu0 0
      %2911 = vmatpush1.bf16.msra.mxu0 %v479
      %2912 = vmatprep.subr.bf16.mxu0 0
      %2913 = vmatpush1.bf16.msra.mxu0 %v480
      %2914 = vmatprep.subr.bf16.mxu0 0
      %2915 = vmatpush1.bf16.msra.mxu0 %v481
      %2916 = vmatprep.subr.bf16.mxu0 0
      %2917 = vmatpush1.bf16.msra.mxu0 %v482
      %2918 = vmatprep.subr.bf16.mxu0 0
      %2919 = vmatpush1.bf16.msra.mxu0 0
      %2920 = vmatprep.subr.bf16.mxu0 0
      %2921 = vmatpush1.bf16.msra.mxu0 0
      %2922 = vmatprep.subr.bf16.mxu0 0
      %2923 = vmatpush1.bf16.msra.mxu0 0
      %2924 = vmatprep.subr.bf16.mxu0 0
      %2925 = vmatpush1.bf16.msra.mxu0 0
      %2926 = vmatprep.subr.bf16.mxu0 0
      %2927 = vmatpush1.bf16.msra.mxu0 0
      %2928 = vmatprep.subr.bf16.mxu0 0
      %2929 = vmatpush1.bf16.msra.mxu0 0
      %2930 = vmatprep.subr.bf16.mxu0 0
      %2931 = vmatpush1.bf16.msra.mxu0 0
      %2932 = vmatprep.subr.bf16.mxu0 0
      %2933 = vmatpush1.bf16.msra.mxu0 0
      %2934 = vmatprep.subr.bf16.mxu0 0
      %2935 = vmatpush1.bf16.msra.mxu0 0
      %2936 = vmatprep.subr.bf16.mxu0 0
      %2937 = vmatpush1.bf16.msra.mxu0 0
      %2938 = vmatprep.subr.bf16.mxu0 0
      %2939 = vmatpush1.bf16.msra.mxu0 0
      %2940 = vmatprep.subr.bf16.mxu0 0
      %2941 = vmatpush1.bf16.msra.mxu0 0
      %2942 = vmatprep.mubr.bf16.mxu0 0
      %2943 = vmatmul.mubr.bf16.gmra.mrb[0].mxu0 %v2908
      %v2944 = vpop.f32.mrb[0].mxu0
      %v2945 = vadd.f32 %v359, %v2944
      %v2946 = vpop.f32.mrb[0].mxu0
      %v2947 = vpop.f32.mrb[0].mxu0
      %v2948 = vpop.f32.mrb[0].mxu0
      %2949 = vdwg.mxu0
      %v2950 = vmul.f32 %v2945, %v326
      %v2951 = vtanh.pop %v2950
      %v2952 = vmul.f32 %v2951, %v326
      %v2953 = vadd.f32 %v2952, %v327
      %v2954 = vmul.f32 %v2953, %v2212
      %2956 = vrot.lane.b32.xlu0 %v2953, 64
      %v2957 = vpop.permute.xlu0 %2956
      %v2959 = vmul.f32 %v2953, %v2957
      %2961 = vrot.lane.b32.xlu0 %v2959, 32
      %v2962 = vpop.permute.xlu0 %2961
      %v2964 = vadd.f32 %v2954, %v2962
      %v2965 = vtanh.pop %v2964
      %2967 = vrot.lane.b32.xlu0 %v2965, 64
      %v2968 = vpop.permute.xlu0 %2967
      %v2970 = vmul.f32 %v2953, %v2968
      %s2971 = scalar_lea.vmem %s280, 36
      %v2972 = vld [vmem:[%s2971] sm:$0xf]
      %v2973 = vunpack.c.l.bf16 %v2972
      %v2974 = vpack.c.bf16 %v2896, %v2896
      %2976 = vrot.lane.b32.xlu0 %v2974, 32
      %v2977 = vpop.permute.xlu0 %2976
      %v2979 = vsel %vm387, %v2977, 0
      %2981 = vmatprep.subr.bf16.mxu0 0
      %2982 = vmatpush1.bf16.msra.mxu0 %v383
      %2983 = vmatprep.subr.bf16.mxu0 0
      %2984 = vmatpush1.bf16.msra.mxu0 %v384
      %2985 = vmatprep.subr.bf16.mxu0 0
      %2986 = vmatpush1.bf16.msra.mxu0 0
      %2987 = vmatprep.subr.bf16.mxu0 0
      %2988 = vmatpush1.bf16.msra.mxu0 0
      %2989 = vmatprep.subr.bf16.mxu0 0
      %2990 = vmatpush1.bf16.msra.mxu0 0
      %2991 = vmatprep.subr.bf16.mxu0 0
      %2992 = vmatpush1.bf16.msra.mxu0 0
      %2993 = vmatprep.subr.bf16.mxu0 0
      %2994 = vmatpush1.bf16.msra.mxu0 0
      %2995 = vmatprep.subr.bf16.mxu0 0
      %2996 = vmatpush1.bf16.msra.mxu0 0
      %2997 = vmatprep.subr.bf16.mxu0 0
      %2998 = vmatpush1.bf16.msra.mxu0 0
      %2999 = vmatprep.subr.bf16.mxu0 0
      %3000 = vmatpush1.bf16.msra.mxu0 0
      %3001 = vmatprep.subr.bf16.mxu0 0
      %3002 = vmatpush1.bf16.msra.mxu0 0
      %3003 = vmatprep.subr.bf16.mxu0 0
      %3004 = vmatpush1.bf16.msra.mxu0 0
      %3005 = vmatprep.subr.bf16.mxu0 0
      %3006 = vmatpush1.bf16.msra.mxu0 0
      %3007 = vmatprep.subr.bf16.mxu0 0
      %3008 = vmatpush1.bf16.msra.mxu0 0
      %3009 = vmatprep.subr.bf16.mxu0 0
      %3010 = vmatpush1.bf16.msra.mxu0 0
      %3011 = vmatprep.subr.bf16.mxu0 0
      %3012 = vmatpush1.bf16.msra.mxu0 0
      %3013 = vmatprep.mubr.bf16.mxu0 0
      %3014 = vmatmul.mubr.bf16.gmra.mrb[0].mxu0 %v2979
      %v3015 = vpop.f32.mrb[0].mxu0
      %v3016 = vadd.f32 0.0, %v3015
      %v3017 = vpop.f32.mrb[0].mxu0
      %v3018 = vpop.f32.mrb[0].mxu0
      %v3019 = vpop.f32.mrb[0].mxu0
      %3020 = vdwg.mxu0
      %v3021 = vadd.f32 %v2973, %v3016
      %v3022 = vmul.f32 %v3021, %v326
      %v3023 = vtanh.pop %v3022
      %v3024 = vmul.f32 %v3023, %v326
      %v3025 = vadd.f32 %v3024, %v327
      %v3026 = vmul.f32 %v3025, %v2890
      %3028 = vrot.lane.b32.xlu0 %v3025, 64
      %v3029 = vpop.permute.xlu0 %3028
      %v3031 = vmul.f32 %v3025, %v3029
      %3033 = vrot.lane.b32.xlu0 %v3031, 32
      %v3034 = vpop.permute.xlu0 %3033
      %v3036 = vadd.f32 %v3026, %v3034
      %v3037 = vtanh.pop %v3036
      %3039 = vrot.lane.b32.xlu0 %v3037, 64
      %v3040 = vpop.permute.xlu0 %3039
      %v3042 = vmul.f32 %v3025, %v3040
      %3044 = vrot.lane.b32.xlu0 %v3042, 32
      %v3045 = vpop.permute.xlu0 %3044
      %3048 = vrot.lane.b32.xlu0 %v2970, 64
      %v3049 = vpop.permute.xlu0 %3048
      %v3051 = vsel %vm387, %v3045, %v3049
      %v3052 = vpack.c.bf16 %v3051, %v3051
      %v3054 = vsel %vm487, %v3052, 0
      %3056 = vmatprep.subr.bf16.mxu0 0
      %3057 = vmatpush1.bf16.msra.mxu0 %v479
      %3058 = vmatprep.subr.bf16.mxu0 0
      %3059 = vmatpush1.bf16.msra.mxu0 %v480
      %3060 = vmatprep.subr.bf16.mxu0 0
      %3061 = vmatpush1.bf16.msra.mxu0 %v481
      %3062 = vmatprep.subr.bf16.mxu0 0
      %3063 = vmatpush1.bf16.msra.mxu0 %v482
      %3064 = vmatprep.subr.bf16.mxu0 0
      %3065 = vmatpush1.bf16.msra.mxu0 0
      %3066 = vmatprep.subr.bf16.mxu0 0
      %3067 = vmatpush1.bf16.msra.mxu0 0
      %3068 = vmatprep.subr.bf16.mxu0 0
      %3069 = vmatpush1.bf16.msra.mxu0 0
      %3070 = vmatprep.subr.bf16.mxu0 0
      %3071 = vmatpush1.bf16.msra.mxu0 0
      %3072 = vmatprep.subr.bf16.mxu0 0
      %3073 = vmatpush1.bf16.msra.mxu0 0
      %3074 = vmatprep.subr.bf16.mxu0 0
      %3075 = vmatpush1.bf16.msra.mxu0 0
      %3076 = vmatprep.subr.bf16.mxu0 0
      %3077 = vmatpush1.bf16.msra.mxu0 0
      %3078 = vmatprep.subr.bf16.mxu0 0
      %3079 = vmatpush1.bf16.msra.mxu0 0
      %3080 = vmatprep.subr.bf16.mxu0 0
      %3081 = vmatpush1.bf16.msra.mxu0 0
      %3082 = vmatprep.subr.bf16.mxu0 0
      %3083 = vmatpush1.bf16.msra.mxu0 0
      %3084 = vmatprep.subr.bf16.mxu0 0
      %3085 = vmatpush1.bf16.msra.mxu0 0
      %3086 = vmatprep.subr.bf16.mxu0 0
      %3087 = vmatpush1.bf16.msra.mxu0 0
      %3088 = vmatprep.mubr.bf16.mxu0 0
      %3089 = vmatmul.mubr.bf16.gmra.mrb[0].mxu0 %v3054
      %v3090 = vpop.f32.mrb[0].mxu0
      %v3091 = vadd.f32 %v359, %v3090
      %v3092 = vpop.f32.mrb[0].mxu0
      %v3093 = vpop.f32.mrb[0].mxu0
      %v3094 = vpop.f32.mrb[0].mxu0
      %3095 = vdwg.mxu0
      %v3096 = vmul.f32 %v3091, %v326
      %v3097 = vtanh.pop %v3096
      %v3098 = vmul.f32 %v3097, %v326
      %v3099 = vadd.f32 %v3098, %v327
      %v3100 = vmul.f32 %v3099, %v2964
      %3102 = vrot.lane.b32.xlu0 %v3099, 64
      %v3103 = vpop.permute.xlu0 %3102
      %v3105 = vmul.f32 %v3099, %v3103
      %3107 = vrot.lane.b32.xlu0 %v3105, 32
      %v3108 = vpop.permute.xlu0 %3107
      %v3110 = vadd.f32 %v3100, %v3108
      %v3111 = vtanh.pop %v3110
      %3113 = vrot.lane.b32.xlu0 %v3111, 64
      %v3114 = vpop.permute.xlu0 %3113
      %v3116 = vmul.f32 %v3099, %v3114
      %s3117 = scalar_lea.vmem %s280, 40
      %v3118 = vld [vmem:[%s3117] sm:$0xf]
      %v3119 = vunpack.c.l.bf16 %v3118
      %v3120 = vpack.c.bf16 %v3042, %v3042
      %3122 = vrot.lane.b32.xlu0 %v3120, 32
      %v3123 = vpop.permute.xlu0 %3122
      %v3125 = vsel %vm387, %v3123, 0
      %3127 = vmatprep.subr.bf16.mxu0 0
      %3128 = vmatpush1.bf16.msra.mxu0 %v383
      %3129 = vmatprep.subr.bf16.mxu0 0
      %3130 = vmatpush1.bf16.msra.mxu0 %v384
      %3131 = vmatprep.subr.bf16.mxu0 0
      %3132 = vmatpush1.bf16.msra.mxu0 0
      %3133 = vmatprep.subr.bf16.mxu0 0
      %3134 = vmatpush1.bf16.msra.mxu0 0
      %3135 = vmatprep.subr.bf16.mxu0 0
      %3136 = vmatpush1.bf16.msra.mxu0 0
      %3137 = vmatprep.subr.bf16.mxu0 0
      %3138 = vmatpush1.bf16.msra.mxu0 0
      %3139 = vmatprep.subr.bf16.mxu0 0
      %3140 = vmatpush1.bf16.msra.mxu0 0
      %3141 = vmatprep.subr.bf16.mxu0 0
      %3142 = vmatpush1.bf16.msra.mxu0 0
      %3143 = vmatprep.subr.bf16.mxu0 0
      %3144 = vmatpush1.bf16.msra.mxu0 0
      %3145 = vmatprep.subr.bf16.mxu0 0
      %3146 = vmatpush1.bf16.msra.mxu0 0
      %3147 = vmatprep.subr.bf16.mxu0 0
      %3148 = vmatpush1.bf16.msra.mxu0 0
      %3149 = vmatprep.subr.bf16.mxu0 0
      %3150 = vmatpush1.bf16.msra.mxu0 0
      %3151 = vmatprep.subr.bf16.mxu0 0
      %3152 = vmatpush1.bf16.msra.mxu0 0
      %3153 = vmatprep.subr.bf16.mxu0 0
      %3154 = vmatpush1.bf16.msra.mxu0 0
      %3155 = vmatprep.subr.bf16.mxu0 0
      %3156 = vmatpush1.bf16.msra.mxu0 0
      %3157 = vmatprep.subr.bf16.mxu0 0
      %3158 = vmatpush1.bf16.msra.mxu0 0
      %3159 = vmatprep.mubr.bf16.mxu0 0
      %3160 = vmatmul.mubr.bf16.gmra.mrb[0].mxu0 %v3125
      %v3161 = vpop.f32.mrb[0].mxu0
      %v3162 = vadd.f32 0.0, %v3161
      %v3163 = vpop.f32.mrb[0].mxu0
      %v3164 = vpop.f32.mrb[0].mxu0
      %v3165 = vpop.f32.mrb[0].mxu0
      %3166 = vdwg.mxu0
      %v3167 = vadd.f32 %v3119, %v3162
      %v3168 = vmul.f32 %v3167, %v326
      %v3169 = vtanh.pop %v3168
      %v3170 = vmul.f32 %v3169, %v326
      %v3171 = vadd.f32 %v3170, %v327
      %v3172 = vmul.f32 %v3171, %v3036
      %3174 = vrot.lane.b32.xlu0 %v3171, 64
      %v3175 = vpop.permute.xlu0 %3174
      %v3177 = vmul.f32 %v3171, %v3175
      %3179 = vrot.lane.b32.xlu0 %v3177, 32
      %v3180 = vpop.permute.xlu0 %3179
      %v3182 = vadd.f32 %v3172, %v3180
      %v3183 = vtanh.pop %v3182
      %3185 = vrot.lane.b32.xlu0 %v3183, 64
      %v3186 = vpop.permute.xlu0 %3185
      %v3188 = vmul.f32 %v3171, %v3186
      %3190 = vrot.lane.b32.xlu0 %v3188, 32
      %v3191 = vpop.permute.xlu0 %3190
      %3194 = vrot.lane.b32.xlu0 %v3116, 64
      %v3195 = vpop.permute.xlu0 %3194
      %v3197 = vsel %vm387, %v3191, %v3195
      %v3198 = vpack.c.bf16 %v3197, %v3197
      %v3200 = vsel %vm487, %v3198, 0
      %3202 = vmatprep.subr.bf16.mxu0 0
      %3203 = vmatpush1.bf16.msra.mxu0 %v479
      %3204 = vmatprep.subr.bf16.mxu0 0
      %3205 = vmatpush1.bf16.msra.mxu0 %v480
      %3206 = vmatprep.subr.bf16.mxu0 0
      %3207 = vmatpush1.bf16.msra.mxu0 %v481
      %3208 = vmatprep.subr.bf16.mxu0 0
      %3209 = vmatpush1.bf16.msra.mxu0 %v482
      %3210 = vmatprep.subr.bf16.mxu0 0
      %3211 = vmatpush1.bf16.msra.mxu0 0
      %3212 = vmatprep.subr.bf16.mxu0 0
      %3213 = vmatpush1.bf16.msra.mxu0 0
      %3214 = vmatprep.subr.bf16.mxu0 0
      %3215 = vmatpush1.bf16.msra.mxu0 0
      %3216 = vmatprep.subr.bf16.mxu0 0
      %3217 = vmatpush1.bf16.msra.mxu0 0
      %3218 = vmatprep.subr.bf16.mxu0 0
      %3219 = vmatpush1.bf16.msra.mxu0 0
      %3220 = vmatprep.subr.bf16.mxu0 0
      %3221 = vmatpush1.bf16.msra.mxu0 0
      %3222 = vmatprep.subr.bf16.mxu0 0
      %3223 = vmatpush1.bf16.msra.mxu0 0
      %3224 = vmatprep.subr.bf16.mxu0 0
      %3225 = vmatpush1.bf16.msra.mxu0 0
      %3226 = vmatprep.subr.bf16.mxu0 0
      %3227 = vmatpush1.bf16.msra.mxu0 0
      %3228 = vmatprep.subr.bf16.mxu0 0
      %3229 = vmatpush1.bf16.msra.mxu0 0
      %3230 = vmatprep.subr.bf16.mxu0 0
      %3231 = vmatpush1.bf16.msra.mxu0 0
      %3232 = vmatprep.subr.bf16.mxu0 0
      %3233 = vmatpush1.bf16.msra.mxu0 0
      %3234 = vmatprep.mubr.bf16.mxu0 0
      %3235 = vmatmul.mubr.bf16.gmra.mrb[0].mxu0 %v3200
      %v3236 = vpop.f32.mrb[0].mxu0
      %v3237 = vadd.f32 %v359, %v3236
      %v3238 = vpop.f32.mrb[0].mxu0
      %v3239 = vpop.f32.mrb[0].mxu0
      %v3240 = vpop.f32.mrb[0].mxu0
      %3241 = vdwg.mxu0
      %v3242 = vmul.f32 %v3237, %v326
      %v3243 = vtanh.pop %v3242
      %v3244 = vmul.f32 %v3243, %v326
      %v3245 = vadd.f32 %v3244, %v327
      %v3246 = vmul.f32 %v3245, %v3110
      %3248 = vrot.lane.b32.xlu0 %v3245, 64
      %v3249 = vpop.permute.xlu0 %3248
      %v3251 = vmul.f32 %v3245, %v3249
      %3253 = vrot.lane.b32.xlu0 %v3251, 32
      %v3254 = vpop.permute.xlu0 %3253
      %v3256 = vadd.f32 %v3246, %v3254
      %v3257 = vtanh.pop %v3256
      %3259 = vrot.lane.b32.xlu0 %v3257, 64
      %v3260 = vpop.permute.xlu0 %3259
      %v3262 = vmul.f32 %v3245, %v3260
      %s3263 = scalar_lea.vmem %s280, 44
      %v3264 = vld [vmem:[%s3263] sm:$0xf]
      %v3265 = vunpack.c.l.bf16 %v3264
      %v3266 = vpack.c.bf16 %v3188, %v3188
      %3268 = vrot.lane.b32.xlu0 %v3266, 32
      %v3269 = vpop.permute.xlu0 %3268
      %v3271 = vsel %vm387, %v3269, 0
      %3273 = vmatprep.subr.bf16.mxu0 0
      %3274 = vmatpush1.bf16.msra.mxu0 %v383
      %3275 = vmatprep.subr.bf16.mxu0 0
      %3276 = vmatpush1.bf16.msra.mxu0 %v384
      %3277 = vmatprep.subr.bf16.mxu0 0
      %3278 = vmatpush1.bf16.msra.mxu0 0
      %3279 = vmatprep.subr.bf16.mxu0 0
      %3280 = vmatpush1.bf16.msra.mxu0 0
      %3281 = vmatprep.subr.bf16.mxu0 0
      %3282 = vmatpush1.bf16.msra.mxu0 0
      %3283 = vmatprep.subr.bf16.mxu0 0
      %3284 = vmatpush1.bf16.msra.mxu0 0
      %3285 = vmatprep.subr.bf16.mxu0 0
      %3286 = vmatpush1.bf16.msra.mxu0 0
      %3287 = vmatprep.subr.bf16.mxu0 0
      %3288 = vmatpush1.bf16.msra.mxu0 0
      %3289 = vmatprep.subr.bf16.mxu0 0
      %3290 = vmatpush1.bf16.msra.mxu0 0
      %3291 = vmatprep.subr.bf16.mxu0 0
      %3292 = vmatpush1.bf16.msra.mxu0 0
      %3293 = vmatprep.subr.bf16.mxu0 0
      %3294 = vmatpush1.bf16.msra.mxu0 0
      %3295 = vmatprep.subr.bf16.mxu0 0
      %3296 = vmatpush1.bf16.msra.mxu0 0
      %3297 = vmatprep.subr.bf16.mxu0 0
      %3298 = vmatpush1.bf16.msra.mxu0 0
      %3299 = vmatprep.subr.bf16.mxu0 0
      %3300 = vmatpush1.bf16.msra.mxu0 0
      %3301 = vmatprep.subr.bf16.mxu0 0
      %3302 = vmatpush1.bf16.msra.mxu0 0
      %3303 = vmatprep.subr.bf16.mxu0 0
      %3304 = vmatpush1.bf16.msra.mxu0 0
      %3305 = vmatprep.mubr.bf16.mxu0 0
      %3306 = vmatmul.mubr.bf16.gmra.mrb[0].mxu0 %v3271
      %v3307 = vpop.f32.mrb[0].mxu0
      %v3308 = vadd.f32 0.0, %v3307
      %v3309 = vpop.f32.mrb[0].mxu0
      %v3310 = vpop.f32.mrb[0].mxu0
      %v3311 = vpop.f32.mrb[0].mxu0
      %3312 = vdwg.mxu0
      %v3313 = vadd.f32 %v3265, %v3308
      %v3314 = vmul.f32 %v3313, %v326
      %v3315 = vtanh.pop %v3314
      %v3316 = vmul.f32 %v3315, %v326
      %v3317 = vadd.f32 %v3316, %v327
      %v3318 = vmul.f32 %v3317, %v3182
      %3320 = vrot.lane.b32.xlu0 %v3317, 64
      %v3321 = vpop.permute.xlu0 %3320
      %v3323 = vmul.f32 %v3317, %v3321
      %3325 = vrot.lane.b32.xlu0 %v3323, 32
      %v3326 = vpop.permute.xlu0 %3325
      %v3328 = vadd.f32 %v3318, %v3326
      %v3329 = vtanh.pop %v3328
      %3331 = vrot.lane.b32.xlu0 %v3329, 64
      %v3332 = vpop.permute.xlu0 %3331
      %v3334 = vmul.f32 %v3317, %v3332
      %3336 = vrot.lane.b32.xlu0 %v3334, 32
      %v3337 = vpop.permute.xlu0 %3336
      %3340 = vrot.lane.b32.xlu0 %v3262, 64
      %v3341 = vpop.permute.xlu0 %3340
      %v3343 = vsel %vm387, %v3337, %v3341
      %v3344 = vpack.c.bf16 %v3343, %v3343
      %v3346 = vsel %vm487, %v3344, 0
      %3348 = vmatprep.subr.bf16.mxu0 0
      %3349 = vmatpush1.bf16.msra.mxu0 %v479
      %3350 = vmatprep.subr.bf16.mxu0 0
      %3351 = vmatpush1.bf16.msra.mxu0 %v480
      %3352 = vmatprep.subr.bf16.mxu0 0
      %3353 = vmatpush1.bf16.msra.mxu0 %v481
      %3354 = vmatprep.subr.bf16.mxu0 0
      %3355 = vmatpush1.bf16.msra.mxu0 %v482
      %3356 = vmatprep.subr.bf16.mxu0 0
      %3357 = vmatpush1.bf16.msra.mxu0 0
      %3358 = vmatprep.subr.bf16.mxu0 0
      %3359 = vmatpush1.bf16.msra.mxu0 0
      %3360 = vmatprep.subr.bf16.mxu0 0
      %3361 = vmatpush1.bf16.msra.mxu0 0
      %3362 = vmatprep.subr.bf16.mxu0 0
      %3363 = vmatpush1.bf16.msra.mxu0 0
      %3364 = vmatprep.subr.bf16.mxu0 0
      %3365 = vmatpush1.bf16.msra.mxu0 0
      %3366 = vmatprep.subr.bf16.mxu0 0
      %3367 = vmatpush1.bf16.msra.mxu0 0
      %3368 = vmatprep.subr.bf16.mxu0 0
      %3369 = vmatpush1.bf16.msra.mxu0 0
      %3370 = vmatprep.subr.bf16.mxu0 0
      %3371 = vmatpush1.bf16.msra.mxu0 0
      %3372 = vmatprep.subr.bf16.mxu0 0
      %3373 = vmatpush1.bf16.msra.mxu0 0
      %3374 = vmatprep.subr.bf16.mxu0 0
      %3375 = vmatpush1.bf16.msra.mxu0 0
      %3376 = vmatprep.subr.bf16.mxu0 0
      %3377 = vmatpush1.bf16.msra.mxu0 0
      %3378 = vmatprep.subr.bf16.mxu0 0
      %3379 = vmatpush1.bf16.msra.mxu0 0
      %3380 = vmatprep.mubr.bf16.mxu0 0
      %3381 = vmatmul.mubr.bf16.gmra.mrb[0].mxu0 %v3346
      %v3382 = vpop.f32.mrb[0].mxu0
      %v3383 = vadd.f32 %v359, %v3382
      %v3384 = vpop.f32.mrb[0].mxu0
      %v3385 = vpop.f32.mrb[0].mxu0
      %v3386 = vpop.f32.mrb[0].mxu0
      %3387 = vdwg.mxu0
      %v3388 = vmul.f32 %v3383, %v326
      %v3389 = vtanh.pop %v3388
      %v3390 = vmul.f32 %v3389, %v326
      %v3391 = vadd.f32 %v3390, %v327
      %v3392 = vmul.f32 %v3391, %v3256
      %3394 = vrot.lane.b32.xlu0 %v3391, 64
      %v3395 = vpop.permute.xlu0 %3394
      %v3397 = vmul.f32 %v3391, %v3395
      %3399 = vrot.lane.b32.xlu0 %v3397, 32
      %v3400 = vpop.permute.xlu0 %3399
      %v3402 = vadd.f32 %v3392, %v3400
      %v3403 = vtanh.pop %v3402
      %3405 = vrot.lane.b32.xlu0 %v3403, 64
      %v3406 = vpop.permute.xlu0 %3405
      %v3408 = vmul.f32 %v3391, %v3406
      %3409 = vrot.lane.b32.xlu0 %v2970, 32
      %v3410 = vpop.permute.xlu0 %3409
      %3412 = vrot.lane.b32.xlu0 %v3262, 96
      %v3413 = vpop.permute.xlu0 %3412
      %v3415 = vsel %vm387, %v3410, %v3195
      %v3416 = vsel %vm487, %v3415, %v3413
      %v3417 = vsel %vm1001, %v3416, %v3408
      %s3418 = scalar_lea.vmem %s311, 16
      %3419 = vst [vmem:[%s3418] sm:$0xff] %v3417
      %s3420 = scalar_lea.vmem %s280, 80
      %v3421 = vld [vmem:[%s3420] sm:$0xf]
      %v3422 = vunpack.c.l.bf16 %v3421
      %v3423 = vpack.c.bf16 %v2739, %v2739
      %3425 = vrot.lane.b32.xlu0 %v3423, 32
      %v3426 = vpop.permute.xlu0 %3425
      %v3428 = vsel %vm387, %v3426, 0
      %3430 = vmatprep.subr.bf16.mxu0 0
      %3431 = vmatpush1.bf16.msra.mxu0 %v1016
      %3432 = vmatprep.subr.bf16.mxu0 0
      %3433 = vmatpush1.bf16.msra.mxu0 %v1017
      %3434 = vmatprep.subr.bf16.mxu0 0
      %3435 = vmatpush1.bf16.msra.mxu0 0
      %3436 = vmatprep.subr.bf16.mxu0 0
      %3437 = vmatpush1.bf16.msra.mxu0 0
      %3438 = vmatprep.subr.bf16.mxu0 0
      %3439 = vmatpush1.bf16.msra.mxu0 0
      %3440 = vmatprep.subr.bf16.mxu0 0
      %3441 = vmatpush1.bf16.msra.mxu0 0
      %3442 = vmatprep.subr.bf16.mxu0 0
      %3443 = vmatpush1.bf16.msra.mxu0 0
      %3444 = vmatprep.subr.bf16.mxu0 0
      %3445 = vmatpush1.bf16.msra.mxu0 0
      %3446 = vmatprep.subr.bf16.mxu0 0
      %3447 = vmatpush1.bf16.msra.mxu0 0
      %3448 = vmatprep.subr.bf16.mxu0 0
      %3449 = vmatpush1.bf16.msra.mxu0 0
      %3450 = vmatprep.subr.bf16.mxu0 0
      %3451 = vmatpush1.bf16.msra.mxu0 0
      %3452 = vmatprep.subr.bf16.mxu0 0
      %3453 = vmatpush1.bf16.msra.mxu0 0
      %3454 = vmatprep.subr.bf16.mxu0 0
      %3455 = vmatpush1.bf16.msra.mxu0 0
      %3456 = vmatprep.subr.bf16.mxu0 0
      %3457 = vmatpush1.bf16.msra.mxu0 0
      %3458 = vmatprep.subr.bf16.mxu0 0
      %3459 = vmatpush1.bf16.msra.mxu0 0
      %3460 = vmatprep.subr.bf16.mxu0 0
      %3461 = vmatpush1.bf16.msra.mxu0 0
      %3462 = vmatprep.mubr.bf16.mxu0 0
      %3463 = vmatmul.mubr.bf16.gmra.mrb[0].mxu0 %v3428
      %v3464 = vpop.f32.mrb[0].mxu0
      %v3465 = vadd.f32 0.0, %v3464
      %v3466 = vpop.f32.mrb[0].mxu0
      %v3467 = vpop.f32.mrb[0].mxu0
      %v3468 = vpop.f32.mrb[0].mxu0
      %3469 = vdwg.mxu0
      %v3470 = vadd.f32 %v3422, %v3465
      %v3471 = vmul.f32 %v3470, %v326
      %v3472 = vtanh.pop %v3471
      %v3473 = vmul.f32 %v3472, %v326
      %v3474 = vadd.f32 %v3473, %v327
      %v3475 = vmul.f32 %v3474, %v2733
      %3477 = vrot.lane.b32.xlu0 %v3474, 64
      %v3478 = vpop.permute.xlu0 %3477
      %v3480 = vmul.f32 %v3474, %v3478
      %3482 = vrot.lane.b32.xlu0 %v3480, 32
      %v3483 = vpop.permute.xlu0 %3482
      %v3485 = vadd.f32 %v3475, %v3483
      %v3486 = vtanh.pop %v3485
      %3488 = vrot.lane.b32.xlu0 %v3486, 64
      %v3489 = vpop.permute.xlu0 %3488
      %v3491 = vmul.f32 %v3474, %v3489
      %3493 = vrot.lane.b32.xlu0 %v3491, 32
      %v3494 = vpop.permute.xlu0 %3493
      %3497 = vrot.lane.b32.xlu0 %v2813, 64
      %v3498 = vpop.permute.xlu0 %3497
      %v3500 = vsel %vm387, %v3494, %v3498
      %v3501 = vpack.c.bf16 %v3500, %v3500
      %v3503 = vsel %vm487, %v3501, 0
      %3505 = vmatprep.subr.bf16.mxu0 0
      %3506 = vmatpush1.bf16.msra.mxu0 %v1111
      %3507 = vmatprep.subr.bf16.mxu0 0
      %3508 = vmatpush1.bf16.msra.mxu0 %v1112
      %3509 = vmatprep.subr.bf16.mxu0 0
      %3510 = vmatpush1.bf16.msra.mxu0 %v1113
      %3511 = vmatprep.subr.bf16.mxu0 0
      %3512 = vmatpush1.bf16.msra.mxu0 %v1114
      %3513 = vmatprep.subr.bf16.mxu0 0
      %3514 = vmatpush1.bf16.msra.mxu0 0
      %3515 = vmatprep.subr.bf16.mxu0 0
      %3516 = vmatpush1.bf16.msra.mxu0 0
      %3517 = vmatprep.subr.bf16.mxu0 0
      %3518 = vmatpush1.bf16.msra.mxu0 0
      %3519 = vmatprep.subr.bf16.mxu0 0
      %3520 = vmatpush1.bf16.msra.mxu0 0
      %3521 = vmatprep.subr.bf16.mxu0 0
      %3522 = vmatpush1.bf16.msra.mxu0 0
      %3523 = vmatprep.subr.bf16.mxu0 0
      %3524 = vmatpush1.bf16.msra.mxu0 0
      %3525 = vmatprep.subr.bf16.mxu0 0
      %3526 = vmatpush1.bf16.msra.mxu0 0
      %3527 = vmatprep.subr.bf16.mxu0 0
      %3528 = vmatpush1.bf16.msra.mxu0 0
      %3529 = vmatprep.subr.bf16.mxu0 0
      %3530 = vmatpush1.bf16.msra.mxu0 0
      %3531 = vmatprep.subr.bf16.mxu0 0
      %3532 = vmatpush1.bf16.msra.mxu0 0
      %3533 = vmatprep.subr.bf16.mxu0 0
      %3534 = vmatpush1.bf16.msra.mxu0 0
      %3535 = vmatprep.subr.bf16.mxu0 0
      %3536 = vmatpush1.bf16.msra.mxu0 0
      %3537 = vmatprep.mubr.bf16.mxu0 0
      %3538 = vmatmul.mubr.bf16.gmra.mrb[0].mxu0 %v3503
      %v3539 = vpop.f32.mrb[0].mxu0
      %v3540 = vadd.f32 %v367, %v3539
      %v3541 = vpop.f32.mrb[0].mxu0
      %v3542 = vpop.f32.mrb[0].mxu0
      %v3543 = vpop.f32.mrb[0].mxu0
      %3544 = vdwg.mxu0
      %v3545 = vmul.f32 %v3540, %v326
      %v3546 = vtanh.pop %v3545
      %v3547 = vmul.f32 %v3546, %v326
      %v3548 = vadd.f32 %v3547, %v327
      %v3549 = vmul.f32 %v3548, %v2807
      %3551 = vrot.lane.b32.xlu0 %v3548, 64
      %v3552 = vpop.permute.xlu0 %3551
      %v3554 = vmul.f32 %v3548, %v3552
      %3556 = vrot.lane.b32.xlu0 %v3554, 32
      %v3557 = vpop.permute.xlu0 %3556
      %v3559 = vadd.f32 %v3549, %v3557
      %v3560 = vtanh.pop %v3559
      %3562 = vrot.lane.b32.xlu0 %v3560, 64
      %v3563 = vpop.permute.xlu0 %3562
      %v3565 = vmul.f32 %v3548, %v3563
      %s3566 = scalar_lea.vmem %s280, 84
      %v3567 = vld [vmem:[%s3566] sm:$0xf]
      %v3568 = vunpack.c.l.bf16 %v3567
      %v3569 = vpack.c.bf16 %v3491, %v3491
      %3571 = vrot.lane.b32.xlu0 %v3569, 32
      %v3572 = vpop.permute.xlu0 %3571
      %v3574 = vsel %vm387, %v3572, 0
      %3576 = vmatprep.subr.bf16.mxu0 0
      %3577 = vmatpush1.bf16.msra.mxu0 %v1016
      %3578 = vmatprep.subr.bf16.mxu0 0
      %3579 = vmatpush1.bf16.msra.mxu0 %v1017
      %3580 = vmatprep.subr.bf16.mxu0 0
      %3581 = vmatpush1.bf16.msra.mxu0 0
      %3582 = vmatprep.subr.bf16.mxu0 0
      %3583 = vmatpush1.bf16.msra.mxu0 0
      %3584 = vmatprep.subr.bf16.mxu0 0
      %3585 = vmatpush1.bf16.msra.mxu0 0
      %3586 = vmatprep.subr.bf16.mxu0 0
      %3587 = vmatpush1.bf16.msra.mxu0 0
      %3588 = vmatprep.subr.bf16.mxu0 0
      %3589 = vmatpush1.bf16.msra.mxu0 0
      %3590 = vmatprep.subr.bf16.mxu0 0
      %3591 = vmatpush1.bf16.msra.mxu0 0
      %3592 = vmatprep.subr.bf16.mxu0 0
      %3593 = vmatpush1.bf16.msra.mxu0 0
      %3594 = vmatprep.subr.bf16.mxu0 0
      %3595 = vmatpush1.bf16.msra.mxu0 0
      %3596 = vmatprep.subr.bf16.mxu0 0
      %3597 = vmatpush1.bf16.msra.mxu0 0
      %3598 = vmatprep.subr.bf16.mxu0 0
      %3599 = vmatpush1.bf16.msra.mxu0 0
      %3600 = vmatprep.subr.bf16.mxu0 0
      %3601 = vmatpush1.bf16.msra.mxu0 0
      %3602 = vmatprep.subr.bf16.mxu0 0
      %3603 = vmatpush1.bf16.msra.mxu0 0
      %3604 = vmatprep.subr.bf16.mxu0 0
      %3605 = vmatpush1.bf16.msra.mxu0 0
      %3606 = vmatprep.subr.bf16.mxu0 0
      %3607 = vmatpush1.bf16.msra.mxu0 0
      %3608 = vmatprep.mubr.bf16.mxu0 0
      %3609 = vmatmul.mubr.bf16.gmra.mrb[0].mxu0 %v3574
      %v3610 = vpop.f32.mrb[0].mxu0
      %v3611 = vadd.f32 0.0, %v3610
      %v3612 = vpop.f32.mrb[0].mxu0
      %v3613 = vpop.f32.mrb[0].mxu0
      %v3614 = vpop.f32.mrb[0].mxu0
      %3615 = vdwg.mxu0
      %v3616 = vadd.f32 %v3568, %v3611
      %v3617 = vmul.f32 %v3616, %v326
      %v3618 = vtanh.pop %v3617
      %v3619 = vmul.f32 %v3618, %v326
      %v3620 = vadd.f32 %v3619, %v327
      %v3621 = vmul.f32 %v3620, %v3485
      %3623 = vrot.lane.b32.xlu0 %v3620, 64
      %v3624 = vpop.permute.xlu0 %3623
      %v3626 = vmul.f32 %v3620, %v3624
      %3628 = vrot.lane.b32.xlu0 %v3626, 32
      %v3629 = vpop.permute.xlu0 %3628
      %v3631 = vadd.f32 %v3621, %v3629
      %v3632 = vtanh.pop %v3631
      %3634 = vrot.lane.b32.xlu0 %v3632, 64
      %v3635 = vpop.permute.xlu0 %3634
      %v3637 = vmul.f32 %v3620, %v3635
      %3639 = vrot.lane.b32.xlu0 %v3637, 32
      %v3640 = vpop.permute.xlu0 %3639
      %3643 = vrot.lane.b32.xlu0 %v3565, 64
      %v3644 = vpop.permute.xlu0 %3643
      %v3646 = vsel %vm387, %v3640, %v3644
      %v3647 = vpack.c.bf16 %v3646, %v3646
      %v3649 = vsel %vm487, %v3647, 0
      %3651 = vmatprep.subr.bf16.mxu0 0
      %3652 = vmatpush1.bf16.msra.mxu0 %v1111
      %3653 = vmatprep.subr.bf16.mxu0 0
      %3654 = vmatpush1.bf16.msra.mxu0 %v1112
      %3655 = vmatprep.subr.bf16.mxu0 0
      %3656 = vmatpush1.bf16.msra.mxu0 %v1113
      %3657 = vmatprep.subr.bf16.mxu0 0
      %3658 = vmatpush1.bf16.msra.mxu0 %v1114
      %3659 = vmatprep.subr.bf16.mxu0 0
      %3660 = vmatpush1.bf16.msra.mxu0 0
      %3661 = vmatprep.subr.bf16.mxu0 0
      %3662 = vmatpush1.bf16.msra.mxu0 0
      %3663 = vmatprep.subr.bf16.mxu0 0
      %3664 = vmatpush1.bf16.msra.mxu0 0
      %3665 = vmatprep.subr.bf16.mxu0 0
      %3666 = vmatpush1.bf16.msra.mxu0 0
      %3667 = vmatprep.subr.bf16.mxu0 0
      %3668 = vmatpush1.bf16.msra.mxu0 0
      %3669 = vmatprep.subr.bf16.mxu0 0
      %3670 = vmatpush1.bf16.msra.mxu0 0
      %3671 = vmatprep.subr.bf16.mxu0 0
      %3672 = vmatpush1.bf16.msra.mxu0 0
      %3673 = vmatprep.subr.bf16.mxu0 0
      %3674 = vmatpush1.bf16.msra.mxu0 0
      %3675 = vmatprep.subr.bf16.mxu0 0
      %3676 = vmatpush1.bf16.msra.mxu0 0
      %3677 = vmatprep.subr.bf16.mxu0 0
      %3678 = vmatpush1.bf16.msra.mxu0 0
      %3679 = vmatprep.subr.bf16.mxu0 0
      %3680 = vmatpush1.bf16.msra.mxu0 0
      %3681 = vmatprep.subr.bf16.mxu0 0
      %3682 = vmatpush1.bf16.msra.mxu0 0
      %3683 = vmatprep.mubr.bf16.mxu0 0
      %3684 = vmatmul.mubr.bf16.gmra.mrb[0].mxu0 %v3649
      %v3685 = vpop.f32.mrb[0].mxu0
      %v3686 = vadd.f32 %v367, %v3685
      %v3687 = vpop.f32.mrb[0].mxu0
      %v3688 = vpop.f32.mrb[0].mxu0
      %v3689 = vpop.f32.mrb[0].mxu0
      %3690 = vdwg.mxu0
      %v3691 = vmul.f32 %v3686, %v326
      %v3692 = vtanh.pop %v3691
      %v3693 = vmul.f32 %v3692, %v326
      %v3694 = vadd.f32 %v3693, %v327
      %v3695 = vmul.f32 %v3694, %v3559
      %3697 = vrot.lane.b32.xlu0 %v3694, 64
      %v3698 = vpop.permute.xlu0 %3697
      %v3700 = vmul.f32 %v3694, %v3698
      %3702 = vrot.lane.b32.xlu0 %v3700, 32
      %v3703 = vpop.permute.xlu0 %3702
      %v3705 = vadd.f32 %v3695, %v3703
      %v3706 = vtanh.pop %v3705
      %3708 = vrot.lane.b32.xlu0 %v3706, 64
      %v3709 = vpop.permute.xlu0 %3708
      %v3711 = vmul.f32 %v3694, %v3709
      %s3712 = scalar_lea.vmem %s280, 88
      %v3713 = vld [vmem:[%s3712] sm:$0xf]
      %v3714 = vunpack.c.l.bf16 %v3713
      %v3715 = vpack.c.bf16 %v3637, %v3637
      %3717 = vrot.lane.b32.xlu0 %v3715, 32
      %v3718 = vpop.permute.xlu0 %3717
      %v3720 = vsel %vm387, %v3718, 0
      %3722 = vmatprep.subr.bf16.mxu0 0
      %3723 = vmatpush1.bf16.msra.mxu0 %v1016
      %3724 = vmatprep.subr.bf16.mxu0 0
      %3725 = vmatpush1.bf16.msra.mxu0 %v1017
      %3726 = vmatprep.subr.bf16.mxu0 0
      %3727 = vmatpush1.bf16.msra.mxu0 0
      %3728 = vmatprep.subr.bf16.mxu0 0
      %3729 = vmatpush1.bf16.msra.mxu0 0
      %3730 = vmatprep.subr.bf16.mxu0 0
      %3731 = vmatpush1.bf16.msra.mxu0 0
      %3732 = vmatprep.subr.bf16.mxu0 0
      %3733 = vmatpush1.bf16.msra.mxu0 0
      %3734 = vmatprep.subr.bf16.mxu0 0
      %3735 = vmatpush1.bf16.msra.mxu0 0
      %3736 = vmatprep.subr.bf16.mxu0 0
      %3737 = vmatpush1.bf16.msra.mxu0 0
      %3738 = vmatprep.subr.bf16.mxu0 0
      %3739 = vmatpush1.bf16.msra.mxu0 0
      %3740 = vmatprep.subr.bf16.mxu0 0
      %3741 = vmatpush1.bf16.msra.mxu0 0
      %3742 = vmatprep.subr.bf16.mxu0 0
      %3743 = vmatpush1.bf16.msra.mxu0 0
      %3744 = vmatprep.subr.bf16.mxu0 0
      %3745 = vmatpush1.bf16.msra.mxu0 0
      %3746 = vmatprep.subr.bf16.mxu0 0
      %3747 = vmatpush1.bf16.msra.mxu0 0
      %3748 = vmatprep.subr.bf16.mxu0 0
      %3749 = vmatpush1.bf16.msra.mxu0 0
      %3750 = vmatprep.subr.bf16.mxu0 0
      %3751 = vmatpush1.bf16.msra.mxu0 0
      %3752 = vmatprep.subr.bf16.mxu0 0
      %3753 = vmatpush1.bf16.msra.mxu0 0
      %3754 = vmatprep.mubr.bf16.mxu0 0
      %3755 = vmatmul.mubr.bf16.gmra.mrb[0].mxu0 %v3720
      %v3756 = vpop.f32.mrb[0].mxu0
      %v3757 = vadd.f32 0.0, %v3756
      %v3758 = vpop.f32.mrb[0].mxu0
      %v3759 = vpop.f32.mrb[0].mxu0
      %v3760 = vpop.f32.mrb[0].mxu0
      %3761 = vdwg.mxu0
      %v3762 = vadd.f32 %v3714, %v3757
      %v3763 = vmul.f32 %v3762, %v326
      %v3764 = vtanh.pop %v3763
      %v3765 = vmul.f32 %v3764, %v326
      %v3766 = vadd.f32 %v3765, %v327
      %v3767 = vmul.f32 %v3766, %v3631
      %3769 = vrot.lane.b32.xlu0 %v3766, 64
      %v3770 = vpop.permute.xlu0 %3769
      %v3772 = vmul.f32 %v3766, %v3770
      %3774 = vrot.lane.b32.xlu0 %v3772, 32
      %v3775 = vpop.permute.xlu0 %3774
      %v3777 = vadd.f32 %v3767, %v3775
      %v3778 = vtanh.pop %v3777
      %3780 = vrot.lane.b32.xlu0 %v3778, 64
      %v3781 = vpop.permute.xlu0 %3780
      %v3783 = vmul.f32 %v3766, %v3781
      %3785 = vrot.lane.b32.xlu0 %v3783, 32
      %v3786 = vpop.permute.xlu0 %3785
      %3789 = vrot.lane.b32.xlu0 %v3711, 64
      %v3790 = vpop.permute.xlu0 %3789
      %v3792 = vsel %vm387, %v3786, %v3790
      %v3793 = vpack.c.bf16 %v3792, %v3792
      %v3795 = vsel %vm487, %v3793, 0
      %3797 = vmatprep.subr.bf16.mxu0 0
      %3798 = vmatpush1.bf16.msra.mxu0 %v1111
      %3799 = vmatprep.subr.bf16.mxu0 0
      %3800 = vmatpush1.bf16.msra.mxu0 %v1112
      %3801 = vmatprep.subr.bf16.mxu0 0
      %3802 = vmatpush1.bf16.msra.mxu0 %v1113
      %3803 = vmatprep.subr.bf16.mxu0 0
      %3804 = vmatpush1.bf16.msra.mxu0 %v1114
      %3805 = vmatprep.subr.bf16.mxu0 0
      %3806 = vmatpush1.bf16.msra.mxu0 0
      %3807 = vmatprep.subr.bf16.mxu0 0
      %3808 = vmatpush1.bf16.msra.mxu0 0
      %3809 = vmatprep.subr.bf16.mxu0 0
      %3810 = vmatpush1.bf16.msra.mxu0 0
      %3811 = vmatprep.subr.bf16.mxu0 0
      %3812 = vmatpush1.bf16.msra.mxu0 0
      %3813 = vmatprep.subr.bf16.mxu0 0
      %3814 = vmatpush1.bf16.msra.mxu0 0
      %3815 = vmatprep.subr.bf16.mxu0 0
      %3816 = vmatpush1.bf16.msra.mxu0 0
      %3817 = vmatprep.subr.bf16.mxu0 0
      %3818 = vmatpush1.bf16.msra.mxu0 0
      %3819 = vmatprep.subr.bf16.mxu0 0
      %3820 = vmatpush1.bf16.msra.mxu0 0
      %3821 = vmatprep.subr.bf16.mxu0 0
      %3822 = vmatpush1.bf16.msra.mxu0 0
      %3823 = vmatprep.subr.bf16.mxu0 0
      %3824 = vmatpush1.bf16.msra.mxu0 0
      %3825 = vmatprep.subr.bf16.mxu0 0
      %3826 = vmatpush1.bf16.msra.mxu0 0
      %3827 = vmatprep.subr.bf16.mxu0 0
      %3828 = vmatpush1.bf16.msra.mxu0 0
      %3829 = vmatprep.mubr.bf16.mxu0 0
      %3830 = vmatmul.mubr.bf16.gmra.mrb[0].mxu0 %v3795
      %v3831 = vpop.f32.mrb[0].mxu0
      %v3832 = vadd.f32 %v367, %v3831
      %v3833 = vpop.f32.mrb[0].mxu0
      %v3834 = vpop.f32.mrb[0].mxu0
      %v3835 = vpop.f32.mrb[0].mxu0
      %3836 = vdwg.mxu0
      %v3837 = vmul.f32 %v3832, %v326
      %v3838 = vtanh.pop %v3837
      %v3839 = vmul.f32 %v3838, %v326
      %v3840 = vadd.f32 %v3839, %v327
      %v3841 = vmul.f32 %v3840, %v3705
      %3843 = vrot.lane.b32.xlu0 %v3840, 64
      %v3844 = vpop.permute.xlu0 %3843
      %v3846 = vmul.f32 %v3840, %v3844
      %3848 = vrot.lane.b32.xlu0 %v3846, 32
      %v3849 = vpop.permute.xlu0 %3848
      %v3851 = vadd.f32 %v3841, %v3849
      %v3852 = vtanh.pop %v3851
      %3854 = vrot.lane.b32.xlu0 %v3852, 64
      %v3855 = vpop.permute.xlu0 %3854
      %v3857 = vmul.f32 %v3840, %v3855
      %s3858 = scalar_lea.vmem %s280, 92
      %v3859 = vld [vmem:[%s3858] sm:$0xf]
      %v3860 = vunpack.c.l.bf16 %v3859
      %v3861 = vpack.c.bf16 %v3783, %v3783
      %3863 = vrot.lane.b32.xlu0 %v3861, 32
      %v3864 = vpop.permute.xlu0 %3863
      %v3866 = vsel %vm387, %v3864, 0
      %3868 = vmatprep.subr.bf16.mxu0 0
      %3869 = vmatpush1.bf16.msra.mxu0 %v1016
      %3870 = vmatprep.subr.bf16.mxu0 0
      %3871 = vmatpush1.bf16.msra.mxu0 %v1017
      %3872 = vmatprep.subr.bf16.mxu0 0
      %3873 = vmatpush1.bf16.msra.mxu0 0
      %3874 = vmatprep.subr.bf16.mxu0 0
      %3875 = vmatpush1.bf16.msra.mxu0 0
      %3876 = vmatprep.subr.bf16.mxu0 0
      %3877 = vmatpush1.bf16.msra.mxu0 0
      %3878 = vmatprep.subr.bf16.mxu0 0
      %3879 = vmatpush1.bf16.msra.mxu0 0
      %3880 = vmatprep.subr.bf16.mxu0 0
      %3881 = vmatpush1.bf16.msra.mxu0 0
      %3882 = vmatprep.subr.bf16.mxu0 0
      %3883 = vmatpush1.bf16.msra.mxu0 0
      %3884 = vmatprep.subr.bf16.mxu0 0
      %3885 = vmatpush1.bf16.msra.mxu0 0
      %3886 = vmatprep.subr.bf16.mxu0 0
      %3887 = vmatpush1.bf16.msra.mxu0 0
      %3888 = vmatprep.subr.bf16.mxu0 0
      %3889 = vmatpush1.bf16.msra.mxu0 0
      %3890 = vmatprep.subr.bf16.mxu0 0
      %3891 = vmatpush1.bf16.msra.mxu0 0
      %3892 = vmatprep.subr.bf16.mxu0 0
      %3893 = vmatpush1.bf16.msra.mxu0 0
      %3894 = vmatprep.subr.bf16.mxu0 0
      %3895 = vmatpush1.bf16.msra.mxu0 0
      %3896 = vmatprep.subr.bf16.mxu0 0
      %3897 = vmatpush1.bf16.msra.mxu0 0
      %3898 = vmatprep.subr.bf16.mxu0 0
      %3899 = vmatpush1.bf16.msra.mxu0 0
      %3900 = vmatprep.mubr.bf16.mxu0 0
      %3901 = vmatmul.mubr.bf16.gmra.mrb[0].mxu0 %v3866
      %v3902 = vpop.f32.mrb[0].mxu0
      %v3903 = vadd.f32 0.0, %v3902
      %v3904 = vpop.f32.mrb[0].mxu0
      %v3905 = vpop.f32.mrb[0].mxu0
      %v3906 = vpop.f32.mrb[0].mxu0
      %3907 = vdwg.mxu0
      %v3908 = vadd.f32 %v3860, %v3903
      %v3909 = vmul.f32 %v3908, %v326
      %v3910 = vtanh.pop %v3909
      %v3911 = vmul.f32 %v3910, %v326
      %v3912 = vadd.f32 %v3911, %v327
      %v3913 = vmul.f32 %v3912, %v3777
      %3915 = vrot.lane.b32.xlu0 %v3912, 64
      %v3916 = vpop.permute.xlu0 %3915
      %v3918 = vmul.f32 %v3912, %v3916
      %3920 = vrot.lane.b32.xlu0 %v3918, 32
      %v3921 = vpop.permute.xlu0 %3920
      %v3923 = vadd.f32 %v3913, %v3921
      %v3924 = vtanh.pop %v3923
      %3926 = vrot.lane.b32.xlu0 %v3924, 64
      %v3927 = vpop.permute.xlu0 %3926
      %v3929 = vmul.f32 %v3912, %v3927
      %3931 = vrot.lane.b32.xlu0 %v3929, 32
      %v3932 = vpop.permute.xlu0 %3931
      %3935 = vrot.lane.b32.xlu0 %v3857, 64
      %v3936 = vpop.permute.xlu0 %3935
      %v3938 = vsel %vm387, %v3932, %v3936
      %v3939 = vpack.c.bf16 %v3938, %v3938
      %v3941 = vsel %vm487, %v3939, 0
      %3943 = vmatprep.subr.bf16.mxu0 0
      %3944 = vmatpush1.bf16.msra.mxu0 %v1111
      %3945 = vmatprep.subr.bf16.mxu0 0
      %3946 = vmatpush1.bf16.msra.mxu0 %v1112
      %3947 = vmatprep.subr.bf16.mxu0 0
      %3948 = vmatpush1.bf16.msra.mxu0 %v1113
      %3949 = vmatprep.subr.bf16.mxu0 0
      %3950 = vmatpush1.bf16.msra.mxu0 %v1114
      %3951 = vmatprep.subr.bf16.mxu0 0
      %3952 = vmatpush1.bf16.msra.mxu0 0
      %3953 = vmatprep.subr.bf16.mxu0 0
      %3954 = vmatpush1.bf16.msra.mxu0 0
      %3955 = vmatprep.subr.bf16.mxu0 0
      %3956 = vmatpush1.bf16.msra.mxu0 0
      %3957 = vmatprep.subr.bf16.mxu0 0
      %3958 = vmatpush1.bf16.msra.mxu0 0
      %3959 = vmatprep.subr.bf16.mxu0 0
      %3960 = vmatpush1.bf16.msra.mxu0 0
      %3961 = vmatprep.subr.bf16.mxu0 0
      %3962 = vmatpush1.bf16.msra.mxu0 0
      %3963 = vmatprep.subr.bf16.mxu0 0
      %3964 = vmatpush1.bf16.msra.mxu0 0
      %3965 = vmatprep.subr.bf16.mxu0 0
      %3966 = vmatpush1.bf16.msra.mxu0 0
      %3967 = vmatprep.subr.bf16.mxu0 0
      %3968 = vmatpush1.bf16.msra.mxu0 0
      %3969 = vmatprep.subr.bf16.mxu0 0
      %3970 = vmatpush1.bf16.msra.mxu0 0
      %3971 = vmatprep.subr.bf16.mxu0 0
      %3972 = vmatpush1.bf16.msra.mxu0 0
      %3973 = vmatprep.subr.bf16.mxu0 0
      %3974 = vmatpush1.bf16.msra.mxu0 0
      %3975 = vmatprep.mubr.bf16.mxu0 0
      %3976 = vmatmul.mubr.bf16.gmra.mrb[0].mxu0 %v3941
      %v3977 = vpop.f32.mrb[0].mxu0
      %v3978 = vadd.f32 %v367, %v3977
      %v3979 = vpop.f32.mrb[0].mxu0
      %v3980 = vpop.f32.mrb[0].mxu0
      %v3981 = vpop.f32.mrb[0].mxu0
      %3982 = vdwg.mxu0
      %v3983 = vmul.f32 %v3978, %v326
      %v3984 = vtanh.pop %v3983
      %v3985 = vmul.f32 %v3984, %v326
      %v3986 = vadd.f32 %v3985, %v327
      %v3987 = vmul.f32 %v3986, %v3851
      %3989 = vrot.lane.b32.xlu0 %v3986, 64
      %v3990 = vpop.permute.xlu0 %3989
      %v3992 = vmul.f32 %v3986, %v3990
      %3994 = vrot.lane.b32.xlu0 %v3992, 32
      %v3995 = vpop.permute.xlu0 %3994
      %v3997 = vadd.f32 %v3987, %v3995
      %v3998 = vtanh.pop %v3997
      %4000 = vrot.lane.b32.xlu0 %v3998, 64
      %v4001 = vpop.permute.xlu0 %4000
      %v4003 = vmul.f32 %v3986, %v4001
      %4004 = vrot.lane.b32.xlu0 %v3565, 32
      %v4005 = vpop.permute.xlu0 %4004
      %4007 = vrot.lane.b32.xlu0 %v3857, 96
      %v4008 = vpop.permute.xlu0 %4007
      %v4010 = vsel %vm387, %v4005, %v3790
      %v4011 = vsel %vm487, %v4010, %v4008
      %v4012 = vsel %vm1001, %v4011, %v4003
      %s4013 = scalar_lea.vmem %s311, 40
      %4014 = vst [vmem:[%s4013] sm:$0xff] %v4012
      %4016 = vrot.lane.b32.xlu0 %v3408, 96
      %v4017 = vpop.permute.xlu0 %4016
      %4020 = vrot.lane.b32.xlu0 %v3402, 64
      %v4021 = vpop.permute.xlu0 %4020
      %v4023 = vsel %vm387, %v3337, %v3328
      %v4024 = vsel %vm487, %v4023, %v4017
      %v4025 = vsel %vm1001, %v4024, %v4021
      %4026 = vst [vmem:[#allocation2] sm:$0xff] %v4025
      %4028 = vrot.lane.b32.xlu0 %v4003, 96
      %v4029 = vpop.permute.xlu0 %4028
      %4032 = vrot.lane.b32.xlu0 %v3997, 64
      %v4033 = vpop.permute.xlu0 %4032
      %v4035 = vsel %vm387, %v3932, %v3923
      %v4036 = vsel %vm487, %v4035, %v4029
      %v4037 = vsel %vm1001, %v4036, %v4033
      %4038 = vst [vmem:[%s370] sm:$0xff] %v4037
      %s4039 = smul.u32 2, %s19
      %s4040 = smul.u32 3, %s20
      %p4041 = scmp.lt.s32.totalorder %s4039, 3
      %s4042 = scalar_select %p4041, %s4039, 3
      %p4043 = scmp.lt.s32.totalorder %s4040, 2
      %s4044 = scalar_select %p4043, %s4040, 2
      %s4045 = smul.addr %s4042, 3
      %s4046 = sadd.s32 %s4044, %s4045
      %s4047 = smul.addr %s4046, 8
      %s4048 = scalar_lea.vmem %s4, %s4047
      // Predicated region
      $region41: #{model_forward.3} parent=35 // pred_check
        %p4049 = pneg %p153
      $region42: #{model_forward.3} parent=35 // pred_check_branch
        %4051 = sbr.rel (%p4049) target = $region44
      $region43: #{model_forward.3} parent=35 // pred_region
        %s4052 = smul.u32 2, %s19
        %s4053 = smul.u32 3, %s20
      $region44: #{model_forward.3} parent=35 // pred_fallthru
        _
    $region36: #{model_forward.3} parent=5 // pred_fallthru
      _
    %p4054 = scmp.le.s32.totalorder 2, %s10
    // Predicated region
    $region45: #{model_forward.3} parent=5 // pred_check
      %p4055 = pneg %p4054
    $region46: #{model_forward.3} parent=5 // pred_check_branch
      %4057 = sbr.rel (%p4055) target = $region48
    $region47: #{model_forward.3} parent=5 // pred_region
      %s4058 = ssub.s32 %s10, 2
      // Predicated region
      $region49: #{model_forward.3} parent=47 // pred_check
        %p4059 = pneg %p159
      $region50: #{model_forward.3} parent=47 // pred_check_branch
        %4061 = sbr.rel (%p4059) target = $region52
      $region51: #{model_forward.3} parent=47 // pred_region
        %s4062 = smul.u32 2, %s21
        %s4063 = smul.u32 3, %s22
        %p4064 = scmp.lt.s32.totalorder %s4062, 3
        %s4065 = scalar_select %p4064, %s4062, 3
        %p4066 = scmp.lt.s32.totalorder %s4063, 2
        %s4067 = scalar_select %p4066, %s4063, 2
        %s4068 = smul.addr %s4065, 3
        %s4069 = sadd.s32 %s4067, %s4068
        %s4070 = smul.addr %s4069, 8
        %s4071 = scalar_lea.vmem %s4, %s4070
      $region52: #{model_forward.3} parent=47 // pred_fallthru
        _
    $region48: #{model_forward.3} parent=5 // pred_fallthru
      _
  $region6: #{model_forward.3} parent=0 // loop_footer
    %s14 = sadd.s32 1, %s10
  $region7: #{model_forward.3} parent=0 // loop_footer_branch
    %9 = sbr.rel target = $region3
  $region8: #{model_forward.3} parent=0 // loop_exit
    _

</llo_original>
